<compile_context>
chip_gen: v6e
topology: v6e:2x2x1
jax: 0.10.0
libtpu: 0.0.40
codegen_flags: <defaults>
</compile_context>

<pallas_src>
import jax
import jax.numpy as jnp
import numpy as np
from jax.experimental import pallas as pl
from jax.experimental.pallas import tpu as pltpu


PH_BINS = 600        # logical BettiCurve resolution (diagram_vector_size)
PH_PAD_BINS = 640    # padded to a multiple of 128 lanes; extra bins zeroed
HID_PAD = 128        # hidden channels zero-padded to a full lane width
CLS_PAD = 128        # classifier outputs zero-padded to a full lane width
NUM_ROUNDS = 3


# ----------------------------------------------------------------------------
# In-kernel round body (pure function of VMEM-resident values)
# ----------------------------------------------------------------------------

def _round_body(x, a_hat, img_col, thr_row, p_real,
                gcn_w, gcn_b, src_oh, dst_oh, psel,
                w_dv, w_x, upd_b, score_w, score_b):
    """GCN+ReLU -> PH proxy -> feature update+ReLU -> edge score -> softmax
    -> fixed-pair merge.  Returns the (n/2, HID_PAD) coarsened node features."""
    f32 = jnp.float32

    # --- GCNConv + ReLU: relu(A_hat @ (x @ W) + b) ---
    xw = jnp.dot(x, gcn_w, preferred_element_type=f32)
    x1 = jnp.maximum(jnp.dot(a_hat, xw, preferred_element_type=f32) + gcn_b, 0.0)

    # --- PH proxy (sublevel-set pixel-count Betti curve) + W_dv projection ---
    # TODO(synk): giotto-tda CubicalPersistence + BettiCurve has no Pallas
    # equivalent; a deterministic sublevel-set pixel-counting curve is used.
    ppad = img_col.shape[0]
    mask = (img_col <= thr_row).astype(f32)                      # (Ppad, Kpad)
    valid = (jax.lax.broadcasted_iota(jnp.int32, (1, ppad), 1)
             < p_real).astype(f32)                               # (1, Ppad)
    dv = jnp.dot(valid, mask, preferred_element_type=f32)        # (1, Kpad) MXU
    kmask = (jax.lax.broadcasted_iota(jnp.int32, dv.shape, 1)
             < PH_BINS).astype(f32)
    dv = dv * kmask                                              # zero pad bins
    dvp = jnp.dot(dv, w_dv, preferred_element_type=f32)          # (1, HID_PAD)

    # --- FeatureUpdateLayer: relu(x1 @ W_x + dv @ W_dv + b) ---
    x2 = jnp.maximum(
        jnp.dot(x1, w_x, preferred_element_type=f32) + dvp + upd_b, 0.0)

    # --- EdgePooling raw scores: x2[src] @ Ws_src + x2[dst] @ Ws_dst + bias ---
    s_nodes = jnp.dot(x2, score_w, preferred_element_type=f32) + score_b  # (n,2)
    raw = (jnp.dot(src_oh, s_nodes[:, 0:1], preferred_element_type=f32)
           + jnp.dot(dst_oh, s_nodes[:, 1:2], preferred_element_type=f32))  # (E,1)

    # --- softmax over edges grouped by destination node, then +0.5 ---
    neg = jnp.float32(-1e30)
    masked = jnp.where(dst_oh > 0.0, raw, neg)                   # (E, n)
    m_e = jnp.sum(dst_oh * jnp.max(masked, axis=0, keepdims=True),
                  axis=1, keepdims=True)                         # (E, 1)
    e = jnp.exp(raw - m_e)
    z_e = jnp.sum(dst_oh * jnp.sum(dst_oh * e, axis=0, keepdims=True),
                  axis=1, keepdims=True)                         # (E, 1)
    score = e * pl.reciprocal(jnp.maximum(z_e, 1e-12), approx=True) + 0.5

    # --- merge fixed (2k, 2k+1) node pairs weighted by connecting-edge score --
    # TODO(synk): torch_geometric EdgePooling's greedy max-score matching is
    # sequential/data-dependent; fixed (2k, 2k+1) pairs are merged instead.
    cnt = jnp.sum(psel, axis=1, keepdims=True)                   # (Np, 1)
    s_sum = jnp.dot(psel, score, preferred_element_type=f32)     # (Np, 1)
    s_pair = jnp.where(cnt > 0.0, s_sum / jnp.maximum(cnt, 1.0), 0.5)
    n = x2.shape[0]
    npair = n // 2
    # Tiny in-kernel selector (no HBM constant, no strided relayout):
    rows = jax.lax.broadcasted_iota(jnp.int32, (npair, n), 0)
    cols = jax.lax.broadcasted_iota(jnp.int32, (npair, n), 1)
    merge = ((cols == 2 * rows).astype(f32)
             + (cols == 2 * rows + 1).astype(f32))               # (Np, n)
    pair_sum = jnp.dot(merge, x2, preferred_element_type=f32)    # (Np, HID_PAD)
    return pair_sum * s_pair


# ----------------------------------------------------------------------------
# Plain-JAX / numpy glue
# ----------------------------------------------------------------------------

def avg_pool2d_2x2(x):
    # F.avg_pool2d(kernel_size=2): floor division of spatial dims.
    b, c, h, w = x.shape
    hc, wc = (h // 2) * 2, (w // 2) * 2
    xc = x[:, :, :hc, :wc].reshape(b, c, hc // 2, 2, wc // 2, 2)
    return xc.mean(axis=(3, 5))


def _build_graph_structs(edge_index, batch, num_graphs, nodes_per_graph):
    """Per-round, per-graph structure constants (pure numpy, built once).

    Returns a list over rounds of (a_hat, src_oh, dst_oh, psel), each stacked
    along a leading graph axis.  Coarsening clusters nodes (2k,2k+1)->k and
    coalesces duplicate edges (self-loops kept, a la EdgePooling's coalesce).
    """
    edge_index = np.asarray(edge_index)
    batch = np.asarray(batch)
    src_all = edge_index[0].astype(np.int64)
    dst_all = edge_index[1].astype(np.int64)
    expected = np.repeat(np.arange(num_graphs), nodes_per_graph)
    # TODO(synk): assumes contiguous, equal-size per-graph node numbering.
    assert np.array_equal(batch, expected), "contiguous equal-size graphs required"
    assert nodes_per_graph % (2 ** NUM_ROUNDS) == 0

    per_graph = []
    for g in range(num_graphs):
        lo, hi = g * nodes_per_graph, (g + 1) * nodes_per_graph
        sel = (src_all >= lo) & (src_all < hi)
        assert np.all((dst_all[sel] >= lo) & (dst_all[sel] < hi)), \
            "edges must not cross graphs"
        per_graph.append((src_all[sel] - lo, dst_all[sel] - lo))

    structs = []
    n = nodes_per_graph
    for _ in range(NUM_ROUNDS):
        e_counts = {s.shape[0] for s, _ in per_graph}
        assert len(e_counts) == 1, "all graphs need equal edge counts per round"
        a_l, so_l, do_l, ps_l = [], [], [], []
        for s, d in per_graph:
            # Dense GCN normalization D^-1/2 (A + I) D^-1/2.
            # TODO(synk): replace with a CSR / scalar-prefetch row-block
            # aggregation before scaling N (dense O(n^2) per graph).
            a = np.zeros((n, n), np.float32)
            a[d, s] = 1.0
            a = a * (1.0 - np.eye(n, dtype=np.float32)) + np.eye(n, dtype=np.float32)
            deg = a.sum(axis=1)
            dinv = 1.0 / np.sqrt(np.maximum(deg, 1e-12))
            a_l.append((dinv[:, None] * a * dinv[None, :]).astype(np.float32))
            ecnt = s.shape[0]
            so = np.zeros((ecnt, n), np.float32)
            do = np.zeros((ecnt, n), np.float32)
            so[np.arange(ecnt), s] = 1.0
            do[np.arange(ecnt), d] = 1.0
            so_l.append(so)
            do_l.append(do)
            k = np.arange(n // 2)
            ps_l.append(((s[None, :] == 2 * k[:, None]) &
                         (d[None, :] == 2 * k[:, None] + 1)).astype(np.float32))
        structs.append((np.stack(a_l), np.stack(so_l),
                        np.stack(do_l), np.stack(ps_l)))
        new_pg = []
        for s, d in per_graph:
            pairs = sorted(set(zip((s // 2).tolist(), (d // 2).tolist())))
            new_pg.append((np.array([p[0] for p in pairs], np.int64),
                           np.array([p[1] for p in pairs], np.int64)))
        per_graph = new_pg
        n //= 2
    return structs


# ----------------------------------------------------------------------------
# Parameters
# ----------------------------------------------------------------------------

def init_params(key, in_channels, hidden, num_classes,
                dv_size=PH_BINS, dv_pad=PH_PAD_BINS):
    ks = jax.random.split(key, 5)

    def lin(k, fan_in, fan_out):
        w = jax.random.normal(k, (fan_in, fan_out), jnp.float32) / jnp.sqrt(
            jnp.asarray(fan_in, jnp.float32))
        b = jnp.zeros((1, fan_out), jnp.float32)
        return w, b

    def pad2(w, rows, cols):
        return jnp.zeros((rows, cols), jnp.float32).at[
            :w.shape[0], :w.shape[1]].set(w)

    p = {}
    w, b = lin(ks[0], in_channels, hidden)
    p["gcn1_w"] = pad2(w, in_channels, HID_PAD)
    p["gcn1_b"] = pad2(b, 1, HID_PAD)
    w, b = lin(ks[1], hidden, hidden)
    p["gcn2_w"] = pad2(w, HID_PAD, HID_PAD)
    p["gcn2_b"] = pad2(b, 1, HID_PAD)

    # FeatureUpdateLayer: logical (hidden + 600, hidden) split into the x part
    # and the diagram-vector part (zero-padded rows 600..639, cols 32..127).
    w, b = lin(ks[2], hidden + dv_size, hidden)
    p["upd_wx"] = pad2(w[:hidden], HID_PAD, HID_PAD)
    p["upd_wdv"] = pad2(w[hidden:], dv_pad, HID_PAD)
    p["upd_b"] = pad2(b, 1, HID_PAD)

    # EdgePooling score: logical (2*hidden, 1) split into src/dst columns;
    # the scalar bias is folded into the src column's bias.
    w, b = lin(ks[3], 2 * hidden, 1)
    sw = jnp.zeros((HID_PAD, 2), jnp.float32)
    sw = sw.at[:hidden, 0:1].set(w[:hidden])
    sw = sw.at[:hidden, 1:2].set(w[hidden:])
    p["score_w"] = sw
    p["score_b"] = jnp.concatenate([b, jnp.zeros((1, 1), jnp.float32)], axis=1)

    w, b = lin(ks[4], hidden, num_classes)
    p["cls_w"] = pad2(w, HID_PAD, CLS_PAD)
    p["cls_b"] = pad2(b, 1, CLS_PAD)
    return p


# ----------------------------------------------------------------------------
# Forward factory (structure constants baked once; one pallas_call per forward)
# ----------------------------------------------------------------------------

def make_multiscale_gnn_forward(edge_index, batch, num_graphs, nodes_per_graph,
                                num_classes):
    structs_np = _build_graph_structs(edge_index, batch, num_graphs,
                                      nodes_per_graph)
    structs = [tuple(jnp.asarray(a) for a in s) for s in structs_np]

    def forward(params, x, images):
        g_cnt = num_graphs
        f32 = jnp.float32

        # --- per-round PH inputs (images as pixel columns + thresholds) ---
        img_ops, thr_ops, p_reals = [], [], []
        cur = images.astype(f32)
        for r in range(NUM_ROUNDS):
            flat = cur.reshape(g_cnt, -1)
            p = flat.shape[1]
            ppad = ((p + 127) // 128) * 128
            lo = jnp.min(flat, axis=1, keepdims=True)
            hi = jnp.max(flat, axis=1, keepdims=True)
            idx = jnp.arange(PH_PAD_BINS, dtype=f32)[None, :]
            thr = lo + (hi - lo) * idx * (1.0 / float(PH_BINS - 1))
            flat_p = jnp.pad(flat, ((0, 0), (0, ppad - p)))
            img_ops.append(flat_p.reshape(g_cnt, ppad, 1))
            thr_ops.append(thr.reshape(g_cnt, 1, PH_PAD_BINS))
            p_reals.append(p)
            if r + 1 < NUM_ROUNDS:
                cur = avg_pool2d_2x2(cur)

        x0 = x.astype(f32).reshape(g_cnt, nodes_per_graph, -1)

        # --- operands (order must match the kernel signature) ---
        gridded = [x0, img_ops[0], thr_ops[0], img_ops[1], thr_ops[1],
                   img_ops[2], thr_ops[2]]
        shared = [params["gcn1_w"], params["gcn1_b"],
                  params["gcn2_w"], params["gcn2_b"],
                  params["upd_wdv"], params["upd_wx"], params["upd_b"],
                  params["score_w"], params["score_b"],
                  params["cls_w"], params["cls_b"]]
        struct_ops = []
        for a_hat, so, do, ps in structs:
            struct_ops += [a_hat, so, do, ps]
        operands = gridded + shared + struct_ops

        def g_spec(arr):  # one graph per grid step
            nd = arr.ndim
            return pl.BlockSpec((1,) + tuple(arr.shape[1:]),
                                lambda g, _nd=nd: (g,) + (0,) * (_nd - 1))

        def s_spec(arr):  # shared across grid steps
            nd = arr.ndim
            return pl.BlockSpec(tuple(arr.shape),
                                lambda g, _nd=nd: (0,) * _nd)

        in_specs = ([g_spec(a) for a in gridded]
                    + [s_spec(a) for a in shared]
                    + [g_spec(a) for a in struct_ops])

        def kernel(x0_ref, i1_ref, t1_ref, i2_ref, t2_ref, i3_ref, t3_ref,
                   g1w_ref, g1b_ref, g2w_ref, g2b_ref,
                   wdv_ref, wx_ref, ub_ref, ws_ref, wsb_ref, cw_ref, cb_ref,
                   a1_ref, so1_ref, do1_ref, ps1_ref,
                   a2_ref, so2_ref, do2_ref, ps2_ref,
                   a3_ref, so3_ref, do3_ref, ps3_ref,
                   o_ref):
            h = x0_ref[0]                                       # (n0, Cin)
            h = _round_body(h, a1_ref[0], i1_ref[0], t1_ref[0], p_reals[0],
                            g1w_ref[...], g1b_ref[...],
                            so1_ref[0], do1_ref[0], ps1_ref[0],
                            wdv_ref[...], wx_ref[...], ub_ref[...],
                            ws_ref[...], wsb_ref[...])
            h = _round_body(h, a2_ref[0], i2_ref[0], t2_ref[0], p_reals[1],
                            g2w_ref[...], g2b_ref[...],
                            so2_ref[0], do2_ref[0], ps2_ref[0],
                            wdv_ref[...], wx_ref[...], ub_ref[...],
                            ws_ref[...], wsb_ref[...])
            h = _round_body(h, a3_ref[0], i3_ref[0], t3_ref[0], p_reals[2],
                            g2w_ref[...], g2b_ref[...],
                            so3_ref[0], do3_ref[0], ps3_ref[0],
                            wdv_ref[...], wx_ref[...], ub_ref[...],
                            ws_ref[...], wsb_ref[...])
            # global_mean_pool over this graph's remaining nodes + classifier.
            pooled = jnp.mean(h, axis=0, keepdims=True)         # (1, HID_PAD)
            logits = jnp.dot(pooled, cw_ref[...],
                             preferred_element_type=jnp.float32) + cb_ref[...]
            # Dense, full-lane store of the whole (8, 128) output block.
            o_ref[0] = jnp.broadcast_to(logits, o_ref.shape[1:])

        out = pl.pallas_call(
            kernel,
            out_shape=jax.ShapeDtypeStruct((g_cnt, 8, CLS_PAD), f32),
            grid=(g_cnt,),
            in_specs=in_specs,
            out_specs=pl.BlockSpec((1, 8, CLS_PAD), lambda g: (g, 0, 0)),
            compiler_params=pltpu.CompilerParams(
                dimension_semantics=("parallel",),
                vmem_limit_bytes=32 * 1024 * 1024),
        )(*operands)

        return out[:, 0, :num_classes]

    return forward


# ----------------------------------------------------------------------------
# Main
# ----------------------------------------------------------------------------

if __name__ == "__main__":
    key = jax.random.PRNGKey(0)
    kp, kx, kimg = jax.random.split(key, 3)

    in_channels, hidden_channels, num_classes = 4, 32, 10
    num_graphs, nodes_per_graph = 2, 16
    N = num_graphs * nodes_per_graph

    params = init_params(kp, in_channels, hidden_channels, num_classes)

    # Node features, batch assignment, bidirectional chain edges per graph.
    x = jax.random.normal(kx, (N, in_channels), jnp.float32)
    batch = np.repeat(np.arange(num_graphs, dtype=np.int32), nodes_per_graph)
    src_list, dst_list = [], []
    for g in range(num_graphs):
        off = g * nodes_per_graph
        for i in range(nodes_per_graph - 1):
            src_list += [off + i, off + i + 1]
            dst_list += [off + i + 1, off + i]
    edge_index = np.array([src_list, dst_list], dtype=np.int32)

    # Images: the PyTorch code views data.image as (batch_size, 1, 28, 28).
    images = jax.random.uniform(kimg, (num_graphs, 1, 28, 28), jnp.float32)

    forward = make_multiscale_gnn_forward(edge_index, batch, num_graphs,
                                          nodes_per_graph, num_classes)
    fwd = jax.jit(forward)
    out = fwd(params, x, images)
    out = jax.block_until_ready(out)
    assert out.shape == (num_graphs, num_classes)
    print("KERNEL_OK")
</pallas_src>

<mosaic_0001>
module attributes {stable_mosaic.version = 11 : i64} {
  func.func @kernel(%arg0: i32, %arg1: memref<1x16x4xf32, #tpu.memory_space<vmem>>, %arg2: memref<1x896x1xf32, #tpu.memory_space<vmem>>, %arg3: memref<1x1x640xf32, #tpu.memory_space<vmem>>, %arg4: memref<1x256x1xf32, #tpu.memory_space<vmem>>, %arg5: memref<1x1x640xf32, #tpu.memory_space<vmem>>, %arg6: memref<1x128x1xf32, #tpu.memory_space<vmem>>, %arg7: memref<1x1x640xf32, #tpu.memory_space<vmem>>, %arg8: memref<4x128xf32, #tpu.memory_space<vmem>>, %arg9: memref<1x128xf32, #tpu.memory_space<vmem>>, %arg10: memref<128x128xf32, #tpu.memory_space<vmem>>, %arg11: memref<1x128xf32, #tpu.memory_space<vmem>>, %arg12: memref<640x128xf32, #tpu.memory_space<vmem>>, %arg13: memref<128x128xf32, #tpu.memory_space<vmem>>, %arg14: memref<1x128xf32, #tpu.memory_space<vmem>>, %arg15: memref<128x2xf32, #tpu.memory_space<vmem>>, %arg16: memref<1x2xf32, #tpu.memory_space<vmem>>, %arg17: memref<128x128xf32, #tpu.memory_space<vmem>>, %arg18: memref<1x128xf32, #tpu.memory_space<vmem>>, %arg19: memref<1x16x16xf32, #tpu.memory_space<vmem>>, %arg20: memref<1x30x16xf32, #tpu.memory_space<vmem>>, %arg21: memref<1x30x16xf32, #tpu.memory_space<vmem>>, %arg22: memref<1x8x30xf32, #tpu.memory_space<vmem>>, %arg23: memref<1x8x8xf32, #tpu.memory_space<vmem>>, %arg24: memref<1x22x8xf32, #tpu.memory_space<vmem>>, %arg25: memref<1x22x8xf32, #tpu.memory_space<vmem>>, %arg26: memref<1x4x22xf32, #tpu.memory_space<vmem>>, %arg27: memref<1x4x4xf32, #tpu.memory_space<vmem>>, %arg28: memref<1x10x4xf32, #tpu.memory_space<vmem>>, %arg29: memref<1x10x4xf32, #tpu.memory_space<vmem>>, %arg30: memref<1x2x10xf32, #tpu.memory_space<vmem>>, %arg31: memref<1x8x128xf32, #tpu.memory_space<vmem>>) attributes {dimension_semantics = [#tpu.dimension_semantics<parallel>], iteration_bounds = array<i64: 2>, scalar_prefetch = 0 : i64, scratch_operands = 0 : i64, tpu.core_type = #tpu.core_type<tc>, window_params = [{transform_indices = @transform_0, window_bounds = array<i64: 1, 16, 4>}, {transform_indices = @transform_1, window_bounds = array<i64: 1, 896, 1>}, {transform_indices = @transform_2, window_bounds = array<i64: 1, 1, 640>}, {transform_indices = @transform_3, window_bounds = array<i64: 1, 256, 1>}, {transform_indices = @transform_4, window_bounds = array<i64: 1, 1, 640>}, {transform_indices = @transform_5, window_bounds = array<i64: 1, 128, 1>}, {transform_indices = @transform_6, window_bounds = array<i64: 1, 1, 640>}, {pipeline_mode = #tpu.pipeline_mode<synchronous>, transform_indices = @transform_7, window_bounds = array<i64: 4, 128>}, {pipeline_mode = #tpu.pipeline_mode<synchronous>, transform_indices = @transform_8, window_bounds = array<i64: 1, 128>}, {pipeline_mode = #tpu.pipeline_mode<synchronous>, transform_indices = @transform_9, window_bounds = array<i64: 128, 128>}, {pipeline_mode = #tpu.pipeline_mode<synchronous>, transform_indices = @transform_10, window_bounds = array<i64: 1, 128>}, {pipeline_mode = #tpu.pipeline_mode<synchronous>, transform_indices = @transform_11, window_bounds = array<i64: 640, 128>}, {pipeline_mode = #tpu.pipeline_mode<synchronous>, transform_indices = @transform_12, window_bounds = array<i64: 128, 128>}, {pipeline_mode = #tpu.pipeline_mode<synchronous>, transform_indices = @transform_13, window_bounds = array<i64: 1, 128>}, {pipeline_mode = #tpu.pipeline_mode<synchronous>, transform_indices = @transform_14, window_bounds = array<i64: 128, 2>}, {pipeline_mode = #tpu.pipeline_mode<synchronous>, transform_indices = @transform_15, window_bounds = array<i64: 1, 2>}, {pipeline_mode = #tpu.pipeline_mode<synchronous>, transform_indices = @transform_16, window_bounds = array<i64: 128, 128>}, {pipeline_mode = #tpu.pipeline_mode<synchronous>, transform_indices = @transform_17, window_bounds = array<i64: 1, 128>}, {transform_indices = @transform_18, window_bounds = array<i64: 1, 16, 16>}, {transform_indices = @transform_19, window_bounds = array<i64: 1, 30, 16>}, {transform_indices = @transform_20, window_bounds = array<i64: 1, 30, 16>}, {transform_indices = @transform_21, window_bounds = array<i64: 1, 8, 30>}, {transform_indices = @transform_22, window_bounds = array<i64: 1, 8, 8>}, {transform_indices = @transform_23, window_bounds = array<i64: 1, 22, 8>}, {transform_indices = @transform_24, window_bounds = array<i64: 1, 22, 8>}, {transform_indices = @transform_25, window_bounds = array<i64: 1, 4, 22>}, {transform_indices = @transform_26, window_bounds = array<i64: 1, 4, 4>}, {transform_indices = @transform_27, window_bounds = array<i64: 1, 10, 4>}, {transform_indices = @transform_28, window_bounds = array<i64: 1, 10, 4>}, {transform_indices = @transform_29, window_bounds = array<i64: 1, 2, 10>}, {transform_indices = @transform_30, window_bounds = array<i64: 1, 8, 128>}]} {
    %c0 = arith.constant 0 : index
    %c0_0 = arith.constant 0 : index
    %c0_1 = arith.constant 0 : index
    %0 = vector.load %arg1[%c0, %c0_0, %c0_1] : memref<1x16x4xf32, #tpu.memory_space<vmem>>, vector<1x16x4xf32>
    %1 = vector.shape_cast %0 : vector<1x16x4xf32> to vector<16x4xf32>
    %c0_2 = arith.constant 0 : index
    %c0_3 = arith.constant 0 : index
    %c0_4 = arith.constant 0 : index
    %2 = vector.load %arg19[%c0_2, %c0_3, %c0_4] : memref<1x16x16xf32, #tpu.memory_space<vmem>>, vector<1x16x16xf32>
    %3 = vector.shape_cast %2 : vector<1x16x16xf32> to vector<16x16xf32>
    %c0_5 = arith.constant 0 : index
    %c0_6 = arith.constant 0 : index
    %c0_7 = arith.constant 0 : index
    %4 = vector.load %arg2[%c0_5, %c0_6, %c0_7] : memref<1x896x1xf32, #tpu.memory_space<vmem>>, vector<1x896x1xf32>
    %5 = vector.shape_cast %4 : vector<1x896x1xf32> to vector<896x1xf32>
    %c0_8 = arith.constant 0 : index
    %c0_9 = arith.constant 0 : index
    %c0_10 = arith.constant 0 : index
    %6 = vector.load %arg3[%c0_8, %c0_9, %c0_10] : memref<1x1x640xf32, #tpu.memory_space<vmem>>, vector<1x1x640xf32>
    %7 = vector.shape_cast %6 : vector<1x1x640xf32> to vector<1x640xf32>
    %c0_11 = arith.constant 0 : index
    %c0_12 = arith.constant 0 : index
    %8 = vector.load %arg8[%c0_11, %c0_12] : memref<4x128xf32, #tpu.memory_space<vmem>>, vector<4x128xf32>
    %c0_13 = arith.constant 0 : index
    %c0_14 = arith.constant 0 : index
    %9 = vector.load %arg9[%c0_13, %c0_14] : memref<1x128xf32, #tpu.memory_space<vmem>>, vector<1x128xf32>
    %c0_15 = arith.constant 0 : index
    %c0_16 = arith.constant 0 : index
    %c0_17 = arith.constant 0 : index
    %10 = vector.load %arg20[%c0_15, %c0_16, %c0_17] : memref<1x30x16xf32, #tpu.memory_space<vmem>>, vector<1x30x16xf32>
    %11 = vector.shape_cast %10 : vector<1x30x16xf32> to vector<30x16xf32>
    %c0_18 = arith.constant 0 : index
    %c0_19 = arith.constant 0 : index
    %c0_20 = arith.constant 0 : index
    %12 = vector.load %arg21[%c0_18, %c0_19, %c0_20] : memref<1x30x16xf32, #tpu.memory_space<vmem>>, vector<1x30x16xf32>
    %13 = vector.shape_cast %12 : vector<1x30x16xf32> to vector<30x16xf32>
    %c0_21 = arith.constant 0 : index
    %c0_22 = arith.constant 0 : index
    %c0_23 = arith.constant 0 : index
    %14 = vector.load %arg22[%c0_21, %c0_22, %c0_23] : memref<1x8x30xf32, #tpu.memory_space<vmem>>, vector<1x8x30xf32>
    %15 = vector.shape_cast %14 : vector<1x8x30xf32> to vector<8x30xf32>
    %c0_24 = arith.constant 0 : index
    %c0_25 = arith.constant 0 : index
    %16 = vector.load %arg12[%c0_24, %c0_25] : memref<640x128xf32, #tpu.memory_space<vmem>>, vector<640x128xf32>
    %c0_26 = arith.constant 0 : index
    %c0_27 = arith.constant 0 : index
    %17 = vector.load %arg13[%c0_26, %c0_27] : memref<128x128xf32, #tpu.memory_space<vmem>>, vector<128x128xf32>
    %c0_28 = arith.constant 0 : index
    %c0_29 = arith.constant 0 : index
    %18 = vector.load %arg14[%c0_28, %c0_29] : memref<1x128xf32, #tpu.memory_space<vmem>>, vector<1x128xf32>
    %c0_30 = arith.constant 0 : index
    %c0_31 = arith.constant 0 : index
    %19 = vector.load %arg15[%c0_30, %c0_31] : memref<128x2xf32, #tpu.memory_space<vmem>>, vector<128x2xf32>
    %c0_32 = arith.constant 0 : index
    %c0_33 = arith.constant 0 : index
    %20 = vector.load %arg16[%c0_32, %c0_33] : memref<1x2xf32, #tpu.memory_space<vmem>>, vector<1x2xf32>
    %cst = arith.constant dense<0.000000e+00> : vector<16x128xf32>
    %21 = tpu.matmul %1, %8, %cst {dimension_numbers = #tpu.dot_dimension_numbers<[1], [0], [0], [1], [0, 0, 1, 1], [], []>} : vector<16x4xf32>, vector<4x128xf32>, vector<16x128xf32> -> vector<16x128xf32>
    %cst_34 = arith.constant dense<0.000000e+00> : vector<16x128xf32>
    %22 = tpu.matmul %3, %21, %cst_34 {dimension_numbers = #tpu.dot_dimension_numbers<[1], [0], [0], [1], [0, 0, 1, 1], [], []>} : vector<16x16xf32>, vector<16x128xf32>, vector<16x128xf32> -> vector<16x128xf32>
    %23 = vector.broadcast %9 : vector<1x128xf32> to vector<16x128xf32>
    %24 = arith.addf %22, %23 : vector<16x128xf32>
    %cst_35 = arith.constant 0.000000e+00 : f32
    %25 = vector.broadcast %cst_35 : f32 to vector<16x128xf32>
    %26 = arith.maximumf %24, %25 : vector<16x128xf32>
    %27 = vector.broadcast %5 : vector<896x1xf32> to vector<896x640xf32>
    %28 = vector.broadcast %7 : vector<1x640xf32> to vector<896x640xf32>
    %29 = arith.cmpf ole, %27, %28 : vector<896x640xf32>
    %30 = arith.extui %29 : vector<896x640xi1> to vector<896x640xi32>
    %31 = arith.sitofp %30 : vector<896x640xi32> to vector<896x640xf32>
    %32 = tpu.iota {dimensions = array<i32: 1>} : vector<1x896xi32>
    %c784_i32 = arith.constant 784 : i32
    %33 = vector.broadcast %c784_i32 : i32 to vector<1x896xi32>
    %34 = arith.cmpi slt, %32, %33 : vector<1x896xi32>
    %35 = arith.extui %34 : vector<1x896xi1> to vector<1x896xi32>
    %36 = arith.sitofp %35 : vector<1x896xi32> to vector<1x896xf32>
    %cst_36 = arith.constant dense<0.000000e+00> : vector<1x640xf32>
    %37 = tpu.matmul %36, %31, %cst_36 {dimension_numbers = #tpu.dot_dimension_numbers<[1], [0], [0], [1], [0, 0, 1, 1], [], []>} : vector<1x896xf32>, vector<896x640xf32>, vector<1x640xf32> -> vector<1x640xf32>
    %38 = tpu.iota {dimensions = array<i32: 1>} : vector<1x640xi32>
    %c600_i32 = arith.constant 600 : i32
    %39 = vector.broadcast %c600_i32 : i32 to vector<1x640xi32>
    %40 = arith.cmpi slt, %38, %39 : vector<1x640xi32>
    %41 = arith.extui %40 : vector<1x640xi1> to vector<1x640xi32>
    %42 = arith.sitofp %41 : vector<1x640xi32> to vector<1x640xf32>
    %43 = arith.mulf %37, %42 : vector<1x640xf32>
    %cst_37 = arith.constant dense<0.000000e+00> : vector<1x128xf32>
    %44 = tpu.matmul %43, %16, %cst_37 {dimension_numbers = #tpu.dot_dimension_numbers<[1], [0], [0], [1], [0, 0, 1, 1], [], []>} : vector<1x640xf32>, vector<640x128xf32>, vector<1x128xf32> -> vector<1x128xf32>
    %cst_38 = arith.constant dense<0.000000e+00> : vector<16x128xf32>
    %45 = tpu.matmul %26, %17, %cst_38 {dimension_numbers = #tpu.dot_dimension_numbers<[1], [0], [0], [1], [0, 0, 1, 1], [], []>} : vector<16x128xf32>, vector<128x128xf32>, vector<16x128xf32> -> vector<16x128xf32>
    %46 = vector.broadcast %44 : vector<1x128xf32> to vector<16x128xf32>
    %47 = arith.addf %45, %46 : vector<16x128xf32>
    %48 = vector.broadcast %18 : vector<1x128xf32> to vector<16x128xf32>
    %49 = arith.addf %47, %48 : vector<16x128xf32>
    %cst_39 = arith.constant 0.000000e+00 : f32
    %50 = vector.broadcast %cst_39 : f32 to vector<16x128xf32>
    %51 = arith.maximumf %49, %50 : vector<16x128xf32>
    %cst_40 = arith.constant dense<0.000000e+00> : vector<16x2xf32>
    %52 = tpu.matmul %51, %19, %cst_40 {dimension_numbers = #tpu.dot_dimension_numbers<[1], [0], [0], [1], [0, 0, 1, 1], [], []>} : vector<16x128xf32>, vector<128x2xf32>, vector<16x2xf32> -> vector<16x2xf32>
    %53 = vector.broadcast %20 : vector<1x2xf32> to vector<16x2xf32>
    %54 = arith.addf %52, %53 : vector<16x2xf32>
    %55 = vector.extract_strided_slice %54 {offsets = [0, 0], sizes = [16, 1], strides = [1, 1]} : vector<16x2xf32> to vector<16x1xf32>
    %cst_41 = arith.constant dense<0.000000e+00> : vector<30x1xf32>
    %56 = tpu.matmul %11, %55, %cst_41 {dimension_numbers = #tpu.dot_dimension_numbers<[1], [0], [0], [1], [0, 0, 1, 1], [], []>} : vector<30x16xf32>, vector<16x1xf32>, vector<30x1xf32> -> vector<30x1xf32>
    %57 = vector.extract_strided_slice %54 {offsets = [0, 1], sizes = [16, 1], strides = [1, 1]} : vector<16x2xf32> to vector<16x1xf32>
    %cst_42 = arith.constant dense<0.000000e+00> : vector<30x1xf32>
    %58 = tpu.matmul %13, %57, %cst_42 {dimension_numbers = #tpu.dot_dimension_numbers<[1], [0], [0], [1], [0, 0, 1, 1], [], []>} : vector<30x16xf32>, vector<16x1xf32>, vector<30x1xf32> -> vector<30x1xf32>
    %59 = arith.addf %56, %58 : vector<30x1xf32>
    %cst_43 = arith.constant 0.000000e+00 : f32
    %60 = vector.broadcast %cst_43 : f32 to vector<30x16xf32>
    %61 = arith.cmpf ogt, %13, %60 : vector<30x16xf32>
    %cst_44 = arith.constant -1.000000e+30 : f32
    %62 = vector.shape_cast %59 : vector<30x1xf32> to vector<30x1xf32>
    %63 = vector.broadcast %62 : vector<30x1xf32> to vector<30x16xf32>
    %64 = vector.broadcast %cst_44 : f32 to vector<30x16xf32>
    %65 = arith.select %61, %63, %64 : vector<30x16xi1>, vector<30x16xf32>
    %cst_45 = arith.constant dense<0xFF800000> : vector<16xf32>
    %66 = vector.multi_reduction <maximumf>, %65, %cst_45 [0] : vector<30x16xf32> to vector<16xf32>
    %67 = vector.shape_cast %66 : vector<16xf32> to vector<1x16xf32>
    %68 = vector.broadcast %67 : vector<1x16xf32> to vector<30x16xf32>
    %69 = arith.mulf %13, %68 : vector<30x16xf32>
    %cst_46 = arith.constant dense<0.000000e+00> : vector<30xf32>
    %70 = vector.multi_reduction <add>, %69, %cst_46 [1] : vector<30x16xf32> to vector<30xf32>
    %71 = vector.shape_cast %70 : vector<30xf32> to vector<30x1xf32>
    %72 = arith.subf %59, %71 : vector<30x1xf32>
    %73 = math.exp %72 : vector<30x1xf32>
    %74 = vector.broadcast %73 : vector<30x1xf32> to vector<30x16xf32>
    %75 = arith.mulf %13, %74 : vector<30x16xf32>
    %cst_47 = arith.constant dense<0.000000e+00> : vector<16xf32>
    %76 = vector.multi_reduction <add>, %75, %cst_47 [0] : vector<30x16xf32> to vector<16xf32>
    %77 = vector.shape_cast %76 : vector<16xf32> to vector<1x16xf32>
    %78 = vector.broadcast %77 : vector<1x16xf32> to vector<30x16xf32>
    %79 = arith.mulf %13, %78 : vector<30x16xf32>
    %cst_48 = arith.constant dense<0.000000e+00> : vector<30xf32>
    %80 = vector.multi_reduction <add>, %79, %cst_48 [1] : vector<30x16xf32> to vector<30xf32>
    %81 = vector.shape_cast %80 : vector<30xf32> to vector<30x1xf32>
    %cst_49 = arith.constant 9.99999996E-13 : f32
    %82 = vector.broadcast %cst_49 : f32 to vector<30x1xf32>
    %83 = arith.maximumf %81, %82 : vector<30x1xf32>
    %84 = tpu.reciprocal %83 {approx = true} : vector<30x1xf32> -> vector<30x1xf32>
    %85 = arith.mulf %73, %84 : vector<30x1xf32>
    %cst_50 = arith.constant 5.000000e-01 : f32
    %86 = vector.broadcast %cst_50 : f32 to vector<30x1xf32>
    %87 = arith.addf %85, %86 : vector<30x1xf32>
    %cst_51 = arith.constant dense<0.000000e+00> : vector<8xf32>
    %88 = vector.multi_reduction <add>, %15, %cst_51 [1] : vector<8x30xf32> to vector<8xf32>
    %89 = vector.shape_cast %88 : vector<8xf32> to vector<8x1xf32>
    %cst_52 = arith.constant dense<0.000000e+00> : vector<8x1xf32>
    %90 = tpu.matmul %15, %87, %cst_52 {dimension_numbers = #tpu.dot_dimension_numbers<[1], [0], [0], [1], [0, 0, 1, 1], [], []>} : vector<8x30xf32>, vector<30x1xf32>, vector<8x1xf32> -> vector<8x1xf32>
    %cst_53 = arith.constant 0.000000e+00 : f32
    %91 = vector.broadcast %cst_53 : f32 to vector<8x1xf32>
    %92 = arith.cmpf ogt, %89, %91 : vector<8x1xf32>
    %cst_54 = arith.constant 1.000000e+00 : f32
    %93 = vector.broadcast %cst_54 : f32 to vector<8x1xf32>
    %94 = arith.maximumf %89, %93 : vector<8x1xf32>
    %95 = arith.divf %90, %94 : vector<8x1xf32>
    %cst_55 = arith.constant 5.000000e-01 : f32
    %96 = vector.broadcast %cst_55 : f32 to vector<8x1xf32>
    %97 = arith.select %92, %95, %96 : vector<8x1xi1>, vector<8x1xf32>
    %98 = tpu.iota {dimensions = array<i32: 0>} : vector<8x16xi32>
    %99 = tpu.iota {dimensions = array<i32: 1>} : vector<8x16xi32>
    %c2_i32 = arith.constant 2 : i32
    %100 = vector.broadcast %c2_i32 : i32 to vector<8x16xi32>
    %101 = arith.muli %100, %98 : vector<8x16xi32>
    %102 = arith.cmpi eq, %99, %101 : vector<8x16xi32>
    %103 = arith.extui %102 : vector<8x16xi1> to vector<8x16xi32>
    %104 = arith.sitofp %103 : vector<8x16xi32> to vector<8x16xf32>
    %c2_i32_56 = arith.constant 2 : i32
    %105 = vector.broadcast %c2_i32_56 : i32 to vector<8x16xi32>
    %106 = arith.muli %105, %98 : vector<8x16xi32>
    %c1_i32 = arith.constant 1 : i32
    %107 = vector.broadcast %c1_i32 : i32 to vector<8x16xi32>
    %108 = arith.addi %106, %107 : vector<8x16xi32>
    %109 = arith.cmpi eq, %99, %108 : vector<8x16xi32>
    %110 = arith.extui %109 : vector<8x16xi1> to vector<8x16xi32>
    %111 = arith.sitofp %110 : vector<8x16xi32> to vector<8x16xf32>
    %112 = arith.addf %104, %111 : vector<8x16xf32>
    %cst_57 = arith.constant dense<0.000000e+00> : vector<8x128xf32>
    %113 = tpu.matmul %112, %51, %cst_57 {dimension_numbers = #tpu.dot_dimension_numbers<[1], [0], [0], [1], [0, 0, 1, 1], [], []>} : vector<8x16xf32>, vector<16x128xf32>, vector<8x128xf32> -> vector<8x128xf32>
    %114 = vector.broadcast %97 : vector<8x1xf32> to vector<8x128xf32>
    %115 = arith.mulf %113, %114 : vector<8x128xf32>
    %c0_58 = arith.constant 0 : index
    %c0_59 = arith.constant 0 : index
    %c0_60 = arith.constant 0 : index
    %116 = vector.load %arg23[%c0_58, %c0_59, %c0_60] : memref<1x8x8xf32, #tpu.memory_space<vmem>>, vector<1x8x8xf32>
    %117 = vector.shape_cast %116 : vector<1x8x8xf32> to vector<8x8xf32>
    %c0_61 = arith.constant 0 : index
    %c0_62 = arith.constant 0 : index
    %c0_63 = arith.constant 0 : index
    %118 = vector.load %arg4[%c0_61, %c0_62, %c0_63] : memref<1x256x1xf32, #tpu.memory_space<vmem>>, vector<1x256x1xf32>
    %119 = vector.shape_cast %118 : vector<1x256x1xf32> to vector<256x1xf32>
    %c0_64 = arith.constant 0 : index
    %c0_65 = arith.constant 0 : index
    %c0_66 = arith.constant 0 : index
    %120 = vector.load %arg5[%c0_64, %c0_65, %c0_66] : memref<1x1x640xf32, #tpu.memory_space<vmem>>, vector<1x1x640xf32>
    %121 = vector.shape_cast %120 : vector<1x1x640xf32> to vector<1x640xf32>
    %c0_67 = arith.constant 0 : index
    %c0_68 = arith.constant 0 : index
    %122 = vector.load %arg10[%c0_67, %c0_68] : memref<128x128xf32, #tpu.memory_space<vmem>>, vector<128x128xf32>
    %c0_69 = arith.constant 0 : index
    %c0_70 = arith.constant 0 : index
    %123 = vector.load %arg11[%c0_69, %c0_70] : memref<1x128xf32, #tpu.memory_space<vmem>>, vector<1x128xf32>
    %c0_71 = arith.constant 0 : index
    %c0_72 = arith.constant 0 : index
    %c0_73 = arith.constant 0 : index
    %124 = vector.load %arg24[%c0_71, %c0_72, %c0_73] : memref<1x22x8xf32, #tpu.memory_space<vmem>>, vector<1x22x8xf32>
    %125 = vector.shape_cast %124 : vector<1x22x8xf32> to vector<22x8xf32>
    %c0_74 = arith.constant 0 : index
    %c0_75 = arith.constant 0 : index
    %c0_76 = arith.constant 0 : index
    %126 = vector.load %arg25[%c0_74, %c0_75, %c0_76] : memref<1x22x8xf32, #tpu.memory_space<vmem>>, vector<1x22x8xf32>
    %127 = vector.shape_cast %126 : vector<1x22x8xf32> to vector<22x8xf32>
    %c0_77 = arith.constant 0 : index
    %c0_78 = arith.constant 0 : index
    %c0_79 = arith.constant 0 : index
    %128 = vector.load %arg26[%c0_77, %c0_78, %c0_79] : memref<1x4x22xf32, #tpu.memory_space<vmem>>, vector<1x4x22xf32>
    %129 = vector.shape_cast %128 : vector<1x4x22xf32> to vector<4x22xf32>
    %c0_80 = arith.constant 0 : index
    %c0_81 = arith.constant 0 : index
    %130 = vector.load %arg12[%c0_80, %c0_81] : memref<640x128xf32, #tpu.memory_space<vmem>>, vector<640x128xf32>
    %c0_82 = arith.constant 0 : index
    %c0_83 = arith.constant 0 : index
    %131 = vector.load %arg13[%c0_82, %c0_83] : memref<128x128xf32, #tpu.memory_space<vmem>>, vector<128x128xf32>
    %c0_84 = arith.constant 0 : index
    %c0_85 = arith.constant 0 : index
    %132 = vector.load %arg14[%c0_84, %c0_85] : memref<1x128xf32, #tpu.memory_space<vmem>>, vector<1x128xf32>
    %c0_86 = arith.constant 0 : index
    %c0_87 = arith.constant 0 : index
    %133 = vector.load %arg15[%c0_86, %c0_87] : memref<128x2xf32, #tpu.memory_space<vmem>>, vector<128x2xf32>
    %c0_88 = arith.constant 0 : index
    %c0_89 = arith.constant 0 : index
    %134 = vector.load %arg16[%c0_88, %c0_89] : memref<1x2xf32, #tpu.memory_space<vmem>>, vector<1x2xf32>
    %cst_90 = arith.constant dense<0.000000e+00> : vector<8x128xf32>
    %135 = tpu.matmul %115, %122, %cst_90 {dimension_numbers = #tpu.dot_dimension_numbers<[1], [0], [0], [1], [0, 0, 1, 1], [], []>} : vector<8x128xf32>, vector<128x128xf32>, vector<8x128xf32> -> vector<8x128xf32>
    %cst_91 = arith.constant dense<0.000000e+00> : vector<8x128xf32>
    %136 = tpu.matmul %117, %135, %cst_91 {dimension_numbers = #tpu.dot_dimension_numbers<[1], [0], [0], [1], [0, 0, 1, 1], [], []>} : vector<8x8xf32>, vector<8x128xf32>, vector<8x128xf32> -> vector<8x128xf32>
    %137 = vector.broadcast %123 : vector<1x128xf32> to vector<8x128xf32>
    %138 = arith.addf %136, %137 : vector<8x128xf32>
    %cst_92 = arith.constant 0.000000e+00 : f32
    %139 = vector.broadcast %cst_92 : f32 to vector<8x128xf32>
    %140 = arith.maximumf %138, %139 : vector<8x128xf32>
    %141 = vector.broadcast %119 : vector<256x1xf32> to vector<256x640xf32>
    %142 = vector.broadcast %121 : vector<1x640xf32> to vector<256x640xf32>
    %143 = arith.cmpf ole, %141, %142 : vector<256x640xf32>
    %144 = arith.extui %143 : vector<256x640xi1> to vector<256x640xi32>
    %145 = arith.sitofp %144 : vector<256x640xi32> to vector<256x640xf32>
    %146 = tpu.iota {dimensions = array<i32: 1>} : vector<1x256xi32>
    %c196_i32 = arith.constant 196 : i32
    %147 = vector.broadcast %c196_i32 : i32 to vector<1x256xi32>
    %148 = arith.cmpi slt, %146, %147 : vector<1x256xi32>
    %149 = arith.extui %148 : vector<1x256xi1> to vector<1x256xi32>
    %150 = arith.sitofp %149 : vector<1x256xi32> to vector<1x256xf32>
    %cst_93 = arith.constant dense<0.000000e+00> : vector<1x640xf32>
    %151 = tpu.matmul %150, %145, %cst_93 {dimension_numbers = #tpu.dot_dimension_numbers<[1], [0], [0], [1], [0, 0, 1, 1], [], []>} : vector<1x256xf32>, vector<256x640xf32>, vector<1x640xf32> -> vector<1x640xf32>
    %152 = tpu.iota {dimensions = array<i32: 1>} : vector<1x640xi32>
    %c600_i32_94 = arith.constant 600 : i32
    %153 = vector.broadcast %c600_i32_94 : i32 to vector<1x640xi32>
    %154 = arith.cmpi slt, %152, %153 : vector<1x640xi32>
    %155 = arith.extui %154 : vector<1x640xi1> to vector<1x640xi32>
    %156 = arith.sitofp %155 : vector<1x640xi32> to vector<1x640xf32>
    %157 = arith.mulf %151, %156 : vector<1x640xf32>
    %cst_95 = arith.constant dense<0.000000e+00> : vector<1x128xf32>
    %158 = tpu.matmul %157, %130, %cst_95 {dimension_numbers = #tpu.dot_dimension_numbers<[1], [0], [0], [1], [0, 0, 1, 1], [], []>} : vector<1x640xf32>, vector<640x128xf32>, vector<1x128xf32> -> vector<1x128xf32>
    %cst_96 = arith.constant dense<0.000000e+00> : vector<8x128xf32>
    %159 = tpu.matmul %140, %131, %cst_96 {dimension_numbers = #tpu.dot_dimension_numbers<[1], [0], [0], [1], [0, 0, 1, 1], [], []>} : vector<8x128xf32>, vector<128x128xf32>, vector<8x128xf32> -> vector<8x128xf32>
    %160 = vector.broadcast %158 : vector<1x128xf32> to vector<8x128xf32>
    %161 = arith.addf %159, %160 : vector<8x128xf32>
    %162 = vector.broadcast %132 : vector<1x128xf32> to vector<8x128xf32>
    %163 = arith.addf %161, %162 : vector<8x128xf32>
    %cst_97 = arith.constant 0.000000e+00 : f32
    %164 = vector.broadcast %cst_97 : f32 to vector<8x128xf32>
    %165 = arith.maximumf %163, %164 : vector<8x128xf32>
    %cst_98 = arith.constant dense<0.000000e+00> : vector<8x2xf32>
    %166 = tpu.matmul %165, %133, %cst_98 {dimension_numbers = #tpu.dot_dimension_numbers<[1], [0], [0], [1], [0, 0, 1, 1], [], []>} : vector<8x128xf32>, vector<128x2xf32>, vector<8x2xf32> -> vector<8x2xf32>
    %167 = vector.broadcast %134 : vector<1x2xf32> to vector<8x2xf32>
    %168 = arith.addf %166, %167 : vector<8x2xf32>
    %169 = vector.extract_strided_slice %168 {offsets = [0, 0], sizes = [8, 1], strides = [1, 1]} : vector<8x2xf32> to vector<8x1xf32>
    %cst_99 = arith.constant dense<0.000000e+00> : vector<22x1xf32>
    %170 = tpu.matmul %125, %169, %cst_99 {dimension_numbers = #tpu.dot_dimension_numbers<[1], [0], [0], [1], [0, 0, 1, 1], [], []>} : vector<22x8xf32>, vector<8x1xf32>, vector<22x1xf32> -> vector<22x1xf32>
    %171 = vector.extract_strided_slice %168 {offsets = [0, 1], sizes = [8, 1], strides = [1, 1]} : vector<8x2xf32> to vector<8x1xf32>
    %cst_100 = arith.constant dense<0.000000e+00> : vector<22x1xf32>
    %172 = tpu.matmul %127, %171, %cst_100 {dimension_numbers = #tpu.dot_dimension_numbers<[1], [0], [0], [1], [0, 0, 1, 1], [], []>} : vector<22x8xf32>, vector<8x1xf32>, vector<22x1xf32> -> vector<22x1xf32>
    %173 = arith.addf %170, %172 : vector<22x1xf32>
    %cst_101 = arith.constant 0.000000e+00 : f32
    %174 = vector.broadcast %cst_101 : f32 to vector<22x8xf32>
    %175 = arith.cmpf ogt, %127, %174 : vector<22x8xf32>
    %cst_102 = arith.constant -1.000000e+30 : f32
    %176 = vector.shape_cast %173 : vector<22x1xf32> to vector<22x1xf32>
    %177 = vector.broadcast %176 : vector<22x1xf32> to vector<22x8xf32>
    %178 = vector.broadcast %cst_102 : f32 to vector<22x8xf32>
    %179 = arith.select %175, %177, %178 : vector<22x8xi1>, vector<22x8xf32>
    %cst_103 = arith.constant dense<0xFF800000> : vector<8xf32>
    %180 = vector.multi_reduction <maximumf>, %179, %cst_103 [0] : vector<22x8xf32> to vector<8xf32>
    %181 = vector.shape_cast %180 : vector<8xf32> to vector<1x8xf32>
    %182 = vector.broadcast %181 : vector<1x8xf32> to vector<22x8xf32>
    %183 = arith.mulf %127, %182 : vector<22x8xf32>
    %cst_104 = arith.constant dense<0.000000e+00> : vector<22xf32>
    %184 = vector.multi_reduction <add>, %183, %cst_104 [1] : vector<22x8xf32> to vector<22xf32>
    %185 = vector.shape_cast %184 : vector<22xf32> to vector<22x1xf32>
    %186 = arith.subf %173, %185 : vector<22x1xf32>
    %187 = math.exp %186 : vector<22x1xf32>
    %188 = vector.broadcast %187 : vector<22x1xf32> to vector<22x8xf32>
    %189 = arith.mulf %127, %188 : vector<22x8xf32>
    %cst_105 = arith.constant dense<0.000000e+00> : vector<8xf32>
    %190 = vector.multi_reduction <add>, %189, %cst_105 [0] : vector<22x8xf32> to vector<8xf32>
    %191 = vector.shape_cast %190 : vector<8xf32> to vector<1x8xf32>
    %192 = vector.broadcast %191 : vector<1x8xf32> to vector<22x8xf32>
    %193 = arith.mulf %127, %192 : vector<22x8xf32>
    %cst_106 = arith.constant dense<0.000000e+00> : vector<22xf32>
    %194 = vector.multi_reduction <add>, %193, %cst_106 [1] : vector<22x8xf32> to vector<22xf32>
    %195 = vector.shape_cast %194 : vector<22xf32> to vector<22x1xf32>
    %cst_107 = arith.constant 9.99999996E-13 : f32
    %196 = vector.broadcast %cst_107 : f32 to vector<22x1xf32>
    %197 = arith.maximumf %195, %196 : vector<22x1xf32>
    %198 = tpu.reciprocal %197 {approx = true} : vector<22x1xf32> -> vector<22x1xf32>
    %199 = arith.mulf %187, %198 : vector<22x1xf32>
    %cst_108 = arith.constant 5.000000e-01 : f32
    %200 = vector.broadcast %cst_108 : f32 to vector<22x1xf32>
    %201 = arith.addf %199, %200 : vector<22x1xf32>
    %cst_109 = arith.constant dense<0.000000e+00> : vector<4xf32>
    %202 = vector.multi_reduction <add>, %129, %cst_109 [1] : vector<4x22xf32> to vector<4xf32>
    %203 = vector.shape_cast %202 : vector<4xf32> to vector<4x1xf32>
    %cst_110 = arith.constant dense<0.000000e+00> : vector<4x1xf32>
    %204 = tpu.matmul %129, %201, %cst_110 {dimension_numbers = #tpu.dot_dimension_numbers<[1], [0], [0], [1], [0, 0, 1, 1], [], []>} : vector<4x22xf32>, vector<22x1xf32>, vector<4x1xf32> -> vector<4x1xf32>
    %cst_111 = arith.constant 0.000000e+00 : f32
    %205 = vector.broadcast %cst_111 : f32 to vector<4x1xf32>
    %206 = arith.cmpf ogt, %203, %205 : vector<4x1xf32>
    %cst_112 = arith.constant 1.000000e+00 : f32
    %207 = vector.broadcast %cst_112 : f32 to vector<4x1xf32>
    %208 = arith.maximumf %203, %207 : vector<4x1xf32>
    %209 = arith.divf %204, %208 : vector<4x1xf32>
    %cst_113 = arith.constant 5.000000e-01 : f32
    %210 = vector.broadcast %cst_113 : f32 to vector<4x1xf32>
    %211 = arith.select %206, %209, %210 : vector<4x1xi1>, vector<4x1xf32>
    %212 = tpu.iota {dimensions = array<i32: 0>} : vector<4x8xi32>
    %213 = tpu.iota {dimensions = array<i32: 1>} : vector<4x8xi32>
    %c2_i32_114 = arith.constant 2 : i32
    %214 = vector.broadcast %c2_i32_114 : i32 to vector<4x8xi32>
    %215 = arith.muli %214, %212 : vector<4x8xi32>
    %216 = arith.cmpi eq, %213, %215 : vector<4x8xi32>
    %217 = arith.extui %216 : vector<4x8xi1> to vector<4x8xi32>
    %218 = arith.sitofp %217 : vector<4x8xi32> to vector<4x8xf32>
    %c2_i32_115 = arith.constant 2 : i32
    %219 = vector.broadcast %c2_i32_115 : i32 to vector<4x8xi32>
    %220 = arith.muli %219, %212 : vector<4x8xi32>
    %c1_i32_116 = arith.constant 1 : i32
    %221 = vector.broadcast %c1_i32_116 : i32 to vector<4x8xi32>
    %222 = arith.addi %220, %221 : vector<4x8xi32>
    %223 = arith.cmpi eq, %213, %222 : vector<4x8xi32>
    %224 = arith.extui %223 : vector<4x8xi1> to vector<4x8xi32>
    %225 = arith.sitofp %224 : vector<4x8xi32> to vector<4x8xf32>
    %226 = arith.addf %218, %225 : vector<4x8xf32>
    %cst_117 = arith.constant dense<0.000000e+00> : vector<4x128xf32>
    %227 = tpu.matmul %226, %165, %cst_117 {dimension_numbers = #tpu.dot_dimension_numbers<[1], [0], [0], [1], [0, 0, 1, 1], [], []>} : vector<4x8xf32>, vector<8x128xf32>, vector<4x128xf32> -> vector<4x128xf32>
    %228 = vector.broadcast %211 : vector<4x1xf32> to vector<4x128xf32>
    %229 = arith.mulf %227, %228 : vector<4x128xf32>
    %c0_118 = arith.constant 0 : index
    %c0_119 = arith.constant 0 : index
    %c0_120 = arith.constant 0 : index
    %230 = vector.load %arg27[%c0_118, %c0_119, %c0_120] : memref<1x4x4xf32, #tpu.memory_space<vmem>>, vector<1x4x4xf32>
    %231 = vector.shape_cast %230 : vector<1x4x4xf32> to vector<4x4xf32>
    %c0_121 = arith.constant 0 : index
    %c0_122 = arith.constant 0 : index
    %c0_123 = arith.constant 0 : index
    %232 = vector.load %arg6[%c0_121, %c0_122, %c0_123] : memref<1x128x1xf32, #tpu.memory_space<vmem>>, vector<1x128x1xf32>
    %233 = vector.shape_cast %232 : vector<1x128x1xf32> to vector<128x1xf32>
    %c0_124 = arith.constant 0 : index
    %c0_125 = arith.constant 0 : index
    %c0_126 = arith.constant 0 : index
    %234 = vector.load %arg7[%c0_124, %c0_125, %c0_126] : memref<1x1x640xf32, #tpu.memory_space<vmem>>, vector<1x1x640xf32>
    %235 = vector.shape_cast %234 : vector<1x1x640xf32> to vector<1x640xf32>
    %c0_127 = arith.constant 0 : index
    %c0_128 = arith.constant 0 : index
    %236 = vector.load %arg10[%c0_127, %c0_128] : memref<128x128xf32, #tpu.memory_space<vmem>>, vector<128x128xf32>
    %c0_129 = arith.constant 0 : index
    %c0_130 = arith.constant 0 : index
    %237 = vector.load %arg11[%c0_129, %c0_130] : memref<1x128xf32, #tpu.memory_space<vmem>>, vector<1x128xf32>
    %c0_131 = arith.constant 0 : index
    %c0_132 = arith.constant 0 : index
    %c0_133 = arith.constant 0 : index
    %238 = vector.load %arg28[%c0_131, %c0_132, %c0_133] : memref<1x10x4xf32, #tpu.memory_space<vmem>>, vector<1x10x4xf32>
    %239 = vector.shape_cast %238 : vector<1x10x4xf32> to vector<10x4xf32>
    %c0_134 = arith.constant 0 : index
    %c0_135 = arith.constant 0 : index
    %c0_136 = arith.constant 0 : index
    %240 = vector.load %arg29[%c0_134, %c0_135, %c0_136] : memref<1x10x4xf32, #tpu.memory_space<vmem>>, vector<1x10x4xf32>
    %241 = vector.shape_cast %240 : vector<1x10x4xf32> to vector<10x4xf32>
    %c0_137 = arith.constant 0 : index
    %c0_138 = arith.constant 0 : index
    %c0_139 = arith.constant 0 : index
    %242 = vector.load %arg30[%c0_137, %c0_138, %c0_139] : memref<1x2x10xf32, #tpu.memory_space<vmem>>, vector<1x2x10xf32>
    %243 = vector.shape_cast %242 : vector<1x2x10xf32> to vector<2x10xf32>
    %c0_140 = arith.constant 0 : index
    %c0_141 = arith.constant 0 : index
    %244 = vector.load %arg12[%c0_140, %c0_141] : memref<640x128xf32, #tpu.memory_space<vmem>>, vector<640x128xf32>
    %c0_142 = arith.constant 0 : index
    %c0_143 = arith.constant 0 : index
    %245 = vector.load %arg13[%c0_142, %c0_143] : memref<128x128xf32, #tpu.memory_space<vmem>>, vector<128x128xf32>
    %c0_144 = arith.constant 0 : index
    %c0_145 = arith.constant 0 : index
    %246 = vector.load %arg14[%c0_144, %c0_145] : memref<1x128xf32, #tpu.memory_space<vmem>>, vector<1x128xf32>
    %c0_146 = arith.constant 0 : index
    %c0_147 = arith.constant 0 : index
    %247 = vector.load %arg15[%c0_146, %c0_147] : memref<128x2xf32, #tpu.memory_space<vmem>>, vector<128x2xf32>
    %c0_148 = arith.constant 0 : index
    %c0_149 = arith.constant 0 : index
    %248 = vector.load %arg16[%c0_148, %c0_149] : memref<1x2xf32, #tpu.memory_space<vmem>>, vector<1x2xf32>
    %cst_150 = arith.constant dense<0.000000e+00> : vector<4x128xf32>
    %249 = tpu.matmul %229, %236, %cst_150 {dimension_numbers = #tpu.dot_dimension_numbers<[1], [0], [0], [1], [0, 0, 1, 1], [], []>} : vector<4x128xf32>, vector<128x128xf32>, vector<4x128xf32> -> vector<4x128xf32>
    %cst_151 = arith.constant dense<0.000000e+00> : vector<4x128xf32>
    %250 = tpu.matmul %231, %249, %cst_151 {dimension_numbers = #tpu.dot_dimension_numbers<[1], [0], [0], [1], [0, 0, 1, 1], [], []>} : vector<4x4xf32>, vector<4x128xf32>, vector<4x128xf32> -> vector<4x128xf32>
    %251 = vector.broadcast %237 : vector<1x128xf32> to vector<4x128xf32>
    %252 = arith.addf %250, %251 : vector<4x128xf32>
    %cst_152 = arith.constant 0.000000e+00 : f32
    %253 = vector.broadcast %cst_152 : f32 to vector<4x128xf32>
    %254 = arith.maximumf %252, %253 : vector<4x128xf32>
    %255 = vector.broadcast %233 : vector<128x1xf32> to vector<128x640xf32>
    %256 = vector.broadcast %235 : vector<1x640xf32> to vector<128x640xf32>
    %257 = arith.cmpf ole, %255, %256 : vector<128x640xf32>
    %258 = arith.extui %257 : vector<128x640xi1> to vector<128x640xi32>
    %259 = arith.sitofp %258 : vector<128x640xi32> to vector<128x640xf32>
    %260 = tpu.iota {dimensions = array<i32: 1>} : vector<1x128xi32>
    %c49_i32 = arith.constant 49 : i32
    %261 = vector.broadcast %c49_i32 : i32 to vector<1x128xi32>
    %262 = arith.cmpi slt, %260, %261 : vector<1x128xi32>
    %263 = arith.extui %262 : vector<1x128xi1> to vector<1x128xi32>
    %264 = arith.sitofp %263 : vector<1x128xi32> to vector<1x128xf32>
    %cst_153 = arith.constant dense<0.000000e+00> : vector<1x640xf32>
    %265 = tpu.matmul %264, %259, %cst_153 {dimension_numbers = #tpu.dot_dimension_numbers<[1], [0], [0], [1], [0, 0, 1, 1], [], []>} : vector<1x128xf32>, vector<128x640xf32>, vector<1x640xf32> -> vector<1x640xf32>
    %266 = tpu.iota {dimensions = array<i32: 1>} : vector<1x640xi32>
    %c600_i32_154 = arith.constant 600 : i32
    %267 = vector.broadcast %c600_i32_154 : i32 to vector<1x640xi32>
    %268 = arith.cmpi slt, %266, %267 : vector<1x640xi32>
    %269 = arith.extui %268 : vector<1x640xi1> to vector<1x640xi32>
    %270 = arith.sitofp %269 : vector<1x640xi32> to vector<1x640xf32>
    %271 = arith.mulf %265, %270 : vector<1x640xf32>
    %cst_155 = arith.constant dense<0.000000e+00> : vector<1x128xf32>
    %272 = tpu.matmul %271, %244, %cst_155 {dimension_numbers = #tpu.dot_dimension_numbers<[1], [0], [0], [1], [0, 0, 1, 1], [], []>} : vector<1x640xf32>, vector<640x128xf32>, vector<1x128xf32> -> vector<1x128xf32>
    %cst_156 = arith.constant dense<0.000000e+00> : vector<4x128xf32>
    %273 = tpu.matmul %254, %245, %cst_156 {dimension_numbers = #tpu.dot_dimension_numbers<[1], [0], [0], [1], [0, 0, 1, 1], [], []>} : vector<4x128xf32>, vector<128x128xf32>, vector<4x128xf32> -> vector<4x128xf32>
    %274 = vector.broadcast %272 : vector<1x128xf32> to vector<4x128xf32>
    %275 = arith.addf %273, %274 : vector<4x128xf32>
    %276 = vector.broadcast %246 : vector<1x128xf32> to vector<4x128xf32>
    %277 = arith.addf %275, %276 : vector<4x128xf32>
    %cst_157 = arith.constant 0.000000e+00 : f32
    %278 = vector.broadcast %cst_157 : f32 to vector<4x128xf32>
    %279 = arith.maximumf %277, %278 : vector<4x128xf32>
    %cst_158 = arith.constant dense<0.000000e+00> : vector<4x2xf32>
    %280 = tpu.matmul %279, %247, %cst_158 {dimension_numbers = #tpu.dot_dimension_numbers<[1], [0], [0], [1], [0, 0, 1, 1], [], []>} : vector<4x128xf32>, vector<128x2xf32>, vector<4x2xf32> -> vector<4x2xf32>
    %281 = vector.broadcast %248 : vector<1x2xf32> to vector<4x2xf32>
    %282 = arith.addf %280, %281 : vector<4x2xf32>
    %283 = vector.extract_strided_slice %282 {offsets = [0, 0], sizes = [4, 1], strides = [1, 1]} : vector<4x2xf32> to vector<4x1xf32>
    %cst_159 = arith.constant dense<0.000000e+00> : vector<10x1xf32>
    %284 = tpu.matmul %239, %283, %cst_159 {dimension_numbers = #tpu.dot_dimension_numbers<[1], [0], [0], [1], [0, 0, 1, 1], [], []>} : vector<10x4xf32>, vector<4x1xf32>, vector<10x1xf32> -> vector<10x1xf32>
    %285 = vector.extract_strided_slice %282 {offsets = [0, 1], sizes = [4, 1], strides = [1, 1]} : vector<4x2xf32> to vector<4x1xf32>
    %cst_160 = arith.constant dense<0.000000e+00> : vector<10x1xf32>
    %286 = tpu.matmul %241, %285, %cst_160 {dimension_numbers = #tpu.dot_dimension_numbers<[1], [0], [0], [1], [0, 0, 1, 1], [], []>} : vector<10x4xf32>, vector<4x1xf32>, vector<10x1xf32> -> vector<10x1xf32>
    %287 = arith.addf %284, %286 : vector<10x1xf32>
    %cst_161 = arith.constant 0.000000e+00 : f32
    %288 = vector.broadcast %cst_161 : f32 to vector<10x4xf32>
    %289 = arith.cmpf ogt, %241, %288 : vector<10x4xf32>
    %cst_162 = arith.constant -1.000000e+30 : f32
    %290 = vector.shape_cast %287 : vector<10x1xf32> to vector<10x1xf32>
    %291 = vector.broadcast %290 : vector<10x1xf32> to vector<10x4xf32>
    %292 = vector.broadcast %cst_162 : f32 to vector<10x4xf32>
    %293 = arith.select %289, %291, %292 : vector<10x4xi1>, vector<10x4xf32>
    %cst_163 = arith.constant dense<0xFF800000> : vector<4xf32>
    %294 = vector.multi_reduction <maximumf>, %293, %cst_163 [0] : vector<10x4xf32> to vector<4xf32>
    %295 = vector.shape_cast %294 : vector<4xf32> to vector<1x4xf32>
    %296 = vector.broadcast %295 : vector<1x4xf32> to vector<10x4xf32>
    %297 = arith.mulf %241, %296 : vector<10x4xf32>
    %cst_164 = arith.constant dense<0.000000e+00> : vector<10xf32>
    %298 = vector.multi_reduction <add>, %297, %cst_164 [1] : vector<10x4xf32> to vector<10xf32>
    %299 = vector.shape_cast %298 : vector<10xf32> to vector<10x1xf32>
    %300 = arith.subf %287, %299 : vector<10x1xf32>
    %301 = math.exp %300 : vector<10x1xf32>
    %302 = vector.broadcast %301 : vector<10x1xf32> to vector<10x4xf32>
    %303 = arith.mulf %241, %302 : vector<10x4xf32>
    %cst_165 = arith.constant dense<0.000000e+00> : vector<4xf32>
    %304 = vector.multi_reduction <add>, %303, %cst_165 [0] : vector<10x4xf32> to vector<4xf32>
    %305 = vector.shape_cast %304 : vector<4xf32> to vector<1x4xf32>
    %306 = vector.broadcast %305 : vector<1x4xf32> to vector<10x4xf32>
    %307 = arith.mulf %241, %306 : vector<10x4xf32>
    %cst_166 = arith.constant dense<0.000000e+00> : vector<10xf32>
    %308 = vector.multi_reduction <add>, %307, %cst_166 [1] : vector<10x4xf32> to vector<10xf32>
    %309 = vector.shape_cast %308 : vector<10xf32> to vector<10x1xf32>
    %cst_167 = arith.constant 9.99999996E-13 : f32
    %310 = vector.broadcast %cst_167 : f32 to vector<10x1xf32>
    %311 = arith.maximumf %309, %310 : vector<10x1xf32>
    %312 = tpu.reciprocal %311 {approx = true} : vector<10x1xf32> -> vector<10x1xf32>
    %313 = arith.mulf %301, %312 : vector<10x1xf32>
    %cst_168 = arith.constant 5.000000e-01 : f32
    %314 = vector.broadcast %cst_168 : f32 to vector<10x1xf32>
    %315 = arith.addf %313, %314 : vector<10x1xf32>
    %cst_169 = arith.constant dense<0.000000e+00> : vector<2xf32>
    %316 = vector.multi_reduction <add>, %243, %cst_169 [1] : vector<2x10xf32> to vector<2xf32>
    %317 = vector.shape_cast %316 : vector<2xf32> to vector<2x1xf32>
    %cst_170 = arith.constant dense<0.000000e+00> : vector<2x1xf32>
    %318 = tpu.matmul %243, %315, %cst_170 {dimension_numbers = #tpu.dot_dimension_numbers<[1], [0], [0], [1], [0, 0, 1, 1], [], []>} : vector<2x10xf32>, vector<10x1xf32>, vector<2x1xf32> -> vector<2x1xf32>
    %cst_171 = arith.constant 0.000000e+00 : f32
    %319 = vector.broadcast %cst_171 : f32 to vector<2x1xf32>
    %320 = arith.cmpf ogt, %317, %319 : vector<2x1xf32>
    %cst_172 = arith.constant 1.000000e+00 : f32
    %321 = vector.broadcast %cst_172 : f32 to vector<2x1xf32>
    %322 = arith.maximumf %317, %321 : vector<2x1xf32>
    %323 = arith.divf %318, %322 : vector<2x1xf32>
    %cst_173 = arith.constant 5.000000e-01 : f32
    %324 = vector.broadcast %cst_173 : f32 to vector<2x1xf32>
    %325 = arith.select %320, %323, %324 : vector<2x1xi1>, vector<2x1xf32>
    %326 = tpu.iota {dimensions = array<i32: 0>} : vector<2x4xi32>
    %327 = tpu.iota {dimensions = array<i32: 1>} : vector<2x4xi32>
    %c2_i32_174 = arith.constant 2 : i32
    %328 = vector.broadcast %c2_i32_174 : i32 to vector<2x4xi32>
    %329 = arith.muli %328, %326 : vector<2x4xi32>
    %330 = arith.cmpi eq, %327, %329 : vector<2x4xi32>
    %331 = arith.extui %330 : vector<2x4xi1> to vector<2x4xi32>
    %332 = arith.sitofp %331 : vector<2x4xi32> to vector<2x4xf32>
    %c2_i32_175 = arith.constant 2 : i32
    %333 = vector.broadcast %c2_i32_175 : i32 to vector<2x4xi32>
    %334 = arith.muli %333, %326 : vector<2x4xi32>
    %c1_i32_176 = arith.constant 1 : i32
    %335 = vector.broadcast %c1_i32_176 : i32 to vector<2x4xi32>
    %336 = arith.addi %334, %335 : vector<2x4xi32>
    %337 = arith.cmpi eq, %327, %336 : vector<2x4xi32>
    %338 = arith.extui %337 : vector<2x4xi1> to vector<2x4xi32>
    %339 = arith.sitofp %338 : vector<2x4xi32> to vector<2x4xf32>
    %340 = arith.addf %332, %339 : vector<2x4xf32>
    %cst_177 = arith.constant dense<0.000000e+00> : vector<2x128xf32>
    %341 = tpu.matmul %340, %279, %cst_177 {dimension_numbers = #tpu.dot_dimension_numbers<[1], [0], [0], [1], [0, 0, 1, 1], [], []>} : vector<2x4xf32>, vector<4x128xf32>, vector<2x128xf32> -> vector<2x128xf32>
    %342 = vector.broadcast %325 : vector<2x1xf32> to vector<2x128xf32>
    %343 = arith.mulf %341, %342 : vector<2x128xf32>
    %cst_178 = arith.constant dense<0.000000e+00> : vector<128xf32>
    %344 = vector.multi_reduction <add>, %343, %cst_178 [0] : vector<2x128xf32> to vector<128xf32>
    %345 = vector.shape_cast %344 : vector<128xf32> to vector<1x128xf32>
    %cst_179 = arith.constant 2.000000e+00 : f32
    %346 = vector.broadcast %cst_179 : f32 to vector<1x128xf32>
    %347 = arith.divf %345, %346 : vector<1x128xf32>
    %c0_180 = arith.constant 0 : index
    %c0_181 = arith.constant 0 : index
    %348 = vector.load %arg17[%c0_180, %c0_181] : memref<128x128xf32, #tpu.memory_space<vmem>>, vector<128x128xf32>
    %cst_182 = arith.constant dense<0.000000e+00> : vector<1x128xf32>
    %349 = tpu.matmul %347, %348, %cst_182 {dimension_numbers = #tpu.dot_dimension_numbers<[1], [0], [0], [1], [0, 0, 1, 1], [], []>} : vector<1x128xf32>, vector<128x128xf32>, vector<1x128xf32> -> vector<1x128xf32>
    %c0_183 = arith.constant 0 : index
    %c0_184 = arith.constant 0 : index
    %350 = vector.load %arg18[%c0_183, %c0_184] : memref<1x128xf32, #tpu.memory_space<vmem>>, vector<1x128xf32>
    %351 = arith.addf %349, %350 : vector<1x128xf32>
    %352 = vector.shape_cast %351 : vector<1x128xf32> to vector<1x128xf32>
    %353 = vector.broadcast %352 : vector<1x128xf32> to vector<8x128xf32>
    %c0_185 = arith.constant 0 : index
    %c0_186 = arith.constant 0 : index
    %c0_187 = arith.constant 0 : index
    %354 = vector.load %arg31[%c0_185, %c0_186, %c0_187] : memref<1x8x128xf32, #tpu.memory_space<vmem>>, vector<1x8x128xf32>
    %355 = vector.shape_cast %354 : vector<1x8x128xf32> to vector<8x128xf32>
    %356 = vector.shape_cast %353 : vector<8x128xf32> to vector<1x8x128xf32>
    tpu.vector_store %arg31[%c0_185, %c0_186, %c0_187], %356 {strides = array<i32>} : memref<1x8x128xf32, #tpu.memory_space<vmem>>, vector<1x8x128xf32>,
    return
  }
  func.func @transform_0(%arg0: i32) -> (i32, i32, i32) {
    %c0_i32 = arith.constant 0 : i32
    %c0_i32_0 = arith.constant 0 : i32
    %c0_i32_1 = arith.constant 0 : i32
    return %arg0, %c0_i32, %c0_i32_0 : i32, i32, i32
  }
  func.func @transform_1(%arg0: i32) -> (i32, i32, i32) {
    %c0_i32 = arith.constant 0 : i32
    %c0_i32_0 = arith.constant 0 : i32
    %c0_i32_1 = arith.constant 0 : i32
    return %arg0, %c0_i32, %c0_i32_0 : i32, i32, i32
  }
  func.func @transform_2(%arg0: i32) -> (i32, i32, i32) {
    %c0_i32 = arith.constant 0 : i32
    %c0_i32_0 = arith.constant 0 : i32
    %c0_i32_1 = arith.constant 0 : i32
    return %arg0, %c0_i32, %c0_i32_0 : i32, i32, i32
  }
  func.func @transform_3(%arg0: i32) -> (i32, i32, i32) {
    %c0_i32 = arith.constant 0 : i32
    %c0_i32_0 = arith.constant 0 : i32
    %c0_i32_1 = arith.constant 0 : i32
    return %arg0, %c0_i32, %c0_i32_0 : i32, i32, i32
  }
  func.func @transform_4(%arg0: i32) -> (i32, i32, i32) {
    %c0_i32 = arith.constant 0 : i32
    %c0_i32_0 = arith.constant 0 : i32
    %c0_i32_1 = arith.constant 0 : i32
    return %arg0, %c0_i32, %c0_i32_0 : i32, i32, i32
  }
  func.func @transform_5(%arg0: i32) -> (i32, i32, i32) {
    %c0_i32 = arith.constant 0 : i32
    %c0_i32_0 = arith.constant 0 : i32
    %c0_i32_1 = arith.constant 0 : i32
    return %arg0, %c0_i32, %c0_i32_0 : i32, i32, i32
  }
  func.func @transform_6(%arg0: i32) -> (i32, i32, i32) {
    %c0_i32 = arith.constant 0 : i32
    %c0_i32_0 = arith.constant 0 : i32
    %c0_i32_1 = arith.constant 0 : i32
    return %arg0, %c0_i32, %c0_i32_0 : i32, i32, i32
  }
  func.func @transform_7(%arg0: i32) -> (i32, i32) {
    %c0_i32 = arith.constant 0 : i32
    %c0_i32_0 = arith.constant 0 : i32
    %c0_i32_1 = arith.constant 0 : i32
    return %c0_i32, %c0_i32_0 : i32, i32
  }
  func.func @transform_8(%arg0: i32) -> (i32, i32) {
    %c0_i32 = arith.constant 0 : i32
    %c0_i32_0 = arith.constant 0 : i32
    %c0_i32_1 = arith.constant 0 : i32
    return %c0_i32, %c0_i32_0 : i32, i32
  }
  func.func @transform_9(%arg0: i32) -> (i32, i32) {
    %c0_i32 = arith.constant 0 : i32
    %c0_i32_0 = arith.constant 0 : i32
    %c0_i32_1 = arith.constant 0 : i32
    return %c0_i32, %c0_i32_0 : i32, i32
  }
  func.func @transform_10(%arg0: i32) -> (i32, i32) {
    %c0_i32 = arith.constant 0 : i32
    %c0_i32_0 = arith.constant 0 : i32
    %c0_i32_1 = arith.constant 0 : i32
    return %c0_i32, %c0_i32_0 : i32, i32
  }
  func.func @transform_11(%arg0: i32) -> (i32, i32) {
    %c0_i32 = arith.constant 0 : i32
    %c0_i32_0 = arith.constant 0 : i32
    %c0_i32_1 = arith.constant 0 : i32
    return %c0_i32, %c0_i32_0 : i32, i32
  }
  func.func @transform_12(%arg0: i32) -> (i32, i32) {
    %c0_i32 = arith.constant 0 : i32
    %c0_i32_0 = arith.constant 0 : i32
    %c0_i32_1 = arith.constant 0 : i32
    return %c0_i32, %c0_i32_0 : i32, i32
  }
  func.func @transform_13(%arg0: i32) -> (i32, i32) {
    %c0_i32 = arith.constant 0 : i32
    %c0_i32_0 = arith.constant 0 : i32
    %c0_i32_1 = arith.constant 0 : i32
    return %c0_i32, %c0_i32_0 : i32, i32
  }
  func.func @transform_14(%arg0: i32) -> (i32, i32) {
    %c0_i32 = arith.constant 0 : i32
    %c0_i32_0 = arith.constant 0 : i32
    %c0_i32_1 = arith.constant 0 : i32
    return %c0_i32, %c0_i32_0 : i32, i32
  }
  func.func @transform_15(%arg0: i32) -> (i32, i32) {
    %c0_i32 = arith.constant 0 : i32
    %c0_i32_0 = arith.constant 0 : i32
    %c0_i32_1 = arith.constant 0 : i32
    return %c0_i32, %c0_i32_0 : i32, i32
  }
  func.func @transform_16(%arg0: i32) -> (i32, i32) {
    %c0_i32 = arith.constant 0 : i32
    %c0_i32_0 = arith.constant 0 : i32
    %c0_i32_1 = arith.constant 0 : i32
    return %c0_i32, %c0_i32_0 : i32, i32
  }
  func.func @transform_17(%arg0: i32) -> (i32, i32) {
    %c0_i32 = arith.constant 0 : i32
    %c0_i32_0 = arith.constant 0 : i32
    %c0_i32_1 = arith.constant 0 : i32
    return %c0_i32, %c0_i32_0 : i32, i32
  }
  func.func @transform_18(%arg0: i32) -> (i32, i32, i32) {
    %c0_i32 = arith.constant 0 : i32
    %c0_i32_0 = arith.constant 0 : i32
    %c0_i32_1 = arith.constant 0 : i32
    return %arg0, %c0_i32, %c0_i32_0 : i32, i32, i32
  }
  func.func @transform_19(%arg0: i32) -> (i32, i32, i32) {
    %c0_i32 = arith.constant 0 : i32
    %c0_i32_0 = arith.constant 0 : i32
    %c0_i32_1 = arith.constant 0 : i32
    return %arg0, %c0_i32, %c0_i32_0 : i32, i32, i32
  }
  func.func @transform_20(%arg0: i32) -> (i32, i32, i32) {
    %c0_i32 = arith.constant 0 : i32
    %c0_i32_0 = arith.constant 0 : i32
    %c0_i32_1 = arith.constant 0 : i32
    return %arg0, %c0_i32, %c0_i32_0 : i32, i32, i32
  }
  func.func @transform_21(%arg0: i32) -> (i32, i32, i32) {
    %c0_i32 = arith.constant 0 : i32
    %c0_i32_0 = arith.constant 0 : i32
    %c0_i32_1 = arith.constant 0 : i32
    return %arg0, %c0_i32, %c0_i32_0 : i32, i32, i32
  }
  func.func @transform_22(%arg0: i32) -> (i32, i32, i32) {
    %c0_i32 = arith.constant 0 : i32
    %c0_i32_0 = arith.constant 0 : i32
    %c0_i32_1 = arith.constant 0 : i32
    return %arg0, %c0_i32, %c0_i32_0 : i32, i32, i32
  }
  func.func @transform_23(%arg0: i32) -> (i32, i32, i32) {
    %c0_i32 = arith.constant 0 : i32
    %c0_i32_0 = arith.constant 0 : i32
    %c0_i32_1 = arith.constant 0 : i32
    return %arg0, %c0_i32, %c0_i32_0 : i32, i32, i32
  }
  func.func @transform_24(%arg0: i32) -> (i32, i32, i32) {
    %c0_i32 = arith.constant 0 : i32
    %c0_i32_0 = arith.constant 0 : i32
    %c0_i32_1 = arith.constant 0 : i32
    return %arg0, %c0_i32, %c0_i32_0 : i32, i32, i32
  }
  func.func @transform_25(%arg0: i32) -> (i32, i32, i32) {
    %c0_i32 = arith.constant 0 : i32
    %c0_i32_0 = arith.constant 0 : i32
    %c0_i32_1 = arith.constant 0 : i32
    return %arg0, %c0_i32, %c0_i32_0 : i32, i32, i32
  }
  func.func @transform_26(%arg0: i32) -> (i32, i32, i32) {
    %c0_i32 = arith.constant 0 : i32
    %c0_i32_0 = arith.constant 0 : i32
    %c0_i32_1 = arith.constant 0 : i32
    return %arg0, %c0_i32, %c0_i32_0 : i32, i32, i32
  }
  func.func @transform_27(%arg0: i32) -> (i32, i32, i32) {
    %c0_i32 = arith.constant 0 : i32
    %c0_i32_0 = arith.constant 0 : i32
    %c0_i32_1 = arith.constant 0 : i32
    return %arg0, %c0_i32, %c0_i32_0 : i32, i32, i32
  }
  func.func @transform_28(%arg0: i32) -> (i32, i32, i32) {
    %c0_i32 = arith.constant 0 : i32
    %c0_i32_0 = arith.constant 0 : i32
    %c0_i32_1 = arith.constant 0 : i32
    return %arg0, %c0_i32, %c0_i32_0 : i32, i32, i32
  }
  func.func @transform_29(%arg0: i32) -> (i32, i32, i32) {
    %c0_i32 = arith.constant 0 : i32
    %c0_i32_0 = arith.constant 0 : i32
    %c0_i32_1 = arith.constant 0 : i32
    return %arg0, %c0_i32, %c0_i32_0 : i32, i32, i32
  }
  func.func @transform_30(%arg0: i32) -> (i32, i32, i32) {
    %c0_i32 = arith.constant 0 : i32
    %c0_i32_0 = arith.constant 0 : i32
    %c0_i32_1 = arith.constant 0 : i32
    return %arg0, %c0_i32, %c0_i32_0 : i32, i32, i32
  }
}

</mosaic_0001>

<llo_original>
// kernel: sub.13
$region0: #{sub.13}
  #allocation0 [shape = 's32[1]{0}', space=sflag, size = 0x4, scoped, tag = 'scoped memory for sub.13']
  %s0 = inlined_call_operand.vmem [shape: f32[2], index: 0, kind: input, shape index: {}]
  %s1 = inlined_call_operand.vmem [shape: f32[2], index: 1, kind: input, shape index: {}]
  %s2 = inlined_call_operand.vmem [shape: f32[2], index: 2, kind: output, shape index: {}]
  %v3 = vld [vmem:[%s0] sm:$0x1]
  %v4 = vld [vmem:[%s1] sm:$0x1]
  %5 = xla_tuple %v3, %v4
  %6 = xla_tuple %5
  %v7 = vsub.f32 %v3, %v4
  %8 = xla_tuple %v7
  %9 = vst [vmem:[%s2] sm:$0x1] %v7

// kernel: forward.1
$region0: #{forward.1}
  #allocation0 [shape = 'u32[]', space=smem, size = 0x4, offset = 0x4, fixed_abs, tag = 'smem constant byte address 0x4 - core index']
  #allocation1 [shape = 'u32[144,128]{1,0:T(1,128)}', space=vmem, size = 0x12000, scoped, tag = 'internal scratch']
  %s0 = inlined_call_operand.smem [shape: u32[31], index: -1, kind: input, shape index: {}]
  %s1 = sld [smem:[%s0]]
  %s2 = scalar_lea.smem %s0, 1
  %s3 = sld [smem:[%s2]]
  %s4 = scalar_lea.smem %s0, 2
  %s5 = sld [smem:[%s4]]
  %s6 = scalar_lea.smem %s0, 3
  %s7 = sld [smem:[%s6]]
  %s8 = scalar_lea.smem %s0, 4
  %s9 = sld [smem:[%s8]]
  %s10 = scalar_lea.smem %s0, 5
  %s11 = sld [smem:[%s10]]
  %s12 = scalar_lea.smem %s0, 6
  %s13 = sld [smem:[%s12]]
  %s14 = scalar_lea.smem %s0, 7
  %s15 = sld [smem:[%s14]]
  %s16 = scalar_lea.smem %s0, 8
  %s17 = sld [smem:[%s16]]
  %s18 = scalar_lea.smem %s0, 9
  %s19 = sld [smem:[%s18]]
  %s20 = scalar_lea.smem %s0, 10
  %s21 = sld [smem:[%s20]]
  %s22 = scalar_lea.smem %s0, 11
  %s23 = sld [smem:[%s22]]
  %s24 = scalar_lea.smem %s0, 12
  %s25 = sld [smem:[%s24]]
  %s26 = scalar_lea.smem %s0, 13
  %s27 = sld [smem:[%s26]]
  %s28 = scalar_lea.smem %s0, 14
  %s29 = sld [smem:[%s28]]
  %s30 = scalar_lea.smem %s0, 15
  %s31 = sld [smem:[%s30]]
  %s32 = scalar_lea.smem %s0, 16
  %s33 = sld [smem:[%s32]]
  %s34 = scalar_lea.smem %s0, 17
  %s35 = sld [smem:[%s34]]
  %s36 = scalar_lea.smem %s0, 18
  %s37 = sld [smem:[%s36]]
  %s38 = scalar_lea.smem %s0, 19
  %s39 = sld [smem:[%s38]]
  %s40 = scalar_lea.smem %s0, 20
  %s41 = sld [smem:[%s40]]
  %s42 = scalar_lea.smem %s0, 21
  %s43 = sld [smem:[%s42]]
  %s44 = scalar_lea.smem %s0, 22
  %s45 = sld [smem:[%s44]]
  %s46 = scalar_lea.smem %s0, 23
  %s47 = sld [smem:[%s46]]
  %s48 = scalar_lea.smem %s0, 24
  %s49 = sld [smem:[%s48]]
  %s50 = scalar_lea.smem %s0, 25
  %s51 = sld [smem:[%s50]]
  %s52 = scalar_lea.smem %s0, 26
  %s53 = sld [smem:[%s52]]
  %s54 = scalar_lea.smem %s0, 27
  %s55 = sld [smem:[%s54]]
  %s56 = scalar_lea.smem %s0, 28
  %s57 = sld [smem:[%s56]]
  %s58 = scalar_lea.smem %s0, 29
  %s59 = sld [smem:[%s58]]
  %s60 = scalar_lea.smem %s0, 30
  %s61 = sld [smem:[%s60]]
  %s62 = sld [smem:[#allocation0]]
  $region153: #{forward.1} parent=0
    _
  %s64 = ssub.s32 1, %s62
  %s65 = scalar_select 0, %s64, %s62
  loop: start=0, step=1, limit=4
  $region2: #{forward.1} parent=0 // loop_pre_header
    _
  $region3: #{forward.1} parent=0 // loop_header
    %s67 = sphi 0, %s71
    %p68 = scmp.ge.s32.totalorder %s67, 4
    %s77 = sphi 0, %s79
    %s80 = sphi 0, %s77
    %s81 = sphi 0, %s80
    %s97 = sphi 0, %s81
    %s103 = sphi 0, %s105
    %s106 = sphi 0, %s103
    %s107 = sphi 0, %s106
    %s123 = sphi 0, %s107
    %s129 = sphi 0, %s131
    %s132 = sphi 0, %s129
    %s133 = sphi 0, %s132
    %s149 = sphi 0, %s133
    %s155 = sphi 0, %s157
    %s158 = sphi 0, %s155
    %s159 = sphi 0, %s158
    %s175 = sphi 0, %s159
    %s181 = sphi 0, %s183
    %s184 = sphi 0, %s181
    %s185 = sphi 0, %s184
    %s201 = sphi 0, %s185
    %s207 = sphi 0, %s209
    %s210 = sphi 0, %s207
    %s211 = sphi 0, %s210
    %s227 = sphi 0, %s211
    %s233 = sphi 0, %s235
    %s236 = sphi 0, %s233
    %s237 = sphi 0, %s236
    %s253 = sphi 0, %s237
    %s257 = sphi 0, %s257
    %s259 = sphi 0, %s257
    %s260 = sphi 0, %s259
    %s274 = sphi 0, %s260
    %s278 = sphi 0, %s278
    %s280 = sphi 0, %s278
    %s281 = sphi 0, %s280
    %s295 = sphi 0, %s281
    %s299 = sphi 0, %s299
    %s301 = sphi 0, %s299
    %s302 = sphi 0, %s301
    %s316 = sphi 0, %s302
    %s320 = sphi 0, %s320
    %s322 = sphi 0, %s320
    %s323 = sphi 0, %s322
    %s337 = sphi 0, %s323
    %s341 = sphi 0, %s341
    %s343 = sphi 0, %s341
    %s344 = sphi 0, %s343
    %s358 = sphi 0, %s344
    %s362 = sphi 0, %s362
    %s364 = sphi 0, %s362
    %s365 = sphi 0, %s364
    %s379 = sphi 0, %s365
    %s383 = sphi 0, %s383
    %s385 = sphi 0, %s383
    %s386 = sphi 0, %s385
    %s400 = sphi 0, %s386
    %s404 = sphi 0, %s404
    %s406 = sphi 0, %s404
    %s407 = sphi 0, %s406
    %s421 = sphi 0, %s407
    %s425 = sphi 0, %s425
    %s427 = sphi 0, %s425
    %s428 = sphi 0, %s427
    %s442 = sphi 0, %s428
    %s446 = sphi 0, %s446
    %s448 = sphi 0, %s446
    %s449 = sphi 0, %s448
    %s463 = sphi 0, %s449
    %s467 = sphi 0, %s467
    %s469 = sphi 0, %s467
    %s470 = sphi 0, %s469
    %s484 = sphi 0, %s470
    %s490 = sphi 0, %s492
    %s493 = sphi 0, %s490
    %s494 = sphi 0, %s493
    %s510 = sphi 0, %s494
    %s516 = sphi 0, %s518
    %s519 = sphi 0, %s516
    %s520 = sphi 0, %s519
    %s536 = sphi 0, %s520
    %s542 = sphi 0, %s544
    %s545 = sphi 0, %s542
    %s546 = sphi 0, %s545
    %s562 = sphi 0, %s546
    %s568 = sphi 0, %s570
    %s571 = sphi 0, %s568
    %s572 = sphi 0, %s571
    %s588 = sphi 0, %s572
    %s594 = sphi 0, %s596
    %s597 = sphi 0, %s594
    %s598 = sphi 0, %s597
    %s614 = sphi 0, %s598
    %s620 = sphi 0, %s622
    %s623 = sphi 0, %s620
    %s624 = sphi 0, %s623
    %s640 = sphi 0, %s624
    %s646 = sphi 0, %s648
    %s649 = sphi 0, %s646
    %s650 = sphi 0, %s649
    %s666 = sphi 0, %s650
    %s672 = sphi 0, %s674
    %s675 = sphi 0, %s672
    %s676 = sphi 0, %s675
    %s692 = sphi 0, %s676
    %s698 = sphi 0, %s700
    %s701 = sphi 0, %s698
    %s702 = sphi 0, %s701
    %s718 = sphi 0, %s702
    %s724 = sphi 0, %s726
    %s727 = sphi 0, %s724
    %s728 = sphi 0, %s727
    %s744 = sphi 0, %s728
    %s750 = sphi 0, %s752
    %s753 = sphi 0, %s750
    %s754 = sphi 0, %s753
    %s770 = sphi 0, %s754
    %s776 = sphi 0, %s778
    %s779 = sphi 0, %s776
    %s780 = sphi 0, %s779
    %s796 = sphi 0, %s780
    %s802 = sphi 0, %s804
    %s805 = sphi 0, %s802
    %s806 = sphi 0, %s805
    %s822 = sphi 0, %s806
  $region4: #{forward.1} parent=0 // loop_header_branch
    %70 = sbr.rel (%p68) target = $region8
  $region5: #{forward.1} parent=0 // loop_body
    %s72 = ssub.s32 %s67, 1
    %s73 = ssub.s32 %s67, 2
    %s74 = sadd.s32 %s67, 1
    %s75 = ssub.s32 %s67, %s74
    %p76 = scmp.eq.s32.totalorder %s75, 0
    %s78 = sadd.s32 %s77, 1
    %s79 = scalar_select %p76, %s77, %s78
    %p82 = pneg %p76
    %p83 = scmp.eq.s32.totalorder %s67, 1
    %p84 = por %p82, %p83
    %p85 = scmp.ne.s32.totalorder %s77, %s80
    %p86 = scmp.eq.s32.totalorder %s67, 0
    %p87 = por %p85, %p86
    %p88 = scmp.ne.s32.totalorder %s77, %s80
    %p89 = scmp.eq.s32.totalorder %s72, 1
    %p90 = por %p88, %p89
    %p91 = scmp.ne.s32.totalorder %s80, %s81
    %p92 = scmp.eq.s32.totalorder %s72, 0
    %p93 = por %p91, %p92
    %p94 = scmp.ne.s32.totalorder %s80, %s81
    %p95 = scmp.eq.s32.totalorder %s73, 1
    %p96 = por %p94, %p95
    %p98 = scmp.ne.s32.totalorder %s81, %s97
    %p99 = scmp.eq.s32.totalorder %s73, 0
    %p100 = por %p98, %p99
    %s101 = ssub.s32 %s67, %s74
    %p102 = scmp.eq.s32.totalorder %s101, 0
    %s104 = sadd.s32 %s103, 1
    %s105 = scalar_select %p102, %s103, %s104
    %p108 = pneg %p102
    %p109 = scmp.eq.s32.totalorder %s67, 1
    %p110 = por %p108, %p109
    %p111 = scmp.ne.s32.totalorder %s103, %s106
    %p112 = scmp.eq.s32.totalorder %s67, 0
    %p113 = por %p111, %p112
    %p114 = scmp.ne.s32.totalorder %s103, %s106
    %p115 = scmp.eq.s32.totalorder %s72, 1
    %p116 = por %p114, %p115
    %p117 = scmp.ne.s32.totalorder %s106, %s107
    %p118 = scmp.eq.s32.totalorder %s72, 0
    %p119 = por %p117, %p118
    %p120 = scmp.ne.s32.totalorder %s106, %s107
    %p121 = scmp.eq.s32.totalorder %s73, 1
    %p122 = por %p120, %p121
    %p124 = scmp.ne.s32.totalorder %s107, %s123
    %p125 = scmp.eq.s32.totalorder %s73, 0
    %p126 = por %p124, %p125
    %s127 = ssub.s32 %s67, %s74
    %p128 = scmp.eq.s32.totalorder %s127, 0
    %s130 = sadd.s32 %s129, 1
    %s131 = scalar_select %p128, %s129, %s130
    %p134 = pneg %p128
    %p135 = scmp.eq.s32.totalorder %s67, 1
    %p136 = por %p134, %p135
    %p137 = scmp.ne.s32.totalorder %s129, %s132
    %p138 = scmp.eq.s32.totalorder %s67, 0
    %p139 = por %p137, %p138
    %p140 = scmp.ne.s32.totalorder %s129, %s132
    %p141 = scmp.eq.s32.totalorder %s72, 1
    %p142 = por %p140, %p141
    %p143 = scmp.ne.s32.totalorder %s132, %s133
    %p144 = scmp.eq.s32.totalorder %s72, 0
    %p145 = por %p143, %p144
    %p146 = scmp.ne.s32.totalorder %s132, %s133
    %p147 = scmp.eq.s32.totalorder %s73, 1
    %p148 = por %p146, %p147
    %p150 = scmp.ne.s32.totalorder %s133, %s149
    %p151 = scmp.eq.s32.totalorder %s73, 0
    %p152 = por %p150, %p151
    %s153 = ssub.s32 %s67, %s74
    %p154 = scmp.eq.s32.totalorder %s153, 0
    %s156 = sadd.s32 %s155, 1
    %s157 = scalar_select %p154, %s155, %s156
    %p160 = pneg %p154
    %p161 = scmp.eq.s32.totalorder %s67, 1
    %p162 = por %p160, %p161
    %p163 = scmp.ne.s32.totalorder %s155, %s158
    %p164 = scmp.eq.s32.totalorder %s67, 0
    %p165 = por %p163, %p164
    %p166 = scmp.ne.s32.totalorder %s155, %s158
    %p167 = scmp.eq.s32.totalorder %s72, 1
    %p168 = por %p166, %p167
    %p169 = scmp.ne.s32.totalorder %s158, %s159
    %p170 = scmp.eq.s32.totalorder %s72, 0
    %p171 = por %p169, %p170
    %p172 = scmp.ne.s32.totalorder %s158, %s159
    %p173 = scmp.eq.s32.totalorder %s73, 1
    %p174 = por %p172, %p173
    %p176 = scmp.ne.s32.totalorder %s159, %s175
    %p177 = scmp.eq.s32.totalorder %s73, 0
    %p178 = por %p176, %p177
    %s179 = ssub.s32 %s67, %s74
    %p180 = scmp.eq.s32.totalorder %s179, 0
    %s182 = sadd.s32 %s181, 1
    %s183 = scalar_select %p180, %s181, %s182
    %p186 = pneg %p180
    %p187 = scmp.eq.s32.totalorder %s67, 1
    %p188 = por %p186, %p187
    %p189 = scmp.ne.s32.totalorder %s181, %s184
    %p190 = scmp.eq.s32.totalorder %s67, 0
    %p191 = por %p189, %p190
    %p192 = scmp.ne.s32.totalorder %s181, %s184
    %p193 = scmp.eq.s32.totalorder %s72, 1
    %p194 = por %p192, %p193
    %p195 = scmp.ne.s32.totalorder %s184, %s185
    %p196 = scmp.eq.s32.totalorder %s72, 0
    %p197 = por %p195, %p196
    %p198 = scmp.ne.s32.totalorder %s184, %s185
    %p199 = scmp.eq.s32.totalorder %s73, 1
    %p200 = por %p198, %p199
    %p202 = scmp.ne.s32.totalorder %s185, %s201
    %p203 = scmp.eq.s32.totalorder %s73, 0
    %p204 = por %p202, %p203
    %s205 = ssub.s32 %s67, %s74
    %p206 = scmp.eq.s32.totalorder %s205, 0
    %s208 = sadd.s32 %s207, 1
    %s209 = scalar_select %p206, %s207, %s208
    %p212 = pneg %p206
    %p213 = scmp.eq.s32.totalorder %s67, 1
    %p214 = por %p212, %p213
    %p215 = scmp.ne.s32.totalorder %s207, %s210
    %p216 = scmp.eq.s32.totalorder %s67, 0
    %p217 = por %p215, %p216
    %p218 = scmp.ne.s32.totalorder %s207, %s210
    %p219 = scmp.eq.s32.totalorder %s72, 1
    %p220 = por %p218, %p219
    %p221 = scmp.ne.s32.totalorder %s210, %s211
    %p222 = scmp.eq.s32.totalorder %s72, 0
    %p223 = por %p221, %p222
    %p224 = scmp.ne.s32.totalorder %s210, %s211
    %p225 = scmp.eq.s32.totalorder %s73, 1
    %p226 = por %p224, %p225
    %p228 = scmp.ne.s32.totalorder %s211, %s227
    %p229 = scmp.eq.s32.totalorder %s73, 0
    %p230 = por %p228, %p229
    %s231 = ssub.s32 %s67, %s74
    %p232 = scmp.eq.s32.totalorder %s231, 0
    %s234 = sadd.s32 %s233, 1
    %s235 = scalar_select %p232, %s233, %s234
    %p238 = pneg %p232
    %p239 = scmp.eq.s32.totalorder %s67, 1
    %p240 = por %p238, %p239
    %p241 = scmp.ne.s32.totalorder %s233, %s236
    %p242 = scmp.eq.s32.totalorder %s67, 0
    %p243 = por %p241, %p242
    %p244 = scmp.ne.s32.totalorder %s233, %s236
    %p245 = scmp.eq.s32.totalorder %s72, 1
    %p246 = por %p244, %p245
    %p247 = scmp.ne.s32.totalorder %s236, %s237
    %p248 = scmp.eq.s32.totalorder %s72, 0
    %p249 = por %p247, %p248
    %p250 = scmp.ne.s32.totalorder %s236, %s237
    %p251 = scmp.eq.s32.totalorder %s73, 1
    %p252 = por %p250, %p251
    %p254 = scmp.ne.s32.totalorder %s237, %s253
    %p255 = scmp.eq.s32.totalorder %s73, 0
    %p256 = por %p254, %p255
    %s258 = sadd.s32 %s257, 1
    %p261 = scmp.eq.s32.totalorder %s67, 1
    %p262 = scmp.ne.s32.totalorder %s257, %s259
    %p263 = scmp.eq.s32.totalorder %s67, 0
    %p264 = por %p262, %p263
    %p265 = scmp.ne.s32.totalorder %s257, %s259
    %p266 = scmp.eq.s32.totalorder %s72, 1
    %p267 = por %p265, %p266
    %p268 = scmp.ne.s32.totalorder %s259, %s260
    %p269 = scmp.eq.s32.totalorder %s72, 0
    %p270 = por %p268, %p269
    %p271 = scmp.ne.s32.totalorder %s259, %s260
    %p272 = scmp.eq.s32.totalorder %s73, 1
    %p273 = por %p271, %p272
    %p275 = scmp.ne.s32.totalorder %s260, %s274
    %p276 = scmp.eq.s32.totalorder %s73, 0
    %p277 = por %p275, %p276
    %s279 = sadd.s32 %s278, 1
    %p282 = scmp.eq.s32.totalorder %s67, 1
    %p283 = scmp.ne.s32.totalorder %s278, %s280
    %p284 = scmp.eq.s32.totalorder %s67, 0
    %p285 = por %p283, %p284
    %p286 = scmp.ne.s32.totalorder %s278, %s280
    %p287 = scmp.eq.s32.totalorder %s72, 1
    %p288 = por %p286, %p287
    %p289 = scmp.ne.s32.totalorder %s280, %s281
    %p290 = scmp.eq.s32.totalorder %s72, 0
    %p291 = por %p289, %p290
    %p292 = scmp.ne.s32.totalorder %s280, %s281
    %p293 = scmp.eq.s32.totalorder %s73, 1
    %p294 = por %p292, %p293
    %p296 = scmp.ne.s32.totalorder %s281, %s295
    %p297 = scmp.eq.s32.totalorder %s73, 0
    %p298 = por %p296, %p297
    %s300 = sadd.s32 %s299, 1
    %p303 = scmp.eq.s32.totalorder %s67, 1
    %p304 = scmp.ne.s32.totalorder %s299, %s301
    %p305 = scmp.eq.s32.totalorder %s67, 0
    %p306 = por %p304, %p305
    %p307 = scmp.ne.s32.totalorder %s299, %s301
    %p308 = scmp.eq.s32.totalorder %s72, 1
    %p309 = por %p307, %p308
    %p310 = scmp.ne.s32.totalorder %s301, %s302
    %p311 = scmp.eq.s32.totalorder %s72, 0
    %p312 = por %p310, %p311
    %p313 = scmp.ne.s32.totalorder %s301, %s302
    %p314 = scmp.eq.s32.totalorder %s73, 1
    %p315 = por %p313, %p314
    %p317 = scmp.ne.s32.totalorder %s302, %s316
    %p318 = scmp.eq.s32.totalorder %s73, 0
    %p319 = por %p317, %p318
    %s321 = sadd.s32 %s320, 1
    %p324 = scmp.eq.s32.totalorder %s67, 1
    %p325 = scmp.ne.s32.totalorder %s320, %s322
    %p326 = scmp.eq.s32.totalorder %s67, 0
    %p327 = por %p325, %p326
    %p328 = scmp.ne.s32.totalorder %s320, %s322
    %p329 = scmp.eq.s32.totalorder %s72, 1
    %p330 = por %p328, %p329
    %p331 = scmp.ne.s32.totalorder %s322, %s323
    %p332 = scmp.eq.s32.totalorder %s72, 0
    %p333 = por %p331, %p332
    %p334 = scmp.ne.s32.totalorder %s322, %s323
    %p335 = scmp.eq.s32.totalorder %s73, 1
    %p336 = por %p334, %p335
    %p338 = scmp.ne.s32.totalorder %s323, %s337
    %p339 = scmp.eq.s32.totalorder %s73, 0
    %p340 = por %p338, %p339
    %s342 = sadd.s32 %s341, 1
    %p345 = scmp.eq.s32.totalorder %s67, 1
    %p346 = scmp.ne.s32.totalorder %s341, %s343
    %p347 = scmp.eq.s32.totalorder %s67, 0
    %p348 = por %p346, %p347
    %p349 = scmp.ne.s32.totalorder %s341, %s343
    %p350 = scmp.eq.s32.totalorder %s72, 1
    %p351 = por %p349, %p350
    %p352 = scmp.ne.s32.totalorder %s343, %s344
    %p353 = scmp.eq.s32.totalorder %s72, 0
    %p354 = por %p352, %p353
    %p355 = scmp.ne.s32.totalorder %s343, %s344
    %p356 = scmp.eq.s32.totalorder %s73, 1
    %p357 = por %p355, %p356
    %p359 = scmp.ne.s32.totalorder %s344, %s358
    %p360 = scmp.eq.s32.totalorder %s73, 0
    %p361 = por %p359, %p360
    %s363 = sadd.s32 %s362, 1
    %p366 = scmp.eq.s32.totalorder %s67, 1
    %p367 = scmp.ne.s32.totalorder %s362, %s364
    %p368 = scmp.eq.s32.totalorder %s67, 0
    %p369 = por %p367, %p368
    %p370 = scmp.ne.s32.totalorder %s362, %s364
    %p371 = scmp.eq.s32.totalorder %s72, 1
    %p372 = por %p370, %p371
    %p373 = scmp.ne.s32.totalorder %s364, %s365
    %p374 = scmp.eq.s32.totalorder %s72, 0
    %p375 = por %p373, %p374
    %p376 = scmp.ne.s32.totalorder %s364, %s365
    %p377 = scmp.eq.s32.totalorder %s73, 1
    %p378 = por %p376, %p377
    %p380 = scmp.ne.s32.totalorder %s365, %s379
    %p381 = scmp.eq.s32.totalorder %s73, 0
    %p382 = por %p380, %p381
    %s384 = sadd.s32 %s383, 1
    %p387 = scmp.eq.s32.totalorder %s67, 1
    %p388 = scmp.ne.s32.totalorder %s383, %s385
    %p389 = scmp.eq.s32.totalorder %s67, 0
    %p390 = por %p388, %p389
    %p391 = scmp.ne.s32.totalorder %s383, %s385
    %p392 = scmp.eq.s32.totalorder %s72, 1
    %p393 = por %p391, %p392
    %p394 = scmp.ne.s32.totalorder %s385, %s386
    %p395 = scmp.eq.s32.totalorder %s72, 0
    %p396 = por %p394, %p395
    %p397 = scmp.ne.s32.totalorder %s385, %s386
    %p398 = scmp.eq.s32.totalorder %s73, 1
    %p399 = por %p397, %p398
    %p401 = scmp.ne.s32.totalorder %s386, %s400
    %p402 = scmp.eq.s32.totalorder %s73, 0
    %p403 = por %p401, %p402
    %s405 = sadd.s32 %s404, 1
    %p408 = scmp.eq.s32.totalorder %s67, 1
    %p409 = scmp.ne.s32.totalorder %s404, %s406
    %p410 = scmp.eq.s32.totalorder %s67, 0
    %p411 = por %p409, %p410
    %p412 = scmp.ne.s32.totalorder %s404, %s406
    %p413 = scmp.eq.s32.totalorder %s72, 1
    %p414 = por %p412, %p413
    %p415 = scmp.ne.s32.totalorder %s406, %s407
    %p416 = scmp.eq.s32.totalorder %s72, 0
    %p417 = por %p415, %p416
    %p418 = scmp.ne.s32.totalorder %s406, %s407
    %p419 = scmp.eq.s32.totalorder %s73, 1
    %p420 = por %p418, %p419
    %p422 = scmp.ne.s32.totalorder %s407, %s421
    %p423 = scmp.eq.s32.totalorder %s73, 0
    %p424 = por %p422, %p423
    %s426 = sadd.s32 %s425, 1
    %p429 = scmp.eq.s32.totalorder %s67, 1
    %p430 = scmp.ne.s32.totalorder %s425, %s427
    %p431 = scmp.eq.s32.totalorder %s67, 0
    %p432 = por %p430, %p431
    %p433 = scmp.ne.s32.totalorder %s425, %s427
    %p434 = scmp.eq.s32.totalorder %s72, 1
    %p435 = por %p433, %p434
    %p436 = scmp.ne.s32.totalorder %s427, %s428
    %p437 = scmp.eq.s32.totalorder %s72, 0
    %p438 = por %p436, %p437
    %p439 = scmp.ne.s32.totalorder %s427, %s428
    %p440 = scmp.eq.s32.totalorder %s73, 1
    %p441 = por %p439, %p440
    %p443 = scmp.ne.s32.totalorder %s428, %s442
    %p444 = scmp.eq.s32.totalorder %s73, 0
    %p445 = por %p443, %p444
    %s447 = sadd.s32 %s446, 1
    %p450 = scmp.eq.s32.totalorder %s67, 1
    %p451 = scmp.ne.s32.totalorder %s446, %s448
    %p452 = scmp.eq.s32.totalorder %s67, 0
    %p453 = por %p451, %p452
    %p454 = scmp.ne.s32.totalorder %s446, %s448
    %p455 = scmp.eq.s32.totalorder %s72, 1
    %p456 = por %p454, %p455
    %p457 = scmp.ne.s32.totalorder %s448, %s449
    %p458 = scmp.eq.s32.totalorder %s72, 0
    %p459 = por %p457, %p458
    %p460 = scmp.ne.s32.totalorder %s448, %s449
    %p461 = scmp.eq.s32.totalorder %s73, 1
    %p462 = por %p460, %p461
    %p464 = scmp.ne.s32.totalorder %s449, %s463
    %p465 = scmp.eq.s32.totalorder %s73, 0
    %p466 = por %p464, %p465
    %s468 = sadd.s32 %s467, 1
    %p471 = scmp.eq.s32.totalorder %s67, 1
    %p472 = scmp.ne.s32.totalorder %s467, %s469
    %p473 = scmp.eq.s32.totalorder %s67, 0
    %p474 = por %p472, %p473
    %p475 = scmp.ne.s32.totalorder %s467, %s469
    %p476 = scmp.eq.s32.totalorder %s72, 1
    %p477 = por %p475, %p476
    %p478 = scmp.ne.s32.totalorder %s469, %s470
    %p479 = scmp.eq.s32.totalorder %s72, 0
    %p480 = por %p478, %p479
    %p481 = scmp.ne.s32.totalorder %s469, %s470
    %p482 = scmp.eq.s32.totalorder %s73, 1
    %p483 = por %p481, %p482
    %p485 = scmp.ne.s32.totalorder %s470, %s484
    %p486 = scmp.eq.s32.totalorder %s73, 0
    %p487 = por %p485, %p486
    %s488 = ssub.s32 %s67, %s74
    %p489 = scmp.eq.s32.totalorder %s488, 0
    %s491 = sadd.s32 %s490, 1
    %s492 = scalar_select %p489, %s490, %s491
    %p495 = pneg %p489
    %p496 = scmp.eq.s32.totalorder %s67, 1
    %p497 = por %p495, %p496
    %p498 = scmp.ne.s32.totalorder %s490, %s493
    %p499 = scmp.eq.s32.totalorder %s67, 0
    %p500 = por %p498, %p499
    %p501 = scmp.ne.s32.totalorder %s490, %s493
    %p502 = scmp.eq.s32.totalorder %s72, 1
    %p503 = por %p501, %p502
    %p504 = scmp.ne.s32.totalorder %s493, %s494
    %p505 = scmp.eq.s32.totalorder %s72, 0
    %p506 = por %p504, %p505
    %p507 = scmp.ne.s32.totalorder %s493, %s494
    %p508 = scmp.eq.s32.totalorder %s73, 1
    %p509 = por %p507, %p508
    %p511 = scmp.ne.s32.totalorder %s494, %s510
    %p512 = scmp.eq.s32.totalorder %s73, 0
    %p513 = por %p511, %p512
    %s514 = ssub.s32 %s67, %s74
    %p515 = scmp.eq.s32.totalorder %s514, 0
    %s517 = sadd.s32 %s516, 1
    %s518 = scalar_select %p515, %s516, %s517
    %p521 = pneg %p515
    %p522 = scmp.eq.s32.totalorder %s67, 1
    %p523 = por %p521, %p522
    %p524 = scmp.ne.s32.totalorder %s516, %s519
    %p525 = scmp.eq.s32.totalorder %s67, 0
    %p526 = por %p524, %p525
    %p527 = scmp.ne.s32.totalorder %s516, %s519
    %p528 = scmp.eq.s32.totalorder %s72, 1
    %p529 = por %p527, %p528
    %p530 = scmp.ne.s32.totalorder %s519, %s520
    %p531 = scmp.eq.s32.totalorder %s72, 0
    %p532 = por %p530, %p531
    %p533 = scmp.ne.s32.totalorder %s519, %s520
    %p534 = scmp.eq.s32.totalorder %s73, 1
    %p535 = por %p533, %p534
    %p537 = scmp.ne.s32.totalorder %s520, %s536
    %p538 = scmp.eq.s32.totalorder %s73, 0
    %p539 = por %p537, %p538
    %s540 = ssub.s32 %s67, %s74
    %p541 = scmp.eq.s32.totalorder %s540, 0
    %s543 = sadd.s32 %s542, 1
    %s544 = scalar_select %p541, %s542, %s543
    %p547 = pneg %p541
    %p548 = scmp.eq.s32.totalorder %s67, 1
    %p549 = por %p547, %p548
    %p550 = scmp.ne.s32.totalorder %s542, %s545
    %p551 = scmp.eq.s32.totalorder %s67, 0
    %p552 = por %p550, %p551
    %p553 = scmp.ne.s32.totalorder %s542, %s545
    %p554 = scmp.eq.s32.totalorder %s72, 1
    %p555 = por %p553, %p554
    %p556 = scmp.ne.s32.totalorder %s545, %s546
    %p557 = scmp.eq.s32.totalorder %s72, 0
    %p558 = por %p556, %p557
    %p559 = scmp.ne.s32.totalorder %s545, %s546
    %p560 = scmp.eq.s32.totalorder %s73, 1
    %p561 = por %p559, %p560
    %p563 = scmp.ne.s32.totalorder %s546, %s562
    %p564 = scmp.eq.s32.totalorder %s73, 0
    %p565 = por %p563, %p564
    %s566 = ssub.s32 %s67, %s74
    %p567 = scmp.eq.s32.totalorder %s566, 0
    %s569 = sadd.s32 %s568, 1
    %s570 = scalar_select %p567, %s568, %s569
    %p573 = pneg %p567
    %p574 = scmp.eq.s32.totalorder %s67, 1
    %p575 = por %p573, %p574
    %p576 = scmp.ne.s32.totalorder %s568, %s571
    %p577 = scmp.eq.s32.totalorder %s67, 0
    %p578 = por %p576, %p577
    %p579 = scmp.ne.s32.totalorder %s568, %s571
    %p580 = scmp.eq.s32.totalorder %s72, 1
    %p581 = por %p579, %p580
    %p582 = scmp.ne.s32.totalorder %s571, %s572
    %p583 = scmp.eq.s32.totalorder %s72, 0
    %p584 = por %p582, %p583
    %p585 = scmp.ne.s32.totalorder %s571, %s572
    %p586 = scmp.eq.s32.totalorder %s73, 1
    %p587 = por %p585, %p586
    %p589 = scmp.ne.s32.totalorder %s572, %s588
    %p590 = scmp.eq.s32.totalorder %s73, 0
    %p591 = por %p589, %p590
    %s592 = ssub.s32 %s67, %s74
    %p593 = scmp.eq.s32.totalorder %s592, 0
    %s595 = sadd.s32 %s594, 1
    %s596 = scalar_select %p593, %s594, %s595
    %p599 = pneg %p593
    %p600 = scmp.eq.s32.totalorder %s67, 1
    %p601 = por %p599, %p600
    %p602 = scmp.ne.s32.totalorder %s594, %s597
    %p603 = scmp.eq.s32.totalorder %s67, 0
    %p604 = por %p602, %p603
    %p605 = scmp.ne.s32.totalorder %s594, %s597
    %p606 = scmp.eq.s32.totalorder %s72, 1
    %p607 = por %p605, %p606
    %p608 = scmp.ne.s32.totalorder %s597, %s598
    %p609 = scmp.eq.s32.totalorder %s72, 0
    %p610 = por %p608, %p609
    %p611 = scmp.ne.s32.totalorder %s597, %s598
    %p612 = scmp.eq.s32.totalorder %s73, 1
    %p613 = por %p611, %p612
    %p615 = scmp.ne.s32.totalorder %s598, %s614
    %p616 = scmp.eq.s32.totalorder %s73, 0
    %p617 = por %p615, %p616
    %s618 = ssub.s32 %s67, %s74
    %p619 = scmp.eq.s32.totalorder %s618, 0
    %s621 = sadd.s32 %s620, 1
    %s622 = scalar_select %p619, %s620, %s621
    %p625 = pneg %p619
    %p626 = scmp.eq.s32.totalorder %s67, 1
    %p627 = por %p625, %p626
    %p628 = scmp.ne.s32.totalorder %s620, %s623
    %p629 = scmp.eq.s32.totalorder %s67, 0
    %p630 = por %p628, %p629
    %p631 = scmp.ne.s32.totalorder %s620, %s623
    %p632 = scmp.eq.s32.totalorder %s72, 1
    %p633 = por %p631, %p632
    %p634 = scmp.ne.s32.totalorder %s623, %s624
    %p635 = scmp.eq.s32.totalorder %s72, 0
    %p636 = por %p634, %p635
    %p637 = scmp.ne.s32.totalorder %s623, %s624
    %p638 = scmp.eq.s32.totalorder %s73, 1
    %p639 = por %p637, %p638
    %p641 = scmp.ne.s32.totalorder %s624, %s640
    %p642 = scmp.eq.s32.totalorder %s73, 0
    %p643 = por %p641, %p642
    %s644 = ssub.s32 %s67, %s74
    %p645 = scmp.eq.s32.totalorder %s644, 0
    %s647 = sadd.s32 %s646, 1
    %s648 = scalar_select %p645, %s646, %s647
    %p651 = pneg %p645
    %p652 = scmp.eq.s32.totalorder %s67, 1
    %p653 = por %p651, %p652
    %p654 = scmp.ne.s32.totalorder %s646, %s649
    %p655 = scmp.eq.s32.totalorder %s67, 0
    %p656 = por %p654, %p655
    %p657 = scmp.ne.s32.totalorder %s646, %s649
    %p658 = scmp.eq.s32.totalorder %s72, 1
    %p659 = por %p657, %p658
    %p660 = scmp.ne.s32.totalorder %s649, %s650
    %p661 = scmp.eq.s32.totalorder %s72, 0
    %p662 = por %p660, %p661
    %p663 = scmp.ne.s32.totalorder %s649, %s650
    %p664 = scmp.eq.s32.totalorder %s73, 1
    %p665 = por %p663, %p664
    %p667 = scmp.ne.s32.totalorder %s650, %s666
    %p668 = scmp.eq.s32.totalorder %s73, 0
    %p669 = por %p667, %p668
    %s670 = ssub.s32 %s67, %s74
    %p671 = scmp.eq.s32.totalorder %s670, 0
    %s673 = sadd.s32 %s672, 1
    %s674 = scalar_select %p671, %s672, %s673
    %p677 = pneg %p671
    %p678 = scmp.eq.s32.totalorder %s67, 1
    %p679 = por %p677, %p678
    %p680 = scmp.ne.s32.totalorder %s672, %s675
    %p681 = scmp.eq.s32.totalorder %s67, 0
    %p682 = por %p680, %p681
    %p683 = scmp.ne.s32.totalorder %s672, %s675
    %p684 = scmp.eq.s32.totalorder %s72, 1
    %p685 = por %p683, %p684
    %p686 = scmp.ne.s32.totalorder %s675, %s676
    %p687 = scmp.eq.s32.totalorder %s72, 0
    %p688 = por %p686, %p687
    %p689 = scmp.ne.s32.totalorder %s675, %s676
    %p690 = scmp.eq.s32.totalorder %s73, 1
    %p691 = por %p689, %p690
    %p693 = scmp.ne.s32.totalorder %s676, %s692
    %p694 = scmp.eq.s32.totalorder %s73, 0
    %p695 = por %p693, %p694
    %s696 = ssub.s32 %s67, %s74
    %p697 = scmp.eq.s32.totalorder %s696, 0
    %s699 = sadd.s32 %s698, 1
    %s700 = scalar_select %p697, %s698, %s699
    %p703 = pneg %p697
    %p704 = scmp.eq.s32.totalorder %s67, 1
    %p705 = por %p703, %p704
    %p706 = scmp.ne.s32.totalorder %s698, %s701
    %p707 = scmp.eq.s32.totalorder %s67, 0
    %p708 = por %p706, %p707
    %p709 = scmp.ne.s32.totalorder %s698, %s701
    %p710 = scmp.eq.s32.totalorder %s72, 1
    %p711 = por %p709, %p710
    %p712 = scmp.ne.s32.totalorder %s701, %s702
    %p713 = scmp.eq.s32.totalorder %s72, 0
    %p714 = por %p712, %p713
    %p715 = scmp.ne.s32.totalorder %s701, %s702
    %p716 = scmp.eq.s32.totalorder %s73, 1
    %p717 = por %p715, %p716
    %p719 = scmp.ne.s32.totalorder %s702, %s718
    %p720 = scmp.eq.s32.totalorder %s73, 0
    %p721 = por %p719, %p720
    %s722 = ssub.s32 %s67, %s74
    %p723 = scmp.eq.s32.totalorder %s722, 0
    %s725 = sadd.s32 %s724, 1
    %s726 = scalar_select %p723, %s724, %s725
    %p729 = pneg %p723
    %p730 = scmp.eq.s32.totalorder %s67, 1
    %p731 = por %p729, %p730
    %p732 = scmp.ne.s32.totalorder %s724, %s727
    %p733 = scmp.eq.s32.totalorder %s67, 0
    %p734 = por %p732, %p733
    %p735 = scmp.ne.s32.totalorder %s724, %s727
    %p736 = scmp.eq.s32.totalorder %s72, 1
    %p737 = por %p735, %p736
    %p738 = scmp.ne.s32.totalorder %s727, %s728
    %p739 = scmp.eq.s32.totalorder %s72, 0
    %p740 = por %p738, %p739
    %p741 = scmp.ne.s32.totalorder %s727, %s728
    %p742 = scmp.eq.s32.totalorder %s73, 1
    %p743 = por %p741, %p742
    %p745 = scmp.ne.s32.totalorder %s728, %s744
    %p746 = scmp.eq.s32.totalorder %s73, 0
    %p747 = por %p745, %p746
    %s748 = ssub.s32 %s67, %s74
    %p749 = scmp.eq.s32.totalorder %s748, 0
    %s751 = sadd.s32 %s750, 1
    %s752 = scalar_select %p749, %s750, %s751
    %p755 = pneg %p749
    %p756 = scmp.eq.s32.totalorder %s67, 1
    %p757 = por %p755, %p756
    %p758 = scmp.ne.s32.totalorder %s750, %s753
    %p759 = scmp.eq.s32.totalorder %s67, 0
    %p760 = por %p758, %p759
    %p761 = scmp.ne.s32.totalorder %s750, %s753
    %p762 = scmp.eq.s32.totalorder %s72, 1
    %p763 = por %p761, %p762
    %p764 = scmp.ne.s32.totalorder %s753, %s754
    %p765 = scmp.eq.s32.totalorder %s72, 0
    %p766 = por %p764, %p765
    %p767 = scmp.ne.s32.totalorder %s753, %s754
    %p768 = scmp.eq.s32.totalorder %s73, 1
    %p769 = por %p767, %p768
    %p771 = scmp.ne.s32.totalorder %s754, %s770
    %p772 = scmp.eq.s32.totalorder %s73, 0
    %p773 = por %p771, %p772
    %s774 = ssub.s32 %s67, %s74
    %p775 = scmp.eq.s32.totalorder %s774, 0
    %s777 = sadd.s32 %s776, 1
    %s778 = scalar_select %p775, %s776, %s777
    %p781 = pneg %p775
    %p782 = scmp.eq.s32.totalorder %s67, 1
    %p783 = por %p781, %p782
    %p784 = scmp.ne.s32.totalorder %s776, %s779
    %p785 = scmp.eq.s32.totalorder %s67, 0
    %p786 = por %p784, %p785
    %p787 = scmp.ne.s32.totalorder %s776, %s779
    %p788 = scmp.eq.s32.totalorder %s72, 1
    %p789 = por %p787, %p788
    %p790 = scmp.ne.s32.totalorder %s779, %s780
    %p791 = scmp.eq.s32.totalorder %s72, 0
    %p792 = por %p790, %p791
    %p793 = scmp.ne.s32.totalorder %s779, %s780
    %p794 = scmp.eq.s32.totalorder %s73, 1
    %p795 = por %p793, %p794
    %p797 = scmp.ne.s32.totalorder %s780, %s796
    %p798 = scmp.eq.s32.totalorder %s73, 0
    %p799 = por %p797, %p798
    %s800 = ssub.s32 %s67, %s74
    %p801 = scmp.eq.s32.totalorder %s800, 0
    %s803 = sadd.s32 %s802, 1
    %s804 = scalar_select %p801, %s802, %s803
    %p807 = pneg %p801
    %p808 = scmp.eq.s32.totalorder %s67, 1
    %p809 = por %p807, %p808
    %p810 = scmp.ne.s32.totalorder %s802, %s805
    %p811 = scmp.eq.s32.totalorder %s67, 0
    %p812 = por %p810, %p811
    %p813 = scmp.ne.s32.totalorder %s802, %s805
    %p814 = scmp.eq.s32.totalorder %s72, 1
    %p815 = por %p813, %p814
    %p816 = scmp.ne.s32.totalorder %s805, %s806
    %p817 = scmp.eq.s32.totalorder %s72, 0
    %p818 = por %p816, %p817
    %p819 = scmp.ne.s32.totalorder %s805, %s806
    %p820 = scmp.eq.s32.totalorder %s73, 1
    %p821 = por %p819, %p820
    %p823 = scmp.ne.s32.totalorder %s806, %s822
    %p824 = scmp.eq.s32.totalorder %s73, 0
    %p825 = por %p823, %p824
    %p826 = scmp.le.s32.totalorder 1, %s67
    %p827 = scmp.lt.s32.totalorder %s67, 3
    %p828 = pnand %p826, %p827
    %p829 = pneg %p828
    // Predicated region
    $region9: #{forward.1} parent=5 // pred_check
      _
    $region10: #{forward.1} parent=5 // pred_check_branch
      %831 = sbr.rel (%p828) target = $region12
    $region11: #{forward.1} parent=5 // pred_region
      %s832 = ssub.s32 %s67, 1
      // Predicated region
      $region13: #{forward.1} parent=11 // pred_check
        %p833 = pneg %p270
      $region14: #{forward.1} parent=11 // pred_check_branch
        %835 = sbr.rel (%p833) target = $region16
      $region15: #{forward.1} parent=11 // pred_region
        _
      $region16: #{forward.1} parent=11 // pred_fallthru
        _
      // Predicated region
      $region17: #{forward.1} parent=11 // pred_check
        %p836 = pneg %p291
      $region18: #{forward.1} parent=11 // pred_check_branch
        %838 = sbr.rel (%p836) target = $region20
      $region19: #{forward.1} parent=11 // pred_region
        _
      $region20: #{forward.1} parent=11 // pred_fallthru
        _
      // Predicated region
      $region21: #{forward.1} parent=11 // pred_check
        %p839 = pneg %p312
      $region22: #{forward.1} parent=11 // pred_check_branch
        %841 = sbr.rel (%p839) target = $region24
      $region23: #{forward.1} parent=11 // pred_region
        _
      $region24: #{forward.1} parent=11 // pred_fallthru
        _
      // Predicated region
      $region25: #{forward.1} parent=11 // pred_check
        %p842 = pneg %p333
      $region26: #{forward.1} parent=11 // pred_check_branch
        %844 = sbr.rel (%p842) target = $region28
      $region27: #{forward.1} parent=11 // pred_region
        _
      $region28: #{forward.1} parent=11 // pred_fallthru
        _
      // Predicated region
      $region29: #{forward.1} parent=11 // pred_check
        %p845 = pneg %p354
      $region30: #{forward.1} parent=11 // pred_check_branch
        %847 = sbr.rel (%p845) target = $region32
      $region31: #{forward.1} parent=11 // pred_region
        _
      $region32: #{forward.1} parent=11 // pred_fallthru
        _
      // Predicated region
      $region33: #{forward.1} parent=11 // pred_check
        %p848 = pneg %p375
      $region34: #{forward.1} parent=11 // pred_check_branch
        %850 = sbr.rel (%p848) target = $region36
      $region35: #{forward.1} parent=11 // pred_region
        _
      $region36: #{forward.1} parent=11 // pred_fallthru
        _
      // Predicated region
      $region37: #{forward.1} parent=11 // pred_check
        %p851 = pneg %p396
      $region38: #{forward.1} parent=11 // pred_check_branch
        %853 = sbr.rel (%p851) target = $region40
      $region39: #{forward.1} parent=11 // pred_region
        _
      $region40: #{forward.1} parent=11 // pred_fallthru
        _
      // Predicated region
      $region41: #{forward.1} parent=11 // pred_check
        %p854 = pneg %p417
      $region42: #{forward.1} parent=11 // pred_check_branch
        %856 = sbr.rel (%p854) target = $region44
      $region43: #{forward.1} parent=11 // pred_region
        _
      $region44: #{forward.1} parent=11 // pred_fallthru
        _
      // Predicated region
      $region45: #{forward.1} parent=11 // pred_check
        %p857 = pneg %p438
      $region46: #{forward.1} parent=11 // pred_check_branch
        %859 = sbr.rel (%p857) target = $region48
      $region47: #{forward.1} parent=11 // pred_region
        _
      $region48: #{forward.1} parent=11 // pred_fallthru
        _
      // Predicated region
      $region49: #{forward.1} parent=11 // pred_check
        %p860 = pneg %p459
      $region50: #{forward.1} parent=11 // pred_check_branch
        %862 = sbr.rel (%p860) target = $region52
      $region51: #{forward.1} parent=11 // pred_region
        _
      $region52: #{forward.1} parent=11 // pred_fallthru
        _
      // Predicated region
      $region53: #{forward.1} parent=11 // pred_check
        %p863 = pneg %p480
      $region54: #{forward.1} parent=11 // pred_check_branch
        %865 = sbr.rel (%p863) target = $region56
      $region55: #{forward.1} parent=11 // pred_region
        _
      $region56: #{forward.1} parent=11 // pred_fallthru
        _
    $region12: #{forward.1} parent=5 // pred_fallthru
      _
    %p866 = scmp.lt.s32.totalorder %s67, 2
    // Predicated region
    $region57: #{forward.1} parent=5 // pred_check
      %p867 = pneg %p866
    $region58: #{forward.1} parent=5 // pred_check_branch
      %869 = sbr.rel (%p867) target = $region60
    $region59: #{forward.1} parent=5 // pred_region
      // Predicated region
      $region61: #{forward.1} parent=59 // pred_check
        %p870 = pneg %p87
      $region62: #{forward.1} parent=59 // pred_check_branch
        %872 = sbr.rel (%p870) target = $region64
      $region63: #{forward.1} parent=59 // pred_region
        %p873 = scmp.lt.s32.totalorder %s67, 1
        %s874 = scalar_select %p873, %s67, 1
        %s875 = smul.addr %s874, 2
        %s876 = smul.addr %s875, 8
        %s877 = scalar_lea.vmem %s1, %s876
      $region64: #{forward.1} parent=59 // pred_fallthru
        _
      // Predicated region
      $region65: #{forward.1} parent=59 // pred_check
        %p878 = pneg %p113
      $region66: #{forward.1} parent=59 // pred_check_branch
        %880 = sbr.rel (%p878) target = $region68
      $region67: #{forward.1} parent=59 // pred_region
        %p881 = scmp.lt.s32.totalorder %s67, 1
        %s882 = scalar_select %p881, %s67, 1
        %s883 = smul.addr %s882, 112
        %s884 = smul.addr %s883, 8
        %s885 = scalar_lea.vmem %s3, %s884
      $region68: #{forward.1} parent=59 // pred_fallthru
        _
      // Predicated region
      $region69: #{forward.1} parent=59 // pred_check
        %p886 = pneg %p139
      $region70: #{forward.1} parent=59 // pred_check_branch
        %888 = sbr.rel (%p886) target = $region72
      $region71: #{forward.1} parent=59 // pred_region
        %p889 = scmp.lt.s32.totalorder %s67, 1
        %s890 = scalar_select %p889, %s67, 1
        %s891 = smul.addr %s890, 5
        %s892 = scalar_lea.vmem %s5, %s891
      $region72: #{forward.1} parent=59 // pred_fallthru
        _
      // Predicated region
      $region73: #{forward.1} parent=59 // pred_check
        %p893 = pneg %p165
      $region74: #{forward.1} parent=59 // pred_check_branch
        %895 = sbr.rel (%p893) target = $region76
      $region75: #{forward.1} parent=59 // pred_region
        %p896 = scmp.lt.s32.totalorder %s67, 1
        %s897 = scalar_select %p896, %s67, 1
        %s898 = smul.addr %s897, 32
        %s899 = smul.addr %s898, 8
        %s900 = scalar_lea.vmem %s7, %s899
      $region76: #{forward.1} parent=59 // pred_fallthru
        _
      // Predicated region
      $region77: #{forward.1} parent=59 // pred_check
        %p901 = pneg %p191
      $region78: #{forward.1} parent=59 // pred_check_branch
        %903 = sbr.rel (%p901) target = $region80
      $region79: #{forward.1} parent=59 // pred_region
        %p904 = scmp.lt.s32.totalorder %s67, 1
        %s905 = scalar_select %p904, %s67, 1
        %s906 = smul.addr %s905, 5
        %s907 = scalar_lea.vmem %s9, %s906
      $region80: #{forward.1} parent=59 // pred_fallthru
        _
      // Predicated region
      $region81: #{forward.1} parent=59 // pred_check
        %p908 = pneg %p217
      $region82: #{forward.1} parent=59 // pred_check_branch
        %910 = sbr.rel (%p908) target = $region84
      $region83: #{forward.1} parent=59 // pred_region
        %p911 = scmp.lt.s32.totalorder %s67, 1
        %s912 = scalar_select %p911, %s67, 1
        %s913 = smul.addr %s912, 16
        %s914 = smul.addr %s913, 8
        %s915 = scalar_lea.vmem %s11, %s914
      $region84: #{forward.1} parent=59 // pred_fallthru
        _
      // Predicated region
      $region85: #{forward.1} parent=59 // pred_check
        %p916 = pneg %p243
      $region86: #{forward.1} parent=59 // pred_check_branch
        %918 = sbr.rel (%p916) target = $region88
      $region87: #{forward.1} parent=59 // pred_region
        %p919 = scmp.lt.s32.totalorder %s67, 1
        %s920 = scalar_select %p919, %s67, 1
        %s921 = smul.addr %s920, 5
        %s922 = scalar_lea.vmem %s13, %s921
      $region88: #{forward.1} parent=59 // pred_fallthru
        _
      // Predicated region
      $region89: #{forward.1} parent=59 // pred_check
        %p923 = pneg %p500
      $region90: #{forward.1} parent=59 // pred_check_branch
        %925 = sbr.rel (%p923) target = $region92
      $region91: #{forward.1} parent=59 // pred_region
        %p926 = scmp.lt.s32.totalorder %s67, 1
        %s927 = scalar_select %p926, %s67, 1
        %s928 = smul.addr %s927, 2
        %s929 = smul.addr %s928, 8
        %s930 = scalar_lea.vmem %s37, %s929
      $region92: #{forward.1} parent=59 // pred_fallthru
        _
      // Predicated region
      $region93: #{forward.1} parent=59 // pred_check
        %p931 = pneg %p526
      $region94: #{forward.1} parent=59 // pred_check_branch
        %933 = sbr.rel (%p931) target = $region96
      $region95: #{forward.1} parent=59 // pred_region
        %p934 = scmp.lt.s32.totalorder %s67, 1
        %s935 = scalar_select %p934, %s67, 1
        %s936 = smul.addr %s935, 4
        %s937 = smul.addr %s936, 8
        %s938 = scalar_lea.vmem %s39, %s937
      $region96: #{forward.1} parent=59 // pred_fallthru
        _
      // Predicated region
      $region97: #{forward.1} parent=59 // pred_check
        %p939 = pneg %p552
      $region98: #{forward.1} parent=59 // pred_check_branch
        %941 = sbr.rel (%p939) target = $region100
      $region99: #{forward.1} parent=59 // pred_region
        %p942 = scmp.lt.s32.totalorder %s67, 1
        %s943 = scalar_select %p942, %s67, 1
        %s944 = smul.addr %s943, 4
        %s945 = smul.addr %s944, 8
        %s946 = scalar_lea.vmem %s41, %s945
      $region100: #{forward.1} parent=59 // pred_fallthru
        _
      // Predicated region
      $region101: #{forward.1} parent=59 // pred_check
        %p947 = pneg %p578
      $region102: #{forward.1} parent=59 // pred_check_branch
        %949 = sbr.rel (%p947) target = $region104
      $region103: #{forward.1} parent=59 // pred_region
        %p950 = scmp.lt.s32.totalorder %s67, 1
        %s951 = scalar_select %p950, %s67, 1
        %s952 = smul.addr %s951, 8
        %s953 = scalar_lea.vmem %s43, %s952
      $region104: #{forward.1} parent=59 // pred_fallthru
        _
      // Predicated region
      $region105: #{forward.1} parent=59 // pred_check
        %p954 = pneg %p604
      $region106: #{forward.1} parent=59 // pred_check_branch
        %956 = sbr.rel (%p954) target = $region108
      $region107: #{forward.1} parent=59 // pred_region
        %p957 = scmp.lt.s32.totalorder %s67, 1
        %s958 = scalar_select %p957, %s67, 1
        %s959 = smul.addr %s958, 8
        %s960 = scalar_lea.vmem %s45, %s959
      $region108: #{forward.1} parent=59 // pred_fallthru
        _
      // Predicated region
      $region109: #{forward.1} parent=59 // pred_check
        %p961 = pneg %p630
      $region110: #{forward.1} parent=59 // pred_check_branch
        %963 = sbr.rel (%p961) target = $region112
      $region111: #{forward.1} parent=59 // pred_region
        %p964 = scmp.lt.s32.totalorder %s67, 1
        %s965 = scalar_select %p964, %s67, 1
        %s966 = smul.addr %s965, 3
        %s967 = smul.addr %s966, 8
        %s968 = scalar_lea.vmem %s47, %s967
      $region112: #{forward.1} parent=59 // pred_fallthru
        _
      // Predicated region
      $region113: #{forward.1} parent=59 // pred_check
        %p969 = pneg %p656
      $region114: #{forward.1} parent=59 // pred_check_branch
        %971 = sbr.rel (%p969) target = $region116
      $region115: #{forward.1} parent=59 // pred_region
        %p972 = scmp.lt.s32.totalorder %s67, 1
        %s973 = scalar_select %p972, %s67, 1
        %s974 = smul.addr %s973, 3
        %s975 = smul.addr %s974, 8
        %s976 = scalar_lea.vmem %s49, %s975
      $region116: #{forward.1} parent=59 // pred_fallthru
        _
      // Predicated region
      $region117: #{forward.1} parent=59 // pred_check
        %p977 = pneg %p682
      $region118: #{forward.1} parent=59 // pred_check_branch
        %979 = sbr.rel (%p977) target = $region120
      $region119: #{forward.1} parent=59 // pred_region
        %p980 = scmp.lt.s32.totalorder %s67, 1
        %s981 = scalar_select %p980, %s67, 1
        %s982 = smul.addr %s981, 4
        %s983 = scalar_lea.vmem %s51, %s982
      $region120: #{forward.1} parent=59 // pred_fallthru
        _
      // Predicated region
      $region121: #{forward.1} parent=59 // pred_check
        %p984 = pneg %p708
      $region122: #{forward.1} parent=59 // pred_check_branch
        %986 = sbr.rel (%p984) target = $region124
      $region123: #{forward.1} parent=59 // pred_region
        %p987 = scmp.lt.s32.totalorder %s67, 1
        %s988 = scalar_select %p987, %s67, 1
        %s989 = smul.addr %s988, 4
        %s990 = scalar_lea.vmem %s53, %s989
      $region124: #{forward.1} parent=59 // pred_fallthru
        _
      // Predicated region
      $region125: #{forward.1} parent=59 // pred_check
        %p991 = pneg %p734
      $region126: #{forward.1} parent=59 // pred_check_branch
        %993 = sbr.rel (%p991) target = $region128
      $region127: #{forward.1} parent=59 // pred_region
        %p994 = scmp.lt.s32.totalorder %s67, 1
        %s995 = scalar_select %p994, %s67, 1
        %s996 = smul.addr %s995, 2
        %s997 = smul.addr %s996, 8
        %s998 = scalar_lea.vmem %s55, %s997
      $region128: #{forward.1} parent=59 // pred_fallthru
        _
      // Predicated region
      $region129: #{forward.1} parent=59 // pred_check
        %p999 = pneg %p760
      $region130: #{forward.1} parent=59 // pred_check_branch
        %1001 = sbr.rel (%p999) target = $region132
      $region131: #{forward.1} parent=59 // pred_region
        %p1002 = scmp.lt.s32.totalorder %s67, 1
        %s1003 = scalar_select %p1002, %s67, 1
        %s1004 = smul.addr %s1003, 2
        %s1005 = smul.addr %s1004, 8
        %s1006 = scalar_lea.vmem %s57, %s1005
      $region132: #{forward.1} parent=59 // pred_fallthru
        _
      // Predicated region
      $region133: #{forward.1} parent=59 // pred_check
        %p1007 = pneg %p786
      $region134: #{forward.1} parent=59 // pred_check_branch
        %1009 = sbr.rel (%p1007) target = $region136
      $region135: #{forward.1} parent=59 // pred_region
        %p1010 = scmp.lt.s32.totalorder %s67, 1
        %s1011 = scalar_select %p1010, %s67, 1
        %s1012 = smul.addr %s1011, 2
        %s1013 = scalar_lea.vmem %s59, %s1012
      $region136: #{forward.1} parent=59 // pred_fallthru
        _
    $region60: #{forward.1} parent=5 // pred_fallthru
      _
    %p1014 = scmp.le.s32.totalorder 1, %s67
    %p1015 = scmp.lt.s32.totalorder %s67, 3
    %p1016 = pnand %p1014, %p1015
    %p1017 = pneg %p1016
    // Predicated region
    $region137: #{forward.1} parent=5 // pred_check
      _
    $region138: #{forward.1} parent=5 // pred_check_branch
      %1019 = sbr.rel (%p1016) target = $region140
    $region139: #{forward.1} parent=5 // pred_region
      %s1020 = ssub.s32 %s67, 1
      %p1021 = scmp.lt.s32.totalorder %s72, 1
      %s1022 = scalar_select %p1021, %s72, 1
      %s1023 = smul.addr %s1022, 2
      %s1024 = smul.addr %s1023, 8
      %s1025 = scalar_lea.vmem %s1, %s1024
      %p1026 = pneg %p93
      %p1027 = pneg %p90
      %p1028 = scmp.lt.s32.totalorder %s72, 1
      %s1029 = scalar_select %p1028, %s72, 1
      %s1030 = smul.addr %s1029, 112
      %s1031 = smul.addr %s1030, 8
      %s1032 = scalar_lea.vmem %s3, %s1031
      %p1033 = pneg %p119
      %p1034 = pneg %p116
      %p1035 = scmp.lt.s32.totalorder %s72, 1
      %s1036 = scalar_select %p1035, %s72, 1
      %s1037 = smul.addr %s1036, 5
      %s1038 = scalar_lea.vmem %s5, %s1037
      %p1039 = pneg %p145
      %p1040 = pneg %p142
      %p1041 = scmp.lt.s32.totalorder %s72, 1
      %s1042 = scalar_select %p1041, %s72, 1
      %s1043 = smul.addr %s1042, 32
      %s1044 = smul.addr %s1043, 8
      %s1045 = scalar_lea.vmem %s7, %s1044
      %p1046 = pneg %p171
      %p1047 = pneg %p168
      %p1048 = scmp.lt.s32.totalorder %s72, 1
      %s1049 = scalar_select %p1048, %s72, 1
      %s1050 = smul.addr %s1049, 5
      %s1051 = scalar_lea.vmem %s9, %s1050
      %p1052 = pneg %p197
      %p1053 = pneg %p194
      %p1054 = scmp.lt.s32.totalorder %s72, 1
      %s1055 = scalar_select %p1054, %s72, 1
      %s1056 = smul.addr %s1055, 16
      %s1057 = smul.addr %s1056, 8
      %s1058 = scalar_lea.vmem %s11, %s1057
      %p1059 = pneg %p223
      %p1060 = pneg %p220
      %p1061 = scmp.lt.s32.totalorder %s72, 1
      %s1062 = scalar_select %p1061, %s72, 1
      %s1063 = smul.addr %s1062, 5
      %s1064 = scalar_lea.vmem %s13, %s1063
      %p1065 = pneg %p249
      %p1066 = pneg %p246
      %p1067 = pneg %p270
      %p1068 = pneg %p267
      %p1069 = pneg %p291
      %p1070 = pneg %p288
      %p1071 = pneg %p312
      %p1072 = pneg %p309
      %p1073 = pneg %p333
      %p1074 = pneg %p330
      %p1075 = pneg %p354
      %p1076 = pneg %p351
      %p1077 = pneg %p375
      %p1078 = pneg %p372
      %p1079 = pneg %p396
      %p1080 = pneg %p393
      %p1081 = pneg %p417
      %p1082 = pneg %p414
      %p1083 = pneg %p438
      %p1084 = pneg %p435
      %p1085 = pneg %p459
      %p1086 = pneg %p456
      %p1087 = pneg %p480
      %p1088 = pneg %p477
      %p1089 = scmp.lt.s32.totalorder %s72, 1
      %s1090 = scalar_select %p1089, %s72, 1
      %s1091 = smul.addr %s1090, 2
      %s1092 = smul.addr %s1091, 8
      %s1093 = scalar_lea.vmem %s37, %s1092
      %p1094 = pneg %p506
      %p1095 = pneg %p503
      %p1096 = scmp.lt.s32.totalorder %s72, 1
      %s1097 = scalar_select %p1096, %s72, 1
      %s1098 = smul.addr %s1097, 4
      %s1099 = smul.addr %s1098, 8
      %s1100 = scalar_lea.vmem %s39, %s1099
      %p1101 = pneg %p532
      %p1102 = pneg %p529
      %p1103 = scmp.lt.s32.totalorder %s72, 1
      %s1104 = scalar_select %p1103, %s72, 1
      %s1105 = smul.addr %s1104, 4
      %s1106 = smul.addr %s1105, 8
      %s1107 = scalar_lea.vmem %s41, %s1106
      %p1108 = pneg %p558
      %p1109 = pneg %p555
      %p1110 = scmp.lt.s32.totalorder %s72, 1
      %s1111 = scalar_select %p1110, %s72, 1
      %s1112 = smul.addr %s1111, 8
      %s1113 = scalar_lea.vmem %s43, %s1112
      %p1114 = pneg %p584
      %p1115 = pneg %p581
      %p1116 = scmp.lt.s32.totalorder %s72, 1
      %s1117 = scalar_select %p1116, %s72, 1
      %s1118 = smul.addr %s1117, 8
      %s1119 = scalar_lea.vmem %s45, %s1118
      %p1120 = pneg %p610
      %p1121 = pneg %p607
      %p1122 = scmp.lt.s32.totalorder %s72, 1
      %s1123 = scalar_select %p1122, %s72, 1
      %s1124 = smul.addr %s1123, 3
      %s1125 = smul.addr %s1124, 8
      %s1126 = scalar_lea.vmem %s47, %s1125
      %p1127 = pneg %p636
      %p1128 = pneg %p633
      %p1129 = scmp.lt.s32.totalorder %s72, 1
      %s1130 = scalar_select %p1129, %s72, 1
      %s1131 = smul.addr %s1130, 3
      %s1132 = smul.addr %s1131, 8
      %s1133 = scalar_lea.vmem %s49, %s1132
      %p1134 = pneg %p662
      %p1135 = pneg %p659
      %p1136 = scmp.lt.s32.totalorder %s72, 1
      %s1137 = scalar_select %p1136, %s72, 1
      %s1138 = smul.addr %s1137, 4
      %s1139 = scalar_lea.vmem %s51, %s1138
      %p1140 = pneg %p688
      %p1141 = pneg %p685
      %p1142 = scmp.lt.s32.totalorder %s72, 1
      %s1143 = scalar_select %p1142, %s72, 1
      %s1144 = smul.addr %s1143, 4
      %s1145 = scalar_lea.vmem %s53, %s1144
      %p1146 = pneg %p714
      %p1147 = pneg %p711
      %p1148 = scmp.lt.s32.totalorder %s72, 1
      %s1149 = scalar_select %p1148, %s72, 1
      %s1150 = smul.addr %s1149, 2
      %s1151 = smul.addr %s1150, 8
      %s1152 = scalar_lea.vmem %s55, %s1151
      %p1153 = pneg %p740
      %p1154 = pneg %p737
      %p1155 = scmp.lt.s32.totalorder %s72, 1
      %s1156 = scalar_select %p1155, %s72, 1
      %s1157 = smul.addr %s1156, 2
      %s1158 = smul.addr %s1157, 8
      %s1159 = scalar_lea.vmem %s57, %s1158
      %p1160 = pneg %p766
      %p1161 = pneg %p763
      %p1162 = scmp.lt.s32.totalorder %s72, 1
      %s1163 = scalar_select %p1162, %s72, 1
      %s1164 = smul.addr %s1163, 2
      %s1165 = scalar_lea.vmem %s59, %s1164
      %p1166 = pneg %p792
      %p1167 = pneg %p789
      %p1168 = pneg %p818
      %p1169 = pneg %p815
      %p1170 = scmp.lt.s32.totalorder %s72, 1
      %s1171 = scalar_select %p1170, %s72, 1
      %s1172 = smul.addr %s1171, 8
      %s1173 = scalar_lea.vmem %s61, %s1172
      %p1174 = scmp.lt.s32.totalorder %s72, 1
      %s1175 = scalar_select %p1174, %s72, 1
      %s1176 = smul.addr %s1175, 2
      %s1177 = smul.addr %s1176, 8
      %s1178 = scalar_lea.vmem %s1, %s1177
      %p1179 = scmp.lt.s32.totalorder %s72, 1
      %s1180 = scalar_select %p1179, %s72, 1
      %s1181 = smul.addr %s1180, 112
      %s1182 = smul.addr %s1181, 8
      %s1183 = scalar_lea.vmem %s3, %s1182
      %p1184 = scmp.lt.s32.totalorder %s72, 1
      %s1185 = scalar_select %p1184, %s72, 1
      %s1186 = smul.addr %s1185, 5
      %s1187 = scalar_lea.vmem %s5, %s1186
      %p1188 = scmp.lt.s32.totalorder %s72, 1
      %s1189 = scalar_select %p1188, %s72, 1
      %s1190 = smul.addr %s1189, 32
      %s1191 = smul.addr %s1190, 8
      %s1192 = scalar_lea.vmem %s7, %s1191
      %p1193 = scmp.lt.s32.totalorder %s72, 1
      %s1194 = scalar_select %p1193, %s72, 1
      %s1195 = smul.addr %s1194, 5
      %s1196 = scalar_lea.vmem %s9, %s1195
      %p1197 = scmp.lt.s32.totalorder %s72, 1
      %s1198 = scalar_select %p1197, %s72, 1
      %s1199 = smul.addr %s1198, 16
      %s1200 = smul.addr %s1199, 8
      %s1201 = scalar_lea.vmem %s11, %s1200
      %p1202 = scmp.lt.s32.totalorder %s72, 1
      %s1203 = scalar_select %p1202, %s72, 1
      %s1204 = smul.addr %s1203, 5
      %s1205 = scalar_lea.vmem %s13, %s1204
      %p1206 = scmp.lt.s32.totalorder %s72, 1
      %s1207 = scalar_select %p1206, %s72, 1
      %s1208 = smul.addr %s1207, 2
      %s1209 = smul.addr %s1208, 8
      %s1210 = scalar_lea.vmem %s37, %s1209
      %p1211 = scmp.lt.s32.totalorder %s72, 1
      %s1212 = scalar_select %p1211, %s72, 1
      %s1213 = smul.addr %s1212, 4
      %s1214 = smul.addr %s1213, 8
      %s1215 = scalar_lea.vmem %s39, %s1214
      %p1216 = scmp.lt.s32.totalorder %s72, 1
      %s1217 = scalar_select %p1216, %s72, 1
      %s1218 = smul.addr %s1217, 4
      %s1219 = smul.addr %s1218, 8
      %s1220 = scalar_lea.vmem %s41, %s1219
      %p1221 = scmp.lt.s32.totalorder %s72, 1
      %s1222 = scalar_select %p1221, %s72, 1
      %s1223 = smul.addr %s1222, 8
      %s1224 = scalar_lea.vmem %s43, %s1223
      %p1225 = scmp.lt.s32.totalorder %s72, 1
      %s1226 = scalar_select %p1225, %s72, 1
      %s1227 = smul.addr %s1226, 8
      %s1228 = scalar_lea.vmem %s45, %s1227
      %p1229 = scmp.lt.s32.totalorder %s72, 1
      %s1230 = scalar_select %p1229, %s72, 1
      %s1231 = smul.addr %s1230, 3
      %s1232 = smul.addr %s1231, 8
      %s1233 = scalar_lea.vmem %s47, %s1232
      %p1234 = scmp.lt.s32.totalorder %s72, 1
      %s1235 = scalar_select %p1234, %s72, 1
      %s1236 = smul.addr %s1235, 3
      %s1237 = smul.addr %s1236, 8
      %s1238 = scalar_lea.vmem %s49, %s1237
      %p1239 = scmp.lt.s32.totalorder %s72, 1
      %s1240 = scalar_select %p1239, %s72, 1
      %s1241 = smul.addr %s1240, 4
      %s1242 = scalar_lea.vmem %s51, %s1241
      %p1243 = scmp.lt.s32.totalorder %s72, 1
      %s1244 = scalar_select %p1243, %s72, 1
      %s1245 = smul.addr %s1244, 4
      %s1246 = scalar_lea.vmem %s53, %s1245
      %p1247 = scmp.lt.s32.totalorder %s72, 1
      %s1248 = scalar_select %p1247, %s72, 1
      %s1249 = smul.addr %s1248, 2
      %s1250 = smul.addr %s1249, 8
      %s1251 = scalar_lea.vmem %s55, %s1250
      %p1252 = scmp.lt.s32.totalorder %s72, 1
      %s1253 = scalar_select %p1252, %s72, 1
      %s1254 = smul.addr %s1253, 2
      %s1255 = smul.addr %s1254, 8
      %s1256 = scalar_lea.vmem %s57, %s1255
      %p1257 = scmp.lt.s32.totalorder %s72, 1
      %s1258 = scalar_select %p1257, %s72, 1
      %s1259 = smul.addr %s1258, 2
      %s1260 = scalar_lea.vmem %s59, %s1259
      %p1261 = scmp.lt.s32.totalorder %s72, 1
      %s1262 = scalar_select %p1261, %s72, 1
      %s1263 = smul.addr %s1262, 8
      %s1264 = scalar_lea.vmem %s61, %s1263
      %v1265 = vld [vmem:[%s1178] sm:$0xff]
      %v1266 = vld [vmem:[%s1178 + $0x8] sm:$0xff]
      %v1267 = vld [vmem:[%s1210] sm:$0xff]
      %v1268 = vld [vmem:[%s1210 + $0x8] sm:$0xff]
      %v1269 = vld [vmem:[%s1183] sm:$0xff]
      %v1270 = vld [vmem:[%s1183 + $0x8] sm:$0xff]
      %v1271 = vld [vmem:[%s1183 + $0x10] sm:$0xff]
      %v1272 = vld [vmem:[%s1183 + $0x18] sm:$0xff]
      %v1273 = vld [vmem:[%s1183 + $0x20] sm:$0xff]
      %v1274 = vld [vmem:[%s1183 + $0x28] sm:$0xff]
      %v1275 = vld [vmem:[%s1183 + $0x30] sm:$0xff]
      %v1276 = vld [vmem:[%s1183 + $0x38] sm:$0xff]
      %v1277 = vld [vmem:[%s1183 + $0x40] sm:$0xff]
      %v1278 = vld [vmem:[%s1183 + $0x48] sm:$0xff]
      %v1279 = vld [vmem:[%s1183 + $0x50] sm:$0xff]
      %v1280 = vld [vmem:[%s1183 + $0x58] sm:$0xff]
      %v1281 = vld [vmem:[%s1183 + $0x60] sm:$0xff]
      %v1282 = vld [vmem:[%s1183 + $0x68] sm:$0xff]
      %v1283 = vld [vmem:[%s1183 + $0x70] sm:$0xff]
      %v1284 = vld [vmem:[%s1183 + $0x78] sm:$0xff]
      %v1285 = vld [vmem:[%s1183 + $0x80] sm:$0xff]
      %v1286 = vld [vmem:[%s1183 + $0x88] sm:$0xff]
      %v1287 = vld [vmem:[%s1183 + $0x90] sm:$0xff]
      %v1288 = vld [vmem:[%s1183 + $0x98] sm:$0xff]
      %v1289 = vld [vmem:[%s1183 + $0xa0] sm:$0xff]
      %v1290 = vld [vmem:[%s1183 + $0xa8] sm:$0xff]
      %v1291 = vld [vmem:[%s1183 + $0xb0] sm:$0xff]
      %v1292 = vld [vmem:[%s1183 + $0xb8] sm:$0xff]
      %v1293 = vld [vmem:[%s1183 + $0xc0] sm:$0xff]
      %v1294 = vld [vmem:[%s1183 + $0xc8] sm:$0xff]
      %v1295 = vld [vmem:[%s1183 + $0xd0] sm:$0xff]
      %v1296 = vld [vmem:[%s1183 + $0xd8] sm:$0xff]
      %v1297 = vld [vmem:[%s1183 + $0xe0] sm:$0xff]
      %v1298 = vld [vmem:[%s1183 + $0xe8] sm:$0xff]
      %v1299 = vld [vmem:[%s1183 + $0xf0] sm:$0xff]
      %v1300 = vld [vmem:[%s1183 + $0xf8] sm:$0xff]
      %v1301 = vld [vmem:[%s1183 + $0x100] sm:$0xff]
      %v1302 = vld [vmem:[%s1183 + $0x108] sm:$0xff]
      %v1303 = vld [vmem:[%s1183 + $0x110] sm:$0xff]
      %v1304 = vld [vmem:[%s1183 + $0x118] sm:$0xff]
      %v1305 = vld [vmem:[%s1183 + $0x120] sm:$0xff]
      %v1306 = vld [vmem:[%s1183 + $0x128] sm:$0xff]
      %v1307 = vld [vmem:[%s1183 + $0x130] sm:$0xff]
      %v1308 = vld [vmem:[%s1183 + $0x138] sm:$0xff]
      %v1309 = vld [vmem:[%s1183 + $0x140] sm:$0xff]
      %v1310 = vld [vmem:[%s1183 + $0x148] sm:$0xff]
      %v1311 = vld [vmem:[%s1183 + $0x150] sm:$0xff]
      %v1312 = vld [vmem:[%s1183 + $0x158] sm:$0xff]
      %v1313 = vld [vmem:[%s1183 + $0x160] sm:$0xff]
      %v1314 = vld [vmem:[%s1183 + $0x168] sm:$0xff]
      %v1315 = vld [vmem:[%s1183 + $0x170] sm:$0xff]
      %v1316 = vld [vmem:[%s1183 + $0x178] sm:$0xff]
      %v1317 = vld [vmem:[%s1183 + $0x180] sm:$0xff]
      %v1318 = vld [vmem:[%s1183 + $0x188] sm:$0xff]
      %v1319 = vld [vmem:[%s1183 + $0x190] sm:$0xff]
      %v1320 = vld [vmem:[%s1183 + $0x198] sm:$0xff]
      %v1321 = vld [vmem:[%s1183 + $0x1a0] sm:$0xff]
      %v1322 = vld [vmem:[%s1183 + $0x1a8] sm:$0xff]
      %v1323 = vld [vmem:[%s1183 + $0x1b0] sm:$0xff]
      %v1324 = vld [vmem:[%s1183 + $0x1b8] sm:$0xff]
      %v1325 = vld [vmem:[%s1183 + $0x1c0] sm:$0xff]
      %v1326 = vld [vmem:[%s1183 + $0x1c8] sm:$0xff]
      %v1327 = vld [vmem:[%s1183 + $0x1d0] sm:$0xff]
      %v1328 = vld [vmem:[%s1183 + $0x1d8] sm:$0xff]
      %v1329 = vld [vmem:[%s1183 + $0x1e0] sm:$0xff]
      %v1330 = vld [vmem:[%s1183 + $0x1e8] sm:$0xff]
      %v1331 = vld [vmem:[%s1183 + $0x1f0] sm:$0xff]
      %v1332 = vld [vmem:[%s1183 + $0x1f8] sm:$0xff]
      %v1333 = vld [vmem:[%s1183 + $0x200] sm:$0xff]
      %v1334 = vld [vmem:[%s1183 + $0x208] sm:$0xff]
      %v1335 = vld [vmem:[%s1183 + $0x210] sm:$0xff]
      %v1336 = vld [vmem:[%s1183 + $0x218] sm:$0xff]
      %v1337 = vld [vmem:[%s1183 + $0x220] sm:$0xff]
      %v1338 = vld [vmem:[%s1183 + $0x228] sm:$0xff]
      %v1339 = vld [vmem:[%s1183 + $0x230] sm:$0xff]
      %v1340 = vld [vmem:[%s1183 + $0x238] sm:$0xff]
      %v1341 = vld [vmem:[%s1183 + $0x240] sm:$0xff]
      %v1342 = vld [vmem:[%s1183 + $0x248] sm:$0xff]
      %v1343 = vld [vmem:[%s1183 + $0x250] sm:$0xff]
      %v1344 = vld [vmem:[%s1183 + $0x258] sm:$0xff]
      %v1345 = vld [vmem:[%s1183 + $0x260] sm:$0xff]
      %v1346 = vld [vmem:[%s1183 + $0x268] sm:$0xff]
      %v1347 = vld [vmem:[%s1183 + $0x270] sm:$0xff]
      %v1348 = vld [vmem:[%s1183 + $0x278] sm:$0xff]
      %v1349 = vld [vmem:[%s1183 + $0x280] sm:$0xff]
      %v1350 = vld [vmem:[%s1183 + $0x288] sm:$0xff]
      %v1351 = vld [vmem:[%s1183 + $0x290] sm:$0xff]
      %v1352 = vld [vmem:[%s1183 + $0x298] sm:$0xff]
      %v1353 = vld [vmem:[%s1183 + $0x2a0] sm:$0xff]
      %v1354 = vld [vmem:[%s1183 + $0x2a8] sm:$0xff]
      %v1355 = vld [vmem:[%s1183 + $0x2b0] sm:$0xff]
      %v1356 = vld [vmem:[%s1183 + $0x2b8] sm:$0xff]
      %v1357 = vld [vmem:[%s1183 + $0x2c0] sm:$0xff]
      %v1358 = vld [vmem:[%s1183 + $0x2c8] sm:$0xff]
      %v1359 = vld [vmem:[%s1183 + $0x2d0] sm:$0xff]
      %v1360 = vld [vmem:[%s1183 + $0x2d8] sm:$0xff]
      %v1361 = vld [vmem:[%s1183 + $0x2e0] sm:$0xff]
      %v1362 = vld [vmem:[%s1183 + $0x2e8] sm:$0xff]
      %v1363 = vld [vmem:[%s1183 + $0x2f0] sm:$0xff]
      %v1364 = vld [vmem:[%s1183 + $0x2f8] sm:$0xff]
      %v1365 = vld [vmem:[%s1183 + $0x300] sm:$0xff]
      %v1366 = vld [vmem:[%s1183 + $0x308] sm:$0xff]
      %v1367 = vld [vmem:[%s1183 + $0x310] sm:$0xff]
      %v1368 = vld [vmem:[%s1183 + $0x318] sm:$0xff]
      %v1369 = vld [vmem:[%s1183 + $0x320] sm:$0xff]
      %v1370 = vld [vmem:[%s1183 + $0x328] sm:$0xff]
      %v1371 = vld [vmem:[%s1183 + $0x330] sm:$0xff]
      %v1372 = vld [vmem:[%s1183 + $0x338] sm:$0xff]
      %v1373 = vld [vmem:[%s1183 + $0x340] sm:$0xff]
      %v1374 = vld [vmem:[%s1183 + $0x348] sm:$0xff]
      %v1375 = vld [vmem:[%s1183 + $0x350] sm:$0xff]
      %v1376 = vld [vmem:[%s1183 + $0x358] sm:$0xff]
      %v1377 = vld [vmem:[%s1183 + $0x360] sm:$0xff]
      %v1378 = vld [vmem:[%s1183 + $0x368] sm:$0xff]
      %v1379 = vld [vmem:[%s1183 + $0x370] sm:$0xff]
      %v1380 = vld [vmem:[%s1183 + $0x378] sm:$0xff]
      %v1381 = vld [vmem:[%s1187] sm:$0x1f]
      %v1382 = vld [vmem:[%s15] sm:$0xf]
      %v1383 = vld [vmem:[%s17] sm:$0x1]
      %v1384 = vld [vmem:[%s1215] sm:$0xff]
      %v1385 = vld [vmem:[%s1215 + $0x8] sm:$0xff]
      %v1386 = vld [vmem:[%s1215 + $0x10] sm:$0xff]
      %v1387 = vld [vmem:[%s1215 + $0x18] sm:$0x3f]
      %v1388 = vld [vmem:[%s1220] sm:$0xff]
      %v1389 = vld [vmem:[%s1220 + $0x8] sm:$0xff]
      %v1390 = vld [vmem:[%s1220 + $0x10] sm:$0xff]
      %v1391 = vld [vmem:[%s1220 + $0x18] sm:$0x3f]
      %v1392 = vld [vmem:[%s1224] sm:$0xff]
      %v1393 = vld [vmem:[%s23] sm:$0xff]
      %v1394 = vld [vmem:[%s23 + $0x8] sm:$0xff]
      %v1395 = vld [vmem:[%s23 + $0x10] sm:$0xff]
      %v1396 = vld [vmem:[%s23 + $0x18] sm:$0xff]
      %v1397 = vld [vmem:[%s23 + $0x20] sm:$0xff]
      %v1398 = vld [vmem:[%s23 + $0x28] sm:$0xff]
      %v1399 = vld [vmem:[%s23 + $0x30] sm:$0xff]
      %v1400 = vld [vmem:[%s23 + $0x38] sm:$0xff]
      %v1401 = vld [vmem:[%s23 + $0x40] sm:$0xff]
      %v1402 = vld [vmem:[%s23 + $0x48] sm:$0xff]
      %v1403 = vld [vmem:[%s23 + $0x50] sm:$0xff]
      %v1404 = vld [vmem:[%s23 + $0x58] sm:$0xff]
      %v1405 = vld [vmem:[%s23 + $0x60] sm:$0xff]
      %v1406 = vld [vmem:[%s23 + $0x68] sm:$0xff]
      %v1407 = vld [vmem:[%s23 + $0x70] sm:$0xff]
      %v1408 = vld [vmem:[%s23 + $0x78] sm:$0xff]
      %v1409 = vld [vmem:[%s23 + $0x80] sm:$0xff]
      %v1410 = vld [vmem:[%s23 + $0x88] sm:$0xff]
      %v1411 = vld [vmem:[%s23 + $0x90] sm:$0xff]
      %v1412 = vld [vmem:[%s23 + $0x98] sm:$0xff]
      %v1413 = vld [vmem:[%s23 + $0xa0] sm:$0xff]
      %v1414 = vld [vmem:[%s23 + $0xa8] sm:$0xff]
      %v1415 = vld [vmem:[%s23 + $0xb0] sm:$0xff]
      %v1416 = vld [vmem:[%s23 + $0xb8] sm:$0xff]
      %v1417 = vld [vmem:[%s23 + $0xc0] sm:$0xff]
      %v1418 = vld [vmem:[%s23 + $0xc8] sm:$0xff]
      %v1419 = vld [vmem:[%s23 + $0xd0] sm:$0xff]
      %v1420 = vld [vmem:[%s23 + $0xd8] sm:$0xff]
      %v1421 = vld [vmem:[%s23 + $0xe0] sm:$0xff]
      %v1422 = vld [vmem:[%s23 + $0xe8] sm:$0xff]
      %v1423 = vld [vmem:[%s23 + $0xf0] sm:$0xff]
      %v1424 = vld [vmem:[%s23 + $0xf8] sm:$0xff]
      %v1425 = vld [vmem:[%s23 + $0x100] sm:$0xff]
      %v1426 = vld [vmem:[%s23 + $0x108] sm:$0xff]
      %v1427 = vld [vmem:[%s23 + $0x110] sm:$0xff]
      %v1428 = vld [vmem:[%s23 + $0x118] sm:$0xff]
      %v1429 = vld [vmem:[%s23 + $0x120] sm:$0xff]
      %v1430 = vld [vmem:[%s23 + $0x128] sm:$0xff]
      %v1431 = vld [vmem:[%s23 + $0x130] sm:$0xff]
      %v1432 = vld [vmem:[%s23 + $0x138] sm:$0xff]
      %v1433 = vld [vmem:[%s23 + $0x140] sm:$0xff]
      %v1434 = vld [vmem:[%s23 + $0x148] sm:$0xff]
      %v1435 = vld [vmem:[%s23 + $0x150] sm:$0xff]
      %v1436 = vld [vmem:[%s23 + $0x158] sm:$0xff]
      %v1437 = vld [vmem:[%s23 + $0x160] sm:$0xff]
      %v1438 = vld [vmem:[%s23 + $0x168] sm:$0xff]
      %v1439 = vld [vmem:[%s23 + $0x170] sm:$0xff]
      %v1440 = vld [vmem:[%s23 + $0x178] sm:$0xff]
      %v1441 = vld [vmem:[%s23 + $0x180] sm:$0xff]
      %v1442 = vld [vmem:[%s23 + $0x188] sm:$0xff]
      %v1443 = vld [vmem:[%s23 + $0x190] sm:$0xff]
      %v1444 = vld [vmem:[%s23 + $0x198] sm:$0xff]
      %v1445 = vld [vmem:[%s23 + $0x1a0] sm:$0xff]
      %v1446 = vld [vmem:[%s23 + $0x1a8] sm:$0xff]
      %v1447 = vld [vmem:[%s23 + $0x1b0] sm:$0xff]
      %v1448 = vld [vmem:[%s23 + $0x1b8] sm:$0xff]
      %v1449 = vld [vmem:[%s23 + $0x1c0] sm:$0xff]
      %v1450 = vld [vmem:[%s23 + $0x1c8] sm:$0xff]
      %v1451 = vld [vmem:[%s23 + $0x1d0] sm:$0xff]
      %v1452 = vld [vmem:[%s23 + $0x1d8] sm:$0xff]
      %v1453 = vld [vmem:[%s23 + $0x1e0] sm:$0xff]
      %v1454 = vld [vmem:[%s23 + $0x1e8] sm:$0xff]
      %v1455 = vld [vmem:[%s23 + $0x1f0] sm:$0xff]
      %v1456 = vld [vmem:[%s23 + $0x1f8] sm:$0xff]
      %v1457 = vld [vmem:[%s23 + $0x200] sm:$0xff]
      %v1458 = vld [vmem:[%s23 + $0x208] sm:$0xff]
      %v1459 = vld [vmem:[%s23 + $0x210] sm:$0xff]
      %v1460 = vld [vmem:[%s23 + $0x218] sm:$0xff]
      %v1461 = vld [vmem:[%s23 + $0x220] sm:$0xff]
      %v1462 = vld [vmem:[%s23 + $0x228] sm:$0xff]
      %v1463 = vld [vmem:[%s23 + $0x230] sm:$0xff]
      %v1464 = vld [vmem:[%s23 + $0x238] sm:$0xff]
      %v1465 = vld [vmem:[%s23 + $0x240] sm:$0xff]
      %v1466 = vld [vmem:[%s23 + $0x248] sm:$0xff]
      %v1467 = vld [vmem:[%s23 + $0x250] sm:$0xff]
      %v1468 = vld [vmem:[%s23 + $0x258] sm:$0xff]
      %v1469 = vld [vmem:[%s23 + $0x260] sm:$0xff]
      %v1470 = vld [vmem:[%s23 + $0x268] sm:$0xff]
      %v1471 = vld [vmem:[%s23 + $0x270] sm:$0xff]
      %v1472 = vld [vmem:[%s23 + $0x278] sm:$0xff]
      %v1473 = vld [vmem:[%s25] sm:$0xff]
      %v1474 = vld [vmem:[%s25 + $0x8] sm:$0xff]
      %v1475 = vld [vmem:[%s25 + $0x10] sm:$0xff]
      %v1476 = vld [vmem:[%s25 + $0x18] sm:$0xff]
      %v1477 = vld [vmem:[%s25 + $0x20] sm:$0xff]
      %v1478 = vld [vmem:[%s25 + $0x28] sm:$0xff]
      %v1479 = vld [vmem:[%s25 + $0x30] sm:$0xff]
      %v1480 = vld [vmem:[%s25 + $0x38] sm:$0xff]
      %v1481 = vld [vmem:[%s25 + $0x40] sm:$0xff]
      %v1482 = vld [vmem:[%s25 + $0x48] sm:$0xff]
      %v1483 = vld [vmem:[%s25 + $0x50] sm:$0xff]
      %v1484 = vld [vmem:[%s25 + $0x58] sm:$0xff]
      %v1485 = vld [vmem:[%s25 + $0x60] sm:$0xff]
      %v1486 = vld [vmem:[%s25 + $0x68] sm:$0xff]
      %v1487 = vld [vmem:[%s25 + $0x70] sm:$0xff]
      %v1488 = vld [vmem:[%s25 + $0x78] sm:$0xff]
      %v1489 = vld [vmem:[%s27] sm:$0x1]
      %v1490 = vld [vmem:[%s29] sm:$0xff]
      %v1491 = vld [vmem:[%s29 + $0x8] sm:$0xff]
      %v1492 = vld [vmem:[%s29 + $0x10] sm:$0xff]
      %v1493 = vld [vmem:[%s29 + $0x18] sm:$0xff]
      %v1494 = vld [vmem:[%s29 + $0x20] sm:$0xff]
      %v1495 = vld [vmem:[%s29 + $0x28] sm:$0xff]
      %v1496 = vld [vmem:[%s29 + $0x30] sm:$0xff]
      %v1497 = vld [vmem:[%s29 + $0x38] sm:$0xff]
      %v1498 = vld [vmem:[%s29 + $0x40] sm:$0xff]
      %v1499 = vld [vmem:[%s29 + $0x48] sm:$0xff]
      %v1500 = vld [vmem:[%s29 + $0x50] sm:$0xff]
      %v1501 = vld [vmem:[%s29 + $0x58] sm:$0xff]
      %v1502 = vld [vmem:[%s29 + $0x60] sm:$0xff]
      %v1503 = vld [vmem:[%s29 + $0x68] sm:$0xff]
      %v1504 = vld [vmem:[%s29 + $0x70] sm:$0xff]
      %v1505 = vld [vmem:[%s29 + $0x78] sm:$0xff]
      %v1506 = vld [vmem:[%s31] sm:$0x1]
      %vm1507 = vcmask 31744
      %v1509 = vsel %vm1507, %v1265, 0
      %v1512 = vsel %vm1507, %v1266, 0
      %vm1514 = vcmask 1043456
      %v1516 = vsel %vm1514, %v1382, 0
      %1518 = vmatprep.subr.mxu0 0.0
      %1519 = vmatpush1.msra.mxu0 0.0
      %1520 = vmatprep.subr.mxu0 0.0
      %1521 = vmatpush1.msra.mxu0 0.0
      %1522 = vmatprep.subr.mxu0 0.0
      %1523 = vmatpush1.msra.mxu0 0.0
      %1524 = vmatprep.subr.mxu0 0.0
      %1525 = vmatpush1.msra.mxu0 0.0
      %1526 = vmatprep.subr.mxu0 0.0
      %1527 = vmatpush1.msra.mxu0 0.0
      %1528 = vmatprep.subr.mxu0 0.0
      %1529 = vmatpush1.msra.mxu0 0.0
      %1530 = vmatprep.subr.mxu0 0.0
      %1531 = vmatpush1.msra.mxu0 0.0
      %1532 = vmatprep.subr.mxu0 0.0
      %1533 = vmatpush1.msra.mxu0 0.0
      %1534 = vmatprep.subr.mxu0 0.0
      %1535 = vmatpush1.msra.mxu0 0.0
      %1536 = vmatprep.subr.mxu0 0.0
      %1537 = vmatpush1.msra.mxu0 0.0
      %1538 = vmatprep.subr.mxu0 0.0
      %1539 = vmatpush1.msra.mxu0 0.0
      %1540 = vmatprep.subr.mxu0 0.0
      %1541 = vmatpush1.msra.mxu0 0.0
      %1542 = vmatprep.subr.mxu0 0.0
      %1543 = vmatpush1.msra.mxu0 0.0
      %1544 = vmatprep.subr.mxu0 0.0
      %1545 = vmatpush1.msra.mxu0 0.0
      %1546 = vmatprep.subr.mxu0 0.0
      %1547 = vmatpush1.msra.mxu0 0.0
      %1548 = vmatprep.subr.mxu0 0.0
      %1549 = vmatpush1.msra.mxu0 %v1516
      %1550 = vmatprep.subr.mxu0 0.0
      %1551 = vmatpush2.msra.mxu0 0.0
      %1552 = vmatprep.subr.mxu0 0.0
      %1553 = vmatpush2.msra.mxu0 0.0
      %1554 = vmatprep.subr.mxu0 0.0
      %1555 = vmatpush2.msra.mxu0 0.0
      %1556 = vmatprep.subr.mxu0 0.0
      %1557 = vmatpush2.msra.mxu0 0.0
      %1558 = vmatprep.subr.mxu0 0.0
      %1559 = vmatpush2.msra.mxu0 0.0
      %1560 = vmatprep.subr.mxu0 0.0
      %1561 = vmatpush2.msra.mxu0 0.0
      %1562 = vmatprep.subr.mxu0 0.0
      %1563 = vmatpush2.msra.mxu0 0.0
      %1564 = vmatprep.subr.mxu0 0.0
      %1565 = vmatpush2.msra.mxu0 0.0
      %1566 = vmatprep.subr.mxu0 0.0
      %1567 = vmatpush2.msra.mxu0 0.0
      %1568 = vmatprep.subr.mxu0 0.0
      %1569 = vmatpush2.msra.mxu0 0.0
      %1570 = vmatprep.subr.mxu0 0.0
      %1571 = vmatpush2.msra.mxu0 0.0
      %1572 = vmatprep.subr.mxu0 0.0
      %1573 = vmatpush2.msra.mxu0 0.0
      %1574 = vmatprep.subr.mxu0 0.0
      %1575 = vmatpush2.msra.mxu0 0.0
      %1576 = vmatprep.subr.mxu0 0.0
      %1577 = vmatpush2.msra.mxu0 0.0
      %1578 = vmatprep.subr.mxu0 0.0
      %1579 = vmatpush2.msra.mxu0 0.0
      %1580 = vmatprep.subr.mxu0 0.0
      %1581 = vmatpush2.msra.mxu0 0.0
      %1582 = vmatprep.mubr.f32.mxu0 0.0
      %1583 = vmatmul.mubr.f32.gmra.mxu0 %v1509
      %v1584 = vpop.f32.mrf.mxu0
      %v1585 = vadd.f32 0.0, %v1584
      %v1586 = vpop.f32.mrf.mxu0
      %1587 = vmatprep.mubr.f32.mxu0 0.0
      %1588 = vmatmul.mubr.f32.gmra.mxu0 %v1512
      %v1589 = vpop.f32.mrf.mxu0
      %v1590 = vadd.f32 0.0, %v1589
      %v1591 = vpop.f32.mrf.mxu0
      %1592 = vdwg.mxu0
      %v1594 = vlaneseq
      %v1595 = vshrl.u32 %v1594, 7
      %v1596 = vsub.s32 0, %v1595
      %v1597 = vrot.slane %v1383, %v1596
      %vm1599 = vcmask 130048
      %v1601 = vsel %vm1599, %v1267, 0
      %v1604 = vsel %vm1599, %v1268, 0
      %1606 = vmatprep.subr.mxu0 0.0
      %1607 = vmatpush1.msra.mxu0 0.0
      %1608 = vmatprep.subr.mxu0 0.0
      %1609 = vmatpush1.msra.mxu0 0.0
      %1610 = vmatprep.subr.mxu0 0.0
      %1611 = vmatpush1.msra.mxu0 0.0
      %1612 = vmatprep.subr.mxu0 0.0
      %1613 = vmatpush1.msra.mxu0 0.0
      %1614 = vmatprep.subr.mxu0 0.0
      %1615 = vmatpush1.msra.mxu0 0.0
      %1616 = vmatprep.subr.mxu0 0.0
      %1617 = vmatpush1.msra.mxu0 0.0
      %1618 = vmatprep.subr.mxu0 0.0
      %1619 = vmatpush1.msra.mxu0 0.0
      %1620 = vmatprep.subr.mxu0 0.0
      %1621 = vmatpush1.msra.mxu0 0.0
      %1622 = vmatprep.subr.mxu0 0.0
      %1623 = vmatpush1.msra.mxu0 0.0
      %1624 = vmatprep.subr.mxu0 0.0
      %1625 = vmatpush1.msra.mxu0 0.0
      %1626 = vmatprep.subr.mxu0 0.0
      %1627 = vmatpush1.msra.mxu0 0.0
      %1628 = vmatprep.subr.mxu0 0.0
      %1629 = vmatpush1.msra.mxu0 0.0
      %1630 = vmatprep.subr.mxu0 0.0
      %1631 = vmatpush1.msra.mxu0 0.0
      %1632 = vmatprep.subr.mxu0 0.0
      %1633 = vmatpush1.msra.mxu0 0.0
      %1634 = vmatprep.subr.mxu0 0.0
      %1635 = vmatpush1.msra.mxu0 %v1590
      %1636 = vmatprep.subr.mxu0 0.0
      %1637 = vmatpush1.msra.mxu0 %v1585
      %1638 = vmatprep.subr.mxu0 0.0
      %1639 = vmatpush2.msra.mxu0 0.0
      %1640 = vmatprep.subr.mxu0 0.0
      %1641 = vmatpush2.msra.mxu0 0.0
      %1642 = vmatprep.subr.mxu0 0.0
      %1643 = vmatpush2.msra.mxu0 0.0
      %1644 = vmatprep.subr.mxu0 0.0
      %1645 = vmatpush2.msra.mxu0 0.0
      %1646 = vmatprep.subr.mxu0 0.0
      %1647 = vmatpush2.msra.mxu0 0.0
      %1648 = vmatprep.subr.mxu0 0.0
      %1649 = vmatpush2.msra.mxu0 0.0
      %1650 = vmatprep.subr.mxu0 0.0
      %1651 = vmatpush2.msra.mxu0 0.0
      %1652 = vmatprep.subr.mxu0 0.0
      %1653 = vmatpush2.msra.mxu0 0.0
      %1654 = vmatprep.subr.mxu0 0.0
      %1655 = vmatpush2.msra.mxu0 0.0
      %1656 = vmatprep.subr.mxu0 0.0
      %1657 = vmatpush2.msra.mxu0 0.0
      %1658 = vmatprep.subr.mxu0 0.0
      %1659 = vmatpush2.msra.mxu0 0.0
      %1660 = vmatprep.subr.mxu0 0.0
      %1661 = vmatpush2.msra.mxu0 0.0
      %1662 = vmatprep.subr.mxu0 0.0
      %1663 = vmatpush2.msra.mxu0 0.0
      %1664 = vmatprep.subr.mxu0 0.0
      %1665 = vmatpush2.msra.mxu0 0.0
      %1666 = vmatprep.subr.mxu0 0.0
      %1667 = vmatpush2.msra.mxu0 0.0
      %1668 = vmatprep.subr.mxu0 0.0
      %1669 = vmatpush2.msra.mxu0 0.0
      %1670 = vmatprep.mubr.f32.mxu0 0.0
      %1671 = vmatmul.mubr.f32.gmra.mxu0 %v1601
      %v1672 = vpop.f32.mrf.mxu0
      %v1673 = vadd.f32 %v1597, %v1672
      %v1674 = vpop.f32.mrf.mxu0
      %1675 = vmatprep.mubr.f32.mxu0 0.0
      %1676 = vmatmul.mubr.f32.gmra.mxu0 %v1604
      %v1677 = vpop.f32.mrf.mxu0
      %v1678 = vadd.f32 %v1597, %v1677
      %v1679 = vpop.f32.mrf.mxu0
      %1680 = vdwg.mxu0
      %v1681 = vmax.f32 %v1673, 0.0
      %v1682 = vmax.f32 %v1678, 0.0
      %1684 = vset.pattern.permute.xlu0 0
      %1685 = vperm.xlu0 %1684, %v1269
      %v1686 = vpop.permute.xlu0 %1685
      %1689 = vset.pattern.permute.xlu0 0
      %1690 = vperm.xlu0 %1689, %v1270
      %v1691 = vpop.permute.xlu0 %1690
      %1694 = vset.pattern.permute.xlu0 0
      %1695 = vperm.xlu0 %1694, %v1271
      %v1696 = vpop.permute.xlu0 %1695
      %1699 = vset.pattern.permute.xlu0 0
      %1700 = vperm.xlu0 %1699, %v1272
      %v1701 = vpop.permute.xlu0 %1700
      %1704 = vset.pattern.permute.xlu0 0
      %1705 = vperm.xlu0 %1704, %v1273
      %v1706 = vpop.permute.xlu0 %1705
      %1709 = vset.pattern.permute.xlu0 0
      %1710 = vperm.xlu0 %1709, %v1274
      %v1711 = vpop.permute.xlu0 %1710
      %1714 = vset.pattern.permute.xlu0 0
      %1715 = vperm.xlu0 %1714, %v1275
      %v1716 = vpop.permute.xlu0 %1715
      %1719 = vset.pattern.permute.xlu0 0
      %1720 = vperm.xlu0 %1719, %v1276
      %v1721 = vpop.permute.xlu0 %1720
      %1724 = vset.pattern.permute.xlu0 0
      %1725 = vperm.xlu0 %1724, %v1277
      %v1726 = vpop.permute.xlu0 %1725
      %1729 = vset.pattern.permute.xlu0 0
      %1730 = vperm.xlu0 %1729, %v1278
      %v1731 = vpop.permute.xlu0 %1730
      %1734 = vset.pattern.permute.xlu0 0
      %1735 = vperm.xlu0 %1734, %v1279
      %v1736 = vpop.permute.xlu0 %1735
      %1739 = vset.pattern.permute.xlu0 0
      %1740 = vperm.xlu0 %1739, %v1280
      %v1741 = vpop.permute.xlu0 %1740
      %1744 = vset.pattern.permute.xlu0 0
      %1745 = vperm.xlu0 %1744, %v1281
      %v1746 = vpop.permute.xlu0 %1745
      %1749 = vset.pattern.permute.xlu0 0
      %1750 = vperm.xlu0 %1749, %v1282
      %v1751 = vpop.permute.xlu0 %1750
      %1754 = vset.pattern.permute.xlu0 0
      %1755 = vperm.xlu0 %1754, %v1283
      %v1756 = vpop.permute.xlu0 %1755
      %1759 = vset.pattern.permute.xlu0 0
      %1760 = vperm.xlu0 %1759, %v1284
      %v1761 = vpop.permute.xlu0 %1760
      %1764 = vset.pattern.permute.xlu0 0
      %1765 = vperm.xlu0 %1764, %v1285
      %v1766 = vpop.permute.xlu0 %1765
      %1769 = vset.pattern.permute.xlu0 0
      %1770 = vperm.xlu0 %1769, %v1286
      %v1771 = vpop.permute.xlu0 %1770
      %1774 = vset.pattern.permute.xlu0 0
      %1775 = vperm.xlu0 %1774, %v1287
      %v1776 = vpop.permute.xlu0 %1775
      %1779 = vset.pattern.permute.xlu0 0
      %1780 = vperm.xlu0 %1779, %v1288
      %v1781 = vpop.permute.xlu0 %1780
      %1784 = vset.pattern.permute.xlu0 0
      %1785 = vperm.xlu0 %1784, %v1289
      %v1786 = vpop.permute.xlu0 %1785
      %1789 = vset.pattern.permute.xlu0 0
      %1790 = vperm.xlu0 %1789, %v1290
      %v1791 = vpop.permute.xlu0 %1790
      %1794 = vset.pattern.permute.xlu0 0
      %1795 = vperm.xlu0 %1794, %v1291
      %v1796 = vpop.permute.xlu0 %1795
      %1799 = vset.pattern.permute.xlu0 0
      %1800 = vperm.xlu0 %1799, %v1292
      %v1801 = vpop.permute.xlu0 %1800
      %1804 = vset.pattern.permute.xlu0 0
      %1805 = vperm.xlu0 %1804, %v1293
      %v1806 = vpop.permute.xlu0 %1805
      %1809 = vset.pattern.permute.xlu0 0
      %1810 = vperm.xlu0 %1809, %v1294
      %v1811 = vpop.permute.xlu0 %1810
      %1814 = vset.pattern.permute.xlu0 0
      %1815 = vperm.xlu0 %1814, %v1295
      %v1816 = vpop.permute.xlu0 %1815
      %1819 = vset.pattern.permute.xlu0 0
      %1820 = vperm.xlu0 %1819, %v1296
      %v1821 = vpop.permute.xlu0 %1820
      %1824 = vset.pattern.permute.xlu0 0
      %1825 = vperm.xlu0 %1824, %v1297
      %v1826 = vpop.permute.xlu0 %1825
      %1829 = vset.pattern.permute.xlu0 0
      %1830 = vperm.xlu0 %1829, %v1298
      %v1831 = vpop.permute.xlu0 %1830
      %1834 = vset.pattern.permute.xlu0 0
      %1835 = vperm.xlu0 %1834, %v1299
      %v1836 = vpop.permute.xlu0 %1835
      %1839 = vset.pattern.permute.xlu0 0
      %1840 = vperm.xlu0 %1839, %v1300
      %v1841 = vpop.permute.xlu0 %1840
      %1844 = vset.pattern.permute.xlu0 0
      %1845 = vperm.xlu0 %1844, %v1301
      %v1846 = vpop.permute.xlu0 %1845
      %1849 = vset.pattern.permute.xlu0 0
      %1850 = vperm.xlu0 %1849, %v1302
      %v1851 = vpop.permute.xlu0 %1850
      %1854 = vset.pattern.permute.xlu0 0
      %1855 = vperm.xlu0 %1854, %v1303
      %v1856 = vpop.permute.xlu0 %1855
      %1859 = vset.pattern.permute.xlu0 0
      %1860 = vperm.xlu0 %1859, %v1304
      %v1861 = vpop.permute.xlu0 %1860
      %1864 = vset.pattern.permute.xlu0 0
      %1865 = vperm.xlu0 %1864, %v1305
      %v1866 = vpop.permute.xlu0 %1865
      %1869 = vset.pattern.permute.xlu0 0
      %1870 = vperm.xlu0 %1869, %v1306
      %v1871 = vpop.permute.xlu0 %1870
      %1874 = vset.pattern.permute.xlu0 0
      %1875 = vperm.xlu0 %1874, %v1307
      %v1876 = vpop.permute.xlu0 %1875
      %1879 = vset.pattern.permute.xlu0 0
      %1880 = vperm.xlu0 %1879, %v1308
      %v1881 = vpop.permute.xlu0 %1880
      %1884 = vset.pattern.permute.xlu0 0
      %1885 = vperm.xlu0 %1884, %v1309
      %v1886 = vpop.permute.xlu0 %1885
      %1889 = vset.pattern.permute.xlu0 0
      %1890 = vperm.xlu0 %1889, %v1310
      %v1891 = vpop.permute.xlu0 %1890
      %1894 = vset.pattern.permute.xlu0 0
      %1895 = vperm.xlu0 %1894, %v1311
      %v1896 = vpop.permute.xlu0 %1895
      %1899 = vset.pattern.permute.xlu0 0
      %1900 = vperm.xlu0 %1899, %v1312
      %v1901 = vpop.permute.xlu0 %1900
      %1904 = vset.pattern.permute.xlu0 0
      %1905 = vperm.xlu0 %1904, %v1313
      %v1906 = vpop.permute.xlu0 %1905
      %1909 = vset.pattern.permute.xlu0 0
      %1910 = vperm.xlu0 %1909, %v1314
      %v1911 = vpop.permute.xlu0 %1910
      %1914 = vset.pattern.permute.xlu0 0
      %1915 = vperm.xlu0 %1914, %v1315
      %v1916 = vpop.permute.xlu0 %1915
      %1919 = vset.pattern.permute.xlu0 0
      %1920 = vperm.xlu0 %1919, %v1316
      %v1921 = vpop.permute.xlu0 %1920
      %1924 = vset.pattern.permute.xlu0 0
      %1925 = vperm.xlu0 %1924, %v1317
      %v1926 = vpop.permute.xlu0 %1925
      %1929 = vset.pattern.permute.xlu0 0
      %1930 = vperm.xlu0 %1929, %v1318
      %v1931 = vpop.permute.xlu0 %1930
      %1934 = vset.pattern.permute.xlu0 0
      %1935 = vperm.xlu0 %1934, %v1319
      %v1936 = vpop.permute.xlu0 %1935
      %1939 = vset.pattern.permute.xlu0 0
      %1940 = vperm.xlu0 %1939, %v1320
      %v1941 = vpop.permute.xlu0 %1940
      %1944 = vset.pattern.permute.xlu0 0
      %1945 = vperm.xlu0 %1944, %v1321
      %v1946 = vpop.permute.xlu0 %1945
      %1949 = vset.pattern.permute.xlu0 0
      %1950 = vperm.xlu0 %1949, %v1322
      %v1951 = vpop.permute.xlu0 %1950
      %1954 = vset.pattern.permute.xlu0 0
      %1955 = vperm.xlu0 %1954, %v1323
      %v1956 = vpop.permute.xlu0 %1955
      %1959 = vset.pattern.permute.xlu0 0
      %1960 = vperm.xlu0 %1959, %v1324
      %v1961 = vpop.permute.xlu0 %1960
      %1964 = vset.pattern.permute.xlu0 0
      %1965 = vperm.xlu0 %1964, %v1325
      %v1966 = vpop.permute.xlu0 %1965
      %1969 = vset.pattern.permute.xlu0 0
      %1970 = vperm.xlu0 %1969, %v1326
      %v1971 = vpop.permute.xlu0 %1970
      %1974 = vset.pattern.permute.xlu0 0
      %1975 = vperm.xlu0 %1974, %v1327
      %v1976 = vpop.permute.xlu0 %1975
      %1979 = vset.pattern.permute.xlu0 0
      %1980 = vperm.xlu0 %1979, %v1328
      %v1981 = vpop.permute.xlu0 %1980
      %1984 = vset.pattern.permute.xlu0 0
      %1985 = vperm.xlu0 %1984, %v1329
      %v1986 = vpop.permute.xlu0 %1985
      %1989 = vset.pattern.permute.xlu0 0
      %1990 = vperm.xlu0 %1989, %v1330
      %v1991 = vpop.permute.xlu0 %1990
      %1994 = vset.pattern.permute.xlu0 0
      %1995 = vperm.xlu0 %1994, %v1331
      %v1996 = vpop.permute.xlu0 %1995
      %1999 = vset.pattern.permute.xlu0 0
      %2000 = vperm.xlu0 %1999, %v1332
      %v2001 = vpop.permute.xlu0 %2000
      %2004 = vset.pattern.permute.xlu0 0
      %2005 = vperm.xlu0 %2004, %v1333
      %v2006 = vpop.permute.xlu0 %2005
      %2009 = vset.pattern.permute.xlu0 0
      %2010 = vperm.xlu0 %2009, %v1334
      %v2011 = vpop.permute.xlu0 %2010
      %2014 = vset.pattern.permute.xlu0 0
      %2015 = vperm.xlu0 %2014, %v1335
      %v2016 = vpop.permute.xlu0 %2015
      %2019 = vset.pattern.permute.xlu0 0
      %2020 = vperm.xlu0 %2019, %v1336
      %v2021 = vpop.permute.xlu0 %2020
      %2024 = vset.pattern.permute.xlu0 0
      %2025 = vperm.xlu0 %2024, %v1337
      %v2026 = vpop.permute.xlu0 %2025
      %2029 = vset.pattern.permute.xlu0 0
      %2030 = vperm.xlu0 %2029, %v1338
      %v2031 = vpop.permute.xlu0 %2030
      %2034 = vset.pattern.permute.xlu0 0
      %2035 = vperm.xlu0 %2034, %v1339
      %v2036 = vpop.permute.xlu0 %2035
      %2039 = vset.pattern.permute.xlu0 0
      %2040 = vperm.xlu0 %2039, %v1340
      %v2041 = vpop.permute.xlu0 %2040
      %2044 = vset.pattern.permute.xlu0 0
      %2045 = vperm.xlu0 %2044, %v1341
      %v2046 = vpop.permute.xlu0 %2045
      %2049 = vset.pattern.permute.xlu0 0
      %2050 = vperm.xlu0 %2049, %v1342
      %v2051 = vpop.permute.xlu0 %2050
      %2054 = vset.pattern.permute.xlu0 0
      %2055 = vperm.xlu0 %2054, %v1343
      %v2056 = vpop.permute.xlu0 %2055
      %2059 = vset.pattern.permute.xlu0 0
      %2060 = vperm.xlu0 %2059, %v1344
      %v2061 = vpop.permute.xlu0 %2060
      %2064 = vset.pattern.permute.xlu0 0
      %2065 = vperm.xlu0 %2064, %v1345
      %v2066 = vpop.permute.xlu0 %2065
      %2069 = vset.pattern.permute.xlu0 0
      %2070 = vperm.xlu0 %2069, %v1346
      %v2071 = vpop.permute.xlu0 %2070
      %2074 = vset.pattern.permute.xlu0 0
      %2075 = vperm.xlu0 %2074, %v1347
      %v2076 = vpop.permute.xlu0 %2075
      %2079 = vset.pattern.permute.xlu0 0
      %2080 = vperm.xlu0 %2079, %v1348
      %v2081 = vpop.permute.xlu0 %2080
      %2084 = vset.pattern.permute.xlu0 0
      %2085 = vperm.xlu0 %2084, %v1349
      %v2086 = vpop.permute.xlu0 %2085
      %2089 = vset.pattern.permute.xlu0 0
      %2090 = vperm.xlu0 %2089, %v1350
      %v2091 = vpop.permute.xlu0 %2090
      %2094 = vset.pattern.permute.xlu0 0
      %2095 = vperm.xlu0 %2094, %v1351
      %v2096 = vpop.permute.xlu0 %2095
      %2099 = vset.pattern.permute.xlu0 0
      %2100 = vperm.xlu0 %2099, %v1352
      %v2101 = vpop.permute.xlu0 %2100
      %2104 = vset.pattern.permute.xlu0 0
      %2105 = vperm.xlu0 %2104, %v1353
      %v2106 = vpop.permute.xlu0 %2105
      %2109 = vset.pattern.permute.xlu0 0
      %2110 = vperm.xlu0 %2109, %v1354
      %v2111 = vpop.permute.xlu0 %2110
      %2114 = vset.pattern.permute.xlu0 0
      %2115 = vperm.xlu0 %2114, %v1355
      %v2116 = vpop.permute.xlu0 %2115
      %2119 = vset.pattern.permute.xlu0 0
      %2120 = vperm.xlu0 %2119, %v1356
      %v2121 = vpop.permute.xlu0 %2120
      %2124 = vset.pattern.permute.xlu0 0
      %2125 = vperm.xlu0 %2124, %v1357
      %v2126 = vpop.permute.xlu0 %2125
      %2129 = vset.pattern.permute.xlu0 0
      %2130 = vperm.xlu0 %2129, %v1358
      %v2131 = vpop.permute.xlu0 %2130
      %2134 = vset.pattern.permute.xlu0 0
      %2135 = vperm.xlu0 %2134, %v1359
      %v2136 = vpop.permute.xlu0 %2135
      %2139 = vset.pattern.permute.xlu0 0
      %2140 = vperm.xlu0 %2139, %v1360
      %v2141 = vpop.permute.xlu0 %2140
      %2144 = vset.pattern.permute.xlu0 0
      %2145 = vperm.xlu0 %2144, %v1361
      %v2146 = vpop.permute.xlu0 %2145
      %2149 = vset.pattern.permute.xlu0 0
      %2150 = vperm.xlu0 %2149, %v1362
      %v2151 = vpop.permute.xlu0 %2150
      %2154 = vset.pattern.permute.xlu0 0
      %2155 = vperm.xlu0 %2154, %v1363
      %v2156 = vpop.permute.xlu0 %2155
      %2159 = vset.pattern.permute.xlu0 0
      %2160 = vperm.xlu0 %2159, %v1364
      %v2161 = vpop.permute.xlu0 %2160
      %2164 = vset.pattern.permute.xlu0 0
      %2165 = vperm.xlu0 %2164, %v1365
      %v2166 = vpop.permute.xlu0 %2165
      %2169 = vset.pattern.permute.xlu0 0
      %2170 = vperm.xlu0 %2169, %v1366
      %v2171 = vpop.permute.xlu0 %2170
      %2174 = vset.pattern.permute.xlu0 0
      %2175 = vperm.xlu0 %2174, %v1367
      %v2176 = vpop.permute.xlu0 %2175
      %2179 = vset.pattern.permute.xlu0 0
      %2180 = vperm.xlu0 %2179, %v1368
      %v2181 = vpop.permute.xlu0 %2180
      %2184 = vset.pattern.permute.xlu0 0
      %2185 = vperm.xlu0 %2184, %v1369
      %v2186 = vpop.permute.xlu0 %2185
      %2189 = vset.pattern.permute.xlu0 0
      %2190 = vperm.xlu0 %2189, %v1370
      %v2191 = vpop.permute.xlu0 %2190
      %2194 = vset.pattern.permute.xlu0 0
      %2195 = vperm.xlu0 %2194, %v1371
      %v2196 = vpop.permute.xlu0 %2195
      %2199 = vset.pattern.permute.xlu0 0
      %2200 = vperm.xlu0 %2199, %v1372
      %v2201 = vpop.permute.xlu0 %2200
      %2204 = vset.pattern.permute.xlu0 0
      %2205 = vperm.xlu0 %2204, %v1373
      %v2206 = vpop.permute.xlu0 %2205
      %2209 = vset.pattern.permute.xlu0 0
      %2210 = vperm.xlu0 %2209, %v1374
      %v2211 = vpop.permute.xlu0 %2210
      %2214 = vset.pattern.permute.xlu0 0
      %2215 = vperm.xlu0 %2214, %v1375
      %v2216 = vpop.permute.xlu0 %2215
      %2219 = vset.pattern.permute.xlu0 0
      %2220 = vperm.xlu0 %2219, %v1376
      %v2221 = vpop.permute.xlu0 %2220
      %2224 = vset.pattern.permute.xlu0 0
      %2225 = vperm.xlu0 %2224, %v1377
      %v2226 = vpop.permute.xlu0 %2225
      %2229 = vset.pattern.permute.xlu0 0
      %2230 = vperm.xlu0 %2229, %v1378
      %v2231 = vpop.permute.xlu0 %2230
      %2234 = vset.pattern.permute.xlu0 0
      %2235 = vperm.xlu0 %2234, %v1379
      %v2236 = vpop.permute.xlu0 %2235
      %2239 = vset.pattern.permute.xlu0 0
      %2240 = vperm.xlu0 %2239, %v1380
      %v2241 = vpop.permute.xlu0 %2240
      %v2244 = vlaneseq
      %v2245 = vshrl.u32 %v2244, 7
      %v2246 = vsub.s32 0, %v2245
      %v2247 = vrot.slane %v1381, %v2246
      %v2248 = vlaneseq
      %v2249 = vshrl.u32 %v2248, 7
      %v2250 = vsub.s32 1, %v2249
      %v2251 = vrot.slane %v1381, %v2250
      %v2252 = vlaneseq
      %v2253 = vshrl.u32 %v2252, 7
      %v2254 = vsub.s32 2, %v2253
      %v2255 = vrot.slane %v1381, %v2254
      %v2256 = vlaneseq
      %v2257 = vshrl.u32 %v2256, 7
      %v2258 = vsub.s32 3, %v2257
      %v2259 = vrot.slane %v1381, %v2258
      %v2260 = vlaneseq
      %v2261 = vshrl.u32 %v2260, 7
      %v2262 = vsub.s32 4, %v2261
      %v2263 = vrot.slane %v1381, %v2262
      %vm2269 = vcmp.le.f32.partialorder %v1686, %v2247
      %vm2270 = vcmp.le.f32.partialorder %v1686, %v2251
      %vm2271 = vcmp.le.f32.partialorder %v1686, %v2255
      %vm2272 = vcmp.le.f32.partialorder %v1686, %v2259
      %vm2273 = vcmp.le.f32.partialorder %v1686, %v2263
      %vm2274 = vcmp.le.f32.partialorder %v1691, %v2247
      %vm2275 = vcmp.le.f32.partialorder %v1691, %v2251
      %vm2276 = vcmp.le.f32.partialorder %v1691, %v2255
      %vm2277 = vcmp.le.f32.partialorder %v1691, %v2259
      %vm2278 = vcmp.le.f32.partialorder %v1691, %v2263
      %vm2279 = vcmp.le.f32.partialorder %v1696, %v2247
      %vm2280 = vcmp.le.f32.partialorder %v1696, %v2251
      %vm2281 = vcmp.le.f32.partialorder %v1696, %v2255
      %vm2282 = vcmp.le.f32.partialorder %v1696, %v2259
      %vm2283 = vcmp.le.f32.partialorder %v1696, %v2263
      %vm2284 = vcmp.le.f32.partialorder %v1701, %v2247
      %vm2285 = vcmp.le.f32.partialorder %v1701, %v2251
      %vm2286 = vcmp.le.f32.partialorder %v1701, %v2255
      %vm2287 = vcmp.le.f32.partialorder %v1701, %v2259
      %vm2288 = vcmp.le.f32.partialorder %v1701, %v2263
      %vm2289 = vcmp.le.f32.partialorder %v1706, %v2247
      %vm2290 = vcmp.le.f32.partialorder %v1706, %v2251
      %vm2291 = vcmp.le.f32.partialorder %v1706, %v2255
      %vm2292 = vcmp.le.f32.partialorder %v1706, %v2259
      %vm2293 = vcmp.le.f32.partialorder %v1706, %v2263
      %vm2294 = vcmp.le.f32.partialorder %v1711, %v2247
      %vm2295 = vcmp.le.f32.partialorder %v1711, %v2251
      %vm2296 = vcmp.le.f32.partialorder %v1711, %v2255
      %vm2297 = vcmp.le.f32.partialorder %v1711, %v2259
      %vm2298 = vcmp.le.f32.partialorder %v1711, %v2263
      %vm2299 = vcmp.le.f32.partialorder %v1716, %v2247
      %vm2300 = vcmp.le.f32.partialorder %v1716, %v2251
      %vm2301 = vcmp.le.f32.partialorder %v1716, %v2255
      %vm2302 = vcmp.le.f32.partialorder %v1716, %v2259
      %vm2303 = vcmp.le.f32.partialorder %v1716, %v2263
      %vm2304 = vcmp.le.f32.partialorder %v1721, %v2247
      %vm2305 = vcmp.le.f32.partialorder %v1721, %v2251
      %vm2306 = vcmp.le.f32.partialorder %v1721, %v2255
      %vm2307 = vcmp.le.f32.partialorder %v1721, %v2259
      %vm2308 = vcmp.le.f32.partialorder %v1721, %v2263
      %vm2309 = vcmp.le.f32.partialorder %v1726, %v2247
      %vm2310 = vcmp.le.f32.partialorder %v1726, %v2251
      %vm2311 = vcmp.le.f32.partialorder %v1726, %v2255
      %vm2312 = vcmp.le.f32.partialorder %v1726, %v2259
      %vm2313 = vcmp.le.f32.partialorder %v1726, %v2263
      %vm2314 = vcmp.le.f32.partialorder %v1731, %v2247
      %vm2315 = vcmp.le.f32.partialorder %v1731, %v2251
      %vm2316 = vcmp.le.f32.partialorder %v1731, %v2255
      %vm2317 = vcmp.le.f32.partialorder %v1731, %v2259
      %vm2318 = vcmp.le.f32.partialorder %v1731, %v2263
      %vm2319 = vcmp.le.f32.partialorder %v1736, %v2247
      %vm2320 = vcmp.le.f32.partialorder %v1736, %v2251
      %vm2321 = vcmp.le.f32.partialorder %v1736, %v2255
      %vm2322 = vcmp.le.f32.partialorder %v1736, %v2259
      %vm2323 = vcmp.le.f32.partialorder %v1736, %v2263
      %vm2324 = vcmp.le.f32.partialorder %v1741, %v2247
      %vm2325 = vcmp.le.f32.partialorder %v1741, %v2251
      %vm2326 = vcmp.le.f32.partialorder %v1741, %v2255
      %vm2327 = vcmp.le.f32.partialorder %v1741, %v2259
      %vm2328 = vcmp.le.f32.partialorder %v1741, %v2263
      %vm2329 = vcmp.le.f32.partialorder %v1746, %v2247
      %vm2330 = vcmp.le.f32.partialorder %v1746, %v2251
      %vm2331 = vcmp.le.f32.partialorder %v1746, %v2255
      %vm2332 = vcmp.le.f32.partialorder %v1746, %v2259
      %vm2333 = vcmp.le.f32.partialorder %v1746, %v2263
      %vm2334 = vcmp.le.f32.partialorder %v1751, %v2247
      %vm2335 = vcmp.le.f32.partialorder %v1751, %v2251
      %vm2336 = vcmp.le.f32.partialorder %v1751, %v2255
      %vm2337 = vcmp.le.f32.partialorder %v1751, %v2259
      %vm2338 = vcmp.le.f32.partialorder %v1751, %v2263
      %vm2339 = vcmp.le.f32.partialorder %v1756, %v2247
      %vm2340 = vcmp.le.f32.partialorder %v1756, %v2251
      %vm2341 = vcmp.le.f32.partialorder %v1756, %v2255
      %vm2342 = vcmp.le.f32.partialorder %v1756, %v2259
      %vm2343 = vcmp.le.f32.partialorder %v1756, %v2263
      %vm2344 = vcmp.le.f32.partialorder %v1761, %v2247
      %vm2345 = vcmp.le.f32.partialorder %v1761, %v2251
      %vm2346 = vcmp.le.f32.partialorder %v1761, %v2255
      %vm2347 = vcmp.le.f32.partialorder %v1761, %v2259
      %vm2348 = vcmp.le.f32.partialorder %v1761, %v2263
      %vm2349 = vcmp.le.f32.partialorder %v1766, %v2247
      %vm2350 = vcmp.le.f32.partialorder %v1766, %v2251
      %vm2351 = vcmp.le.f32.partialorder %v1766, %v2255
      %vm2352 = vcmp.le.f32.partialorder %v1766, %v2259
      %vm2353 = vcmp.le.f32.partialorder %v1766, %v2263
      %vm2354 = vcmp.le.f32.partialorder %v1771, %v2247
      %vm2355 = vcmp.le.f32.partialorder %v1771, %v2251
      %vm2356 = vcmp.le.f32.partialorder %v1771, %v2255
      %vm2357 = vcmp.le.f32.partialorder %v1771, %v2259
      %vm2358 = vcmp.le.f32.partialorder %v1771, %v2263
      %vm2359 = vcmp.le.f32.partialorder %v1776, %v2247
      %vm2360 = vcmp.le.f32.partialorder %v1776, %v2251
      %vm2361 = vcmp.le.f32.partialorder %v1776, %v2255
      %vm2362 = vcmp.le.f32.partialorder %v1776, %v2259
      %vm2363 = vcmp.le.f32.partialorder %v1776, %v2263
      %vm2364 = vcmp.le.f32.partialorder %v1781, %v2247
      %vm2365 = vcmp.le.f32.partialorder %v1781, %v2251
      %vm2366 = vcmp.le.f32.partialorder %v1781, %v2255
      %vm2367 = vcmp.le.f32.partialorder %v1781, %v2259
      %vm2368 = vcmp.le.f32.partialorder %v1781, %v2263
      %vm2369 = vcmp.le.f32.partialorder %v1786, %v2247
      %vm2370 = vcmp.le.f32.partialorder %v1786, %v2251
      %vm2371 = vcmp.le.f32.partialorder %v1786, %v2255
      %vm2372 = vcmp.le.f32.partialorder %v1786, %v2259
      %vm2373 = vcmp.le.f32.partialorder %v1786, %v2263
      %vm2374 = vcmp.le.f32.partialorder %v1791, %v2247
      %vm2375 = vcmp.le.f32.partialorder %v1791, %v2251
      %vm2376 = vcmp.le.f32.partialorder %v1791, %v2255
      %vm2377 = vcmp.le.f32.partialorder %v1791, %v2259
      %vm2378 = vcmp.le.f32.partialorder %v1791, %v2263
      %vm2379 = vcmp.le.f32.partialorder %v1796, %v2247
      %vm2380 = vcmp.le.f32.partialorder %v1796, %v2251
      %vm2381 = vcmp.le.f32.partialorder %v1796, %v2255
      %vm2382 = vcmp.le.f32.partialorder %v1796, %v2259
      %vm2383 = vcmp.le.f32.partialorder %v1796, %v2263
      %vm2384 = vcmp.le.f32.partialorder %v1801, %v2247
      %vm2385 = vcmp.le.f32.partialorder %v1801, %v2251
      %vm2386 = vcmp.le.f32.partialorder %v1801, %v2255
      %vm2387 = vcmp.le.f32.partialorder %v1801, %v2259
      %vm2388 = vcmp.le.f32.partialorder %v1801, %v2263
      %vm2389 = vcmp.le.f32.partialorder %v1806, %v2247
      %vm2390 = vcmp.le.f32.partialorder %v1806, %v2251
      %vm2391 = vcmp.le.f32.partialorder %v1806, %v2255
      %vm2392 = vcmp.le.f32.partialorder %v1806, %v2259
      %vm2393 = vcmp.le.f32.partialorder %v1806, %v2263
      %vm2394 = vcmp.le.f32.partialorder %v1811, %v2247
      %vm2395 = vcmp.le.f32.partialorder %v1811, %v2251
      %vm2396 = vcmp.le.f32.partialorder %v1811, %v2255
      %vm2397 = vcmp.le.f32.partialorder %v1811, %v2259
      %vm2398 = vcmp.le.f32.partialorder %v1811, %v2263
      %vm2399 = vcmp.le.f32.partialorder %v1816, %v2247
      %vm2400 = vcmp.le.f32.partialorder %v1816, %v2251
      %vm2401 = vcmp.le.f32.partialorder %v1816, %v2255
      %vm2402 = vcmp.le.f32.partialorder %v1816, %v2259
      %vm2403 = vcmp.le.f32.partialorder %v1816, %v2263
      %vm2404 = vcmp.le.f32.partialorder %v1821, %v2247
      %vm2405 = vcmp.le.f32.partialorder %v1821, %v2251
      %vm2406 = vcmp.le.f32.partialorder %v1821, %v2255
      %vm2407 = vcmp.le.f32.partialorder %v1821, %v2259
      %vm2408 = vcmp.le.f32.partialorder %v1821, %v2263
      %vm2409 = vcmp.le.f32.partialorder %v1826, %v2247
      %vm2410 = vcmp.le.f32.partialorder %v1826, %v2251
      %vm2411 = vcmp.le.f32.partialorder %v1826, %v2255
      %vm2412 = vcmp.le.f32.partialorder %v1826, %v2259
      %vm2413 = vcmp.le.f32.partialorder %v1826, %v2263
      %vm2414 = vcmp.le.f32.partialorder %v1831, %v2247
      %vm2415 = vcmp.le.f32.partialorder %v1831, %v2251
      %vm2416 = vcmp.le.f32.partialorder %v1831, %v2255
      %vm2417 = vcmp.le.f32.partialorder %v1831, %v2259
      %vm2418 = vcmp.le.f32.partialorder %v1831, %v2263
      %vm2419 = vcmp.le.f32.partialorder %v1836, %v2247
      %vm2420 = vcmp.le.f32.partialorder %v1836, %v2251
      %vm2421 = vcmp.le.f32.partialorder %v1836, %v2255
      %vm2422 = vcmp.le.f32.partialorder %v1836, %v2259
      %vm2423 = vcmp.le.f32.partialorder %v1836, %v2263
      %vm2424 = vcmp.le.f32.partialorder %v1841, %v2247
      %vm2425 = vcmp.le.f32.partialorder %v1841, %v2251
      %vm2426 = vcmp.le.f32.partialorder %v1841, %v2255
      %vm2427 = vcmp.le.f32.partialorder %v1841, %v2259
      %vm2428 = vcmp.le.f32.partialorder %v1841, %v2263
      %vm2429 = vcmp.le.f32.partialorder %v1846, %v2247
      %vm2430 = vcmp.le.f32.partialorder %v1846, %v2251
      %vm2431 = vcmp.le.f32.partialorder %v1846, %v2255
      %vm2432 = vcmp.le.f32.partialorder %v1846, %v2259
      %vm2433 = vcmp.le.f32.partialorder %v1846, %v2263
      %vm2434 = vcmp.le.f32.partialorder %v1851, %v2247
      %vm2435 = vcmp.le.f32.partialorder %v1851, %v2251
      %vm2436 = vcmp.le.f32.partialorder %v1851, %v2255
      %vm2437 = vcmp.le.f32.partialorder %v1851, %v2259
      %vm2438 = vcmp.le.f32.partialorder %v1851, %v2263
      %vm2439 = vcmp.le.f32.partialorder %v1856, %v2247
      %vm2440 = vcmp.le.f32.partialorder %v1856, %v2251
      %vm2441 = vcmp.le.f32.partialorder %v1856, %v2255
      %vm2442 = vcmp.le.f32.partialorder %v1856, %v2259
      %vm2443 = vcmp.le.f32.partialorder %v1856, %v2263
      %vm2444 = vcmp.le.f32.partialorder %v1861, %v2247
      %vm2445 = vcmp.le.f32.partialorder %v1861, %v2251
      %vm2446 = vcmp.le.f32.partialorder %v1861, %v2255
      %vm2447 = vcmp.le.f32.partialorder %v1861, %v2259
      %vm2448 = vcmp.le.f32.partialorder %v1861, %v2263
      %vm2449 = vcmp.le.f32.partialorder %v1866, %v2247
      %vm2450 = vcmp.le.f32.partialorder %v1866, %v2251
      %vm2451 = vcmp.le.f32.partialorder %v1866, %v2255
      %vm2452 = vcmp.le.f32.partialorder %v1866, %v2259
      %vm2453 = vcmp.le.f32.partialorder %v1866, %v2263
      %vm2454 = vcmp.le.f32.partialorder %v1871, %v2247
      %vm2455 = vcmp.le.f32.partialorder %v1871, %v2251
      %vm2456 = vcmp.le.f32.partialorder %v1871, %v2255
      %vm2457 = vcmp.le.f32.partialorder %v1871, %v2259
      %vm2458 = vcmp.le.f32.partialorder %v1871, %v2263
      %vm2459 = vcmp.le.f32.partialorder %v1876, %v2247
      %vm2460 = vcmp.le.f32.partialorder %v1876, %v2251
      %vm2461 = vcmp.le.f32.partialorder %v1876, %v2255
      %vm2462 = vcmp.le.f32.partialorder %v1876, %v2259
      %vm2463 = vcmp.le.f32.partialorder %v1876, %v2263
      %vm2464 = vcmp.le.f32.partialorder %v1881, %v2247
      %vm2465 = vcmp.le.f32.partialorder %v1881, %v2251
      %vm2466 = vcmp.le.f32.partialorder %v1881, %v2255
      %vm2467 = vcmp.le.f32.partialorder %v1881, %v2259
      %vm2468 = vcmp.le.f32.partialorder %v1881, %v2263
      %vm2469 = vcmp.le.f32.partialorder %v1886, %v2247
      %vm2470 = vcmp.le.f32.partialorder %v1886, %v2251
      %vm2471 = vcmp.le.f32.partialorder %v1886, %v2255
      %vm2472 = vcmp.le.f32.partialorder %v1886, %v2259
      %vm2473 = vcmp.le.f32.partialorder %v1886, %v2263
      %vm2474 = vcmp.le.f32.partialorder %v1891, %v2247
      %vm2475 = vcmp.le.f32.partialorder %v1891, %v2251
      %vm2476 = vcmp.le.f32.partialorder %v1891, %v2255
      %vm2477 = vcmp.le.f32.partialorder %v1891, %v2259
      %vm2478 = vcmp.le.f32.partialorder %v1891, %v2263
      %vm2479 = vcmp.le.f32.partialorder %v1896, %v2247
      %vm2480 = vcmp.le.f32.partialorder %v1896, %v2251
      %vm2481 = vcmp.le.f32.partialorder %v1896, %v2255
      %vm2482 = vcmp.le.f32.partialorder %v1896, %v2259
      %vm2483 = vcmp.le.f32.partialorder %v1896, %v2263
      %vm2484 = vcmp.le.f32.partialorder %v1901, %v2247
      %vm2485 = vcmp.le.f32.partialorder %v1901, %v2251
      %vm2486 = vcmp.le.f32.partialorder %v1901, %v2255
      %vm2487 = vcmp.le.f32.partialorder %v1901, %v2259
      %vm2488 = vcmp.le.f32.partialorder %v1901, %v2263
      %vm2489 = vcmp.le.f32.partialorder %v1906, %v2247
      %vm2490 = vcmp.le.f32.partialorder %v1906, %v2251
      %vm2491 = vcmp.le.f32.partialorder %v1906, %v2255
      %vm2492 = vcmp.le.f32.partialorder %v1906, %v2259
      %vm2493 = vcmp.le.f32.partialorder %v1906, %v2263
      %vm2494 = vcmp.le.f32.partialorder %v1911, %v2247
      %vm2495 = vcmp.le.f32.partialorder %v1911, %v2251
      %vm2496 = vcmp.le.f32.partialorder %v1911, %v2255
      %vm2497 = vcmp.le.f32.partialorder %v1911, %v2259
      %vm2498 = vcmp.le.f32.partialorder %v1911, %v2263
      %vm2499 = vcmp.le.f32.partialorder %v1916, %v2247
      %vm2500 = vcmp.le.f32.partialorder %v1916, %v2251
      %vm2501 = vcmp.le.f32.partialorder %v1916, %v2255
      %vm2502 = vcmp.le.f32.partialorder %v1916, %v2259
      %vm2503 = vcmp.le.f32.partialorder %v1916, %v2263
      %vm2504 = vcmp.le.f32.partialorder %v1921, %v2247
      %vm2505 = vcmp.le.f32.partialorder %v1921, %v2251
      %vm2506 = vcmp.le.f32.partialorder %v1921, %v2255
      %vm2507 = vcmp.le.f32.partialorder %v1921, %v2259
      %vm2508 = vcmp.le.f32.partialorder %v1921, %v2263
      %vm2509 = vcmp.le.f32.partialorder %v1926, %v2247
      %vm2510 = vcmp.le.f32.partialorder %v1926, %v2251
      %vm2511 = vcmp.le.f32.partialorder %v1926, %v2255
      %vm2512 = vcmp.le.f32.partialorder %v1926, %v2259
      %vm2513 = vcmp.le.f32.partialorder %v1926, %v2263
      %vm2514 = vcmp.le.f32.partialorder %v1931, %v2247
      %vm2515 = vcmp.le.f32.partialorder %v1931, %v2251
      %vm2516 = vcmp.le.f32.partialorder %v1931, %v2255
      %vm2517 = vcmp.le.f32.partialorder %v1931, %v2259
      %vm2518 = vcmp.le.f32.partialorder %v1931, %v2263
      %vm2519 = vcmp.le.f32.partialorder %v1936, %v2247
      %vm2520 = vcmp.le.f32.partialorder %v1936, %v2251
      %vm2521 = vcmp.le.f32.partialorder %v1936, %v2255
      %vm2522 = vcmp.le.f32.partialorder %v1936, %v2259
      %vm2523 = vcmp.le.f32.partialorder %v1936, %v2263
      %vm2524 = vcmp.le.f32.partialorder %v1941, %v2247
      %vm2525 = vcmp.le.f32.partialorder %v1941, %v2251
      %vm2526 = vcmp.le.f32.partialorder %v1941, %v2255
      %vm2527 = vcmp.le.f32.partialorder %v1941, %v2259
      %vm2528 = vcmp.le.f32.partialorder %v1941, %v2263
      %vm2529 = vcmp.le.f32.partialorder %v1946, %v2247
      %vm2530 = vcmp.le.f32.partialorder %v1946, %v2251
      %vm2531 = vcmp.le.f32.partialorder %v1946, %v2255
      %vm2532 = vcmp.le.f32.partialorder %v1946, %v2259
      %vm2533 = vcmp.le.f32.partialorder %v1946, %v2263
      %vm2534 = vcmp.le.f32.partialorder %v1951, %v2247
      %vm2535 = vcmp.le.f32.partialorder %v1951, %v2251
      %vm2536 = vcmp.le.f32.partialorder %v1951, %v2255
      %vm2537 = vcmp.le.f32.partialorder %v1951, %v2259
      %vm2538 = vcmp.le.f32.partialorder %v1951, %v2263
      %vm2539 = vcmp.le.f32.partialorder %v1956, %v2247
      %vm2540 = vcmp.le.f32.partialorder %v1956, %v2251
      %vm2541 = vcmp.le.f32.partialorder %v1956, %v2255
      %vm2542 = vcmp.le.f32.partialorder %v1956, %v2259
      %vm2543 = vcmp.le.f32.partialorder %v1956, %v2263
      %vm2544 = vcmp.le.f32.partialorder %v1961, %v2247
      %vm2545 = vcmp.le.f32.partialorder %v1961, %v2251
      %vm2546 = vcmp.le.f32.partialorder %v1961, %v2255
      %vm2547 = vcmp.le.f32.partialorder %v1961, %v2259
      %vm2548 = vcmp.le.f32.partialorder %v1961, %v2263
      %vm2549 = vcmp.le.f32.partialorder %v1966, %v2247
      %vm2550 = vcmp.le.f32.partialorder %v1966, %v2251
      %vm2551 = vcmp.le.f32.partialorder %v1966, %v2255
      %vm2552 = vcmp.le.f32.partialorder %v1966, %v2259
      %vm2553 = vcmp.le.f32.partialorder %v1966, %v2263
      %vm2554 = vcmp.le.f32.partialorder %v1971, %v2247
      %vm2555 = vcmp.le.f32.partialorder %v1971, %v2251
      %vm2556 = vcmp.le.f32.partialorder %v1971, %v2255
      %vm2557 = vcmp.le.f32.partialorder %v1971, %v2259
      %vm2558 = vcmp.le.f32.partialorder %v1971, %v2263
      %vm2559 = vcmp.le.f32.partialorder %v1976, %v2247
      %vm2560 = vcmp.le.f32.partialorder %v1976, %v2251
      %vm2561 = vcmp.le.f32.partialorder %v1976, %v2255
      %vm2562 = vcmp.le.f32.partialorder %v1976, %v2259
      %vm2563 = vcmp.le.f32.partialorder %v1976, %v2263
      %vm2564 = vcmp.le.f32.partialorder %v1981, %v2247
      %vm2565 = vcmp.le.f32.partialorder %v1981, %v2251
      %vm2566 = vcmp.le.f32.partialorder %v1981, %v2255
      %vm2567 = vcmp.le.f32.partialorder %v1981, %v2259
      %vm2568 = vcmp.le.f32.partialorder %v1981, %v2263
      %vm2569 = vcmp.le.f32.partialorder %v1986, %v2247
      %vm2570 = vcmp.le.f32.partialorder %v1986, %v2251
      %vm2571 = vcmp.le.f32.partialorder %v1986, %v2255
      %vm2572 = vcmp.le.f32.partialorder %v1986, %v2259
      %vm2573 = vcmp.le.f32.partialorder %v1986, %v2263
      %vm2574 = vcmp.le.f32.partialorder %v1991, %v2247
      %vm2575 = vcmp.le.f32.partialorder %v1991, %v2251
      %vm2576 = vcmp.le.f32.partialorder %v1991, %v2255
      %vm2577 = vcmp.le.f32.partialorder %v1991, %v2259
      %vm2578 = vcmp.le.f32.partialorder %v1991, %v2263
      %vm2579 = vcmp.le.f32.partialorder %v1996, %v2247
      %vm2580 = vcmp.le.f32.partialorder %v1996, %v2251
      %vm2581 = vcmp.le.f32.partialorder %v1996, %v2255
      %vm2582 = vcmp.le.f32.partialorder %v1996, %v2259
      %vm2583 = vcmp.le.f32.partialorder %v1996, %v2263
      %vm2584 = vcmp.le.f32.partialorder %v2001, %v2247
      %vm2585 = vcmp.le.f32.partialorder %v2001, %v2251
      %vm2586 = vcmp.le.f32.partialorder %v2001, %v2255
      %vm2587 = vcmp.le.f32.partialorder %v2001, %v2259
      %vm2588 = vcmp.le.f32.partialorder %v2001, %v2263
      %vm2589 = vcmp.le.f32.partialorder %v2006, %v2247
      %vm2590 = vcmp.le.f32.partialorder %v2006, %v2251
      %vm2591 = vcmp.le.f32.partialorder %v2006, %v2255
      %vm2592 = vcmp.le.f32.partialorder %v2006, %v2259
      %vm2593 = vcmp.le.f32.partialorder %v2006, %v2263
      %vm2594 = vcmp.le.f32.partialorder %v2011, %v2247
      %vm2595 = vcmp.le.f32.partialorder %v2011, %v2251
      %vm2596 = vcmp.le.f32.partialorder %v2011, %v2255
      %vm2597 = vcmp.le.f32.partialorder %v2011, %v2259
      %vm2598 = vcmp.le.f32.partialorder %v2011, %v2263
      %vm2599 = vcmp.le.f32.partialorder %v2016, %v2247
      %vm2600 = vcmp.le.f32.partialorder %v2016, %v2251
      %vm2601 = vcmp.le.f32.partialorder %v2016, %v2255
      %vm2602 = vcmp.le.f32.partialorder %v2016, %v2259
      %vm2603 = vcmp.le.f32.partialorder %v2016, %v2263
      %vm2604 = vcmp.le.f32.partialorder %v2021, %v2247
      %vm2605 = vcmp.le.f32.partialorder %v2021, %v2251
      %vm2606 = vcmp.le.f32.partialorder %v2021, %v2255
      %vm2607 = vcmp.le.f32.partialorder %v2021, %v2259
      %vm2608 = vcmp.le.f32.partialorder %v2021, %v2263
      %vm2609 = vcmp.le.f32.partialorder %v2026, %v2247
      %vm2610 = vcmp.le.f32.partialorder %v2026, %v2251
      %vm2611 = vcmp.le.f32.partialorder %v2026, %v2255
      %vm2612 = vcmp.le.f32.partialorder %v2026, %v2259
      %vm2613 = vcmp.le.f32.partialorder %v2026, %v2263
      %vm2614 = vcmp.le.f32.partialorder %v2031, %v2247
      %vm2615 = vcmp.le.f32.partialorder %v2031, %v2251
      %vm2616 = vcmp.le.f32.partialorder %v2031, %v2255
      %vm2617 = vcmp.le.f32.partialorder %v2031, %v2259
      %vm2618 = vcmp.le.f32.partialorder %v2031, %v2263
      %vm2619 = vcmp.le.f32.partialorder %v2036, %v2247
      %vm2620 = vcmp.le.f32.partialorder %v2036, %v2251
      %vm2621 = vcmp.le.f32.partialorder %v2036, %v2255
      %vm2622 = vcmp.le.f32.partialorder %v2036, %v2259
      %vm2623 = vcmp.le.f32.partialorder %v2036, %v2263
      %vm2624 = vcmp.le.f32.partialorder %v2041, %v2247
      %vm2625 = vcmp.le.f32.partialorder %v2041, %v2251
      %vm2626 = vcmp.le.f32.partialorder %v2041, %v2255
      %vm2627 = vcmp.le.f32.partialorder %v2041, %v2259
      %vm2628 = vcmp.le.f32.partialorder %v2041, %v2263
      %vm2629 = vcmp.le.f32.partialorder %v2046, %v2247
      %vm2630 = vcmp.le.f32.partialorder %v2046, %v2251
      %vm2631 = vcmp.le.f32.partialorder %v2046, %v2255
      %vm2632 = vcmp.le.f32.partialorder %v2046, %v2259
      %vm2633 = vcmp.le.f32.partialorder %v2046, %v2263
      %vm2634 = vcmp.le.f32.partialorder %v2051, %v2247
      %vm2635 = vcmp.le.f32.partialorder %v2051, %v2251
      %vm2636 = vcmp.le.f32.partialorder %v2051, %v2255
      %vm2637 = vcmp.le.f32.partialorder %v2051, %v2259
      %vm2638 = vcmp.le.f32.partialorder %v2051, %v2263
      %vm2639 = vcmp.le.f32.partialorder %v2056, %v2247
      %vm2640 = vcmp.le.f32.partialorder %v2056, %v2251
      %vm2641 = vcmp.le.f32.partialorder %v2056, %v2255
      %vm2642 = vcmp.le.f32.partialorder %v2056, %v2259
      %vm2643 = vcmp.le.f32.partialorder %v2056, %v2263
      %vm2644 = vcmp.le.f32.partialorder %v2061, %v2247
      %vm2645 = vcmp.le.f32.partialorder %v2061, %v2251
      %vm2646 = vcmp.le.f32.partialorder %v2061, %v2255
      %vm2647 = vcmp.le.f32.partialorder %v2061, %v2259
      %vm2648 = vcmp.le.f32.partialorder %v2061, %v2263
      %vm2649 = vcmp.le.f32.partialorder %v2066, %v2247
      %vm2650 = vcmp.le.f32.partialorder %v2066, %v2251
      %vm2651 = vcmp.le.f32.partialorder %v2066, %v2255
      %vm2652 = vcmp.le.f32.partialorder %v2066, %v2259
      %vm2653 = vcmp.le.f32.partialorder %v2066, %v2263
      %vm2654 = vcmp.le.f32.partialorder %v2071, %v2247
      %vm2655 = vcmp.le.f32.partialorder %v2071, %v2251
      %vm2656 = vcmp.le.f32.partialorder %v2071, %v2255
      %vm2657 = vcmp.le.f32.partialorder %v2071, %v2259
      %vm2658 = vcmp.le.f32.partialorder %v2071, %v2263
      %vm2659 = vcmp.le.f32.partialorder %v2076, %v2247
      %vm2660 = vcmp.le.f32.partialorder %v2076, %v2251
      %vm2661 = vcmp.le.f32.partialorder %v2076, %v2255
      %vm2662 = vcmp.le.f32.partialorder %v2076, %v2259
      %vm2663 = vcmp.le.f32.partialorder %v2076, %v2263
      %vm2664 = vcmp.le.f32.partialorder %v2081, %v2247
      %vm2665 = vcmp.le.f32.partialorder %v2081, %v2251
      %vm2666 = vcmp.le.f32.partialorder %v2081, %v2255
      %vm2667 = vcmp.le.f32.partialorder %v2081, %v2259
      %vm2668 = vcmp.le.f32.partialorder %v2081, %v2263
      %vm2669 = vcmp.le.f32.partialorder %v2086, %v2247
      %vm2670 = vcmp.le.f32.partialorder %v2086, %v2251
      %vm2671 = vcmp.le.f32.partialorder %v2086, %v2255
      %vm2672 = vcmp.le.f32.partialorder %v2086, %v2259
      %vm2673 = vcmp.le.f32.partialorder %v2086, %v2263
      %vm2674 = vcmp.le.f32.partialorder %v2091, %v2247
      %vm2675 = vcmp.le.f32.partialorder %v2091, %v2251
      %vm2676 = vcmp.le.f32.partialorder %v2091, %v2255
      %vm2677 = vcmp.le.f32.partialorder %v2091, %v2259
      %vm2678 = vcmp.le.f32.partialorder %v2091, %v2263
      %vm2679 = vcmp.le.f32.partialorder %v2096, %v2247
      %vm2680 = vcmp.le.f32.partialorder %v2096, %v2251
      %vm2681 = vcmp.le.f32.partialorder %v2096, %v2255
      %vm2682 = vcmp.le.f32.partialorder %v2096, %v2259
      %vm2683 = vcmp.le.f32.partialorder %v2096, %v2263
      %vm2684 = vcmp.le.f32.partialorder %v2101, %v2247
      %vm2685 = vcmp.le.f32.partialorder %v2101, %v2251
      %vm2686 = vcmp.le.f32.partialorder %v2101, %v2255
      %vm2687 = vcmp.le.f32.partialorder %v2101, %v2259
      %vm2688 = vcmp.le.f32.partialorder %v2101, %v2263
      %vm2689 = vcmp.le.f32.partialorder %v2106, %v2247
      %vm2690 = vcmp.le.f32.partialorder %v2106, %v2251
      %vm2691 = vcmp.le.f32.partialorder %v2106, %v2255
      %vm2692 = vcmp.le.f32.partialorder %v2106, %v2259
      %vm2693 = vcmp.le.f32.partialorder %v2106, %v2263
      %vm2694 = vcmp.le.f32.partialorder %v2111, %v2247
      %vm2695 = vcmp.le.f32.partialorder %v2111, %v2251
      %vm2696 = vcmp.le.f32.partialorder %v2111, %v2255
      %vm2697 = vcmp.le.f32.partialorder %v2111, %v2259
      %vm2698 = vcmp.le.f32.partialorder %v2111, %v2263
      %vm2699 = vcmp.le.f32.partialorder %v2116, %v2247
      %vm2700 = vcmp.le.f32.partialorder %v2116, %v2251
      %vm2701 = vcmp.le.f32.partialorder %v2116, %v2255
      %vm2702 = vcmp.le.f32.partialorder %v2116, %v2259
      %vm2703 = vcmp.le.f32.partialorder %v2116, %v2263
      %vm2704 = vcmp.le.f32.partialorder %v2121, %v2247
      %vm2705 = vcmp.le.f32.partialorder %v2121, %v2251
      %vm2706 = vcmp.le.f32.partialorder %v2121, %v2255
      %vm2707 = vcmp.le.f32.partialorder %v2121, %v2259
      %vm2708 = vcmp.le.f32.partialorder %v2121, %v2263
      %vm2709 = vcmp.le.f32.partialorder %v2126, %v2247
      %vm2710 = vcmp.le.f32.partialorder %v2126, %v2251
      %vm2711 = vcmp.le.f32.partialorder %v2126, %v2255
      %vm2712 = vcmp.le.f32.partialorder %v2126, %v2259
      %vm2713 = vcmp.le.f32.partialorder %v2126, %v2263
      %vm2714 = vcmp.le.f32.partialorder %v2131, %v2247
      %vm2715 = vcmp.le.f32.partialorder %v2131, %v2251
      %vm2716 = vcmp.le.f32.partialorder %v2131, %v2255
      %vm2717 = vcmp.le.f32.partialorder %v2131, %v2259
      %vm2718 = vcmp.le.f32.partialorder %v2131, %v2263
      %vm2719 = vcmp.le.f32.partialorder %v2136, %v2247
      %vm2720 = vcmp.le.f32.partialorder %v2136, %v2251
      %vm2721 = vcmp.le.f32.partialorder %v2136, %v2255
      %vm2722 = vcmp.le.f32.partialorder %v2136, %v2259
      %vm2723 = vcmp.le.f32.partialorder %v2136, %v2263
      %vm2724 = vcmp.le.f32.partialorder %v2141, %v2247
      %vm2725 = vcmp.le.f32.partialorder %v2141, %v2251
      %vm2726 = vcmp.le.f32.partialorder %v2141, %v2255
      %vm2727 = vcmp.le.f32.partialorder %v2141, %v2259
      %vm2728 = vcmp.le.f32.partialorder %v2141, %v2263
      %vm2729 = vcmp.le.f32.partialorder %v2146, %v2247
      %vm2730 = vcmp.le.f32.partialorder %v2146, %v2251
      %vm2731 = vcmp.le.f32.partialorder %v2146, %v2255
      %vm2732 = vcmp.le.f32.partialorder %v2146, %v2259
      %vm2733 = vcmp.le.f32.partialorder %v2146, %v2263
      %vm2734 = vcmp.le.f32.partialorder %v2151, %v2247
      %vm2735 = vcmp.le.f32.partialorder %v2151, %v2251
      %vm2736 = vcmp.le.f32.partialorder %v2151, %v2255
      %vm2737 = vcmp.le.f32.partialorder %v2151, %v2259
      %vm2738 = vcmp.le.f32.partialorder %v2151, %v2263
      %vm2739 = vcmp.le.f32.partialorder %v2156, %v2247
      %vm2740 = vcmp.le.f32.partialorder %v2156, %v2251
      %vm2741 = vcmp.le.f32.partialorder %v2156, %v2255
      %vm2742 = vcmp.le.f32.partialorder %v2156, %v2259
      %vm2743 = vcmp.le.f32.partialorder %v2156, %v2263
      %vm2744 = vcmp.le.f32.partialorder %v2161, %v2247
      %vm2745 = vcmp.le.f32.partialorder %v2161, %v2251
      %vm2746 = vcmp.le.f32.partialorder %v2161, %v2255
      %vm2747 = vcmp.le.f32.partialorder %v2161, %v2259
      %vm2748 = vcmp.le.f32.partialorder %v2161, %v2263
      %vm2749 = vcmp.le.f32.partialorder %v2166, %v2247
      %vm2750 = vcmp.le.f32.partialorder %v2166, %v2251
      %vm2751 = vcmp.le.f32.partialorder %v2166, %v2255
      %vm2752 = vcmp.le.f32.partialorder %v2166, %v2259
      %vm2753 = vcmp.le.f32.partialorder %v2166, %v2263
      %vm2754 = vcmp.le.f32.partialorder %v2171, %v2247
      %vm2755 = vcmp.le.f32.partialorder %v2171, %v2251
      %vm2756 = vcmp.le.f32.partialorder %v2171, %v2255
      %vm2757 = vcmp.le.f32.partialorder %v2171, %v2259
      %vm2758 = vcmp.le.f32.partialorder %v2171, %v2263
      %vm2759 = vcmp.le.f32.partialorder %v2176, %v2247
      %vm2760 = vcmp.le.f32.partialorder %v2176, %v2251
      %vm2761 = vcmp.le.f32.partialorder %v2176, %v2255
      %vm2762 = vcmp.le.f32.partialorder %v2176, %v2259
      %vm2763 = vcmp.le.f32.partialorder %v2176, %v2263
      %vm2764 = vcmp.le.f32.partialorder %v2181, %v2247
      %vm2765 = vcmp.le.f32.partialorder %v2181, %v2251
      %vm2766 = vcmp.le.f32.partialorder %v2181, %v2255
      %vm2767 = vcmp.le.f32.partialorder %v2181, %v2259
      %vm2768 = vcmp.le.f32.partialorder %v2181, %v2263
      %vm2769 = vcmp.le.f32.partialorder %v2186, %v2247
      %vm2770 = vcmp.le.f32.partialorder %v2186, %v2251
      %vm2771 = vcmp.le.f32.partialorder %v2186, %v2255
      %vm2772 = vcmp.le.f32.partialorder %v2186, %v2259
      %vm2773 = vcmp.le.f32.partialorder %v2186, %v2263
      %vm2774 = vcmp.le.f32.partialorder %v2191, %v2247
      %vm2775 = vcmp.le.f32.partialorder %v2191, %v2251
      %vm2776 = vcmp.le.f32.partialorder %v2191, %v2255
      %vm2777 = vcmp.le.f32.partialorder %v2191, %v2259
      %vm2778 = vcmp.le.f32.partialorder %v2191, %v2263
      %vm2779 = vcmp.le.f32.partialorder %v2196, %v2247
      %vm2780 = vcmp.le.f32.partialorder %v2196, %v2251
      %vm2781 = vcmp.le.f32.partialorder %v2196, %v2255
      %vm2782 = vcmp.le.f32.partialorder %v2196, %v2259
      %vm2783 = vcmp.le.f32.partialorder %v2196, %v2263
      %vm2784 = vcmp.le.f32.partialorder %v2201, %v2247
      %vm2785 = vcmp.le.f32.partialorder %v2201, %v2251
      %vm2786 = vcmp.le.f32.partialorder %v2201, %v2255
      %vm2787 = vcmp.le.f32.partialorder %v2201, %v2259
      %vm2788 = vcmp.le.f32.partialorder %v2201, %v2263
      %vm2789 = vcmp.le.f32.partialorder %v2206, %v2247
      %vm2790 = vcmp.le.f32.partialorder %v2206, %v2251
      %vm2791 = vcmp.le.f32.partialorder %v2206, %v2255
      %vm2792 = vcmp.le.f32.partialorder %v2206, %v2259
      %vm2793 = vcmp.le.f32.partialorder %v2206, %v2263
      %vm2794 = vcmp.le.f32.partialorder %v2211, %v2247
      %vm2795 = vcmp.le.f32.partialorder %v2211, %v2251
      %vm2796 = vcmp.le.f32.partialorder %v2211, %v2255
      %vm2797 = vcmp.le.f32.partialorder %v2211, %v2259
      %vm2798 = vcmp.le.f32.partialorder %v2211, %v2263
      %vm2799 = vcmp.le.f32.partialorder %v2216, %v2247
      %vm2800 = vcmp.le.f32.partialorder %v2216, %v2251
      %vm2801 = vcmp.le.f32.partialorder %v2216, %v2255
      %vm2802 = vcmp.le.f32.partialorder %v2216, %v2259
      %vm2803 = vcmp.le.f32.partialorder %v2216, %v2263
      %vm2804 = vcmp.le.f32.partialorder %v2221, %v2247
      %vm2805 = vcmp.le.f32.partialorder %v2221, %v2251
      %vm2806 = vcmp.le.f32.partialorder %v2221, %v2255
      %vm2807 = vcmp.le.f32.partialorder %v2221, %v2259
      %vm2808 = vcmp.le.f32.partialorder %v2221, %v2263
      %vm2809 = vcmp.le.f32.partialorder %v2226, %v2247
      %vm2810 = vcmp.le.f32.partialorder %v2226, %v2251
      %vm2811 = vcmp.le.f32.partialorder %v2226, %v2255
      %vm2812 = vcmp.le.f32.partialorder %v2226, %v2259
      %vm2813 = vcmp.le.f32.partialorder %v2226, %v2263
      %vm2814 = vcmp.le.f32.partialorder %v2231, %v2247
      %vm2815 = vcmp.le.f32.partialorder %v2231, %v2251
      %vm2816 = vcmp.le.f32.partialorder %v2231, %v2255
      %vm2817 = vcmp.le.f32.partialorder %v2231, %v2259
      %vm2818 = vcmp.le.f32.partialorder %v2231, %v2263
      %vm2819 = vcmp.le.f32.partialorder %v2236, %v2247
      %vm2820 = vcmp.le.f32.partialorder %v2236, %v2251
      %vm2821 = vcmp.le.f32.partialorder %v2236, %v2255
      %vm2822 = vcmp.le.f32.partialorder %v2236, %v2259
      %vm2823 = vcmp.le.f32.partialorder %v2236, %v2263
      %vm2824 = vcmp.le.f32.partialorder %v2241, %v2247
      %vm2825 = vcmp.le.f32.partialorder %v2241, %v2251
      %vm2826 = vcmp.le.f32.partialorder %v2241, %v2255
      %vm2827 = vcmp.le.f32.partialorder %v2241, %v2259
      %vm2828 = vcmp.le.f32.partialorder %v2241, %v2263
      %v2829 = vsel %vm2269, 1, 0
      %v2830 = vsel %vm2270, 1, 0
      %v2831 = vsel %vm2271, 1, 0
      %v2832 = vsel %vm2272, 1, 0
      %v2833 = vsel %vm2273, 1, 0
      %v2834 = vsel %vm2274, 1, 0
      %v2835 = vsel %vm2275, 1, 0
      %v2836 = vsel %vm2276, 1, 0
      %v2837 = vsel %vm2277, 1, 0
      %v2838 = vsel %vm2278, 1, 0
      %v2839 = vsel %vm2279, 1, 0
      %v2840 = vsel %vm2280, 1, 0
      %v2841 = vsel %vm2281, 1, 0
      %v2842 = vsel %vm2282, 1, 0
      %v2843 = vsel %vm2283, 1, 0
      %v2844 = vsel %vm2284, 1, 0
      %v2845 = vsel %vm2285, 1, 0
      %v2846 = vsel %vm2286, 1, 0
      %v2847 = vsel %vm2287, 1, 0
      %v2848 = vsel %vm2288, 1, 0
      %v2849 = vsel %vm2289, 1, 0
      %v2850 = vsel %vm2290, 1, 0
      %v2851 = vsel %vm2291, 1, 0
      %v2852 = vsel %vm2292, 1, 0
      %v2853 = vsel %vm2293, 1, 0
      %v2854 = vsel %vm2294, 1, 0
      %v2855 = vsel %vm2295, 1, 0
      %v2856 = vsel %vm2296, 1, 0
      %v2857 = vsel %vm2297, 1, 0
      %v2858 = vsel %vm2298, 1, 0
      %v2859 = vsel %vm2299, 1, 0
      %v2860 = vsel %vm2300, 1, 0
      %v2861 = vsel %vm2301, 1, 0
      %v2862 = vsel %vm2302, 1, 0
      %v2863 = vsel %vm2303, 1, 0
      %v2864 = vsel %vm2304, 1, 0
      %v2865 = vsel %vm2305, 1, 0
      %v2866 = vsel %vm2306, 1, 0
      %v2867 = vsel %vm2307, 1, 0
      %v2868 = vsel %vm2308, 1, 0
      %v2869 = vsel %vm2309, 1, 0
      %v2870 = vsel %vm2310, 1, 0
      %v2871 = vsel %vm2311, 1, 0
      %v2872 = vsel %vm2312, 1, 0
      %v2873 = vsel %vm2313, 1, 0
      %v2874 = vsel %vm2314, 1, 0
      %v2875 = vsel %vm2315, 1, 0
      %v2876 = vsel %vm2316, 1, 0
      %v2877 = vsel %vm2317, 1, 0
      %v2878 = vsel %vm2318, 1, 0
      %v2879 = vsel %vm2319, 1, 0
      %v2880 = vsel %vm2320, 1, 0
      %v2881 = vsel %vm2321, 1, 0
      %v2882 = vsel %vm2322, 1, 0
      %v2883 = vsel %vm2323, 1, 0
      %v2884 = vsel %vm2324, 1, 0
      %v2885 = vsel %vm2325, 1, 0
      %v2886 = vsel %vm2326, 1, 0
      %v2887 = vsel %vm2327, 1, 0
      %v2888 = vsel %vm2328, 1, 0
      %v2889 = vsel %vm2329, 1, 0
      %v2890 = vsel %vm2330, 1, 0
      %v2891 = vsel %vm2331, 1, 0
      %v2892 = vsel %vm2332, 1, 0
      %v2893 = vsel %vm2333, 1, 0
      %v2894 = vsel %vm2334, 1, 0
      %v2895 = vsel %vm2335, 1, 0
      %v2896 = vsel %vm2336, 1, 0
      %v2897 = vsel %vm2337, 1, 0
      %v2898 = vsel %vm2338, 1, 0
      %v2899 = vsel %vm2339, 1, 0
      %v2900 = vsel %vm2340, 1, 0
      %v2901 = vsel %vm2341, 1, 0
      %v2902 = vsel %vm2342, 1, 0
      %v2903 = vsel %vm2343, 1, 0
      %v2904 = vsel %vm2344, 1, 0
      %v2905 = vsel %vm2345, 1, 0
      %v2906 = vsel %vm2346, 1, 0
      %v2907 = vsel %vm2347, 1, 0
      %v2908 = vsel %vm2348, 1, 0
      %v2909 = vsel %vm2349, 1, 0
      %v2910 = vsel %vm2350, 1, 0
      %v2911 = vsel %vm2351, 1, 0
      %v2912 = vsel %vm2352, 1, 0
      %v2913 = vsel %vm2353, 1, 0
      %v2914 = vsel %vm2354, 1, 0
      %v2915 = vsel %vm2355, 1, 0
      %v2916 = vsel %vm2356, 1, 0
      %v2917 = vsel %vm2357, 1, 0
      %v2918 = vsel %vm2358, 1, 0
      %v2919 = vsel %vm2359, 1, 0
      %v2920 = vsel %vm2360, 1, 0
      %v2921 = vsel %vm2361, 1, 0
      %v2922 = vsel %vm2362, 1, 0
      %v2923 = vsel %vm2363, 1, 0
      %v2924 = vsel %vm2364, 1, 0
      %v2925 = vsel %vm2365, 1, 0
      %v2926 = vsel %vm2366, 1, 0
      %v2927 = vsel %vm2367, 1, 0
      %v2928 = vsel %vm2368, 1, 0
      %v2929 = vsel %vm2369, 1, 0
      %v2930 = vsel %vm2370, 1, 0
      %v2931 = vsel %vm2371, 1, 0
      %v2932 = vsel %vm2372, 1, 0
      %v2933 = vsel %vm2373, 1, 0
      %v2934 = vsel %vm2374, 1, 0
      %v2935 = vsel %vm2375, 1, 0
      %v2936 = vsel %vm2376, 1, 0
      %v2937 = vsel %vm2377, 1, 0
      %v2938 = vsel %vm2378, 1, 0
      %v2939 = vsel %vm2379, 1, 0
      %v2940 = vsel %vm2380, 1, 0
      %v2941 = vsel %vm2381, 1, 0
      %v2942 = vsel %vm2382, 1, 0
      %v2943 = vsel %vm2383, 1, 0
      %v2944 = vsel %vm2384, 1, 0
      %v2945 = vsel %vm2385, 1, 0
      %v2946 = vsel %vm2386, 1, 0
      %v2947 = vsel %vm2387, 1, 0
      %v2948 = vsel %vm2388, 1, 0
      %v2949 = vsel %vm2389, 1, 0
      %v2950 = vsel %vm2390, 1, 0
      %v2951 = vsel %vm2391, 1, 0
      %v2952 = vsel %vm2392, 1, 0
      %v2953 = vsel %vm2393, 1, 0
      %v2954 = vsel %vm2394, 1, 0
      %v2955 = vsel %vm2395, 1, 0
      %v2956 = vsel %vm2396, 1, 0
      %v2957 = vsel %vm2397, 1, 0
      %v2958 = vsel %vm2398, 1, 0
      %v2959 = vsel %vm2399, 1, 0
      %v2960 = vsel %vm2400, 1, 0
      %v2961 = vsel %vm2401, 1, 0
      %v2962 = vsel %vm2402, 1, 0
      %v2963 = vsel %vm2403, 1, 0
      %v2964 = vsel %vm2404, 1, 0
      %v2965 = vsel %vm2405, 1, 0
      %v2966 = vsel %vm2406, 1, 0
      %v2967 = vsel %vm2407, 1, 0
      %v2968 = vsel %vm2408, 1, 0
      %v2969 = vsel %vm2409, 1, 0
      %v2970 = vsel %vm2410, 1, 0
      %v2971 = vsel %vm2411, 1, 0
      %v2972 = vsel %vm2412, 1, 0
      %v2973 = vsel %vm2413, 1, 0
      %v2974 = vsel %vm2414, 1, 0
      %v2975 = vsel %vm2415, 1, 0
      %v2976 = vsel %vm2416, 1, 0
      %v2977 = vsel %vm2417, 1, 0
      %v2978 = vsel %vm2418, 1, 0
      %v2979 = vsel %vm2419, 1, 0
      %v2980 = vsel %vm2420, 1, 0
      %v2981 = vsel %vm2421, 1, 0
      %v2982 = vsel %vm2422, 1, 0
      %v2983 = vsel %vm2423, 1, 0
      %v2984 = vsel %vm2424, 1, 0
      %v2985 = vsel %vm2425, 1, 0
      %v2986 = vsel %vm2426, 1, 0
      %v2987 = vsel %vm2427, 1, 0
      %v2988 = vsel %vm2428, 1, 0
      %v2989 = vsel %vm2429, 1, 0
      %v2990 = vsel %vm2430, 1, 0
      %v2991 = vsel %vm2431, 1, 0
      %v2992 = vsel %vm2432, 1, 0
      %v2993 = vsel %vm2433, 1, 0
      %v2994 = vsel %vm2434, 1, 0
      %v2995 = vsel %vm2435, 1, 0
      %v2996 = vsel %vm2436, 1, 0
      %v2997 = vsel %vm2437, 1, 0
      %v2998 = vsel %vm2438, 1, 0
      %v2999 = vsel %vm2439, 1, 0
      %v3000 = vsel %vm2440, 1, 0
      %v3001 = vsel %vm2441, 1, 0
      %v3002 = vsel %vm2442, 1, 0
      %v3003 = vsel %vm2443, 1, 0
      %v3004 = vsel %vm2444, 1, 0
      %v3005 = vsel %vm2445, 1, 0
      %v3006 = vsel %vm2446, 1, 0
      %v3007 = vsel %vm2447, 1, 0
      %v3008 = vsel %vm2448, 1, 0
      %v3009 = vsel %vm2449, 1, 0
      %v3010 = vsel %vm2450, 1, 0
      %v3011 = vsel %vm2451, 1, 0
      %v3012 = vsel %vm2452, 1, 0
      %v3013 = vsel %vm2453, 1, 0
      %v3014 = vsel %vm2454, 1, 0
      %v3015 = vsel %vm2455, 1, 0
      %v3016 = vsel %vm2456, 1, 0
      %v3017 = vsel %vm2457, 1, 0
      %v3018 = vsel %vm2458, 1, 0
      %v3019 = vsel %vm2459, 1, 0
      %v3020 = vsel %vm2460, 1, 0
      %v3021 = vsel %vm2461, 1, 0
      %v3022 = vsel %vm2462, 1, 0
      %v3023 = vsel %vm2463, 1, 0
      %v3024 = vsel %vm2464, 1, 0
      %v3025 = vsel %vm2465, 1, 0
      %v3026 = vsel %vm2466, 1, 0
      %v3027 = vsel %vm2467, 1, 0
      %v3028 = vsel %vm2468, 1, 0
      %v3029 = vsel %vm2469, 1, 0
      %v3030 = vsel %vm2470, 1, 0
      %v3031 = vsel %vm2471, 1, 0
      %v3032 = vsel %vm2472, 1, 0
      %v3033 = vsel %vm2473, 1, 0
      %v3034 = vsel %vm2474, 1, 0
      %v3035 = vsel %vm2475, 1, 0
      %v3036 = vsel %vm2476, 1, 0
      %v3037 = vsel %vm2477, 1, 0
      %v3038 = vsel %vm2478, 1, 0
      %v3039 = vsel %vm2479, 1, 0
      %v3040 = vsel %vm2480, 1, 0
      %v3041 = vsel %vm2481, 1, 0
      %v3042 = vsel %vm2482, 1, 0
      %v3043 = vsel %vm2483, 1, 0
      %v3044 = vsel %vm2484, 1, 0
      %v3045 = vsel %vm2485, 1, 0
      %v3046 = vsel %vm2486, 1, 0
      %v3047 = vsel %vm2487, 1, 0
      %v3048 = vsel %vm2488, 1, 0
      %v3049 = vsel %vm2489, 1, 0
      %v3050 = vsel %vm2490, 1, 0
      %v3051 = vsel %vm2491, 1, 0
      %v3052 = vsel %vm2492, 1, 0
      %v3053 = vsel %vm2493, 1, 0
      %v3054 = vsel %vm2494, 1, 0
      %v3055 = vsel %vm2495, 1, 0
      %v3056 = vsel %vm2496, 1, 0
      %v3057 = vsel %vm2497, 1, 0
      %v3058 = vsel %vm2498, 1, 0
      %v3059 = vsel %vm2499, 1, 0
      %v3060 = vsel %vm2500, 1, 0
      %v3061 = vsel %vm2501, 1, 0
      %v3062 = vsel %vm2502, 1, 0
      %v3063 = vsel %vm2503, 1, 0
      %v3064 = vsel %vm2504, 1, 0
      %v3065 = vsel %vm2505, 1, 0
      %v3066 = vsel %vm2506, 1, 0
      %v3067 = vsel %vm2507, 1, 0
      %v3068 = vsel %vm2508, 1, 0
      %v3069 = vsel %vm2509, 1, 0
      %v3070 = vsel %vm2510, 1, 0
      %v3071 = vsel %vm2511, 1, 0
      %v3072 = vsel %vm2512, 1, 0
      %v3073 = vsel %vm2513, 1, 0
      %v3074 = vsel %vm2514, 1, 0
      %v3075 = vsel %vm2515, 1, 0
      %v3076 = vsel %vm2516, 1, 0
      %v3077 = vsel %vm2517, 1, 0
      %v3078 = vsel %vm2518, 1, 0
      %v3079 = vsel %vm2519, 1, 0
      %v3080 = vsel %vm2520, 1, 0
      %v3081 = vsel %vm2521, 1, 0
      %v3082 = vsel %vm2522, 1, 0
      %v3083 = vsel %vm2523, 1, 0
      %v3084 = vsel %vm2524, 1, 0
      %v3085 = vsel %vm2525, 1, 0
      %v3086 = vsel %vm2526, 1, 0
      %v3087 = vsel %vm2527, 1, 0
      %v3088 = vsel %vm2528, 1, 0
      %v3089 = vsel %vm2529, 1, 0
      %v3090 = vsel %vm2530, 1, 0
      %v3091 = vsel %vm2531, 1, 0
      %v3092 = vsel %vm2532, 1, 0
      %v3093 = vsel %vm2533, 1, 0
      %v3094 = vsel %vm2534, 1, 0
      %v3095 = vsel %vm2535, 1, 0
      %v3096 = vsel %vm2536, 1, 0
      %v3097 = vsel %vm2537, 1, 0
      %v3098 = vsel %vm2538, 1, 0
      %v3099 = vsel %vm2539, 1, 0
      %v3100 = vsel %vm2540, 1, 0
      %v3101 = vsel %vm2541, 1, 0
      %v3102 = vsel %vm2542, 1, 0
      %v3103 = vsel %vm2543, 1, 0
      %v3104 = vsel %vm2544, 1, 0
      %v3105 = vsel %vm2545, 1, 0
      %v3106 = vsel %vm2546, 1, 0
      %v3107 = vsel %vm2547, 1, 0
      %v3108 = vsel %vm2548, 1, 0
      %v3109 = vsel %vm2549, 1, 0
      %v3110 = vsel %vm2550, 1, 0
      %v3111 = vsel %vm2551, 1, 0
      %v3112 = vsel %vm2552, 1, 0
      %v3113 = vsel %vm2553, 1, 0
      %v3114 = vsel %vm2554, 1, 0
      %v3115 = vsel %vm2555, 1, 0
      %v3116 = vsel %vm2556, 1, 0
      %v3117 = vsel %vm2557, 1, 0
      %v3118 = vsel %vm2558, 1, 0
      %v3119 = vsel %vm2559, 1, 0
      %v3120 = vsel %vm2560, 1, 0
      %v3121 = vsel %vm2561, 1, 0
      %v3122 = vsel %vm2562, 1, 0
      %v3123 = vsel %vm2563, 1, 0
      %v3124 = vsel %vm2564, 1, 0
      %v3125 = vsel %vm2565, 1, 0
      %v3126 = vsel %vm2566, 1, 0
      %v3127 = vsel %vm2567, 1, 0
      %v3128 = vsel %vm2568, 1, 0
      %v3129 = vsel %vm2569, 1, 0
      %v3130 = vsel %vm2570, 1, 0
      %v3131 = vsel %vm2571, 1, 0
      %v3132 = vsel %vm2572, 1, 0
      %v3133 = vsel %vm2573, 1, 0
      %v3134 = vsel %vm2574, 1, 0
      %v3135 = vsel %vm2575, 1, 0
      %v3136 = vsel %vm2576, 1, 0
      %v3137 = vsel %vm2577, 1, 0
      %v3138 = vsel %vm2578, 1, 0
      %v3139 = vsel %vm2579, 1, 0
      %v3140 = vsel %vm2580, 1, 0
      %v3141 = vsel %vm2581, 1, 0
      %v3142 = vsel %vm2582, 1, 0
      %v3143 = vsel %vm2583, 1, 0
      %v3144 = vsel %vm2584, 1, 0
      %v3145 = vsel %vm2585, 1, 0
      %v3146 = vsel %vm2586, 1, 0
      %v3147 = vsel %vm2587, 1, 0
      %v3148 = vsel %vm2588, 1, 0
      %v3149 = vsel %vm2589, 1, 0
      %v3150 = vsel %vm2590, 1, 0
      %v3151 = vsel %vm2591, 1, 0
      %v3152 = vsel %vm2592, 1, 0
      %v3153 = vsel %vm2593, 1, 0
      %v3154 = vsel %vm2594, 1, 0
      %v3155 = vsel %vm2595, 1, 0
      %v3156 = vsel %vm2596, 1, 0
      %v3157 = vsel %vm2597, 1, 0
      %v3158 = vsel %vm2598, 1, 0
      %v3159 = vsel %vm2599, 1, 0
      %v3160 = vsel %vm2600, 1, 0
      %v3161 = vsel %vm2601, 1, 0
      %v3162 = vsel %vm2602, 1, 0
      %v3163 = vsel %vm2603, 1, 0
      %v3164 = vsel %vm2604, 1, 0
      %v3165 = vsel %vm2605, 1, 0
      %v3166 = vsel %vm2606, 1, 0
      %v3167 = vsel %vm2607, 1, 0
      %v3168 = vsel %vm2608, 1, 0
      %v3169 = vsel %vm2609, 1, 0
      %v3170 = vsel %vm2610, 1, 0
      %v3171 = vsel %vm2611, 1, 0
      %v3172 = vsel %vm2612, 1, 0
      %v3173 = vsel %vm2613, 1, 0
      %v3174 = vsel %vm2614, 1, 0
      %v3175 = vsel %vm2615, 1, 0
      %v3176 = vsel %vm2616, 1, 0
      %v3177 = vsel %vm2617, 1, 0
      %v3178 = vsel %vm2618, 1, 0
      %v3179 = vsel %vm2619, 1, 0
      %v3180 = vsel %vm2620, 1, 0
      %v3181 = vsel %vm2621, 1, 0
      %v3182 = vsel %vm2622, 1, 0
      %v3183 = vsel %vm2623, 1, 0
      %v3184 = vsel %vm2624, 1, 0
      %v3185 = vsel %vm2625, 1, 0
      %v3186 = vsel %vm2626, 1, 0
      %v3187 = vsel %vm2627, 1, 0
      %v3188 = vsel %vm2628, 1, 0
      %v3189 = vsel %vm2629, 1, 0
      %v3190 = vsel %vm2630, 1, 0
      %v3191 = vsel %vm2631, 1, 0
      %v3192 = vsel %vm2632, 1, 0
      %v3193 = vsel %vm2633, 1, 0
      %v3194 = vsel %vm2634, 1, 0
      %v3195 = vsel %vm2635, 1, 0
      %v3196 = vsel %vm2636, 1, 0
      %v3197 = vsel %vm2637, 1, 0
      %v3198 = vsel %vm2638, 1, 0
      %v3199 = vsel %vm2639, 1, 0
      %v3200 = vsel %vm2640, 1, 0
      %v3201 = vsel %vm2641, 1, 0
      %v3202 = vsel %vm2642, 1, 0
      %v3203 = vsel %vm2643, 1, 0
      %v3204 = vsel %vm2644, 1, 0
      %v3205 = vsel %vm2645, 1, 0
      %v3206 = vsel %vm2646, 1, 0
      %v3207 = vsel %vm2647, 1, 0
      %v3208 = vsel %vm2648, 1, 0
      %v3209 = vsel %vm2649, 1, 0
      %v3210 = vsel %vm2650, 1, 0
      %v3211 = vsel %vm2651, 1, 0
      %v3212 = vsel %vm2652, 1, 0
      %v3213 = vsel %vm2653, 1, 0
      %v3214 = vsel %vm2654, 1, 0
      %v3215 = vsel %vm2655, 1, 0
      %v3216 = vsel %vm2656, 1, 0
      %v3217 = vsel %vm2657, 1, 0
      %v3218 = vsel %vm2658, 1, 0
      %v3219 = vsel %vm2659, 1, 0
      %v3220 = vsel %vm2660, 1, 0
      %v3221 = vsel %vm2661, 1, 0
      %v3222 = vsel %vm2662, 1, 0
      %v3223 = vsel %vm2663, 1, 0
      %v3224 = vsel %vm2664, 1, 0
      %v3225 = vsel %vm2665, 1, 0
      %v3226 = vsel %vm2666, 1, 0
      %v3227 = vsel %vm2667, 1, 0
      %v3228 = vsel %vm2668, 1, 0
      %v3229 = vsel %vm2669, 1, 0
      %v3230 = vsel %vm2670, 1, 0
      %v3231 = vsel %vm2671, 1, 0
      %v3232 = vsel %vm2672, 1, 0
      %v3233 = vsel %vm2673, 1, 0
      %v3234 = vsel %vm2674, 1, 0
      %v3235 = vsel %vm2675, 1, 0
      %v3236 = vsel %vm2676, 1, 0
      %v3237 = vsel %vm2677, 1, 0
      %v3238 = vsel %vm2678, 1, 0
      %v3239 = vsel %vm2679, 1, 0
      %v3240 = vsel %vm2680, 1, 0
      %v3241 = vsel %vm2681, 1, 0
      %v3242 = vsel %vm2682, 1, 0
      %v3243 = vsel %vm2683, 1, 0
      %v3244 = vsel %vm2684, 1, 0
      %v3245 = vsel %vm2685, 1, 0
      %v3246 = vsel %vm2686, 1, 0
      %v3247 = vsel %vm2687, 1, 0
      %v3248 = vsel %vm2688, 1, 0
      %v3249 = vsel %vm2689, 1, 0
      %v3250 = vsel %vm2690, 1, 0
      %v3251 = vsel %vm2691, 1, 0
      %v3252 = vsel %vm2692, 1, 0
      %v3253 = vsel %vm2693, 1, 0
      %v3254 = vsel %vm2694, 1, 0
      %v3255 = vsel %vm2695, 1, 0
      %v3256 = vsel %vm2696, 1, 0
      %v3257 = vsel %vm2697, 1, 0
      %v3258 = vsel %vm2698, 1, 0
      %v3259 = vsel %vm2699, 1, 0
      %v3260 = vsel %vm2700, 1, 0
      %v3261 = vsel %vm2701, 1, 0
      %v3262 = vsel %vm2702, 1, 0
      %v3263 = vsel %vm2703, 1, 0
      %v3264 = vsel %vm2704, 1, 0
      %v3265 = vsel %vm2705, 1, 0
      %v3266 = vsel %vm2706, 1, 0
      %v3267 = vsel %vm2707, 1, 0
      %v3268 = vsel %vm2708, 1, 0
      %v3269 = vsel %vm2709, 1, 0
      %v3270 = vsel %vm2710, 1, 0
      %v3271 = vsel %vm2711, 1, 0
      %v3272 = vsel %vm2712, 1, 0
      %v3273 = vsel %vm2713, 1, 0
      %v3274 = vsel %vm2714, 1, 0
      %v3275 = vsel %vm2715, 1, 0
      %v3276 = vsel %vm2716, 1, 0
      %v3277 = vsel %vm2717, 1, 0
      %v3278 = vsel %vm2718, 1, 0
      %v3279 = vsel %vm2719, 1, 0
      %v3280 = vsel %vm2720, 1, 0
      %v3281 = vsel %vm2721, 1, 0
      %v3282 = vsel %vm2722, 1, 0
      %v3283 = vsel %vm2723, 1, 0
      %v3284 = vsel %vm2724, 1, 0
      %v3285 = vsel %vm2725, 1, 0
      %v3286 = vsel %vm2726, 1, 0
      %v3287 = vsel %vm2727, 1, 0
      %v3288 = vsel %vm2728, 1, 0
      %v3289 = vsel %vm2729, 1, 0
      %v3290 = vsel %vm2730, 1, 0
      %v3291 = vsel %vm2731, 1, 0
      %v3292 = vsel %vm2732, 1, 0
      %v3293 = vsel %vm2733, 1, 0
      %v3294 = vsel %vm2734, 1, 0
      %v3295 = vsel %vm2735, 1, 0
      %v3296 = vsel %vm2736, 1, 0
      %v3297 = vsel %vm2737, 1, 0
      %v3298 = vsel %vm2738, 1, 0
      %v3299 = vsel %vm2739, 1, 0
      %v3300 = vsel %vm2740, 1, 0
      %v3301 = vsel %vm2741, 1, 0
      %v3302 = vsel %vm2742, 1, 0
      %v3303 = vsel %vm2743, 1, 0
      %v3304 = vsel %vm2744, 1, 0
      %v3305 = vsel %vm2745, 1, 0
      %v3306 = vsel %vm2746, 1, 0
      %v3307 = vsel %vm2747, 1, 0
      %v3308 = vsel %vm2748, 1, 0
      %v3309 = vsel %vm2749, 1, 0
      %v3310 = vsel %vm2750, 1, 0
      %v3311 = vsel %vm2751, 1, 0
      %v3312 = vsel %vm2752, 1, 0
      %v3313 = vsel %vm2753, 1, 0
      %v3314 = vsel %vm2754, 1, 0
      %v3315 = vsel %vm2755, 1, 0
      %v3316 = vsel %vm2756, 1, 0
      %v3317 = vsel %vm2757, 1, 0
      %v3318 = vsel %vm2758, 1, 0
      %v3319 = vsel %vm2759, 1, 0
      %v3320 = vsel %vm2760, 1, 0
      %v3321 = vsel %vm2761, 1, 0
      %v3322 = vsel %vm2762, 1, 0
      %v3323 = vsel %vm2763, 1, 0
      %v3324 = vsel %vm2764, 1, 0
      %v3325 = vsel %vm2765, 1, 0
      %v3326 = vsel %vm2766, 1, 0
      %v3327 = vsel %vm2767, 1, 0
      %v3328 = vsel %vm2768, 1, 0
      %v3329 = vsel %vm2769, 1, 0
      %v3330 = vsel %vm2770, 1, 0
      %v3331 = vsel %vm2771, 1, 0
      %v3332 = vsel %vm2772, 1, 0
      %v3333 = vsel %vm2773, 1, 0
      %v3334 = vsel %vm2774, 1, 0
      %v3335 = vsel %vm2775, 1, 0
      %v3336 = vsel %vm2776, 1, 0
      %v3337 = vsel %vm2777, 1, 0
      %v3338 = vsel %vm2778, 1, 0
      %v3339 = vsel %vm2779, 1, 0
      %v3340 = vsel %vm2780, 1, 0
      %v3341 = vsel %vm2781, 1, 0
      %v3342 = vsel %vm2782, 1, 0
      %v3343 = vsel %vm2783, 1, 0
      %v3344 = vsel %vm2784, 1, 0
      %v3345 = vsel %vm2785, 1, 0
      %v3346 = vsel %vm2786, 1, 0
      %v3347 = vsel %vm2787, 1, 0
      %v3348 = vsel %vm2788, 1, 0
      %v3349 = vsel %vm2789, 1, 0
      %v3350 = vsel %vm2790, 1, 0
      %v3351 = vsel %vm2791, 1, 0
      %v3352 = vsel %vm2792, 1, 0
      %v3353 = vsel %vm2793, 1, 0
      %v3354 = vsel %vm2794, 1, 0
      %v3355 = vsel %vm2795, 1, 0
      %v3356 = vsel %vm2796, 1, 0
      %v3357 = vsel %vm2797, 1, 0
      %v3358 = vsel %vm2798, 1, 0
      %v3359 = vsel %vm2799, 1, 0
      %v3360 = vsel %vm2800, 1, 0
      %v3361 = vsel %vm2801, 1, 0
      %v3362 = vsel %vm2802, 1, 0
      %v3363 = vsel %vm2803, 1, 0
      %v3364 = vsel %vm2804, 1, 0
      %v3365 = vsel %vm2805, 1, 0
      %v3366 = vsel %vm2806, 1, 0
      %v3367 = vsel %vm2807, 1, 0
      %v3368 = vsel %vm2808, 1, 0
      %v3369 = vsel %vm2809, 1, 0
      %v3370 = vsel %vm2810, 1, 0
      %v3371 = vsel %vm2811, 1, 0
      %v3372 = vsel %vm2812, 1, 0
      %v3373 = vsel %vm2813, 1, 0
      %v3374 = vsel %vm2814, 1, 0
      %v3375 = vsel %vm2815, 1, 0
      %v3376 = vsel %vm2816, 1, 0
      %v3377 = vsel %vm2817, 1, 0
      %v3378 = vsel %vm2818, 1, 0
      %v3379 = vsel %vm2819, 1, 0
      %v3380 = vsel %vm2820, 1, 0
      %v3381 = vsel %vm2821, 1, 0
      %v3382 = vsel %vm2822, 1, 0
      %v3383 = vsel %vm2823, 1, 0
      %v3384 = vsel %vm2824, 1, 0
      %v3385 = vsel %vm2825, 1, 0
      %v3386 = vsel %vm2826, 1, 0
      %v3387 = vsel %vm2827, 1, 0
      %v3388 = vsel %vm2828, 1, 0
      %v3389 = vcvt.s32.f32 %v2829
      %v3390 = vcvt.s32.f32 %v2830
      %v3391 = vcvt.s32.f32 %v2831
      %v3392 = vcvt.s32.f32 %v2832
      %v3393 = vcvt.s32.f32 %v2833
      %v3394 = vcvt.s32.f32 %v2834
      %v3395 = vcvt.s32.f32 %v2835
      %v3396 = vcvt.s32.f32 %v2836
      %v3397 = vcvt.s32.f32 %v2837
      %v3398 = vcvt.s32.f32 %v2838
      %v3399 = vcvt.s32.f32 %v2839
      %v3400 = vcvt.s32.f32 %v2840
      %v3401 = vcvt.s32.f32 %v2841
      %v3402 = vcvt.s32.f32 %v2842
      %v3403 = vcvt.s32.f32 %v2843
      %v3404 = vcvt.s32.f32 %v2844
      %v3405 = vcvt.s32.f32 %v2845
      %v3406 = vcvt.s32.f32 %v2846
      %v3407 = vcvt.s32.f32 %v2847
      %v3408 = vcvt.s32.f32 %v2848
      %v3409 = vcvt.s32.f32 %v2849
      %v3410 = vcvt.s32.f32 %v2850
      %v3411 = vcvt.s32.f32 %v2851
      %v3412 = vcvt.s32.f32 %v2852
      %v3413 = vcvt.s32.f32 %v2853
      %v3414 = vcvt.s32.f32 %v2854
      %v3415 = vcvt.s32.f32 %v2855
      %v3416 = vcvt.s32.f32 %v2856
      %v3417 = vcvt.s32.f32 %v2857
      %v3418 = vcvt.s32.f32 %v2858
      %v3419 = vcvt.s32.f32 %v2859
      %v3420 = vcvt.s32.f32 %v2860
      %v3421 = vcvt.s32.f32 %v2861
      %v3422 = vcvt.s32.f32 %v2862
      %v3423 = vcvt.s32.f32 %v2863
      %v3424 = vcvt.s32.f32 %v2864
      %v3425 = vcvt.s32.f32 %v2865
      %v3426 = vcvt.s32.f32 %v2866
      %v3427 = vcvt.s32.f32 %v2867
      %v3428 = vcvt.s32.f32 %v2868
      %v3429 = vcvt.s32.f32 %v2869
      %v3430 = vcvt.s32.f32 %v2870
      %v3431 = vcvt.s32.f32 %v2871
      %v3432 = vcvt.s32.f32 %v2872
      %v3433 = vcvt.s32.f32 %v2873
      %v3434 = vcvt.s32.f32 %v2874
      %v3435 = vcvt.s32.f32 %v2875
      %v3436 = vcvt.s32.f32 %v2876
      %v3437 = vcvt.s32.f32 %v2877
      %v3438 = vcvt.s32.f32 %v2878
      %v3439 = vcvt.s32.f32 %v2879
      %v3440 = vcvt.s32.f32 %v2880
      %v3441 = vcvt.s32.f32 %v2881
      %v3442 = vcvt.s32.f32 %v2882
      %v3443 = vcvt.s32.f32 %v2883
      %v3444 = vcvt.s32.f32 %v2884
      %v3445 = vcvt.s32.f32 %v2885
      %v3446 = vcvt.s32.f32 %v2886
      %v3447 = vcvt.s32.f32 %v2887
      %v3448 = vcvt.s32.f32 %v2888
      %v3449 = vcvt.s32.f32 %v2889
      %v3450 = vcvt.s32.f32 %v2890
      %v3451 = vcvt.s32.f32 %v2891
      %v3452 = vcvt.s32.f32 %v2892
      %v3453 = vcvt.s32.f32 %v2893
      %v3454 = vcvt.s32.f32 %v2894
      %v3455 = vcvt.s32.f32 %v2895
      %v3456 = vcvt.s32.f32 %v2896
      %v3457 = vcvt.s32.f32 %v2897
      %v3458 = vcvt.s32.f32 %v2898
      %v3459 = vcvt.s32.f32 %v2899
      %v3460 = vcvt.s32.f32 %v2900
      %v3461 = vcvt.s32.f32 %v2901
      %v3462 = vcvt.s32.f32 %v2902
      %v3463 = vcvt.s32.f32 %v2903
      %v3464 = vcvt.s32.f32 %v2904
      %v3465 = vcvt.s32.f32 %v2905
      %v3466 = vcvt.s32.f32 %v2906
      %v3467 = vcvt.s32.f32 %v2907
      %v3468 = vcvt.s32.f32 %v2908
      %v3469 = vcvt.s32.f32 %v2909
      %v3470 = vcvt.s32.f32 %v2910
      %v3471 = vcvt.s32.f32 %v2911
      %v3472 = vcvt.s32.f32 %v2912
      %v3473 = vcvt.s32.f32 %v2913
      %v3474 = vcvt.s32.f32 %v2914
      %v3475 = vcvt.s32.f32 %v2915
      %v3476 = vcvt.s32.f32 %v2916
      %v3477 = vcvt.s32.f32 %v2917
      %v3478 = vcvt.s32.f32 %v2918
      %v3479 = vcvt.s32.f32 %v2919
      %v3480 = vcvt.s32.f32 %v2920
      %v3481 = vcvt.s32.f32 %v2921
      %v3482 = vcvt.s32.f32 %v2922
      %v3483 = vcvt.s32.f32 %v2923
      %v3484 = vcvt.s32.f32 %v2924
      %v3485 = vcvt.s32.f32 %v2925
      %v3486 = vcvt.s32.f32 %v2926
      %v3487 = vcvt.s32.f32 %v2927
      %v3488 = vcvt.s32.f32 %v2928
      %v3489 = vcvt.s32.f32 %v2929
      %v3490 = vcvt.s32.f32 %v2930
      %v3491 = vcvt.s32.f32 %v2931
      %v3492 = vcvt.s32.f32 %v2932
      %v3493 = vcvt.s32.f32 %v2933
      %v3494 = vcvt.s32.f32 %v2934
      %v3495 = vcvt.s32.f32 %v2935
      %v3496 = vcvt.s32.f32 %v2936
      %v3497 = vcvt.s32.f32 %v2937
      %v3498 = vcvt.s32.f32 %v2938
      %v3499 = vcvt.s32.f32 %v2939
      %v3500 = vcvt.s32.f32 %v2940
      %v3501 = vcvt.s32.f32 %v2941
      %v3502 = vcvt.s32.f32 %v2942
      %v3503 = vcvt.s32.f32 %v2943
      %v3504 = vcvt.s32.f32 %v2944
      %v3505 = vcvt.s32.f32 %v2945
      %v3506 = vcvt.s32.f32 %v2946
      %v3507 = vcvt.s32.f32 %v2947
      %v3508 = vcvt.s32.f32 %v2948
      %v3509 = vcvt.s32.f32 %v2949
      %v3510 = vcvt.s32.f32 %v2950
      %v3511 = vcvt.s32.f32 %v2951
      %v3512 = vcvt.s32.f32 %v2952
      %v3513 = vcvt.s32.f32 %v2953
      %v3514 = vcvt.s32.f32 %v2954
      %v3515 = vcvt.s32.f32 %v2955
      %v3516 = vcvt.s32.f32 %v2956
      %v3517 = vcvt.s32.f32 %v2957
      %v3518 = vcvt.s32.f32 %v2958
      %v3519 = vcvt.s32.f32 %v2959
      %v3520 = vcvt.s32.f32 %v2960
      %v3521 = vcvt.s32.f32 %v2961
      %v3522 = vcvt.s32.f32 %v2962
      %v3523 = vcvt.s32.f32 %v2963
      %v3524 = vcvt.s32.f32 %v2964
      %v3525 = vcvt.s32.f32 %v2965
      %v3526 = vcvt.s32.f32 %v2966
      %v3527 = vcvt.s32.f32 %v2967
      %v3528 = vcvt.s32.f32 %v2968
      %v3529 = vcvt.s32.f32 %v2969
      %v3530 = vcvt.s32.f32 %v2970
      %v3531 = vcvt.s32.f32 %v2971
      %v3532 = vcvt.s32.f32 %v2972
      %v3533 = vcvt.s32.f32 %v2973
      %v3534 = vcvt.s32.f32 %v2974
      %v3535 = vcvt.s32.f32 %v2975
      %v3536 = vcvt.s32.f32 %v2976
      %v3537 = vcvt.s32.f32 %v2977
      %v3538 = vcvt.s32.f32 %v2978
      %v3539 = vcvt.s32.f32 %v2979
      %v3540 = vcvt.s32.f32 %v2980
      %v3541 = vcvt.s32.f32 %v2981
      %v3542 = vcvt.s32.f32 %v2982
      %v3543 = vcvt.s32.f32 %v2983
      %v3544 = vcvt.s32.f32 %v2984
      %v3545 = vcvt.s32.f32 %v2985
      %v3546 = vcvt.s32.f32 %v2986
      %v3547 = vcvt.s32.f32 %v2987
      %v3548 = vcvt.s32.f32 %v2988
      %v3549 = vcvt.s32.f32 %v2989
      %v3550 = vcvt.s32.f32 %v2990
      %v3551 = vcvt.s32.f32 %v2991
      %v3552 = vcvt.s32.f32 %v2992
      %v3553 = vcvt.s32.f32 %v2993
      %v3554 = vcvt.s32.f32 %v2994
      %v3555 = vcvt.s32.f32 %v2995
      %v3556 = vcvt.s32.f32 %v2996
      %v3557 = vcvt.s32.f32 %v2997
      %v3558 = vcvt.s32.f32 %v2998
      %v3559 = vcvt.s32.f32 %v2999
      %v3560 = vcvt.s32.f32 %v3000
      %v3561 = vcvt.s32.f32 %v3001
      %v3562 = vcvt.s32.f32 %v3002
      %v3563 = vcvt.s32.f32 %v3003
      %v3564 = vcvt.s32.f32 %v3004
      %v3565 = vcvt.s32.f32 %v3005
      %v3566 = vcvt.s32.f32 %v3006
      %v3567 = vcvt.s32.f32 %v3007
      %v3568 = vcvt.s32.f32 %v3008
      %v3569 = vcvt.s32.f32 %v3009
      %v3570 = vcvt.s32.f32 %v3010
      %v3571 = vcvt.s32.f32 %v3011
      %v3572 = vcvt.s32.f32 %v3012
      %v3573 = vcvt.s32.f32 %v3013
      %v3574 = vcvt.s32.f32 %v3014
      %v3575 = vcvt.s32.f32 %v3015
      %v3576 = vcvt.s32.f32 %v3016
      %v3577 = vcvt.s32.f32 %v3017
      %v3578 = vcvt.s32.f32 %v3018
      %v3579 = vcvt.s32.f32 %v3019
      %v3580 = vcvt.s32.f32 %v3020
      %v3581 = vcvt.s32.f32 %v3021
      %v3582 = vcvt.s32.f32 %v3022
      %v3583 = vcvt.s32.f32 %v3023
      %v3584 = vcvt.s32.f32 %v3024
      %v3585 = vcvt.s32.f32 %v3025
      %v3586 = vcvt.s32.f32 %v3026
      %v3587 = vcvt.s32.f32 %v3027
      %v3588 = vcvt.s32.f32 %v3028
      %v3589 = vcvt.s32.f32 %v3029
      %v3590 = vcvt.s32.f32 %v3030
      %v3591 = vcvt.s32.f32 %v3031
      %v3592 = vcvt.s32.f32 %v3032
      %v3593 = vcvt.s32.f32 %v3033
      %v3594 = vcvt.s32.f32 %v3034
      %v3595 = vcvt.s32.f32 %v3035
      %v3596 = vcvt.s32.f32 %v3036
      %v3597 = vcvt.s32.f32 %v3037
      %v3598 = vcvt.s32.f32 %v3038
      %v3599 = vcvt.s32.f32 %v3039
      %v3600 = vcvt.s32.f32 %v3040
      %v3601 = vcvt.s32.f32 %v3041
      %v3602 = vcvt.s32.f32 %v3042
      %v3603 = vcvt.s32.f32 %v3043
      %v3604 = vcvt.s32.f32 %v3044
      %v3605 = vcvt.s32.f32 %v3045
      %v3606 = vcvt.s32.f32 %v3046
      %v3607 = vcvt.s32.f32 %v3047
      %v3608 = vcvt.s32.f32 %v3048
      %v3609 = vcvt.s32.f32 %v3049
      %v3610 = vcvt.s32.f32 %v3050
      %v3611 = vcvt.s32.f32 %v3051
      %v3612 = vcvt.s32.f32 %v3052
      %v3613 = vcvt.s32.f32 %v3053
      %v3614 = vcvt.s32.f32 %v3054
      %v3615 = vcvt.s32.f32 %v3055
      %v3616 = vcvt.s32.f32 %v3056
      %v3617 = vcvt.s32.f32 %v3057
      %v3618 = vcvt.s32.f32 %v3058
      %v3619 = vcvt.s32.f32 %v3059
      %v3620 = vcvt.s32.f32 %v3060
      %v3621 = vcvt.s32.f32 %v3061
      %v3622 = vcvt.s32.f32 %v3062
      %v3623 = vcvt.s32.f32 %v3063
      %v3624 = vcvt.s32.f32 %v3064
      %v3625 = vcvt.s32.f32 %v3065
      %v3626 = vcvt.s32.f32 %v3066
      %v3627 = vcvt.s32.f32 %v3067
      %v3628 = vcvt.s32.f32 %v3068
      %v3629 = vcvt.s32.f32 %v3069
      %v3630 = vcvt.s32.f32 %v3070
      %v3631 = vcvt.s32.f32 %v3071
      %v3632 = vcvt.s32.f32 %v3072
      %v3633 = vcvt.s32.f32 %v3073
      %v3634 = vcvt.s32.f32 %v3074
      %v3635 = vcvt.s32.f32 %v3075
      %v3636 = vcvt.s32.f32 %v3076
      %v3637 = vcvt.s32.f32 %v3077
      %v3638 = vcvt.s32.f32 %v3078
      %v3639 = vcvt.s32.f32 %v3079
      %v3640 = vcvt.s32.f32 %v3080
      %v3641 = vcvt.s32.f32 %v3081
      %v3642 = vcvt.s32.f32 %v3082
      %v3643 = vcvt.s32.f32 %v3083
      %v3644 = vcvt.s32.f32 %v3084
      %v3645 = vcvt.s32.f32 %v3085
      %v3646 = vcvt.s32.f32 %v3086
      %v3647 = vcvt.s32.f32 %v3087
      %v3648 = vcvt.s32.f32 %v3088
      %v3649 = vcvt.s32.f32 %v3089
      %v3650 = vcvt.s32.f32 %v3090
      %v3651 = vcvt.s32.f32 %v3091
      %v3652 = vcvt.s32.f32 %v3092
      %v3653 = vcvt.s32.f32 %v3093
      %v3654 = vcvt.s32.f32 %v3094
      %v3655 = vcvt.s32.f32 %v3095
      %v3656 = vcvt.s32.f32 %v3096
      %v3657 = vcvt.s32.f32 %v3097
      %v3658 = vcvt.s32.f32 %v3098
      %v3659 = vcvt.s32.f32 %v3099
      %v3660 = vcvt.s32.f32 %v3100
      %v3661 = vcvt.s32.f32 %v3101
      %v3662 = vcvt.s32.f32 %v3102
      %v3663 = vcvt.s32.f32 %v3103
      %v3664 = vcvt.s32.f32 %v3104
      %v3665 = vcvt.s32.f32 %v3105
      %v3666 = vcvt.s32.f32 %v3106
      %v3667 = vcvt.s32.f32 %v3107
      %v3668 = vcvt.s32.f32 %v3108
      %v3669 = vcvt.s32.f32 %v3109
      %v3670 = vcvt.s32.f32 %v3110
      %v3671 = vcvt.s32.f32 %v3111
      %v3672 = vcvt.s32.f32 %v3112
      %v3673 = vcvt.s32.f32 %v3113
      %v3674 = vcvt.s32.f32 %v3114
      %v3675 = vcvt.s32.f32 %v3115
      %v3676 = vcvt.s32.f32 %v3116
      %v3677 = vcvt.s32.f32 %v3117
      %v3678 = vcvt.s32.f32 %v3118
      %v3679 = vcvt.s32.f32 %v3119
      %v3680 = vcvt.s32.f32 %v3120
      %v3681 = vcvt.s32.f32 %v3121
      %v3682 = vcvt.s32.f32 %v3122
      %v3683 = vcvt.s32.f32 %v3123
      %v3684 = vcvt.s32.f32 %v3124
      %v3685 = vcvt.s32.f32 %v3125
      %v3686 = vcvt.s32.f32 %v3126
      %v3687 = vcvt.s32.f32 %v3127
      %v3688 = vcvt.s32.f32 %v3128
      %v3689 = vcvt.s32.f32 %v3129
      %v3690 = vcvt.s32.f32 %v3130
      %v3691 = vcvt.s32.f32 %v3131
      %v3692 = vcvt.s32.f32 %v3132
      %v3693 = vcvt.s32.f32 %v3133
      %v3694 = vcvt.s32.f32 %v3134
      %v3695 = vcvt.s32.f32 %v3135
      %v3696 = vcvt.s32.f32 %v3136
      %v3697 = vcvt.s32.f32 %v3137
      %v3698 = vcvt.s32.f32 %v3138
      %v3699 = vcvt.s32.f32 %v3139
      %v3700 = vcvt.s32.f32 %v3140
      %v3701 = vcvt.s32.f32 %v3141
      %v3702 = vcvt.s32.f32 %v3142
      %v3703 = vcvt.s32.f32 %v3143
      %v3704 = vcvt.s32.f32 %v3144
      %v3705 = vcvt.s32.f32 %v3145
      %v3706 = vcvt.s32.f32 %v3146
      %v3707 = vcvt.s32.f32 %v3147
      %v3708 = vcvt.s32.f32 %v3148
      %v3709 = vcvt.s32.f32 %v3149
      %v3710 = vcvt.s32.f32 %v3150
      %v3711 = vcvt.s32.f32 %v3151
      %v3712 = vcvt.s32.f32 %v3152
      %v3713 = vcvt.s32.f32 %v3153
      %v3714 = vcvt.s32.f32 %v3154
      %v3715 = vcvt.s32.f32 %v3155
      %v3716 = vcvt.s32.f32 %v3156
      %v3717 = vcvt.s32.f32 %v3157
      %v3718 = vcvt.s32.f32 %v3158
      %v3719 = vcvt.s32.f32 %v3159
      %v3720 = vcvt.s32.f32 %v3160
      %v3721 = vcvt.s32.f32 %v3161
      %v3722 = vcvt.s32.f32 %v3162
      %v3723 = vcvt.s32.f32 %v3163
      %v3724 = vcvt.s32.f32 %v3164
      %v3725 = vcvt.s32.f32 %v3165
      %v3726 = vcvt.s32.f32 %v3166
      %v3727 = vcvt.s32.f32 %v3167
      %v3728 = vcvt.s32.f32 %v3168
      %v3729 = vcvt.s32.f32 %v3169
      %v3730 = vcvt.s32.f32 %v3170
      %v3731 = vcvt.s32.f32 %v3171
      %v3732 = vcvt.s32.f32 %v3172
      %v3733 = vcvt.s32.f32 %v3173
      %v3734 = vcvt.s32.f32 %v3174
      %v3735 = vcvt.s32.f32 %v3175
      %v3736 = vcvt.s32.f32 %v3176
      %v3737 = vcvt.s32.f32 %v3177
      %v3738 = vcvt.s32.f32 %v3178
      %v3739 = vcvt.s32.f32 %v3179
      %v3740 = vcvt.s32.f32 %v3180
      %v3741 = vcvt.s32.f32 %v3181
      %v3742 = vcvt.s32.f32 %v3182
      %v3743 = vcvt.s32.f32 %v3183
      %v3744 = vcvt.s32.f32 %v3184
      %v3745 = vcvt.s32.f32 %v3185
      %v3746 = vcvt.s32.f32 %v3186
      %v3747 = vcvt.s32.f32 %v3187
      %v3748 = vcvt.s32.f32 %v3188
      %v3749 = vcvt.s32.f32 %v3189
      %v3750 = vcvt.s32.f32 %v3190
      %v3751 = vcvt.s32.f32 %v3191
      %v3752 = vcvt.s32.f32 %v3192
      %v3753 = vcvt.s32.f32 %v3193
      %v3754 = vcvt.s32.f32 %v3194
      %v3755 = vcvt.s32.f32 %v3195
      %v3756 = vcvt.s32.f32 %v3196
      %v3757 = vcvt.s32.f32 %v3197
      %v3758 = vcvt.s32.f32 %v3198
      %v3759 = vcvt.s32.f32 %v3199
      %v3760 = vcvt.s32.f32 %v3200
      %v3761 = vcvt.s32.f32 %v3201
      %v3762 = vcvt.s32.f32 %v3202
      %v3763 = vcvt.s32.f32 %v3203
      %v3764 = vcvt.s32.f32 %v3204
      %v3765 = vcvt.s32.f32 %v3205
      %v3766 = vcvt.s32.f32 %v3206
      %v3767 = vcvt.s32.f32 %v3207
      %v3768 = vcvt.s32.f32 %v3208
      %v3769 = vcvt.s32.f32 %v3209
      %v3770 = vcvt.s32.f32 %v3210
      %v3771 = vcvt.s32.f32 %v3211
      %v3772 = vcvt.s32.f32 %v3212
      %v3773 = vcvt.s32.f32 %v3213
      %v3774 = vcvt.s32.f32 %v3214
      %v3775 = vcvt.s32.f32 %v3215
      %v3776 = vcvt.s32.f32 %v3216
      %v3777 = vcvt.s32.f32 %v3217
      %v3778 = vcvt.s32.f32 %v3218
      %v3779 = vcvt.s32.f32 %v3219
      %v3780 = vcvt.s32.f32 %v3220
      %v3781 = vcvt.s32.f32 %v3221
      %v3782 = vcvt.s32.f32 %v3222
      %v3783 = vcvt.s32.f32 %v3223
      %v3784 = vcvt.s32.f32 %v3224
      %v3785 = vcvt.s32.f32 %v3225
      %v3786 = vcvt.s32.f32 %v3226
      %v3787 = vcvt.s32.f32 %v3227
      %v3788 = vcvt.s32.f32 %v3228
      %v3789 = vcvt.s32.f32 %v3229
      %v3790 = vcvt.s32.f32 %v3230
      %v3791 = vcvt.s32.f32 %v3231
      %v3792 = vcvt.s32.f32 %v3232
      %v3793 = vcvt.s32.f32 %v3233
      %v3794 = vcvt.s32.f32 %v3234
      %v3795 = vcvt.s32.f32 %v3235
      %v3796 = vcvt.s32.f32 %v3236
      %v3797 = vcvt.s32.f32 %v3237
      %v3798 = vcvt.s32.f32 %v3238
      %v3799 = vcvt.s32.f32 %v3239
      %v3800 = vcvt.s32.f32 %v3240
      %v3801 = vcvt.s32.f32 %v3241
      %v3802 = vcvt.s32.f32 %v3242
      %v3803 = vcvt.s32.f32 %v3243
      %v3804 = vcvt.s32.f32 %v3244
      %v3805 = vcvt.s32.f32 %v3245
      %v3806 = vcvt.s32.f32 %v3246
      %v3807 = vcvt.s32.f32 %v3247
      %v3808 = vcvt.s32.f32 %v3248
      %v3809 = vcvt.s32.f32 %v3249
      %v3810 = vcvt.s32.f32 %v3250
      %v3811 = vcvt.s32.f32 %v3251
      %v3812 = vcvt.s32.f32 %v3252
      %v3813 = vcvt.s32.f32 %v3253
      %v3814 = vcvt.s32.f32 %v3254
      %v3815 = vcvt.s32.f32 %v3255
      %v3816 = vcvt.s32.f32 %v3256
      %v3817 = vcvt.s32.f32 %v3257
      %v3818 = vcvt.s32.f32 %v3258
      %v3819 = vcvt.s32.f32 %v3259
      %v3820 = vcvt.s32.f32 %v3260
      %v3821 = vcvt.s32.f32 %v3261
      %v3822 = vcvt.s32.f32 %v3262
      %v3823 = vcvt.s32.f32 %v3263
      %v3824 = vcvt.s32.f32 %v3264
      %v3825 = vcvt.s32.f32 %v3265
      %v3826 = vcvt.s32.f32 %v3266
      %v3827 = vcvt.s32.f32 %v3267
      %v3828 = vcvt.s32.f32 %v3268
      %v3829 = vcvt.s32.f32 %v3269
      %v3830 = vcvt.s32.f32 %v3270
      %v3831 = vcvt.s32.f32 %v3271
      %v3832 = vcvt.s32.f32 %v3272
      %v3833 = vcvt.s32.f32 %v3273
      %v3834 = vcvt.s32.f32 %v3274
      %v3835 = vcvt.s32.f32 %v3275
      %v3836 = vcvt.s32.f32 %v3276
      %v3837 = vcvt.s32.f32 %v3277
      %v3838 = vcvt.s32.f32 %v3278
      %v3839 = vcvt.s32.f32 %v3279
      %v3840 = vcvt.s32.f32 %v3280
      %v3841 = vcvt.s32.f32 %v3281
      %v3842 = vcvt.s32.f32 %v3282
      %v3843 = vcvt.s32.f32 %v3283
      %v3844 = vcvt.s32.f32 %v3284
      %v3845 = vcvt.s32.f32 %v3285
      %v3846 = vcvt.s32.f32 %v3286
      %v3847 = vcvt.s32.f32 %v3287
      %v3848 = vcvt.s32.f32 %v3288
      %v3849 = vcvt.s32.f32 %v3289
      %v3850 = vcvt.s32.f32 %v3290
      %v3851 = vcvt.s32.f32 %v3291
      %v3852 = vcvt.s32.f32 %v3292
      %v3853 = vcvt.s32.f32 %v3293
      %v3854 = vcvt.s32.f32 %v3294
      %v3855 = vcvt.s32.f32 %v3295
      %v3856 = vcvt.s32.f32 %v3296
      %v3857 = vcvt.s32.f32 %v3297
      %v3858 = vcvt.s32.f32 %v3298
      %v3859 = vcvt.s32.f32 %v3299
      %v3860 = vcvt.s32.f32 %v3300
      %v3861 = vcvt.s32.f32 %v3301
      %v3862 = vcvt.s32.f32 %v3302
      %v3863 = vcvt.s32.f32 %v3303
      %v3864 = vcvt.s32.f32 %v3304
      %v3865 = vcvt.s32.f32 %v3305
      %v3866 = vcvt.s32.f32 %v3306
      %v3867 = vcvt.s32.f32 %v3307
      %v3868 = vcvt.s32.f32 %v3308
      %v3869 = vcvt.s32.f32 %v3309
      %v3870 = vcvt.s32.f32 %v3310
      %v3871 = vcvt.s32.f32 %v3311
      %v3872 = vcvt.s32.f32 %v3312
      %v3873 = vcvt.s32.f32 %v3313
      %v3874 = vcvt.s32.f32 %v3314
      %v3875 = vcvt.s32.f32 %v3315
      %v3876 = vcvt.s32.f32 %v3316
      %v3877 = vcvt.s32.f32 %v3317
      %v3878 = vcvt.s32.f32 %v3318
      %v3879 = vcvt.s32.f32 %v3319
      %v3880 = vcvt.s32.f32 %v3320
      %v3881 = vcvt.s32.f32 %v3321
      %v3882 = vcvt.s32.f32 %v3322
      %v3883 = vcvt.s32.f32 %v3323
      %v3884 = vcvt.s32.f32 %v3324
      %v3885 = vcvt.s32.f32 %v3325
      %v3886 = vcvt.s32.f32 %v3326
      %v3887 = vcvt.s32.f32 %v3327
      %v3888 = vcvt.s32.f32 %v3328
      %v3889 = vcvt.s32.f32 %v3329
      %v3890 = vcvt.s32.f32 %v3330
      %v3891 = vcvt.s32.f32 %v3331
      %v3892 = vcvt.s32.f32 %v3332
      %v3893 = vcvt.s32.f32 %v3333
      %v3894 = vcvt.s32.f32 %v3334
      %v3895 = vcvt.s32.f32 %v3335
      %v3896 = vcvt.s32.f32 %v3336
      %v3897 = vcvt.s32.f32 %v3337
      %v3898 = vcvt.s32.f32 %v3338
      %v3899 = vcvt.s32.f32 %v3339
      %v3900 = vcvt.s32.f32 %v3340
      %v3901 = vcvt.s32.f32 %v3341
      %v3902 = vcvt.s32.f32 %v3342
      %v3903 = vcvt.s32.f32 %v3343
      %v3904 = vcvt.s32.f32 %v3344
      %v3905 = vcvt.s32.f32 %v3345
      %v3906 = vcvt.s32.f32 %v3346
      %v3907 = vcvt.s32.f32 %v3347
      %v3908 = vcvt.s32.f32 %v3348
      %v3909 = vcvt.s32.f32 %v3349
      %v3910 = vcvt.s32.f32 %v3350
      %v3911 = vcvt.s32.f32 %v3351
      %v3912 = vcvt.s32.f32 %v3352
      %v3913 = vcvt.s32.f32 %v3353
      %v3914 = vcvt.s32.f32 %v3354
      %v3915 = vcvt.s32.f32 %v3355
      %v3916 = vcvt.s32.f32 %v3356
      %v3917 = vcvt.s32.f32 %v3357
      %v3918 = vcvt.s32.f32 %v3358
      %v3919 = vcvt.s32.f32 %v3359
      %v3920 = vcvt.s32.f32 %v3360
      %v3921 = vcvt.s32.f32 %v3361
      %v3922 = vcvt.s32.f32 %v3362
      %v3923 = vcvt.s32.f32 %v3363
      %v3924 = vcvt.s32.f32 %v3364
      %v3925 = vcvt.s32.f32 %v3365
      %v3926 = vcvt.s32.f32 %v3366
      %v3927 = vcvt.s32.f32 %v3367
      %v3928 = vcvt.s32.f32 %v3368
      %v3929 = vcvt.s32.f32 %v3369
      %v3930 = vcvt.s32.f32 %v3370
      %v3931 = vcvt.s32.f32 %v3371
      %v3932 = vcvt.s32.f32 %v3372
      %v3933 = vcvt.s32.f32 %v3373
      %v3934 = vcvt.s32.f32 %v3374
      %v3935 = vcvt.s32.f32 %v3375
      %v3936 = vcvt.s32.f32 %v3376
      %v3937 = vcvt.s32.f32 %v3377
      %v3938 = vcvt.s32.f32 %v3378
      %v3939 = vcvt.s32.f32 %v3379
      %v3940 = vcvt.s32.f32 %v3380
      %v3941 = vcvt.s32.f32 %v3381
      %v3942 = vcvt.s32.f32 %v3382
      %v3943 = vcvt.s32.f32 %v3383
      %v3944 = vcvt.s32.f32 %v3384
      %v3945 = vcvt.s32.f32 %v3385
      %v3946 = vcvt.s32.f32 %v3386
      %v3947 = vcvt.s32.f32 %v3387
      %v3948 = vcvt.s32.f32 %v3388
      %v3949 = vlaneseq
      %v3950 = vand.u32 %v3949, 127
      %v3951 = vadd.s32 %v3950, 128
      %v3952 = vadd.s32 %v3950, 256
      %v3953 = vadd.s32 %v3950, 384
      %v3954 = vadd.s32 %v3950, 512
      %v3955 = vadd.s32 %v3950, 640
      %v3956 = vadd.s32 %v3950, 768
      %vm3957 = vcmp.lt.s32.totalorder %v3950, 784
      %vm3958 = vcmp.lt.s32.totalorder %v3951, 784
      %vm3959 = vcmp.lt.s32.totalorder %v3952, 784
      %vm3960 = vcmp.lt.s32.totalorder %v3953, 784
      %vm3961 = vcmp.lt.s32.totalorder %v3954, 784
      %vm3962 = vcmp.lt.s32.totalorder %v3955, 784
      %vm3963 = vcmp.lt.s32.totalorder %v3956, 784
      %v3964 = vsel %vm3957, 1, 0
      %v3965 = vsel %vm3958, 1, 0
      %v3966 = vsel %vm3959, 1, 0
      %v3967 = vsel %vm3960, 1, 0
      %v3968 = vsel %vm3961, 1, 0
      %v3969 = vsel %vm3962, 1, 0
      %v3970 = vsel %vm3963, 1, 0
      %v3971 = vcvt.s32.f32 %v3964
      %v3972 = vcvt.s32.f32 %v3965
      %v3973 = vcvt.s32.f32 %v3966
      %v3974 = vcvt.s32.f32 %v3967
      %v3975 = vcvt.s32.f32 %v3968
      %v3976 = vcvt.s32.f32 %v3969
      %v3977 = vcvt.s32.f32 %v3970
      %3978 = vmatprep.subr.mxu0 %v3465
      %3979 = vmatpush1.msra.mxu0 %v3464
      %3980 = vmatprep.subr.mxu0 %v3460
      %3981 = vmatpush1.msra.mxu0 %v3459
      %3982 = vmatprep.subr.mxu0 %v3455
      %3983 = vmatpush1.msra.mxu0 %v3454
      %3984 = vmatprep.subr.mxu0 %v3450
      %3985 = vmatpush1.msra.mxu0 %v3449
      %3986 = vmatprep.subr.mxu0 %v3445
      %3987 = vmatpush1.msra.mxu0 %v3444
      %3988 = vmatprep.subr.mxu0 %v3440
      %3989 = vmatpush1.msra.mxu0 %v3439
      %3990 = vmatprep.subr.mxu0 %v3435
      %3991 = vmatpush1.msra.mxu0 %v3434
      %3992 = vmatprep.subr.mxu0 %v3430
      %3993 = vmatpush1.msra.mxu0 %v3429
      %3994 = vmatprep.subr.mxu0 %v3425
      %3995 = vmatpush1.msra.mxu0 %v3424
      %3996 = vmatprep.subr.mxu0 %v3420
      %3997 = vmatpush1.msra.mxu0 %v3419
      %3998 = vmatprep.subr.mxu0 %v3415
      %3999 = vmatpush1.msra.mxu0 %v3414
      %4000 = vmatprep.subr.mxu0 %v3410
      %4001 = vmatpush1.msra.mxu0 %v3409
      %4002 = vmatprep.subr.mxu0 %v3405
      %4003 = vmatpush1.msra.mxu0 %v3404
      %4004 = vmatprep.subr.mxu0 %v3400
      %4005 = vmatpush1.msra.mxu0 %v3399
      %4006 = vmatprep.subr.mxu0 %v3395
      %4007 = vmatpush1.msra.mxu0 %v3394
      %4008 = vmatprep.subr.mxu0 %v3390
      %4009 = vmatpush1.msra.mxu0 %v3389
      %4010 = vmatprep.subr.mxu0 %v3545
      %4011 = vmatpush2.msra.mxu0 %v3544
      %4012 = vmatprep.subr.mxu0 %v3540
      %4013 = vmatpush2.msra.mxu0 %v3539
      %4014 = vmatprep.subr.mxu0 %v3535
      %4015 = vmatpush2.msra.mxu0 %v3534
      %4016 = vmatprep.subr.mxu0 %v3530
      %4017 = vmatpush2.msra.mxu0 %v3529
      %4018 = vmatprep.subr.mxu0 %v3525
      %4019 = vmatpush2.msra.mxu0 %v3524
      %4020 = vmatprep.subr.mxu0 %v3520
      %4021 = vmatpush2.msra.mxu0 %v3519
      %4022 = vmatprep.subr.mxu0 %v3515
      %4023 = vmatpush2.msra.mxu0 %v3514
      %4024 = vmatprep.subr.mxu0 %v3510
      %4025 = vmatpush2.msra.mxu0 %v3509
      %4026 = vmatprep.subr.mxu0 %v3505
      %4027 = vmatpush2.msra.mxu0 %v3504
      %4028 = vmatprep.subr.mxu0 %v3500
      %4029 = vmatpush2.msra.mxu0 %v3499
      %4030 = vmatprep.subr.mxu0 %v3495
      %4031 = vmatpush2.msra.mxu0 %v3494
      %4032 = vmatprep.subr.mxu0 %v3490
      %4033 = vmatpush2.msra.mxu0 %v3489
      %4034 = vmatprep.subr.mxu0 %v3485
      %4035 = vmatpush2.msra.mxu0 %v3484
      %4036 = vmatprep.subr.mxu0 %v3480
      %4037 = vmatpush2.msra.mxu0 %v3479
      %4038 = vmatprep.subr.mxu0 %v3475
      %4039 = vmatpush2.msra.mxu0 %v3474
      %4040 = vmatprep.subr.mxu0 %v3470
      %4041 = vmatpush2.msra.mxu0 %v3469
      %4042 = vmatprep.mubr.f32.mxu0 %v3972
      %4043 = vmatmul.mubr.f32.gmra.mxu0 %v3971
      %v4044 = vpop.f32.mrf.mxu0
      %v4045 = vadd.f32 0.0, %v4044
      %v4046 = vpop.f32.mrf.mxu0
      %v4047 = vadd.f32 0.0, %v4046
      %4048 = vdwg.mxu0
      %4049 = vmatprep.subr.mxu0 %v3625
      %4050 = vmatpush1.msra.mxu0 %v3624
      %4051 = vmatprep.subr.mxu0 %v3620
      %4052 = vmatpush1.msra.mxu0 %v3619
      %4053 = vmatprep.subr.mxu0 %v3615
      %4054 = vmatpush1.msra.mxu0 %v3614
      %4055 = vmatprep.subr.mxu0 %v3610
      %4056 = vmatpush1.msra.mxu0 %v3609
      %4057 = vmatprep.subr.mxu0 %v3605
      %4058 = vmatpush1.msra.mxu0 %v3604
      %4059 = vmatprep.subr.mxu0 %v3600
      %4060 = vmatpush1.msra.mxu0 %v3599
      %4061 = vmatprep.subr.mxu0 %v3595
      %4062 = vmatpush1.msra.mxu0 %v3594
      %4063 = vmatprep.subr.mxu0 %v3590
      %4064 = vmatpush1.msra.mxu0 %v3589
      %4065 = vmatprep.subr.mxu0 %v3585
      %4066 = vmatpush1.msra.mxu0 %v3584
      %4067 = vmatprep.subr.mxu0 %v3580
      %4068 = vmatpush1.msra.mxu0 %v3579
      %4069 = vmatprep.subr.mxu0 %v3575
      %4070 = vmatpush1.msra.mxu0 %v3574
      %4071 = vmatprep.subr.mxu0 %v3570
      %4072 = vmatpush1.msra.mxu0 %v3569
      %4073 = vmatprep.subr.mxu0 %v3565
      %4074 = vmatpush1.msra.mxu0 %v3564
      %4075 = vmatprep.subr.mxu0 %v3560
      %4076 = vmatpush1.msra.mxu0 %v3559
      %4077 = vmatprep.subr.mxu0 %v3555
      %4078 = vmatpush1.msra.mxu0 %v3554
      %4079 = vmatprep.subr.mxu0 %v3550
      %4080 = vmatpush1.msra.mxu0 %v3549
      %4081 = vmatprep.subr.mxu0 %v3705
      %4082 = vmatpush2.msra.mxu0 %v3704
      %4083 = vmatprep.subr.mxu0 %v3700
      %4084 = vmatpush2.msra.mxu0 %v3699
      %4085 = vmatprep.subr.mxu0 %v3695
      %4086 = vmatpush2.msra.mxu0 %v3694
      %4087 = vmatprep.subr.mxu0 %v3690
      %4088 = vmatpush2.msra.mxu0 %v3689
      %4089 = vmatprep.subr.mxu0 %v3685
      %4090 = vmatpush2.msra.mxu0 %v3684
      %4091 = vmatprep.subr.mxu0 %v3680
      %4092 = vmatpush2.msra.mxu0 %v3679
      %4093 = vmatprep.subr.mxu0 %v3675
      %4094 = vmatpush2.msra.mxu0 %v3674
      %4095 = vmatprep.subr.mxu0 %v3670
      %4096 = vmatpush2.msra.mxu0 %v3669
      %4097 = vmatprep.subr.mxu0 %v3665
      %4098 = vmatpush2.msra.mxu0 %v3664
      %4099 = vmatprep.subr.mxu0 %v3660
      %4100 = vmatpush2.msra.mxu0 %v3659
      %4101 = vmatprep.subr.mxu0 %v3655
      %4102 = vmatpush2.msra.mxu0 %v3654
      %4103 = vmatprep.subr.mxu0 %v3650
      %4104 = vmatpush2.msra.mxu0 %v3649
      %4105 = vmatprep.subr.mxu0 %v3645
      %4106 = vmatpush2.msra.mxu0 %v3644
      %4107 = vmatprep.subr.mxu0 %v3640
      %4108 = vmatpush2.msra.mxu0 %v3639
      %4109 = vmatprep.subr.mxu0 %v3635
      %4110 = vmatpush2.msra.mxu0 %v3634
      %4111 = vmatprep.subr.mxu0 %v3630
      %4112 = vmatpush2.msra.mxu0 %v3629
      %4113 = vmatprep.mubr.f32.mxu0 %v3974
      %4114 = vmatmul.mubr.f32.gmra.mxu0 %v3973
      %v4115 = vpop.f32.mrf.mxu0
      %v4116 = vadd.f32 %v4045, %v4115
      %v4117 = vpop.f32.mrf.mxu0
      %v4118 = vadd.f32 %v4047, %v4117
      %4119 = vdwg.mxu0
      %4120 = vmatprep.subr.mxu0 %v3785
      %4121 = vmatpush1.msra.mxu0 %v3784
      %4122 = vmatprep.subr.mxu0 %v3780
      %4123 = vmatpush1.msra.mxu0 %v3779
      %4124 = vmatprep.subr.mxu0 %v3775
      %4125 = vmatpush1.msra.mxu0 %v3774
      %4126 = vmatprep.subr.mxu0 %v3770
      %4127 = vmatpush1.msra.mxu0 %v3769
      %4128 = vmatprep.subr.mxu0 %v3765
      %4129 = vmatpush1.msra.mxu0 %v3764
      %4130 = vmatprep.subr.mxu0 %v3760
      %4131 = vmatpush1.msra.mxu0 %v3759
      %4132 = vmatprep.subr.mxu0 %v3755
      %4133 = vmatpush1.msra.mxu0 %v3754
      %4134 = vmatprep.subr.mxu0 %v3750
      %4135 = vmatpush1.msra.mxu0 %v3749
      %4136 = vmatprep.subr.mxu0 %v3745
      %4137 = vmatpush1.msra.mxu0 %v3744
      %4138 = vmatprep.subr.mxu0 %v3740
      %4139 = vmatpush1.msra.mxu0 %v3739
      %4140 = vmatprep.subr.mxu0 %v3735
      %4141 = vmatpush1.msra.mxu0 %v3734
      %4142 = vmatprep.subr.mxu0 %v3730
      %4143 = vmatpush1.msra.mxu0 %v3729
      %4144 = vmatprep.subr.mxu0 %v3725
      %4145 = vmatpush1.msra.mxu0 %v3724
      %4146 = vmatprep.subr.mxu0 %v3720
      %4147 = vmatpush1.msra.mxu0 %v3719
      %4148 = vmatprep.subr.mxu0 %v3715
      %4149 = vmatpush1.msra.mxu0 %v3714
      %4150 = vmatprep.subr.mxu0 %v3710
      %4151 = vmatpush1.msra.mxu0 %v3709
      %4152 = vmatprep.subr.mxu0 %v3865
      %4153 = vmatpush2.msra.mxu0 %v3864
      %4154 = vmatprep.subr.mxu0 %v3860
      %4155 = vmatpush2.msra.mxu0 %v3859
      %4156 = vmatprep.subr.mxu0 %v3855
      %4157 = vmatpush2.msra.mxu0 %v3854
      %4158 = vmatprep.subr.mxu0 %v3850
      %4159 = vmatpush2.msra.mxu0 %v3849
      %4160 = vmatprep.subr.mxu0 %v3845
      %4161 = vmatpush2.msra.mxu0 %v3844
      %4162 = vmatprep.subr.mxu0 %v3840
      %4163 = vmatpush2.msra.mxu0 %v3839
      %4164 = vmatprep.subr.mxu0 %v3835
      %4165 = vmatpush2.msra.mxu0 %v3834
      %4166 = vmatprep.subr.mxu0 %v3830
      %4167 = vmatpush2.msra.mxu0 %v3829
      %4168 = vmatprep.subr.mxu0 %v3825
      %4169 = vmatpush2.msra.mxu0 %v3824
      %4170 = vmatprep.subr.mxu0 %v3820
      %4171 = vmatpush2.msra.mxu0 %v3819
      %4172 = vmatprep.subr.mxu0 %v3815
      %4173 = vmatpush2.msra.mxu0 %v3814
      %4174 = vmatprep.subr.mxu0 %v3810
      %4175 = vmatpush2.msra.mxu0 %v3809
      %4176 = vmatprep.subr.mxu0 %v3805
      %4177 = vmatpush2.msra.mxu0 %v3804
      %4178 = vmatprep.subr.mxu0 %v3800
      %4179 = vmatpush2.msra.mxu0 %v3799
      %4180 = vmatprep.subr.mxu0 %v3795
      %4181 = vmatpush2.msra.mxu0 %v3794
      %4182 = vmatprep.subr.mxu0 %v3790
      %4183 = vmatpush2.msra.mxu0 %v3789
      %4184 = vmatprep.mubr.f32.mxu0 %v3976
      %4185 = vmatmul.mubr.f32.gmra.mxu0 %v3975
      %v4186 = vpop.f32.mrf.mxu0
      %v4187 = vadd.f32 %v4116, %v4186
      %v4188 = vpop.f32.mrf.mxu0
      %v4189 = vadd.f32 %v4118, %v4188
      %4190 = vdwg.mxu0
      %4191 = vmatprep.subr.mxu0 %v3945
      %4192 = vmatpush1.msra.mxu0 %v3944
      %4193 = vmatprep.subr.mxu0 %v3940
      %4194 = vmatpush1.msra.mxu0 %v3939
      %4195 = vmatprep.subr.mxu0 %v3935
      %4196 = vmatpush1.msra.mxu0 %v3934
      %4197 = vmatprep.subr.mxu0 %v3930
      %4198 = vmatpush1.msra.mxu0 %v3929
      %4199 = vmatprep.subr.mxu0 %v3925
      %4200 = vmatpush1.msra.mxu0 %v3924
      %4201 = vmatprep.subr.mxu0 %v3920
      %4202 = vmatpush1.msra.mxu0 %v3919
      %4203 = vmatprep.subr.mxu0 %v3915
      %4204 = vmatpush1.msra.mxu0 %v3914
      %4205 = vmatprep.subr.mxu0 %v3910
      %4206 = vmatpush1.msra.mxu0 %v3909
      %4207 = vmatprep.subr.mxu0 %v3905
      %4208 = vmatpush1.msra.mxu0 %v3904
      %4209 = vmatprep.subr.mxu0 %v3900
      %4210 = vmatpush1.msra.mxu0 %v3899
      %4211 = vmatprep.subr.mxu0 %v3895
      %4212 = vmatpush1.msra.mxu0 %v3894
      %4213 = vmatprep.subr.mxu0 %v3890
      %4214 = vmatpush1.msra.mxu0 %v3889
      %4215 = vmatprep.subr.mxu0 %v3885
      %4216 = vmatpush1.msra.mxu0 %v3884
      %4217 = vmatprep.subr.mxu0 %v3880
      %4218 = vmatpush1.msra.mxu0 %v3879
      %4219 = vmatprep.subr.mxu0 %v3875
      %4220 = vmatpush1.msra.mxu0 %v3874
      %4221 = vmatprep.subr.mxu0 %v3870
      %4222 = vmatpush1.msra.mxu0 %v3869
      %4223 = vmatprep.subr.mxu0 0.0
      %4224 = vmatpush2.msra.mxu0 0.0
      %4225 = vmatprep.subr.mxu0 0.0
      %4226 = vmatpush2.msra.mxu0 0.0
      %4227 = vmatprep.subr.mxu0 0.0
      %4228 = vmatpush2.msra.mxu0 0.0
      %4229 = vmatprep.subr.mxu0 0.0
      %4230 = vmatpush2.msra.mxu0 0.0
      %4231 = vmatprep.subr.mxu0 0.0
      %4232 = vmatpush2.msra.mxu0 0.0
      %4233 = vmatprep.subr.mxu0 0.0
      %4234 = vmatpush2.msra.mxu0 0.0
      %4235 = vmatprep.subr.mxu0 0.0
      %4236 = vmatpush2.msra.mxu0 0.0
      %4237 = vmatprep.subr.mxu0 0.0
      %4238 = vmatpush2.msra.mxu0 0.0
      %4239 = vmatprep.subr.mxu0 0.0
      %4240 = vmatpush2.msra.mxu0 0.0
      %4241 = vmatprep.subr.mxu0 0.0
      %4242 = vmatpush2.msra.mxu0 0.0
      %4243 = vmatprep.subr.mxu0 0.0
      %4244 = vmatpush2.msra.mxu0 0.0
      %4245 = vmatprep.subr.mxu0 0.0
      %4246 = vmatpush2.msra.mxu0 0.0
      %4247 = vmatprep.subr.mxu0 0.0
      %4248 = vmatpush2.msra.mxu0 0.0
      %4249 = vmatprep.subr.mxu0 0.0
      %4250 = vmatpush2.msra.mxu0 0.0
      %4251 = vmatprep.subr.mxu0 0.0
      %4252 = vmatpush2.msra.mxu0 0.0
      %4253 = vmatprep.subr.mxu0 0.0
      %4254 = vmatpush2.msra.mxu0 0.0
      %4255 = vmatprep.mubr.f32.mxu0 0.0
      %4256 = vmatmul.mubr.f32.gmra.mxu0 %v3977
      %v4257 = vpop.f32.mrf.mxu0
      %v4258 = vadd.f32 %v4187, %v4257
      %v4259 = vpop.f32.mrf.mxu0
      %v4260 = vadd.f32 %v4189, %v4259
      %4261 = vdwg.mxu0
      %4262 = vmatprep.subr.mxu0 %v3467
      %4263 = vmatpush1.msra.mxu0 %v3466
      %4264 = vmatprep.subr.mxu0 %v3462
      %4265 = vmatpush1.msra.mxu0 %v3461
      %4266 = vmatprep.subr.mxu0 %v3457
      %4267 = vmatpush1.msra.mxu0 %v3456
      %4268 = vmatprep.subr.mxu0 %v3452
      %4269 = vmatpush1.msra.mxu0 %v3451
      %4270 = vmatprep.subr.mxu0 %v3447
      %4271 = vmatpush1.msra.mxu0 %v3446
      %4272 = vmatprep.subr.mxu0 %v3442
      %4273 = vmatpush1.msra.mxu0 %v3441
      %4274 = vmatprep.subr.mxu0 %v3437
      %4275 = vmatpush1.msra.mxu0 %v3436
      %4276 = vmatprep.subr.mxu0 %v3432
      %4277 = vmatpush1.msra.mxu0 %v3431
      %4278 = vmatprep.subr.mxu0 %v3427
      %4279 = vmatpush1.msra.mxu0 %v3426
      %4280 = vmatprep.subr.mxu0 %v3422
      %4281 = vmatpush1.msra.mxu0 %v3421
      %4282 = vmatprep.subr.mxu0 %v3417
      %4283 = vmatpush1.msra.mxu0 %v3416
      %4284 = vmatprep.subr.mxu0 %v3412
      %4285 = vmatpush1.msra.mxu0 %v3411
      %4286 = vmatprep.subr.mxu0 %v3407
      %4287 = vmatpush1.msra.mxu0 %v3406
      %4288 = vmatprep.subr.mxu0 %v3402
      %4289 = vmatpush1.msra.mxu0 %v3401
      %4290 = vmatprep.subr.mxu0 %v3397
      %4291 = vmatpush1.msra.mxu0 %v3396
      %4292 = vmatprep.subr.mxu0 %v3392
      %4293 = vmatpush1.msra.mxu0 %v3391
      %4294 = vmatprep.subr.mxu0 %v3547
      %4295 = vmatpush2.msra.mxu0 %v3546
      %4296 = vmatprep.subr.mxu0 %v3542
      %4297 = vmatpush2.msra.mxu0 %v3541
      %4298 = vmatprep.subr.mxu0 %v3537
      %4299 = vmatpush2.msra.mxu0 %v3536
      %4300 = vmatprep.subr.mxu0 %v3532
      %4301 = vmatpush2.msra.mxu0 %v3531
      %4302 = vmatprep.subr.mxu0 %v3527
      %4303 = vmatpush2.msra.mxu0 %v3526
      %4304 = vmatprep.subr.mxu0 %v3522
      %4305 = vmatpush2.msra.mxu0 %v3521
      %4306 = vmatprep.subr.mxu0 %v3517
      %4307 = vmatpush2.msra.mxu0 %v3516
      %4308 = vmatprep.subr.mxu0 %v3512
      %4309 = vmatpush2.msra.mxu0 %v3511
      %4310 = vmatprep.subr.mxu0 %v3507
      %4311 = vmatpush2.msra.mxu0 %v3506
      %4312 = vmatprep.subr.mxu0 %v3502
      %4313 = vmatpush2.msra.mxu0 %v3501
      %4314 = vmatprep.subr.mxu0 %v3497
      %4315 = vmatpush2.msra.mxu0 %v3496
      %4316 = vmatprep.subr.mxu0 %v3492
      %4317 = vmatpush2.msra.mxu0 %v3491
      %4318 = vmatprep.subr.mxu0 %v3487
      %4319 = vmatpush2.msra.mxu0 %v3486
      %4320 = vmatprep.subr.mxu0 %v3482
      %4321 = vmatpush2.msra.mxu0 %v3481
      %4322 = vmatprep.subr.mxu0 %v3477
      %4323 = vmatpush2.msra.mxu0 %v3476
      %4324 = vmatprep.subr.mxu0 %v3472
      %4325 = vmatpush2.msra.mxu0 %v3471
      %4326 = vmatprep.mubr.f32.mxu0 %v3972
      %4327 = vmatmul.mubr.f32.gmra.mxu0 %v3971
      %v4328 = vpop.f32.mrf.mxu0
      %v4329 = vadd.f32 0.0, %v4328
      %v4330 = vpop.f32.mrf.mxu0
      %v4331 = vadd.f32 0.0, %v4330
      %4332 = vdwg.mxu0
      %4333 = vmatprep.subr.mxu0 %v3627
      %4334 = vmatpush1.msra.mxu0 %v3626
      %4335 = vmatprep.subr.mxu0 %v3622
      %4336 = vmatpush1.msra.mxu0 %v3621
      %4337 = vmatprep.subr.mxu0 %v3617
      %4338 = vmatpush1.msra.mxu0 %v3616
      %4339 = vmatprep.subr.mxu0 %v3612
      %4340 = vmatpush1.msra.mxu0 %v3611
      %4341 = vmatprep.subr.mxu0 %v3607
      %4342 = vmatpush1.msra.mxu0 %v3606
      %4343 = vmatprep.subr.mxu0 %v3602
      %4344 = vmatpush1.msra.mxu0 %v3601
      %4345 = vmatprep.subr.mxu0 %v3597
      %4346 = vmatpush1.msra.mxu0 %v3596
      %4347 = vmatprep.subr.mxu0 %v3592
      %4348 = vmatpush1.msra.mxu0 %v3591
      %4349 = vmatprep.subr.mxu0 %v3587
      %4350 = vmatpush1.msra.mxu0 %v3586
      %4351 = vmatprep.subr.mxu0 %v3582
      %4352 = vmatpush1.msra.mxu0 %v3581
      %4353 = vmatprep.subr.mxu0 %v3577
      %4354 = vmatpush1.msra.mxu0 %v3576
      %4355 = vmatprep.subr.mxu0 %v3572
      %4356 = vmatpush1.msra.mxu0 %v3571
      %4357 = vmatprep.subr.mxu0 %v3567
      %4358 = vmatpush1.msra.mxu0 %v3566
      %4359 = vmatprep.subr.mxu0 %v3562
      %4360 = vmatpush1.msra.mxu0 %v3561
      %4361 = vmatprep.subr.mxu0 %v3557
      %4362 = vmatpush1.msra.mxu0 %v3556
      %4363 = vmatprep.subr.mxu0 %v3552
      %4364 = vmatpush1.msra.mxu0 %v3551
      %4365 = vmatprep.subr.mxu0 %v3707
      %4366 = vmatpush2.msra.mxu0 %v3706
      %4367 = vmatprep.subr.mxu0 %v3702
      %4368 = vmatpush2.msra.mxu0 %v3701
      %4369 = vmatprep.subr.mxu0 %v3697
      %4370 = vmatpush2.msra.mxu0 %v3696
      %4371 = vmatprep.subr.mxu0 %v3692
      %4372 = vmatpush2.msra.mxu0 %v3691
      %4373 = vmatprep.subr.mxu0 %v3687
      %4374 = vmatpush2.msra.mxu0 %v3686
      %4375 = vmatprep.subr.mxu0 %v3682
      %4376 = vmatpush2.msra.mxu0 %v3681
      %4377 = vmatprep.subr.mxu0 %v3677
      %4378 = vmatpush2.msra.mxu0 %v3676
      %4379 = vmatprep.subr.mxu0 %v3672
      %4380 = vmatpush2.msra.mxu0 %v3671
      %4381 = vmatprep.subr.mxu0 %v3667
      %4382 = vmatpush2.msra.mxu0 %v3666
      %4383 = vmatprep.subr.mxu0 %v3662
      %4384 = vmatpush2.msra.mxu0 %v3661
      %4385 = vmatprep.subr.mxu0 %v3657
      %4386 = vmatpush2.msra.mxu0 %v3656
      %4387 = vmatprep.subr.mxu0 %v3652
      %4388 = vmatpush2.msra.mxu0 %v3651
      %4389 = vmatprep.subr.mxu0 %v3647
      %4390 = vmatpush2.msra.mxu0 %v3646
      %4391 = vmatprep.subr.mxu0 %v3642
      %4392 = vmatpush2.msra.mxu0 %v3641
      %4393 = vmatprep.subr.mxu0 %v3637
      %4394 = vmatpush2.msra.mxu0 %v3636
      %4395 = vmatprep.subr.mxu0 %v3632
      %4396 = vmatpush2.msra.mxu0 %v3631
      %4397 = vmatprep.mubr.f32.mxu0 %v3974
      %4398 = vmatmul.mubr.f32.gmra.mxu0 %v3973
      %v4399 = vpop.f32.mrf.mxu0
      %v4400 = vadd.f32 %v4329, %v4399
      %v4401 = vpop.f32.mrf.mxu0
      %v4402 = vadd.f32 %v4331, %v4401
      %4403 = vdwg.mxu0
      %4404 = vmatprep.subr.mxu0 %v3787
      %4405 = vmatpush1.msra.mxu0 %v3786
      %4406 = vmatprep.subr.mxu0 %v3782
      %4407 = vmatpush1.msra.mxu0 %v3781
      %4408 = vmatprep.subr.mxu0 %v3777
      %4409 = vmatpush1.msra.mxu0 %v3776
      %4410 = vmatprep.subr.mxu0 %v3772
      %4411 = vmatpush1.msra.mxu0 %v3771
      %4412 = vmatprep.subr.mxu0 %v3767
      %4413 = vmatpush1.msra.mxu0 %v3766
      %4414 = vmatprep.subr.mxu0 %v3762
      %4415 = vmatpush1.msra.mxu0 %v3761
      %4416 = vmatprep.subr.mxu0 %v3757
      %4417 = vmatpush1.msra.mxu0 %v3756
      %4418 = vmatprep.subr.mxu0 %v3752
      %4419 = vmatpush1.msra.mxu0 %v3751
      %4420 = vmatprep.subr.mxu0 %v3747
      %4421 = vmatpush1.msra.mxu0 %v3746
      %4422 = vmatprep.subr.mxu0 %v3742
      %4423 = vmatpush1.msra.mxu0 %v3741
      %4424 = vmatprep.subr.mxu0 %v3737
      %4425 = vmatpush1.msra.mxu0 %v3736
      %4426 = vmatprep.subr.mxu0 %v3732
      %4427 = vmatpush1.msra.mxu0 %v3731
      %4428 = vmatprep.subr.mxu0 %v3727
      %4429 = vmatpush1.msra.mxu0 %v3726
      %4430 = vmatprep.subr.mxu0 %v3722
      %4431 = vmatpush1.msra.mxu0 %v3721
      %4432 = vmatprep.subr.mxu0 %v3717
      %4433 = vmatpush1.msra.mxu0 %v3716
      %4434 = vmatprep.subr.mxu0 %v3712
      %4435 = vmatpush1.msra.mxu0 %v3711
      %4436 = vmatprep.subr.mxu0 %v3867
      %4437 = vmatpush2.msra.mxu0 %v3866
      %4438 = vmatprep.subr.mxu0 %v3862
      %4439 = vmatpush2.msra.mxu0 %v3861
      %4440 = vmatprep.subr.mxu0 %v3857
      %4441 = vmatpush2.msra.mxu0 %v3856
      %4442 = vmatprep.subr.mxu0 %v3852
      %4443 = vmatpush2.msra.mxu0 %v3851
      %4444 = vmatprep.subr.mxu0 %v3847
      %4445 = vmatpush2.msra.mxu0 %v3846
      %4446 = vmatprep.subr.mxu0 %v3842
      %4447 = vmatpush2.msra.mxu0 %v3841
      %4448 = vmatprep.subr.mxu0 %v3837
      %4449 = vmatpush2.msra.mxu0 %v3836
      %4450 = vmatprep.subr.mxu0 %v3832
      %4451 = vmatpush2.msra.mxu0 %v3831
      %4452 = vmatprep.subr.mxu0 %v3827
      %4453 = vmatpush2.msra.mxu0 %v3826
      %4454 = vmatprep.subr.mxu0 %v3822
      %4455 = vmatpush2.msra.mxu0 %v3821
      %4456 = vmatprep.subr.mxu0 %v3817
      %4457 = vmatpush2.msra.mxu0 %v3816
      %4458 = vmatprep.subr.mxu0 %v3812
      %4459 = vmatpush2.msra.mxu0 %v3811
      %4460 = vmatprep.subr.mxu0 %v3807
      %4461 = vmatpush2.msra.mxu0 %v3806
      %4462 = vmatprep.subr.mxu0 %v3802
      %4463 = vmatpush2.msra.mxu0 %v3801
      %4464 = vmatprep.subr.mxu0 %v3797
      %4465 = vmatpush2.msra.mxu0 %v3796
      %4466 = vmatprep.subr.mxu0 %v3792
      %4467 = vmatpush2.msra.mxu0 %v3791
      %4468 = vmatprep.mubr.f32.mxu0 %v3976
      %4469 = vmatmul.mubr.f32.gmra.mxu0 %v3975
      %v4470 = vpop.f32.mrf.mxu0
      %v4471 = vadd.f32 %v4400, %v4470
      %v4472 = vpop.f32.mrf.mxu0
      %v4473 = vadd.f32 %v4402, %v4472
      %4474 = vdwg.mxu0
      %4475 = vmatprep.subr.mxu0 %v3947
      %4476 = vmatpush1.msra.mxu0 %v3946
      %4477 = vmatprep.subr.mxu0 %v3942
      %4478 = vmatpush1.msra.mxu0 %v3941
      %4479 = vmatprep.subr.mxu0 %v3937
      %4480 = vmatpush1.msra.mxu0 %v3936
      %4481 = vmatprep.subr.mxu0 %v3932
      %4482 = vmatpush1.msra.mxu0 %v3931
      %4483 = vmatprep.subr.mxu0 %v3927
      %4484 = vmatpush1.msra.mxu0 %v3926
      %4485 = vmatprep.subr.mxu0 %v3922
      %4486 = vmatpush1.msra.mxu0 %v3921
      %4487 = vmatprep.subr.mxu0 %v3917
      %4488 = vmatpush1.msra.mxu0 %v3916
      %4489 = vmatprep.subr.mxu0 %v3912
      %4490 = vmatpush1.msra.mxu0 %v3911
      %4491 = vmatprep.subr.mxu0 %v3907
      %4492 = vmatpush1.msra.mxu0 %v3906
      %4493 = vmatprep.subr.mxu0 %v3902
      %4494 = vmatpush1.msra.mxu0 %v3901
      %4495 = vmatprep.subr.mxu0 %v3897
      %4496 = vmatpush1.msra.mxu0 %v3896
      %4497 = vmatprep.subr.mxu0 %v3892
      %4498 = vmatpush1.msra.mxu0 %v3891
      %4499 = vmatprep.subr.mxu0 %v3887
      %4500 = vmatpush1.msra.mxu0 %v3886
      %4501 = vmatprep.subr.mxu0 %v3882
      %4502 = vmatpush1.msra.mxu0 %v3881
      %4503 = vmatprep.subr.mxu0 %v3877
      %4504 = vmatpush1.msra.mxu0 %v3876
      %4505 = vmatprep.subr.mxu0 %v3872
      %4506 = vmatpush1.msra.mxu0 %v3871
      %4507 = vmatprep.subr.mxu0 0.0
      %4508 = vmatpush2.msra.mxu0 0.0
      %4509 = vmatprep.subr.mxu0 0.0
      %4510 = vmatpush2.msra.mxu0 0.0
      %4511 = vmatprep.subr.mxu0 0.0
      %4512 = vmatpush2.msra.mxu0 0.0
      %4513 = vmatprep.subr.mxu0 0.0
      %4514 = vmatpush2.msra.mxu0 0.0
      %4515 = vmatprep.subr.mxu0 0.0
      %4516 = vmatpush2.msra.mxu0 0.0
      %4517 = vmatprep.subr.mxu0 0.0
      %4518 = vmatpush2.msra.mxu0 0.0
      %4519 = vmatprep.subr.mxu0 0.0
      %4520 = vmatpush2.msra.mxu0 0.0
      %4521 = vmatprep.subr.mxu0 0.0
      %4522 = vmatpush2.msra.mxu0 0.0
      %4523 = vmatprep.subr.mxu0 0.0
      %4524 = vmatpush2.msra.mxu0 0.0
      %4525 = vmatprep.subr.mxu0 0.0
      %4526 = vmatpush2.msra.mxu0 0.0
      %4527 = vmatprep.subr.mxu0 0.0
      %4528 = vmatpush2.msra.mxu0 0.0
      %4529 = vmatprep.subr.mxu0 0.0
      %4530 = vmatpush2.msra.mxu0 0.0
      %4531 = vmatprep.subr.mxu0 0.0
      %4532 = vmatpush2.msra.mxu0 0.0
      %4533 = vmatprep.subr.mxu0 0.0
      %4534 = vmatpush2.msra.mxu0 0.0
      %4535 = vmatprep.subr.mxu0 0.0
      %4536 = vmatpush2.msra.mxu0 0.0
      %4537 = vmatprep.subr.mxu0 0.0
      %4538 = vmatpush2.msra.mxu0 0.0
      %4539 = vmatprep.mubr.f32.mxu0 0.0
      %4540 = vmatmul.mubr.f32.gmra.mxu0 %v3977
      %v4541 = vpop.f32.mrf.mxu0
      %v4542 = vadd.f32 %v4471, %v4541
      %v4543 = vpop.f32.mrf.mxu0
      %v4544 = vadd.f32 %v4473, %v4543
      %4545 = vdwg.mxu0
      %4546 = vmatprep.subr.mxu0 0.0
      %4547 = vmatpush1.msra.mxu0 %v3468
      %4548 = vmatprep.subr.mxu0 0.0
      %4549 = vmatpush1.msra.mxu0 %v3463
      %4550 = vmatprep.subr.mxu0 0.0
      %4551 = vmatpush1.msra.mxu0 %v3458
      %4552 = vmatprep.subr.mxu0 0.0
      %4553 = vmatpush1.msra.mxu0 %v3453
      %4554 = vmatprep.subr.mxu0 0.0
      %4555 = vmatpush1.msra.mxu0 %v3448
      %4556 = vmatprep.subr.mxu0 0.0
      %4557 = vmatpush1.msra.mxu0 %v3443
      %4558 = vmatprep.subr.mxu0 0.0
      %4559 = vmatpush1.msra.mxu0 %v3438
      %4560 = vmatprep.subr.mxu0 0.0
      %4561 = vmatpush1.msra.mxu0 %v3433
      %4562 = vmatprep.subr.mxu0 0.0
      %4563 = vmatpush1.msra.mxu0 %v3428
      %4564 = vmatprep.subr.mxu0 0.0
      %4565 = vmatpush1.msra.mxu0 %v3423
      %4566 = vmatprep.subr.mxu0 0.0
      %4567 = vmatpush1.msra.mxu0 %v3418
      %4568 = vmatprep.subr.mxu0 0.0
      %4569 = vmatpush1.msra.mxu0 %v3413
      %4570 = vmatprep.subr.mxu0 0.0
      %4571 = vmatpush1.msra.mxu0 %v3408
      %4572 = vmatprep.subr.mxu0 0.0
      %4573 = vmatpush1.msra.mxu0 %v3403
      %4574 = vmatprep.subr.mxu0 0.0
      %4575 = vmatpush1.msra.mxu0 %v3398
      %4576 = vmatprep.subr.mxu0 0.0
      %4577 = vmatpush1.msra.mxu0 %v3393
      %4578 = vmatprep.subr.mxu0 0.0
      %4579 = vmatpush2.msra.mxu0 %v3548
      %4580 = vmatprep.subr.mxu0 0.0
      %4581 = vmatpush2.msra.mxu0 %v3543
      %4582 = vmatprep.subr.mxu0 0.0
      %4583 = vmatpush2.msra.mxu0 %v3538
      %4584 = vmatprep.subr.mxu0 0.0
      %4585 = vmatpush2.msra.mxu0 %v3533
      %4586 = vmatprep.subr.mxu0 0.0
      %4587 = vmatpush2.msra.mxu0 %v3528
      %4588 = vmatprep.subr.mxu0 0.0
      %4589 = vmatpush2.msra.mxu0 %v3523
      %4590 = vmatprep.subr.mxu0 0.0
      %4591 = vmatpush2.msra.mxu0 %v3518
      %4592 = vmatprep.subr.mxu0 0.0
      %4593 = vmatpush2.msra.mxu0 %v3513
      %4594 = vmatprep.subr.mxu0 0.0
      %4595 = vmatpush2.msra.mxu0 %v3508
      %4596 = vmatprep.subr.mxu0 0.0
      %4597 = vmatpush2.msra.mxu0 %v3503
      %4598 = vmatprep.subr.mxu0 0.0
      %4599 = vmatpush2.msra.mxu0 %v3498
      %4600 = vmatprep.subr.mxu0 0.0
      %4601 = vmatpush2.msra.mxu0 %v3493
      %4602 = vmatprep.subr.mxu0 0.0
      %4603 = vmatpush2.msra.mxu0 %v3488
      %4604 = vmatprep.subr.mxu0 0.0
      %4605 = vmatpush2.msra.mxu0 %v3483
      %4606 = vmatprep.subr.mxu0 0.0
      %4607 = vmatpush2.msra.mxu0 %v3478
      %4608 = vmatprep.subr.mxu0 0.0
      %4609 = vmatpush2.msra.mxu0 %v3473
      %4610 = vmatprep.mubr.f32.mxu0 %v3972
      %4611 = vmatmul.mubr.f32.gmra.mxu0 %v3971
      %v4612 = vpop.f32.mrf.mxu0
      %v4613 = vadd.f32 0.0, %v4612
      %v4614 = vpop.f32.mrf.mxu0
      %4615 = vdwg.mxu0
      %4616 = vmatprep.subr.mxu0 0.0
      %4617 = vmatpush1.msra.mxu0 %v3628
      %4618 = vmatprep.subr.mxu0 0.0
      %4619 = vmatpush1.msra.mxu0 %v3623
      %4620 = vmatprep.subr.mxu0 0.0
      %4621 = vmatpush1.msra.mxu0 %v3618
      %4622 = vmatprep.subr.mxu0 0.0
      %4623 = vmatpush1.msra.mxu0 %v3613
      %4624 = vmatprep.subr.mxu0 0.0
      %4625 = vmatpush1.msra.mxu0 %v3608
      %4626 = vmatprep.subr.mxu0 0.0
      %4627 = vmatpush1.msra.mxu0 %v3603
      %4628 = vmatprep.subr.mxu0 0.0
      %4629 = vmatpush1.msra.mxu0 %v3598
      %4630 = vmatprep.subr.mxu0 0.0
      %4631 = vmatpush1.msra.mxu0 %v3593
      %4632 = vmatprep.subr.mxu0 0.0
      %4633 = vmatpush1.msra.mxu0 %v3588
      %4634 = vmatprep.subr.mxu0 0.0
      %4635 = vmatpush1.msra.mxu0 %v3583
      %4636 = vmatprep.subr.mxu0 0.0
      %4637 = vmatpush1.msra.mxu0 %v3578
      %4638 = vmatprep.subr.mxu0 0.0
      %4639 = vmatpush1.msra.mxu0 %v3573
      %4640 = vmatprep.subr.mxu0 0.0
      %4641 = vmatpush1.msra.mxu0 %v3568
      %4642 = vmatprep.subr.mxu0 0.0
      %4643 = vmatpush1.msra.mxu0 %v3563
      %4644 = vmatprep.subr.mxu0 0.0
      %4645 = vmatpush1.msra.mxu0 %v3558
      %4646 = vmatprep.subr.mxu0 0.0
      %4647 = vmatpush1.msra.mxu0 %v3553
      %4648 = vmatprep.subr.mxu0 0.0
      %4649 = vmatpush2.msra.mxu0 %v3708
      %4650 = vmatprep.subr.mxu0 0.0
      %4651 = vmatpush2.msra.mxu0 %v3703
      %4652 = vmatprep.subr.mxu0 0.0
      %4653 = vmatpush2.msra.mxu0 %v3698
      %4654 = vmatprep.subr.mxu0 0.0
      %4655 = vmatpush2.msra.mxu0 %v3693
      %4656 = vmatprep.subr.mxu0 0.0
      %4657 = vmatpush2.msra.mxu0 %v3688
      %4658 = vmatprep.subr.mxu0 0.0
      %4659 = vmatpush2.msra.mxu0 %v3683
      %4660 = vmatprep.subr.mxu0 0.0
      %4661 = vmatpush2.msra.mxu0 %v3678
      %4662 = vmatprep.subr.mxu0 0.0
      %4663 = vmatpush2.msra.mxu0 %v3673
      %4664 = vmatprep.subr.mxu0 0.0
      %4665 = vmatpush2.msra.mxu0 %v3668
      %4666 = vmatprep.subr.mxu0 0.0
      %4667 = vmatpush2.msra.mxu0 %v3663
      %4668 = vmatprep.subr.mxu0 0.0
      %4669 = vmatpush2.msra.mxu0 %v3658
      %4670 = vmatprep.subr.mxu0 0.0
      %4671 = vmatpush2.msra.mxu0 %v3653
      %4672 = vmatprep.subr.mxu0 0.0
      %4673 = vmatpush2.msra.mxu0 %v3648
      %4674 = vmatprep.subr.mxu0 0.0
      %4675 = vmatpush2.msra.mxu0 %v3643
      %4676 = vmatprep.subr.mxu0 0.0
      %4677 = vmatpush2.msra.mxu0 %v3638
      %4678 = vmatprep.subr.mxu0 0.0
      %4679 = vmatpush2.msra.mxu0 %v3633
      %4680 = vmatprep.mubr.f32.mxu0 %v3974
      %4681 = vmatmul.mubr.f32.gmra.mxu0 %v3973
      %v4682 = vpop.f32.mrf.mxu0
      %v4683 = vadd.f32 %v4613, %v4682
      %v4684 = vpop.f32.mrf.mxu0
      %4685 = vdwg.mxu0
      %4686 = vmatprep.subr.mxu0 0.0
      %4687 = vmatpush1.msra.mxu0 %v3788
      %4688 = vmatprep.subr.mxu0 0.0
      %4689 = vmatpush1.msra.mxu0 %v3783
      %4690 = vmatprep.subr.mxu0 0.0
      %4691 = vmatpush1.msra.mxu0 %v3778
      %4692 = vmatprep.subr.mxu0 0.0
      %4693 = vmatpush1.msra.mxu0 %v3773
      %4694 = vmatprep.subr.mxu0 0.0
      %4695 = vmatpush1.msra.mxu0 %v3768
      %4696 = vmatprep.subr.mxu0 0.0
      %4697 = vmatpush1.msra.mxu0 %v3763
      %4698 = vmatprep.subr.mxu0 0.0
      %4699 = vmatpush1.msra.mxu0 %v3758
      %4700 = vmatprep.subr.mxu0 0.0
      %4701 = vmatpush1.msra.mxu0 %v3753
      %4702 = vmatprep.subr.mxu0 0.0
      %4703 = vmatpush1.msra.mxu0 %v3748
      %4704 = vmatprep.subr.mxu0 0.0
      %4705 = vmatpush1.msra.mxu0 %v3743
      %4706 = vmatprep.subr.mxu0 0.0
      %4707 = vmatpush1.msra.mxu0 %v3738
      %4708 = vmatprep.subr.mxu0 0.0
      %4709 = vmatpush1.msra.mxu0 %v3733
      %4710 = vmatprep.subr.mxu0 0.0
      %4711 = vmatpush1.msra.mxu0 %v3728
      %4712 = vmatprep.subr.mxu0 0.0
      %4713 = vmatpush1.msra.mxu0 %v3723
      %4714 = vmatprep.subr.mxu0 0.0
      %4715 = vmatpush1.msra.mxu0 %v3718
      %4716 = vmatprep.subr.mxu0 0.0
      %4717 = vmatpush1.msra.mxu0 %v3713
      %4718 = vmatprep.subr.mxu0 0.0
      %4719 = vmatpush2.msra.mxu0 %v3868
      %4720 = vmatprep.subr.mxu0 0.0
      %4721 = vmatpush2.msra.mxu0 %v3863
      %4722 = vmatprep.subr.mxu0 0.0
      %4723 = vmatpush2.msra.mxu0 %v3858
      %4724 = vmatprep.subr.mxu0 0.0
      %4725 = vmatpush2.msra.mxu0 %v3853
      %4726 = vmatprep.subr.mxu0 0.0
      %4727 = vmatpush2.msra.mxu0 %v3848
      %4728 = vmatprep.subr.mxu0 0.0
      %4729 = vmatpush2.msra.mxu0 %v3843
      %4730 = vmatprep.subr.mxu0 0.0
      %4731 = vmatpush2.msra.mxu0 %v3838
      %4732 = vmatprep.subr.mxu0 0.0
      %4733 = vmatpush2.msra.mxu0 %v3833
      %4734 = vmatprep.subr.mxu0 0.0
      %4735 = vmatpush2.msra.mxu0 %v3828
      %4736 = vmatprep.subr.mxu0 0.0
      %4737 = vmatpush2.msra.mxu0 %v3823
      %4738 = vmatprep.subr.mxu0 0.0
      %4739 = vmatpush2.msra.mxu0 %v3818
      %4740 = vmatprep.subr.mxu0 0.0
      %4741 = vmatpush2.msra.mxu0 %v3813
      %4742 = vmatprep.subr.mxu0 0.0
      %4743 = vmatpush2.msra.mxu0 %v3808
      %4744 = vmatprep.subr.mxu0 0.0
      %4745 = vmatpush2.msra.mxu0 %v3803
      %4746 = vmatprep.subr.mxu0 0.0
      %4747 = vmatpush2.msra.mxu0 %v3798
      %4748 = vmatprep.subr.mxu0 0.0
      %4749 = vmatpush2.msra.mxu0 %v3793
      %4750 = vmatprep.mubr.f32.mxu0 %v3976
      %4751 = vmatmul.mubr.f32.gmra.mxu0 %v3975
      %v4752 = vpop.f32.mrf.mxu0
      %v4753 = vadd.f32 %v4683, %v4752
      %v4754 = vpop.f32.mrf.mxu0
      %4755 = vdwg.mxu0
      %4756 = vmatprep.subr.mxu0 0.0
      %4757 = vmatpush1.msra.mxu0 %v3948
      %4758 = vmatprep.subr.mxu0 0.0
      %4759 = vmatpush1.msra.mxu0 %v3943
      %4760 = vmatprep.subr.mxu0 0.0
      %4761 = vmatpush1.msra.mxu0 %v3938
      %4762 = vmatprep.subr.mxu0 0.0
      %4763 = vmatpush1.msra.mxu0 %v3933
      %4764 = vmatprep.subr.mxu0 0.0
      %4765 = vmatpush1.msra.mxu0 %v3928
      %4766 = vmatprep.subr.mxu0 0.0
      %4767 = vmatpush1.msra.mxu0 %v3923
      %4768 = vmatprep.subr.mxu0 0.0
      %4769 = vmatpush1.msra.mxu0 %v3918
      %4770 = vmatprep.subr.mxu0 0.0
      %4771 = vmatpush1.msra.mxu0 %v3913
      %4772 = vmatprep.subr.mxu0 0.0
      %4773 = vmatpush1.msra.mxu0 %v3908
      %4774 = vmatprep.subr.mxu0 0.0
      %4775 = vmatpush1.msra.mxu0 %v3903
      %4776 = vmatprep.subr.mxu0 0.0
      %4777 = vmatpush1.msra.mxu0 %v3898
      %4778 = vmatprep.subr.mxu0 0.0
      %4779 = vmatpush1.msra.mxu0 %v3893
      %4780 = vmatprep.subr.mxu0 0.0
      %4781 = vmatpush1.msra.mxu0 %v3888
      %4782 = vmatprep.subr.mxu0 0.0
      %4783 = vmatpush1.msra.mxu0 %v3883
      %4784 = vmatprep.subr.mxu0 0.0
      %4785 = vmatpush1.msra.mxu0 %v3878
      %4786 = vmatprep.subr.mxu0 0.0
      %4787 = vmatpush1.msra.mxu0 %v3873
      %4788 = vmatprep.subr.mxu0 0.0
      %4789 = vmatpush2.msra.mxu0 0.0
      %4790 = vmatprep.subr.mxu0 0.0
      %4791 = vmatpush2.msra.mxu0 0.0
      %4792 = vmatprep.subr.mxu0 0.0
      %4793 = vmatpush2.msra.mxu0 0.0
      %4794 = vmatprep.subr.mxu0 0.0
      %4795 = vmatpush2.msra.mxu0 0.0
      %4796 = vmatprep.subr.mxu0 0.0
      %4797 = vmatpush2.msra.mxu0 0.0
      %4798 = vmatprep.subr.mxu0 0.0
      %4799 = vmatpush2.msra.mxu0 0.0
      %4800 = vmatprep.subr.mxu0 0.0
      %4801 = vmatpush2.msra.mxu0 0.0
      %4802 = vmatprep.subr.mxu0 0.0
      %4803 = vmatpush2.msra.mxu0 0.0
      %4804 = vmatprep.subr.mxu0 0.0
      %4805 = vmatpush2.msra.mxu0 0.0
      %4806 = vmatprep.subr.mxu0 0.0
      %4807 = vmatpush2.msra.mxu0 0.0
      %4808 = vmatprep.subr.mxu0 0.0
      %4809 = vmatpush2.msra.mxu0 0.0
      %4810 = vmatprep.subr.mxu0 0.0
      %4811 = vmatpush2.msra.mxu0 0.0
      %4812 = vmatprep.subr.mxu0 0.0
      %4813 = vmatpush2.msra.mxu0 0.0
      %4814 = vmatprep.subr.mxu0 0.0
      %4815 = vmatpush2.msra.mxu0 0.0
      %4816 = vmatprep.subr.mxu0 0.0
      %4817 = vmatpush2.msra.mxu0 0.0
      %4818 = vmatprep.subr.mxu0 0.0
      %4819 = vmatpush2.msra.mxu0 0.0
      %4820 = vmatprep.mubr.f32.mxu0 0.0
      %4821 = vmatmul.mubr.f32.gmra.mxu0 %v3977
      %v4822 = vpop.f32.mrf.mxu0
      %v4823 = vadd.f32 %v4753, %v4822
      %v4824 = vpop.f32.mrf.mxu0
      %4825 = vdwg.mxu0
      %vm4826 = vcmp.lt.s32.totalorder %v3950, 600
      %vm4827 = vcmp.lt.s32.totalorder %v3951, 600
      %vm4828 = vcmp.lt.s32.totalorder %v3952, 600
      %vm4829 = vcmp.lt.s32.totalorder %v3953, 600
      %vm4830 = vcmp.lt.s32.totalorder %v3954, 600
      %v4831 = vsel %vm4826, 1, 0
      %v4832 = vsel %vm4827, 1, 0
      %v4833 = vsel %vm4828, 1, 0
      %v4834 = vsel %vm4829, 1, 0
      %v4835 = vsel %vm4830, 1, 0
      %v4836 = vcvt.s32.f32 %v4831
      %v4837 = vcvt.s32.f32 %v4832
      %v4838 = vcvt.s32.f32 %v4833
      %v4839 = vcvt.s32.f32 %v4834
      %v4840 = vcvt.s32.f32 %v4835
      %v4841 = vmul.f32 %v4258, %v4836
      %v4842 = vmul.f32 %v4260, %v4837
      %v4843 = vmul.f32 %v4542, %v4838
      %v4844 = vmul.f32 %v4544, %v4839
      %v4845 = vmul.f32 %v4823, %v4840
      %4846 = vmatprep.subr.mxu0 0.0
      %4847 = vmatpush1.msra.mxu0 %v1408
      %4848 = vmatprep.subr.mxu0 0.0
      %4849 = vmatpush1.msra.mxu0 %v1407
      %4850 = vmatprep.subr.mxu0 0.0
      %4851 = vmatpush1.msra.mxu0 %v1406
      %4852 = vmatprep.subr.mxu0 0.0
      %4853 = vmatpush1.msra.mxu0 %v1405
      %4854 = vmatprep.subr.mxu0 0.0
      %4855 = vmatpush1.msra.mxu0 %v1404
      %4856 = vmatprep.subr.mxu0 0.0
      %4857 = vmatpush1.msra.mxu0 %v1403
      %4858 = vmatprep.subr.mxu0 0.0
      %4859 = vmatpush1.msra.mxu0 %v1402
      %4860 = vmatprep.subr.mxu0 0.0
      %4861 = vmatpush1.msra.mxu0 %v1401
      %4862 = vmatprep.subr.mxu0 0.0
      %4863 = vmatpush1.msra.mxu0 %v1400
      %4864 = vmatprep.subr.mxu0 0.0
      %4865 = vmatpush1.msra.mxu0 %v1399
      %4866 = vmatprep.subr.mxu0 0.0
      %4867 = vmatpush1.msra.mxu0 %v1398
      %4868 = vmatprep.subr.mxu0 0.0
      %4869 = vmatpush1.msra.mxu0 %v1397
      %4870 = vmatprep.subr.mxu0 0.0
      %4871 = vmatpush1.msra.mxu0 %v1396
      %4872 = vmatprep.subr.mxu0 0.0
      %4873 = vmatpush1.msra.mxu0 %v1395
      %4874 = vmatprep.subr.mxu0 0.0
      %4875 = vmatpush1.msra.mxu0 %v1394
      %4876 = vmatprep.subr.mxu0 0.0
      %4877 = vmatpush1.msra.mxu0 %v1393
      %4878 = vmatprep.subr.mxu0 0.0
      %4879 = vmatpush2.msra.mxu0 %v1424
      %4880 = vmatprep.subr.mxu0 0.0
      %4881 = vmatpush2.msra.mxu0 %v1423
      %4882 = vmatprep.subr.mxu0 0.0
      %4883 = vmatpush2.msra.mxu0 %v1422
      %4884 = vmatprep.subr.mxu0 0.0
      %4885 = vmatpush2.msra.mxu0 %v1421
      %4886 = vmatprep.subr.mxu0 0.0
      %4887 = vmatpush2.msra.mxu0 %v1420
      %4888 = vmatprep.subr.mxu0 0.0
      %4889 = vmatpush2.msra.mxu0 %v1419
      %4890 = vmatprep.subr.mxu0 0.0
      %4891 = vmatpush2.msra.mxu0 %v1418
      %4892 = vmatprep.subr.mxu0 0.0
      %4893 = vmatpush2.msra.mxu0 %v1417
      %4894 = vmatprep.subr.mxu0 0.0
      %4895 = vmatpush2.msra.mxu0 %v1416
      %4896 = vmatprep.subr.mxu0 0.0
      %4897 = vmatpush2.msra.mxu0 %v1415
      %4898 = vmatprep.subr.mxu0 0.0
      %4899 = vmatpush2.msra.mxu0 %v1414
      %4900 = vmatprep.subr.mxu0 0.0
      %4901 = vmatpush2.msra.mxu0 %v1413
      %4902 = vmatprep.subr.mxu0 0.0
      %4903 = vmatpush2.msra.mxu0 %v1412
      %4904 = vmatprep.subr.mxu0 0.0
      %4905 = vmatpush2.msra.mxu0 %v1411
      %4906 = vmatprep.subr.mxu0 0.0
      %4907 = vmatpush2.msra.mxu0 %v1410
      %4908 = vmatprep.subr.mxu0 0.0
      %4909 = vmatpush2.msra.mxu0 %v1409
      %4910 = vmatprep.mubr.f32.mxu0 %v4842
      %4911 = vmatmul.mubr.f32.gmra.mxu0 %v4841
      %v4912 = vpop.f32.mrf.mxu0
      %v4913 = vadd.f32 0.0, %v4912
      %v4914 = vpop.f32.mrf.mxu0
      %4915 = vdwg.mxu0
      %4916 = vmatprep.subr.mxu0 0.0
      %4917 = vmatpush1.msra.mxu0 %v1440
      %4918 = vmatprep.subr.mxu0 0.0
      %4919 = vmatpush1.msra.mxu0 %v1439
      %4920 = vmatprep.subr.mxu0 0.0
      %4921 = vmatpush1.msra.mxu0 %v1438
      %4922 = vmatprep.subr.mxu0 0.0
      %4923 = vmatpush1.msra.mxu0 %v1437
      %4924 = vmatprep.subr.mxu0 0.0
      %4925 = vmatpush1.msra.mxu0 %v1436
      %4926 = vmatprep.subr.mxu0 0.0
      %4927 = vmatpush1.msra.mxu0 %v1435
      %4928 = vmatprep.subr.mxu0 0.0
      %4929 = vmatpush1.msra.mxu0 %v1434
      %4930 = vmatprep.subr.mxu0 0.0
      %4931 = vmatpush1.msra.mxu0 %v1433
      %4932 = vmatprep.subr.mxu0 0.0
      %4933 = vmatpush1.msra.mxu0 %v1432
      %4934 = vmatprep.subr.mxu0 0.0
      %4935 = vmatpush1.msra.mxu0 %v1431
      %4936 = vmatprep.subr.mxu0 0.0
      %4937 = vmatpush1.msra.mxu0 %v1430
      %4938 = vmatprep.subr.mxu0 0.0
      %4939 = vmatpush1.msra.mxu0 %v1429
      %4940 = vmatprep.subr.mxu0 0.0
      %4941 = vmatpush1.msra.mxu0 %v1428
      %4942 = vmatprep.subr.mxu0 0.0
      %4943 = vmatpush1.msra.mxu0 %v1427
      %4944 = vmatprep.subr.mxu0 0.0
      %4945 = vmatpush1.msra.mxu0 %v1426
      %4946 = vmatprep.subr.mxu0 0.0
      %4947 = vmatpush1.msra.mxu0 %v1425
      %4948 = vmatprep.subr.mxu0 0.0
      %4949 = vmatpush2.msra.mxu0 %v1456
      %4950 = vmatprep.subr.mxu0 0.0
      %4951 = vmatpush2.msra.mxu0 %v1455
      %4952 = vmatprep.subr.mxu0 0.0
      %4953 = vmatpush2.msra.mxu0 %v1454
      %4954 = vmatprep.subr.mxu0 0.0
      %4955 = vmatpush2.msra.mxu0 %v1453
      %4956 = vmatprep.subr.mxu0 0.0
      %4957 = vmatpush2.msra.mxu0 %v1452
      %4958 = vmatprep.subr.mxu0 0.0
      %4959 = vmatpush2.msra.mxu0 %v1451
      %4960 = vmatprep.subr.mxu0 0.0
      %4961 = vmatpush2.msra.mxu0 %v1450
      %4962 = vmatprep.subr.mxu0 0.0
      %4963 = vmatpush2.msra.mxu0 %v1449
      %4964 = vmatprep.subr.mxu0 0.0
      %4965 = vmatpush2.msra.mxu0 %v1448
      %4966 = vmatprep.subr.mxu0 0.0
      %4967 = vmatpush2.msra.mxu0 %v1447
      %4968 = vmatprep.subr.mxu0 0.0
      %4969 = vmatpush2.msra.mxu0 %v1446
      %4970 = vmatprep.subr.mxu0 0.0
      %4971 = vmatpush2.msra.mxu0 %v1445
      %4972 = vmatprep.subr.mxu0 0.0
      %4973 = vmatpush2.msra.mxu0 %v1444
      %4974 = vmatprep.subr.mxu0 0.0
      %4975 = vmatpush2.msra.mxu0 %v1443
      %4976 = vmatprep.subr.mxu0 0.0
      %4977 = vmatpush2.msra.mxu0 %v1442
      %4978 = vmatprep.subr.mxu0 0.0
      %4979 = vmatpush2.msra.mxu0 %v1441
      %4980 = vmatprep.mubr.f32.mxu0 %v4844
      %4981 = vmatmul.mubr.f32.gmra.mxu0 %v4843
      %v4982 = vpop.f32.mrf.mxu0
      %v4983 = vadd.f32 %v4913, %v4982
      %v4984 = vpop.f32.mrf.mxu0
      %4985 = vdwg.mxu0
      %4986 = vmatprep.subr.mxu0 0.0
      %4987 = vmatpush1.msra.mxu0 %v1472
      %4988 = vmatprep.subr.mxu0 0.0
      %4989 = vmatpush1.msra.mxu0 %v1471
      %4990 = vmatprep.subr.mxu0 0.0
      %4991 = vmatpush1.msra.mxu0 %v1470
      %4992 = vmatprep.subr.mxu0 0.0
      %4993 = vmatpush1.msra.mxu0 %v1469
      %4994 = vmatprep.subr.mxu0 0.0
      %4995 = vmatpush1.msra.mxu0 %v1468
      %4996 = vmatprep.subr.mxu0 0.0
      %4997 = vmatpush1.msra.mxu0 %v1467
      %4998 = vmatprep.subr.mxu0 0.0
      %4999 = vmatpush1.msra.mxu0 %v1466
      %5000 = vmatprep.subr.mxu0 0.0
      %5001 = vmatpush1.msra.mxu0 %v1465
      %5002 = vmatprep.subr.mxu0 0.0
      %5003 = vmatpush1.msra.mxu0 %v1464
      %5004 = vmatprep.subr.mxu0 0.0
      %5005 = vmatpush1.msra.mxu0 %v1463
      %5006 = vmatprep.subr.mxu0 0.0
      %5007 = vmatpush1.msra.mxu0 %v1462
      %5008 = vmatprep.subr.mxu0 0.0
      %5009 = vmatpush1.msra.mxu0 %v1461
      %5010 = vmatprep.subr.mxu0 0.0
      %5011 = vmatpush1.msra.mxu0 %v1460
      %5012 = vmatprep.subr.mxu0 0.0
      %5013 = vmatpush1.msra.mxu0 %v1459
      %5014 = vmatprep.subr.mxu0 0.0
      %5015 = vmatpush1.msra.mxu0 %v1458
      %5016 = vmatprep.subr.mxu0 0.0
      %5017 = vmatpush1.msra.mxu0 %v1457
      %5018 = vmatprep.subr.mxu0 0.0
      %5019 = vmatpush2.msra.mxu0 0.0
      %5020 = vmatprep.subr.mxu0 0.0
      %5021 = vmatpush2.msra.mxu0 0.0
      %5022 = vmatprep.subr.mxu0 0.0
      %5023 = vmatpush2.msra.mxu0 0.0
      %5024 = vmatprep.subr.mxu0 0.0
      %5025 = vmatpush2.msra.mxu0 0.0
      %5026 = vmatprep.subr.mxu0 0.0
      %5027 = vmatpush2.msra.mxu0 0.0
      %5028 = vmatprep.subr.mxu0 0.0
      %5029 = vmatpush2.msra.mxu0 0.0
      %5030 = vmatprep.subr.mxu0 0.0
      %5031 = vmatpush2.msra.mxu0 0.0
      %5032 = vmatprep.subr.mxu0 0.0
      %5033 = vmatpush2.msra.mxu0 0.0
      %5034 = vmatprep.subr.mxu0 0.0
      %5035 = vmatpush2.msra.mxu0 0.0
      %5036 = vmatprep.subr.mxu0 0.0
      %5037 = vmatpush2.msra.mxu0 0.0
      %5038 = vmatprep.subr.mxu0 0.0
      %5039 = vmatpush2.msra.mxu0 0.0
      %5040 = vmatprep.subr.mxu0 0.0
      %5041 = vmatpush2.msra.mxu0 0.0
      %5042 = vmatprep.subr.mxu0 0.0
      %5043 = vmatpush2.msra.mxu0 0.0
      %5044 = vmatprep.subr.mxu0 0.0
      %5045 = vmatpush2.msra.mxu0 0.0
      %5046 = vmatprep.subr.mxu0 0.0
      %5047 = vmatpush2.msra.mxu0 0.0
      %5048 = vmatprep.subr.mxu0 0.0
      %5049 = vmatpush2.msra.mxu0 0.0
      %5050 = vmatprep.mubr.f32.mxu0 0.0
      %5051 = vmatmul.mubr.f32.gmra.mxu0 %v4845
      %v5052 = vpop.f32.mrf.mxu0
      %v5053 = vadd.f32 %v4983, %v5052
      %v5054 = vpop.f32.mrf.mxu0
      %5055 = vdwg.mxu0
      %v5056 = vlaneseq
      %v5057 = vshrl.u32 %v5056, 7
      %v5058 = vsub.s32 0, %v5057
      %v5059 = vrot.slane %v5053, %v5058
      %5060 = vmatprep.subr.mxu0 0.0
      %5061 = vmatpush1.msra.mxu0 %v1488
      %5062 = vmatprep.subr.mxu0 0.0
      %5063 = vmatpush1.msra.mxu0 %v1487
      %5064 = vmatprep.subr.mxu0 0.0
      %5065 = vmatpush1.msra.mxu0 %v1486
      %5066 = vmatprep.subr.mxu0 0.0
      %5067 = vmatpush1.msra.mxu0 %v1485
      %5068 = vmatprep.subr.mxu0 0.0
      %5069 = vmatpush1.msra.mxu0 %v1484
      %5070 = vmatprep.subr.mxu0 0.0
      %5071 = vmatpush1.msra.mxu0 %v1483
      %5072 = vmatprep.subr.mxu0 0.0
      %5073 = vmatpush1.msra.mxu0 %v1482
      %5074 = vmatprep.subr.mxu0 0.0
      %5075 = vmatpush1.msra.mxu0 %v1481
      %5076 = vmatprep.subr.mxu0 0.0
      %5077 = vmatpush1.msra.mxu0 %v1480
      %5078 = vmatprep.subr.mxu0 0.0
      %5079 = vmatpush1.msra.mxu0 %v1479
      %5080 = vmatprep.subr.mxu0 0.0
      %5081 = vmatpush1.msra.mxu0 %v1478
      %5082 = vmatprep.subr.mxu0 0.0
      %5083 = vmatpush1.msra.mxu0 %v1477
      %5084 = vmatprep.subr.mxu0 0.0
      %5085 = vmatpush1.msra.mxu0 %v1476
      %5086 = vmatprep.subr.mxu0 0.0
      %5087 = vmatpush1.msra.mxu0 %v1475
      %5088 = vmatprep.subr.mxu0 0.0
      %5089 = vmatpush1.msra.mxu0 %v1474
      %5090 = vmatprep.subr.mxu0 0.0
      %5091 = vmatpush1.msra.mxu0 %v1473
      %5092 = vmatprep.subr.mxu0 0.0
      %5093 = vmatpush2.msra.mxu0 0.0
      %5094 = vmatprep.subr.mxu0 0.0
      %5095 = vmatpush2.msra.mxu0 0.0
      %5096 = vmatprep.subr.mxu0 0.0
      %5097 = vmatpush2.msra.mxu0 0.0
      %5098 = vmatprep.subr.mxu0 0.0
      %5099 = vmatpush2.msra.mxu0 0.0
      %5100 = vmatprep.subr.mxu0 0.0
      %5101 = vmatpush2.msra.mxu0 0.0
      %5102 = vmatprep.subr.mxu0 0.0
      %5103 = vmatpush2.msra.mxu0 0.0
      %5104 = vmatprep.subr.mxu0 0.0
      %5105 = vmatpush2.msra.mxu0 0.0
      %5106 = vmatprep.subr.mxu0 0.0
      %5107 = vmatpush2.msra.mxu0 0.0
      %5108 = vmatprep.subr.mxu0 0.0
      %5109 = vmatpush2.msra.mxu0 0.0
      %5110 = vmatprep.subr.mxu0 0.0
      %5111 = vmatpush2.msra.mxu0 0.0
      %5112 = vmatprep.subr.mxu0 0.0
      %5113 = vmatpush2.msra.mxu0 0.0
      %5114 = vmatprep.subr.mxu0 0.0
      %5115 = vmatpush2.msra.mxu0 0.0
      %5116 = vmatprep.subr.mxu0 0.0
      %5117 = vmatpush2.msra.mxu0 0.0
      %5118 = vmatprep.subr.mxu0 0.0
      %5119 = vmatpush2.msra.mxu0 0.0
      %5120 = vmatprep.subr.mxu0 0.0
      %5121 = vmatpush2.msra.mxu0 0.0
      %5122 = vmatprep.subr.mxu0 0.0
      %5123 = vmatpush2.msra.mxu0 0.0
      %5124 = vmatprep.mubr.f32.mxu0 0.0
      %5125 = vmatmul.mubr.f32.gmra.mxu0 %v1681
      %v5126 = vpop.f32.mrf.mxu0
      %v5127 = vadd.f32 %v5059, %v5126
      %v5128 = vpop.f32.mrf.mxu0
      %5129 = vmatprep.mubr.f32.mxu0 0.0
      %5130 = vmatmul.mubr.f32.gmra.mxu0 %v1682
      %v5131 = vpop.f32.mrf.mxu0
      %v5132 = vadd.f32 %v5059, %v5131
      %v5133 = vpop.f32.mrf.mxu0
      %5134 = vdwg.mxu0
      %v5136 = vlaneseq
      %v5137 = vshrl.u32 %v5136, 7
      %v5138 = vsub.s32 0, %v5137
      %v5139 = vrot.slane %v1489, %v5138
      %v5141 = vadd.f32 %v5127, %v5139
      %v5142 = vadd.f32 %v5132, %v5139
      %v5143 = vmax.f32 %v5141, 0.0
      %v5144 = vmax.f32 %v5142, 0.0
      %v5146 = vlaneseq
      %v5147 = vshrl.u32 %v5146, 7
      %v5148 = vsub.s32 0, %v5147
      %v5149 = vrot.slane %v1506, %v5148
      %5151 = vmatprep.subr.mxu0 0.0
      %5152 = vmatpush1.msra.mxu0 %v1505
      %5153 = vmatprep.subr.mxu0 0.0
      %5154 = vmatpush1.msra.mxu0 %v1504
      %5155 = vmatprep.subr.mxu0 0.0
      %5156 = vmatpush1.msra.mxu0 %v1503
      %5157 = vmatprep.subr.mxu0 0.0
      %5158 = vmatpush1.msra.mxu0 %v1502
      %5159 = vmatprep.subr.mxu0 0.0
      %5160 = vmatpush1.msra.mxu0 %v1501
      %5161 = vmatprep.subr.mxu0 0.0
      %5162 = vmatpush1.msra.mxu0 %v1500
      %5163 = vmatprep.subr.mxu0 0.0
      %5164 = vmatpush1.msra.mxu0 %v1499
      %5165 = vmatprep.subr.mxu0 0.0
      %5166 = vmatpush1.msra.mxu0 %v1498
      %5167 = vmatprep.subr.mxu0 0.0
      %5168 = vmatpush1.msra.mxu0 %v1497
      %5169 = vmatprep.subr.mxu0 0.0
      %5170 = vmatpush1.msra.mxu0 %v1496
      %5171 = vmatprep.subr.mxu0 0.0
      %5172 = vmatpush1.msra.mxu0 %v1495
      %5173 = vmatprep.subr.mxu0 0.0
      %5174 = vmatpush1.msra.mxu0 %v1494
      %5175 = vmatprep.subr.mxu0 0.0
      %5176 = vmatpush1.msra.mxu0 %v1493
      %5177 = vmatprep.subr.mxu0 0.0
      %5178 = vmatpush1.msra.mxu0 %v1492
      %5179 = vmatprep.subr.mxu0 0.0
      %5180 = vmatpush1.msra.mxu0 %v1491
      %5181 = vmatprep.subr.mxu0 0.0
      %5182 = vmatpush1.msra.mxu0 %v1490
      %5183 = vmatprep.subr.mxu0 0.0
      %5184 = vmatpush2.msra.mxu0 0.0
      %5185 = vmatprep.subr.mxu0 0.0
      %5186 = vmatpush2.msra.mxu0 0.0
      %5187 = vmatprep.subr.mxu0 0.0
      %5188 = vmatpush2.msra.mxu0 0.0
      %5189 = vmatprep.subr.mxu0 0.0
      %5190 = vmatpush2.msra.mxu0 0.0
      %5191 = vmatprep.subr.mxu0 0.0
      %5192 = vmatpush2.msra.mxu0 0.0
      %5193 = vmatprep.subr.mxu0 0.0
      %5194 = vmatpush2.msra.mxu0 0.0
      %5195 = vmatprep.subr.mxu0 0.0
      %5196 = vmatpush2.msra.mxu0 0.0
      %5197 = vmatprep.subr.mxu0 0.0
      %5198 = vmatpush2.msra.mxu0 0.0
      %5199 = vmatprep.subr.mxu0 0.0
      %5200 = vmatpush2.msra.mxu0 0.0
      %5201 = vmatprep.subr.mxu0 0.0
      %5202 = vmatpush2.msra.mxu0 0.0
      %5203 = vmatprep.subr.mxu0 0.0
      %5204 = vmatpush2.msra.mxu0 0.0
      %5205 = vmatprep.subr.mxu0 0.0
      %5206 = vmatpush2.msra.mxu0 0.0
      %5207 = vmatprep.subr.mxu0 0.0
      %5208 = vmatpush2.msra.mxu0 0.0
      %5209 = vmatprep.subr.mxu0 0.0
      %5210 = vmatpush2.msra.mxu0 0.0
      %5211 = vmatprep.subr.mxu0 0.0
      %5212 = vmatpush2.msra.mxu0 0.0
      %5213 = vmatprep.subr.mxu0 0.0
      %5214 = vmatpush2.msra.mxu0 0.0
      %5215 = vmatprep.mubr.f32.mxu0 0.0
      %5216 = vmatmul.mubr.f32.gmra.mxu0 %v5143
      %v5217 = vpop.f32.mrf.mxu0
      %v5218 = vadd.f32 %v5149, %v5217
      %v5219 = vpop.f32.mrf.mxu0
      %5220 = vmatprep.mubr.f32.mxu0 0.0
      %5221 = vmatmul.mubr.f32.gmra.mxu0 %v5144
      %v5222 = vpop.f32.mrf.mxu0
      %v5223 = vadd.f32 %v5149, %v5222
      %v5224 = vpop.f32.mrf.mxu0
      %5225 = vdwg.mxu0
      %5228 = vrot.lane.b32.xlu0 %v5218, 127
      %v5229 = vpop.permute.xlu0 %5228
      %5230 = vrot.lane.b32.xlu0 %v5223, 127
      %v5231 = vpop.permute.xlu0 %5230
      %v5235 = vsel %vm1599, %v1388, 0
      %v5238 = vsel %vm1599, %v1389, 0
      %v5241 = vsel %vm1599, %v1390, 0
      %v5244 = vsel %vm1599, %v1391, 0
      %5246 = vmatprep.subr.mxu0 0.0
      %5247 = vmatpush1.msra.mxu0 0.0
      %5248 = vmatprep.subr.mxu0 0.0
      %5249 = vmatpush1.msra.mxu0 0.0
      %5250 = vmatprep.subr.mxu0 0.0
      %5251 = vmatpush1.msra.mxu0 0.0
      %5252 = vmatprep.subr.mxu0 0.0
      %5253 = vmatpush1.msra.mxu0 0.0
      %5254 = vmatprep.subr.mxu0 0.0
      %5255 = vmatpush1.msra.mxu0 0.0
      %5256 = vmatprep.subr.mxu0 0.0
      %5257 = vmatpush1.msra.mxu0 0.0
      %5258 = vmatprep.subr.mxu0 0.0
      %5259 = vmatpush1.msra.mxu0 0.0
      %5260 = vmatprep.subr.mxu0 0.0
      %5261 = vmatpush1.msra.mxu0 0.0
      %5262 = vmatprep.subr.mxu0 0.0
      %5263 = vmatpush1.msra.mxu0 0.0
      %5264 = vmatprep.subr.mxu0 0.0
      %5265 = vmatpush1.msra.mxu0 0.0
      %5266 = vmatprep.subr.mxu0 0.0
      %5267 = vmatpush1.msra.mxu0 0.0
      %5268 = vmatprep.subr.mxu0 0.0
      %5269 = vmatpush1.msra.mxu0 0.0
      %5270 = vmatprep.subr.mxu0 0.0
      %5271 = vmatpush1.msra.mxu0 0.0
      %5272 = vmatprep.subr.mxu0 0.0
      %5273 = vmatpush1.msra.mxu0 0.0
      %5274 = vmatprep.subr.mxu0 0.0
      %5275 = vmatpush1.msra.mxu0 %v5231
      %5276 = vmatprep.subr.mxu0 0.0
      %5277 = vmatpush1.msra.mxu0 %v5229
      %5278 = vmatprep.subr.mxu0 0.0
      %5279 = vmatpush2.msra.mxu0 0.0
      %5280 = vmatprep.subr.mxu0 0.0
      %5281 = vmatpush2.msra.mxu0 0.0
      %5282 = vmatprep.subr.mxu0 0.0
      %5283 = vmatpush2.msra.mxu0 0.0
      %5284 = vmatprep.subr.mxu0 0.0
      %5285 = vmatpush2.msra.mxu0 0.0
      %5286 = vmatprep.subr.mxu0 0.0
      %5287 = vmatpush2.msra.mxu0 0.0
      %5288 = vmatprep.subr.mxu0 0.0
      %5289 = vmatpush2.msra.mxu0 0.0
      %5290 = vmatprep.subr.mxu0 0.0
      %5291 = vmatpush2.msra.mxu0 0.0
      %5292 = vmatprep.subr.mxu0 0.0
      %5293 = vmatpush2.msra.mxu0 0.0
      %5294 = vmatprep.subr.mxu0 0.0
      %5295 = vmatpush2.msra.mxu0 0.0
      %5296 = vmatprep.subr.mxu0 0.0
      %5297 = vmatpush2.msra.mxu0 0.0
      %5298 = vmatprep.subr.mxu0 0.0
      %5299 = vmatpush2.msra.mxu0 0.0
      %5300 = vmatprep.subr.mxu0 0.0
      %5301 = vmatpush2.msra.mxu0 0.0
      %5302 = vmatprep.subr.mxu0 0.0
      %5303 = vmatpush2.msra.mxu0 0.0
      %5304 = vmatprep.subr.mxu0 0.0
      %5305 = vmatpush2.msra.mxu0 0.0
      %5306 = vmatprep.subr.mxu0 0.0
      %5307 = vmatpush2.msra.mxu0 0.0
      %5308 = vmatprep.subr.mxu0 0.0
      %5309 = vmatpush2.msra.mxu0 0.0
      %5310 = vmatprep.mubr.f32.mxu0 0.0
      %5311 = vmatmul.mubr.f32.gmra.mxu0 %v5235
      %v5312 = vpop.f32.mrf.mxu0
      %v5313 = vadd.f32 0.0, %v5312
      %v5314 = vpop.f32.mrf.mxu0
      %5315 = vmatprep.mubr.f32.mxu0 0.0
      %5316 = vmatmul.mubr.f32.gmra.mxu0 %v5238
      %v5317 = vpop.f32.mrf.mxu0
      %v5318 = vadd.f32 0.0, %v5317
      %v5319 = vpop.f32.mrf.mxu0
      %5320 = vmatprep.mubr.f32.mxu0 0.0
      %5321 = vmatmul.mubr.f32.gmra.mxu0 %v5241
      %v5322 = vpop.f32.mrf.mxu0
      %v5323 = vadd.f32 0.0, %v5322
      %v5324 = vpop.f32.mrf.mxu0
      %5325 = vmatprep.mubr.f32.mxu0 0.0
      %5326 = vmatmul.mubr.f32.gmra.mxu0 %v5244
      %v5327 = vpop.f32.mrf.mxu0
      %v5328 = vadd.f32 0.0, %v5327
      %v5329 = vpop.f32.mrf.mxu0
      %5330 = vdwg.mxu0
      %v5332 = vsel %vm1599, %v1384, 0
      %v5335 = vsel %vm1599, %v1385, 0
      %v5338 = vsel %vm1599, %v1386, 0
      %v5341 = vsel %vm1599, %v1387, 0
      %5343 = vmatprep.subr.mxu0 0.0
      %5344 = vmatpush1.msra.mxu0 0.0
      %5345 = vmatprep.subr.mxu0 0.0
      %5346 = vmatpush1.msra.mxu0 0.0
      %5347 = vmatprep.subr.mxu0 0.0
      %5348 = vmatpush1.msra.mxu0 0.0
      %5349 = vmatprep.subr.mxu0 0.0
      %5350 = vmatpush1.msra.mxu0 0.0
      %5351 = vmatprep.subr.mxu0 0.0
      %5352 = vmatpush1.msra.mxu0 0.0
      %5353 = vmatprep.subr.mxu0 0.0
      %5354 = vmatpush1.msra.mxu0 0.0
      %5355 = vmatprep.subr.mxu0 0.0
      %5356 = vmatpush1.msra.mxu0 0.0
      %5357 = vmatprep.subr.mxu0 0.0
      %5358 = vmatpush1.msra.mxu0 0.0
      %5359 = vmatprep.subr.mxu0 0.0
      %5360 = vmatpush1.msra.mxu0 0.0
      %5361 = vmatprep.subr.mxu0 0.0
      %5362 = vmatpush1.msra.mxu0 0.0
      %5363 = vmatprep.subr.mxu0 0.0
      %5364 = vmatpush1.msra.mxu0 0.0
      %5365 = vmatprep.subr.mxu0 0.0
      %5366 = vmatpush1.msra.mxu0 0.0
      %5367 = vmatprep.subr.mxu0 0.0
      %5368 = vmatpush1.msra.mxu0 0.0
      %5369 = vmatprep.subr.mxu0 0.0
      %5370 = vmatpush1.msra.mxu0 0.0
      %5371 = vmatprep.subr.mxu0 0.0
      %5372 = vmatpush1.msra.mxu0 %v5223
      %5373 = vmatprep.subr.mxu0 0.0
      %5374 = vmatpush1.msra.mxu0 %v5218
      %5375 = vmatprep.subr.mxu0 0.0
      %5376 = vmatpush2.msra.mxu0 0.0
      %5377 = vmatprep.subr.mxu0 0.0
      %5378 = vmatpush2.msra.mxu0 0.0
      %5379 = vmatprep.subr.mxu0 0.0
      %5380 = vmatpush2.msra.mxu0 0.0
      %5381 = vmatprep.subr.mxu0 0.0
      %5382 = vmatpush2.msra.mxu0 0.0
      %5383 = vmatprep.subr.mxu0 0.0
      %5384 = vmatpush2.msra.mxu0 0.0
      %5385 = vmatprep.subr.mxu0 0.0
      %5386 = vmatpush2.msra.mxu0 0.0
      %5387 = vmatprep.subr.mxu0 0.0
      %5388 = vmatpush2.msra.mxu0 0.0
      %5389 = vmatprep.subr.mxu0 0.0
      %5390 = vmatpush2.msra.mxu0 0.0
      %5391 = vmatprep.subr.mxu0 0.0
      %5392 = vmatpush2.msra.mxu0 0.0
      %5393 = vmatprep.subr.mxu0 0.0
      %5394 = vmatpush2.msra.mxu0 0.0
      %5395 = vmatprep.subr.mxu0 0.0
      %5396 = vmatpush2.msra.mxu0 0.0
      %5397 = vmatprep.subr.mxu0 0.0
      %5398 = vmatpush2.msra.mxu0 0.0
      %5399 = vmatprep.subr.mxu0 0.0
      %5400 = vmatpush2.msra.mxu0 0.0
      %5401 = vmatprep.subr.mxu0 0.0
      %5402 = vmatpush2.msra.mxu0 0.0
      %5403 = vmatprep.subr.mxu0 0.0
      %5404 = vmatpush2.msra.mxu0 0.0
      %5405 = vmatprep.subr.mxu0 0.0
      %5406 = vmatpush2.msra.mxu0 0.0
      %5407 = vmatprep.mubr.f32.mxu0 0.0
      %5408 = vmatmul.mubr.f32.gmra.mxu0 %v5332
      %v5409 = vpop.f32.mrf.mxu0
      %v5410 = vadd.f32 %v5313, %v5409
      %v5411 = vpop.f32.mrf.mxu0
      %5412 = vmatprep.mubr.f32.mxu0 0.0
      %5413 = vmatmul.mubr.f32.gmra.mxu0 %v5335
      %v5414 = vpop.f32.mrf.mxu0
      %v5415 = vadd.f32 %v5318, %v5414
      %v5416 = vpop.f32.mrf.mxu0
      %5417 = vmatprep.mubr.f32.mxu0 0.0
      %5418 = vmatmul.mubr.f32.gmra.mxu0 %v5338
      %v5419 = vpop.f32.mrf.mxu0
      %v5420 = vadd.f32 %v5323, %v5419
      %v5421 = vpop.f32.mrf.mxu0
      %5422 = vmatprep.mubr.f32.mxu0 0.0
      %5423 = vmatmul.mubr.f32.gmra.mxu0 %v5341
      %v5424 = vpop.f32.mrf.mxu0
      %v5425 = vadd.f32 %v5328, %v5424
      %v5426 = vpop.f32.mrf.mxu0
      %5427 = vdwg.mxu0
      %vm5428 = vcmp.gt.f32.partialorder %v1388, 0.0
      %vm5429 = vcmp.gt.f32.partialorder %v1389, 0.0
      %vm5430 = vcmp.gt.f32.partialorder %v1390, 0.0
      %vm5431 = vcmp.gt.f32.partialorder %v1391, 0.0
      %5433 = vset.pattern.permute.xlu0 0
      %5434 = vperm.xlu0 %5433, %v5410
      %v5435 = vpop.permute.xlu0 %5434
      %5438 = vset.pattern.permute.xlu0 0
      %5439 = vperm.xlu0 %5438, %v5415
      %v5440 = vpop.permute.xlu0 %5439
      %5443 = vset.pattern.permute.xlu0 0
      %5444 = vperm.xlu0 %5443, %v5420
      %v5445 = vpop.permute.xlu0 %5444
      %5448 = vset.pattern.permute.xlu0 0
      %5449 = vperm.xlu0 %5448, %v5425
      %v5450 = vpop.permute.xlu0 %5449
      %v5452 = vsel %vm5428, %v5435, -1e+30
      %v5453 = vsel %vm5429, %v5440, -1e+30
      %v5454 = vsel %vm5430, %v5445, -1e+30
      %v5455 = vsel %vm5431, %v5450, -1e+30
      %v5456 = vsel %vm1599, %v5452, -inf
      %v5457 = vsel %vm1599, %v5453, -inf
      %v5458 = vsel %vm1599, %v5454, -inf
      %vm5459 = vcmask 128000
      %v5460 = vsel %vm5459, %v5455, -inf
      %v5461 = vmax.f32 %v5456, %v5457
      %v5462 = vmax.f32 %v5458, %v5460
      %v5463 = vmax.f32 %v5461, %v5462
      %v5464 = vrot.slane %v5463, 4
      %v5465 = vmax.f32 %v5463, %v5464
      %v5466 = vrot.slane %v5465, 2
      %v5467 = vmax.f32 %v5465, %v5466
      %v5468 = vrot.slane %v5467, 1
      %v5469 = vmax.f32 %v5467, %v5468
      %v5470 = vmul.f32 %v1388, %v5469
      %v5471 = vmul.f32 %v1389, %v5469
      %v5472 = vmul.f32 %v1390, %v5469
      %v5473 = vmul.f32 %v1391, %v5469
      %v5474 = vsel %vm1599, %v5470, 0.0
      %5475 = vadd.xlane.f32.xlu0 %v5474
      %v5476 = vpop.xlane.xlu0 %5475
      %v5477 = vsel %vm1599, %v5471, 0.0
      %5478 = vadd.xlane.f32.xlu0 %v5477
      %v5479 = vpop.xlane.xlu0 %5478
      %v5480 = vsel %vm1599, %v5472, 0.0
      %5481 = vadd.xlane.f32.xlu0 %v5480
      %v5482 = vpop.xlane.xlu0 %5481
      %v5483 = vsel %vm5459, %v5473, 0.0
      %5484 = vadd.xlane.f32.xlu0 %v5483
      %v5485 = vpop.xlane.xlu0 %5484
      %v5486 = vsub.f32 %v5410, %v5476
      %v5487 = vsub.f32 %v5415, %v5479
      %v5488 = vsub.f32 %v5420, %v5482
      %v5489 = vsub.f32 %v5425, %v5485
      %v5490 = vmul.f32 %v5486, 1.442695
      %v5491 = vpow.pop %v5490
      %v5492 = vmul.f32 %v5487, 1.442695
      %v5493 = vpow.pop %v5492
      %v5494 = vmul.f32 %v5488, 1.442695
      %v5495 = vpow.pop %v5494
      %v5496 = vmul.f32 %v5489, 1.442695
      %v5497 = vpow.pop %v5496
      %5499 = vset.pattern.permute.xlu0 0
      %5500 = vperm.xlu0 %5499, %v5491
      %v5501 = vpop.permute.xlu0 %5500
      %5504 = vset.pattern.permute.xlu0 0
      %5505 = vperm.xlu0 %5504, %v5493
      %v5506 = vpop.permute.xlu0 %5505
      %5509 = vset.pattern.permute.xlu0 0
      %5510 = vperm.xlu0 %5509, %v5495
      %v5511 = vpop.permute.xlu0 %5510
      %5514 = vset.pattern.permute.xlu0 0
      %5515 = vperm.xlu0 %5514, %v5497
      %v5516 = vpop.permute.xlu0 %5515
      %v5518 = vmul.f32 %v1388, %v5501
      %v5519 = vmul.f32 %v1389, %v5506
      %v5520 = vmul.f32 %v1390, %v5511
      %v5521 = vmul.f32 %v1391, %v5516
      %v5522 = vsel %vm1599, %v5518, 0.0
      %v5523 = vsel %vm1599, %v5519, 0.0
      %v5524 = vadd.f32 %v5522, %v5523
      %v5525 = vsel %vm1599, %v5520, 0.0
      %v5526 = vadd.f32 %v5524, %v5525
      %v5527 = vsel %vm5459, %v5521, 0.0
      %v5528 = vadd.f32 %v5526, %v5527
      %v5529 = vrot.slane %v5528, 4
      %v5530 = vadd.f32 %v5528, %v5529
      %v5531 = vrot.slane %v5530, 2
      %v5532 = vadd.f32 %v5530, %v5531
      %v5533 = vrot.slane %v5532, 1
      %v5534 = vadd.f32 %v5532, %v5533
      %v5535 = vmul.f32 %v1388, %v5534
      %v5536 = vmul.f32 %v1389, %v5534
      %v5537 = vmul.f32 %v1390, %v5534
      %v5538 = vmul.f32 %v1391, %v5534
      %v5539 = vsel %vm1599, %v5535, 0.0
      %5540 = vadd.xlane.f32.xlu0 %v5539
      %v5541 = vpop.xlane.xlu0 %5540
      %v5542 = vsel %vm1599, %v5536, 0.0
      %5543 = vadd.xlane.f32.xlu0 %v5542
      %v5544 = vpop.xlane.xlu0 %5543
      %v5545 = vsel %vm1599, %v5537, 0.0
      %5546 = vadd.xlane.f32.xlu0 %v5545
      %v5547 = vpop.xlane.xlu0 %5546
      %v5548 = vsel %vm5459, %v5538, 0.0
      %5549 = vadd.xlane.f32.xlu0 %v5548
      %v5550 = vpop.xlane.xlu0 %5549
      %v5551 = vmax.f32 %v5541, 1e-12
      %v5552 = vmax.f32 %v5544, 1e-12
      %v5553 = vmax.f32 %v5547, 1e-12
      %v5554 = vmax.f32 %v5550, 1e-12
      %v5555 = vrcp.pop %v5551
      %v5556 = vrcp.pop %v5552
      %v5557 = vrcp.pop %v5553
      %v5558 = vrcp.pop %v5554
      %v5559 = vmul.f32 %v5491, %v5555
      %v5560 = vmul.f32 %v5493, %v5556
      %v5561 = vmul.f32 %v5495, %v5557
      %v5562 = vmul.f32 %v5497, %v5558
      %v5563 = vadd.f32 %v5559, 0.5
      %v5564 = vadd.f32 %v5560, 0.5
      %v5565 = vadd.f32 %v5561, 0.5
      %v5566 = vadd.f32 %v5562, 0.5
      %vm5567 = vcmask 244736
      %v5568 = vsel %vm5567, %v1392, 0.0
      %5569 = vadd.xlane.f32.xlu0 %v5568
      %v5570 = vpop.xlane.xlu0 %5569
      %v5572 = vsel %vm5567, %v1392, 0
      %vm5574 = vcmask 1045504
      %v5576 = vsel %vm5574, %v5566, 0
      %5578 = vmatprep.subr.mxu0 0.0
      %5579 = vmatpush1.msra.mxu0 0.0
      %5580 = vmatprep.subr.mxu0 0.0
      %5581 = vmatpush1.msra.mxu0 0.0
      %5582 = vmatprep.subr.mxu0 0.0
      %5583 = vmatpush1.msra.mxu0 0.0
      %5584 = vmatprep.subr.mxu0 0.0
      %5585 = vmatpush1.msra.mxu0 0.0
      %5586 = vmatprep.subr.mxu0 0.0
      %5587 = vmatpush1.msra.mxu0 0.0
      %5588 = vmatprep.subr.mxu0 0.0
      %5589 = vmatpush1.msra.mxu0 0.0
      %5590 = vmatprep.subr.mxu0 0.0
      %5591 = vmatpush1.msra.mxu0 0.0
      %5592 = vmatprep.subr.mxu0 0.0
      %5593 = vmatpush1.msra.mxu0 0.0
      %5594 = vmatprep.subr.mxu0 0.0
      %5595 = vmatpush1.msra.mxu0 0.0
      %5596 = vmatprep.subr.mxu0 0.0
      %5597 = vmatpush1.msra.mxu0 0.0
      %5598 = vmatprep.subr.mxu0 0.0
      %5599 = vmatpush1.msra.mxu0 0.0
      %5600 = vmatprep.subr.mxu0 0.0
      %5601 = vmatpush1.msra.mxu0 0.0
      %5602 = vmatprep.subr.mxu0 0.0
      %5603 = vmatpush1.msra.mxu0 %v5576
      %5604 = vmatprep.subr.mxu0 0.0
      %5605 = vmatpush1.msra.mxu0 %v5565
      %5606 = vmatprep.subr.mxu0 0.0
      %5607 = vmatpush1.msra.mxu0 %v5564
      %5608 = vmatprep.subr.mxu0 0.0
      %5609 = vmatpush1.msra.mxu0 %v5563
      %5610 = vmatprep.subr.mxu0 0.0
      %5611 = vmatpush2.msra.mxu0 0.0
      %5612 = vmatprep.subr.mxu0 0.0
      %5613 = vmatpush2.msra.mxu0 0.0
      %5614 = vmatprep.subr.mxu0 0.0
      %5615 = vmatpush2.msra.mxu0 0.0
      %5616 = vmatprep.subr.mxu0 0.0
      %5617 = vmatpush2.msra.mxu0 0.0
      %5618 = vmatprep.subr.mxu0 0.0
      %5619 = vmatpush2.msra.mxu0 0.0
      %5620 = vmatprep.subr.mxu0 0.0
      %5621 = vmatpush2.msra.mxu0 0.0
      %5622 = vmatprep.subr.mxu0 0.0
      %5623 = vmatpush2.msra.mxu0 0.0
      %5624 = vmatprep.subr.mxu0 0.0
      %5625 = vmatpush2.msra.mxu0 0.0
      %5626 = vmatprep.subr.mxu0 0.0
      %5627 = vmatpush2.msra.mxu0 0.0
      %5628 = vmatprep.subr.mxu0 0.0
      %5629 = vmatpush2.msra.mxu0 0.0
      %5630 = vmatprep.subr.mxu0 0.0
      %5631 = vmatpush2.msra.mxu0 0.0
      %5632 = vmatprep.subr.mxu0 0.0
      %5633 = vmatpush2.msra.mxu0 0.0
      %5634 = vmatprep.subr.mxu0 0.0
      %5635 = vmatpush2.msra.mxu0 0.0
      %5636 = vmatprep.subr.mxu0 0.0
      %5637 = vmatpush2.msra.mxu0 0.0
      %5638 = vmatprep.subr.mxu0 0.0
      %5639 = vmatpush2.msra.mxu0 0.0
      %5640 = vmatprep.subr.mxu0 0.0
      %5641 = vmatpush2.msra.mxu0 0.0
      %5642 = vmatprep.mubr.f32.mxu0 0.0
      %5643 = vmatmul.mubr.f32.gmra.mxu0 %v5572
      %v5644 = vpop.f32.mrf.mxu0
      %v5645 = vadd.f32 0.0, %v5644
      %v5646 = vpop.f32.mrf.mxu0
      %5647 = vdwg.mxu0
      %vm5648 = vcmp.gt.f32.partialorder %v5570, 0.0
      %v5649 = vmax.f32 %v5570, 1.0
      %v5650 = vrcp.pop %v5649
      %v5651 = vmul.f32 %v5645, %v5650
      %v5652 = vsel %vm5648, %v5651, 0.5
      %v5653 = vlaneseq
      %v5654 = vshrl.u32 %v5653, 7
      %v5655 = vmul.u32 %v5654, 2
      %vm5656 = vcmp.eq.s32.totalorder %v3950, %v5655
      %v5657 = vsel %vm5656, 1, 0
      %v5658 = vcvt.s32.f32 %v5657
      %v5659 = vadd.s32 %v5655, 1
      %vm5660 = vcmp.eq.s32.totalorder %v3950, %v5659
      %v5661 = vsel %vm5660, 1, 0
      %v5662 = vcvt.s32.f32 %v5661
      %v5663 = vadd.f32 %v5658, %v5662
      %v5665 = vsel %vm1599, %v5663, 0
      %5667 = vmatprep.subr.mxu0 0.0
      %5668 = vmatpush1.msra.mxu0 0.0
      %5669 = vmatprep.subr.mxu0 0.0
      %5670 = vmatpush1.msra.mxu0 0.0
      %5671 = vmatprep.subr.mxu0 0.0
      %5672 = vmatpush1.msra.mxu0 0.0
      %5673 = vmatprep.subr.mxu0 0.0
      %5674 = vmatpush1.msra.mxu0 0.0
      %5675 = vmatprep.subr.mxu0 0.0
      %5676 = vmatpush1.msra.mxu0 0.0
      %5677 = vmatprep.subr.mxu0 0.0
      %5678 = vmatpush1.msra.mxu0 0.0
      %5679 = vmatprep.subr.mxu0 0.0
      %5680 = vmatpush1.msra.mxu0 0.0
      %5681 = vmatprep.subr.mxu0 0.0
      %5682 = vmatpush1.msra.mxu0 0.0
      %5683 = vmatprep.subr.mxu0 0.0
      %5684 = vmatpush1.msra.mxu0 0.0
      %5685 = vmatprep.subr.mxu0 0.0
      %5686 = vmatpush1.msra.mxu0 0.0
      %5687 = vmatprep.subr.mxu0 0.0
      %5688 = vmatpush1.msra.mxu0 0.0
      %5689 = vmatprep.subr.mxu0 0.0
      %5690 = vmatpush1.msra.mxu0 0.0
      %5691 = vmatprep.subr.mxu0 0.0
      %5692 = vmatpush1.msra.mxu0 0.0
      %5693 = vmatprep.subr.mxu0 0.0
      %5694 = vmatpush1.msra.mxu0 0.0
      %5695 = vmatprep.subr.mxu0 0.0
      %5696 = vmatpush1.msra.mxu0 %v5144
      %5697 = vmatprep.subr.mxu0 0.0
      %5698 = vmatpush1.msra.mxu0 %v5143
      %5699 = vmatprep.subr.mxu0 0.0
      %5700 = vmatpush2.msra.mxu0 0.0
      %5701 = vmatprep.subr.mxu0 0.0
      %5702 = vmatpush2.msra.mxu0 0.0
      %5703 = vmatprep.subr.mxu0 0.0
      %5704 = vmatpush2.msra.mxu0 0.0
      %5705 = vmatprep.subr.mxu0 0.0
      %5706 = vmatpush2.msra.mxu0 0.0
      %5707 = vmatprep.subr.mxu0 0.0
      %5708 = vmatpush2.msra.mxu0 0.0
      %5709 = vmatprep.subr.mxu0 0.0
      %5710 = vmatpush2.msra.mxu0 0.0
      %5711 = vmatprep.subr.mxu0 0.0
      %5712 = vmatpush2.msra.mxu0 0.0
      %5713 = vmatprep.subr.mxu0 0.0
      %5714 = vmatpush2.msra.mxu0 0.0
      %5715 = vmatprep.subr.mxu0 0.0
      %5716 = vmatpush2.msra.mxu0 0.0
      %5717 = vmatprep.subr.mxu0 0.0
      %5718 = vmatpush2.msra.mxu0 0.0
      %5719 = vmatprep.subr.mxu0 0.0
      %5720 = vmatpush2.msra.mxu0 0.0
      %5721 = vmatprep.subr.mxu0 0.0
      %5722 = vmatpush2.msra.mxu0 0.0
      %5723 = vmatprep.subr.mxu0 0.0
      %5724 = vmatpush2.msra.mxu0 0.0
      %5725 = vmatprep.subr.mxu0 0.0
      %5726 = vmatpush2.msra.mxu0 0.0
      %5727 = vmatprep.subr.mxu0 0.0
      %5728 = vmatpush2.msra.mxu0 0.0
      %5729 = vmatprep.subr.mxu0 0.0
      %5730 = vmatpush2.msra.mxu0 0.0
      %5731 = vmatprep.mubr.f32.mxu0 0.0
      %5732 = vmatmul.mubr.f32.gmra.mxu0 %v5665
      %v5733 = vpop.f32.mrf.mxu0
      %v5734 = vadd.f32 0.0, %v5733
      %v5735 = vpop.f32.mrf.mxu0
      %5736 = vdwg.mxu0
      %5738 = vset.pattern.permute.xlu0 0
      %5739 = vperm.xlu0 %5738, %v5652
      %v5740 = vpop.permute.xlu0 %5739
      %v5742 = vmul.f32 %v5734, %v5740
      %v5743 = vld [vmem:[%s1228] sm:$0xff]
      %v5744 = vld [vmem:[%s1192] sm:$0xff]
      %v5745 = vld [vmem:[%s1192 + $0x8] sm:$0xff]
      %v5746 = vld [vmem:[%s1192 + $0x10] sm:$0xff]
      %v5747 = vld [vmem:[%s1192 + $0x18] sm:$0xff]
      %v5748 = vld [vmem:[%s1192 + $0x20] sm:$0xff]
      %v5749 = vld [vmem:[%s1192 + $0x28] sm:$0xff]
      %v5750 = vld [vmem:[%s1192 + $0x30] sm:$0xff]
      %v5751 = vld [vmem:[%s1192 + $0x38] sm:$0xff]
      %v5752 = vld [vmem:[%s1192 + $0x40] sm:$0xff]
      %v5753 = vld [vmem:[%s1192 + $0x48] sm:$0xff]
      %v5754 = vld [vmem:[%s1192 + $0x50] sm:$0xff]
      %v5755 = vld [vmem:[%s1192 + $0x58] sm:$0xff]
      %v5756 = vld [vmem:[%s1192 + $0x60] sm:$0xff]
      %v5757 = vld [vmem:[%s1192 + $0x68] sm:$0xff]
      %v5758 = vld [vmem:[%s1192 + $0x70] sm:$0xff]
      %v5759 = vld [vmem:[%s1192 + $0x78] sm:$0xff]
      %v5760 = vld [vmem:[%s1192 + $0x80] sm:$0xff]
      %v5761 = vld [vmem:[%s1192 + $0x88] sm:$0xff]
      %v5762 = vld [vmem:[%s1192 + $0x90] sm:$0xff]
      %v5763 = vld [vmem:[%s1192 + $0x98] sm:$0xff]
      %v5764 = vld [vmem:[%s1192 + $0xa0] sm:$0xff]
      %v5765 = vld [vmem:[%s1192 + $0xa8] sm:$0xff]
      %v5766 = vld [vmem:[%s1192 + $0xb0] sm:$0xff]
      %v5767 = vld [vmem:[%s1192 + $0xb8] sm:$0xff]
      %v5768 = vld [vmem:[%s1192 + $0xc0] sm:$0xff]
      %v5769 = vld [vmem:[%s1192 + $0xc8] sm:$0xff]
      %v5770 = vld [vmem:[%s1192 + $0xd0] sm:$0xff]
      %v5771 = vld [vmem:[%s1192 + $0xd8] sm:$0xff]
      %v5772 = vld [vmem:[%s1192 + $0xe0] sm:$0xff]
      %v5773 = vld [vmem:[%s1192 + $0xe8] sm:$0xff]
      %v5774 = vld [vmem:[%s1192 + $0xf0] sm:$0xff]
      %v5775 = vld [vmem:[%s1192 + $0xf8] sm:$0xff]
      %v5776 = vld [vmem:[%s1196] sm:$0x1f]
      %v5777 = vld [vmem:[%s19] sm:$0xff]
      %v5778 = vld [vmem:[%s19 + $0x8] sm:$0xff]
      %v5779 = vld [vmem:[%s19 + $0x10] sm:$0xff]
      %v5780 = vld [vmem:[%s19 + $0x18] sm:$0xff]
      %v5781 = vld [vmem:[%s19 + $0x20] sm:$0xff]
      %v5782 = vld [vmem:[%s19 + $0x28] sm:$0xff]
      %v5783 = vld [vmem:[%s19 + $0x30] sm:$0xff]
      %v5784 = vld [vmem:[%s19 + $0x38] sm:$0xff]
      %v5785 = vld [vmem:[%s19 + $0x40] sm:$0xff]
      %v5786 = vld [vmem:[%s19 + $0x48] sm:$0xff]
      %v5787 = vld [vmem:[%s19 + $0x50] sm:$0xff]
      %v5788 = vld [vmem:[%s19 + $0x58] sm:$0xff]
      %v5789 = vld [vmem:[%s19 + $0x60] sm:$0xff]
      %v5790 = vld [vmem:[%s19 + $0x68] sm:$0xff]
      %v5791 = vld [vmem:[%s19 + $0x70] sm:$0xff]
      %v5792 = vld [vmem:[%s19 + $0x78] sm:$0xff]
      %v5793 = vld [vmem:[%s21] sm:$0x1]
      %v5794 = vld [vmem:[%s1233] sm:$0xff]
      %v5795 = vld [vmem:[%s1233 + $0x8] sm:$0xff]
      %v5796 = vld [vmem:[%s1233 + $0x10] sm:$0x3f]
      %v5797 = vld [vmem:[%s1238] sm:$0xff]
      %v5798 = vld [vmem:[%s1238 + $0x8] sm:$0xff]
      %v5799 = vld [vmem:[%s1238 + $0x10] sm:$0x3f]
      %v5800 = vld [vmem:[%s1242] sm:$0xf]
      %5801 = vmatprep.subr.mxu0 0.0
      %5802 = vmatpush1.msra.mxu0 %v5792
      %5803 = vmatprep.subr.mxu0 0.0
      %5804 = vmatpush1.msra.mxu0 %v5791
      %5805 = vmatprep.subr.mxu0 0.0
      %5806 = vmatpush1.msra.mxu0 %v5790
      %5807 = vmatprep.subr.mxu0 0.0
      %5808 = vmatpush1.msra.mxu0 %v5789
      %5809 = vmatprep.subr.mxu0 0.0
      %5810 = vmatpush1.msra.mxu0 %v5788
      %5811 = vmatprep.subr.mxu0 0.0
      %5812 = vmatpush1.msra.mxu0 %v5787
      %5813 = vmatprep.subr.mxu0 0.0
      %5814 = vmatpush1.msra.mxu0 %v5786
      %5815 = vmatprep.subr.mxu0 0.0
      %5816 = vmatpush1.msra.mxu0 %v5785
      %5817 = vmatprep.subr.mxu0 0.0
      %5818 = vmatpush1.msra.mxu0 %v5784
      %5819 = vmatprep.subr.mxu0 0.0
      %5820 = vmatpush1.msra.mxu0 %v5783
      %5821 = vmatprep.subr.mxu0 0.0
      %5822 = vmatpush1.msra.mxu0 %v5782
      %5823 = vmatprep.subr.mxu0 0.0
      %5824 = vmatpush1.msra.mxu0 %v5781
      %5825 = vmatprep.subr.mxu0 0.0
      %5826 = vmatpush1.msra.mxu0 %v5780
      %5827 = vmatprep.subr.mxu0 0.0
      %5828 = vmatpush1.msra.mxu0 %v5779
      %5829 = vmatprep.subr.mxu0 0.0
      %5830 = vmatpush1.msra.mxu0 %v5778
      %5831 = vmatprep.subr.mxu0 0.0
      %5832 = vmatpush1.msra.mxu0 %v5777
      %5833 = vmatprep.subr.mxu0 0.0
      %5834 = vmatpush2.msra.mxu0 0.0
      %5835 = vmatprep.subr.mxu0 0.0
      %5836 = vmatpush2.msra.mxu0 0.0
      %5837 = vmatprep.subr.mxu0 0.0
      %5838 = vmatpush2.msra.mxu0 0.0
      %5839 = vmatprep.subr.mxu0 0.0
      %5840 = vmatpush2.msra.mxu0 0.0
      %5841 = vmatprep.subr.mxu0 0.0
      %5842 = vmatpush2.msra.mxu0 0.0
      %5843 = vmatprep.subr.mxu0 0.0
      %5844 = vmatpush2.msra.mxu0 0.0
      %5845 = vmatprep.subr.mxu0 0.0
      %5846 = vmatpush2.msra.mxu0 0.0
      %5847 = vmatprep.subr.mxu0 0.0
      %5848 = vmatpush2.msra.mxu0 0.0
      %5849 = vmatprep.subr.mxu0 0.0
      %5850 = vmatpush2.msra.mxu0 0.0
      %5851 = vmatprep.subr.mxu0 0.0
      %5852 = vmatpush2.msra.mxu0 0.0
      %5853 = vmatprep.subr.mxu0 0.0
      %5854 = vmatpush2.msra.mxu0 0.0
      %5855 = vmatprep.subr.mxu0 0.0
      %5856 = vmatpush2.msra.mxu0 0.0
      %5857 = vmatprep.subr.mxu0 0.0
      %5858 = vmatpush2.msra.mxu0 0.0
      %5859 = vmatprep.subr.mxu0 0.0
      %5860 = vmatpush2.msra.mxu0 0.0
      %5861 = vmatprep.subr.mxu0 0.0
      %5862 = vmatpush2.msra.mxu0 0.0
      %5863 = vmatprep.subr.mxu0 0.0
      %5864 = vmatpush2.msra.mxu0 0.0
      %5865 = vmatprep.mubr.f32.mxu0 0.0
      %5866 = vmatmul.mubr.f32.gmra.mxu0 %v5742
      %v5867 = vpop.f32.mrf.mxu0
      %v5868 = vadd.f32 0.0, %v5867
      %v5869 = vpop.f32.mrf.mxu0
      %5870 = vdwg.mxu0
      %v5872 = vlaneseq
      %v5873 = vshrl.u32 %v5872, 7
      %v5874 = vsub.s32 0, %v5873
      %v5875 = vrot.slane %v5793, %v5874
      %vm5877 = vcmask 64512
      %v5879 = vsel %vm5877, %v5743, 0
      %5881 = vmatprep.subr.mxu0 0.0
      %5882 = vmatpush1.msra.mxu0 0.0
      %5883 = vmatprep.subr.mxu0 0.0
      %5884 = vmatpush1.msra.mxu0 0.0
      %5885 = vmatprep.subr.mxu0 0.0
      %5886 = vmatpush1.msra.mxu0 0.0
      %5887 = vmatprep.subr.mxu0 0.0
      %5888 = vmatpush1.msra.mxu0 0.0
      %5889 = vmatprep.subr.mxu0 0.0
      %5890 = vmatpush1.msra.mxu0 0.0
      %5891 = vmatprep.subr.mxu0 0.0
      %5892 = vmatpush1.msra.mxu0 0.0
      %5893 = vmatprep.subr.mxu0 0.0
      %5894 = vmatpush1.msra.mxu0 0.0
      %5895 = vmatprep.subr.mxu0 0.0
      %5896 = vmatpush1.msra.mxu0 0.0
      %5897 = vmatprep.subr.mxu0 0.0
      %5898 = vmatpush1.msra.mxu0 0.0
      %5899 = vmatprep.subr.mxu0 0.0
      %5900 = vmatpush1.msra.mxu0 0.0
      %5901 = vmatprep.subr.mxu0 0.0
      %5902 = vmatpush1.msra.mxu0 0.0
      %5903 = vmatprep.subr.mxu0 0.0
      %5904 = vmatpush1.msra.mxu0 0.0
      %5905 = vmatprep.subr.mxu0 0.0
      %5906 = vmatpush1.msra.mxu0 0.0
      %5907 = vmatprep.subr.mxu0 0.0
      %5908 = vmatpush1.msra.mxu0 0.0
      %5909 = vmatprep.subr.mxu0 0.0
      %5910 = vmatpush1.msra.mxu0 0.0
      %5911 = vmatprep.subr.mxu0 0.0
      %5912 = vmatpush1.msra.mxu0 %v5868
      %5913 = vmatprep.subr.mxu0 0.0
      %5914 = vmatpush2.msra.mxu0 0.0
      %5915 = vmatprep.subr.mxu0 0.0
      %5916 = vmatpush2.msra.mxu0 0.0
      %5917 = vmatprep.subr.mxu0 0.0
      %5918 = vmatpush2.msra.mxu0 0.0
      %5919 = vmatprep.subr.mxu0 0.0
      %5920 = vmatpush2.msra.mxu0 0.0
      %5921 = vmatprep.subr.mxu0 0.0
      %5922 = vmatpush2.msra.mxu0 0.0
      %5923 = vmatprep.subr.mxu0 0.0
      %5924 = vmatpush2.msra.mxu0 0.0
      %5925 = vmatprep.subr.mxu0 0.0
      %5926 = vmatpush2.msra.mxu0 0.0
      %5927 = vmatprep.subr.mxu0 0.0
      %5928 = vmatpush2.msra.mxu0 0.0
      %5929 = vmatprep.subr.mxu0 0.0
      %5930 = vmatpush2.msra.mxu0 0.0
      %5931 = vmatprep.subr.mxu0 0.0
      %5932 = vmatpush2.msra.mxu0 0.0
      %5933 = vmatprep.subr.mxu0 0.0
      %5934 = vmatpush2.msra.mxu0 0.0
      %5935 = vmatprep.subr.mxu0 0.0
      %5936 = vmatpush2.msra.mxu0 0.0
      %5937 = vmatprep.subr.mxu0 0.0
      %5938 = vmatpush2.msra.mxu0 0.0
      %5939 = vmatprep.subr.mxu0 0.0
      %5940 = vmatpush2.msra.mxu0 0.0
      %5941 = vmatprep.subr.mxu0 0.0
      %5942 = vmatpush2.msra.mxu0 0.0
      %5943 = vmatprep.subr.mxu0 0.0
      %5944 = vmatpush2.msra.mxu0 0.0
      %5945 = vmatprep.mubr.f32.mxu0 0.0
      %5946 = vmatmul.mubr.f32.gmra.mxu0 %v5879
      %v5947 = vpop.f32.mrf.mxu0
      %v5948 = vadd.f32 %v5875, %v5947
      %v5949 = vpop.f32.mrf.mxu0
      %5950 = vdwg.mxu0
      %v5951 = vmax.f32 %v5948, 0.0
      %5953 = vset.pattern.permute.xlu0 0
      %5954 = vperm.xlu0 %5953, %v5744
      %v5955 = vpop.permute.xlu0 %5954
      %5958 = vset.pattern.permute.xlu0 0
      %5959 = vperm.xlu0 %5958, %v5745
      %v5960 = vpop.permute.xlu0 %5959
      %5963 = vset.pattern.permute.xlu0 0
      %5964 = vperm.xlu0 %5963, %v5746
      %v5965 = vpop.permute.xlu0 %5964
      %5968 = vset.pattern.permute.xlu0 0
      %5969 = vperm.xlu0 %5968, %v5747
      %v5970 = vpop.permute.xlu0 %5969
      %5973 = vset.pattern.permute.xlu0 0
      %5974 = vperm.xlu0 %5973, %v5748
      %v5975 = vpop.permute.xlu0 %5974
      %5978 = vset.pattern.permute.xlu0 0
      %5979 = vperm.xlu0 %5978, %v5749
      %v5980 = vpop.permute.xlu0 %5979
      %5983 = vset.pattern.permute.xlu0 0
      %5984 = vperm.xlu0 %5983, %v5750
      %v5985 = vpop.permute.xlu0 %5984
      %5988 = vset.pattern.permute.xlu0 0
      %5989 = vperm.xlu0 %5988, %v5751
      %v5990 = vpop.permute.xlu0 %5989
      %5993 = vset.pattern.permute.xlu0 0
      %5994 = vperm.xlu0 %5993, %v5752
      %v5995 = vpop.permute.xlu0 %5994
      %5998 = vset.pattern.permute.xlu0 0
      %5999 = vperm.xlu0 %5998, %v5753
      %v6000 = vpop.permute.xlu0 %5999
      %6003 = vset.pattern.permute.xlu0 0
      %6004 = vperm.xlu0 %6003, %v5754
      %v6005 = vpop.permute.xlu0 %6004
      %6008 = vset.pattern.permute.xlu0 0
      %6009 = vperm.xlu0 %6008, %v5755
      %v6010 = vpop.permute.xlu0 %6009
      %6013 = vset.pattern.permute.xlu0 0
      %6014 = vperm.xlu0 %6013, %v5756
      %v6015 = vpop.permute.xlu0 %6014
      %6018 = vset.pattern.permute.xlu0 0
      %6019 = vperm.xlu0 %6018, %v5757
      %v6020 = vpop.permute.xlu0 %6019
      %6023 = vset.pattern.permute.xlu0 0
      %6024 = vperm.xlu0 %6023, %v5758
      %v6025 = vpop.permute.xlu0 %6024
      %6028 = vset.pattern.permute.xlu0 0
      %6029 = vperm.xlu0 %6028, %v5759
      %v6030 = vpop.permute.xlu0 %6029
      %6033 = vset.pattern.permute.xlu0 0
      %6034 = vperm.xlu0 %6033, %v5760
      %v6035 = vpop.permute.xlu0 %6034
      %6038 = vset.pattern.permute.xlu0 0
      %6039 = vperm.xlu0 %6038, %v5761
      %v6040 = vpop.permute.xlu0 %6039
      %6043 = vset.pattern.permute.xlu0 0
      %6044 = vperm.xlu0 %6043, %v5762
      %v6045 = vpop.permute.xlu0 %6044
      %6048 = vset.pattern.permute.xlu0 0
      %6049 = vperm.xlu0 %6048, %v5763
      %v6050 = vpop.permute.xlu0 %6049
      %6053 = vset.pattern.permute.xlu0 0
      %6054 = vperm.xlu0 %6053, %v5764
      %v6055 = vpop.permute.xlu0 %6054
      %6058 = vset.pattern.permute.xlu0 0
      %6059 = vperm.xlu0 %6058, %v5765
      %v6060 = vpop.permute.xlu0 %6059
      %6063 = vset.pattern.permute.xlu0 0
      %6064 = vperm.xlu0 %6063, %v5766
      %v6065 = vpop.permute.xlu0 %6064
      %6068 = vset.pattern.permute.xlu0 0
      %6069 = vperm.xlu0 %6068, %v5767
      %v6070 = vpop.permute.xlu0 %6069
      %6073 = vset.pattern.permute.xlu0 0
      %6074 = vperm.xlu0 %6073, %v5768
      %v6075 = vpop.permute.xlu0 %6074
      %6078 = vset.pattern.permute.xlu0 0
      %6079 = vperm.xlu0 %6078, %v5769
      %v6080 = vpop.permute.xlu0 %6079
      %6083 = vset.pattern.permute.xlu0 0
      %6084 = vperm.xlu0 %6083, %v5770
      %v6085 = vpop.permute.xlu0 %6084
      %6088 = vset.pattern.permute.xlu0 0
      %6089 = vperm.xlu0 %6088, %v5771
      %v6090 = vpop.permute.xlu0 %6089
      %6093 = vset.pattern.permute.xlu0 0
      %6094 = vperm.xlu0 %6093, %v5772
      %v6095 = vpop.permute.xlu0 %6094
      %6098 = vset.pattern.permute.xlu0 0
      %6099 = vperm.xlu0 %6098, %v5773
      %v6100 = vpop.permute.xlu0 %6099
      %6103 = vset.pattern.permute.xlu0 0
      %6104 = vperm.xlu0 %6103, %v5774
      %v6105 = vpop.permute.xlu0 %6104
      %6108 = vset.pattern.permute.xlu0 0
      %6109 = vperm.xlu0 %6108, %v5775
      %v6110 = vpop.permute.xlu0 %6109
      %v6113 = vlaneseq
      %v6114 = vshrl.u32 %v6113, 7
      %v6115 = vsub.s32 0, %v6114
      %v6116 = vrot.slane %v5776, %v6115
      %v6117 = vlaneseq
      %v6118 = vshrl.u32 %v6117, 7
      %v6119 = vsub.s32 1, %v6118
      %v6120 = vrot.slane %v5776, %v6119
      %v6121 = vlaneseq
      %v6122 = vshrl.u32 %v6121, 7
      %v6123 = vsub.s32 2, %v6122
      %v6124 = vrot.slane %v5776, %v6123
      %v6125 = vlaneseq
      %v6126 = vshrl.u32 %v6125, 7
      %v6127 = vsub.s32 3, %v6126
      %v6128 = vrot.slane %v5776, %v6127
      %v6129 = vlaneseq
      %v6130 = vshrl.u32 %v6129, 7
      %v6131 = vsub.s32 4, %v6130
      %v6132 = vrot.slane %v5776, %v6131
      %vm6138 = vcmp.le.f32.partialorder %v5955, %v6116
      %vm6139 = vcmp.le.f32.partialorder %v5955, %v6120
      %vm6140 = vcmp.le.f32.partialorder %v5955, %v6124
      %vm6141 = vcmp.le.f32.partialorder %v5955, %v6128
      %vm6142 = vcmp.le.f32.partialorder %v5955, %v6132
      %vm6143 = vcmp.le.f32.partialorder %v5960, %v6116
      %vm6144 = vcmp.le.f32.partialorder %v5960, %v6120
      %vm6145 = vcmp.le.f32.partialorder %v5960, %v6124
      %vm6146 = vcmp.le.f32.partialorder %v5960, %v6128
      %vm6147 = vcmp.le.f32.partialorder %v5960, %v6132
      %vm6148 = vcmp.le.f32.partialorder %v5965, %v6116
      %vm6149 = vcmp.le.f32.partialorder %v5965, %v6120
      %vm6150 = vcmp.le.f32.partialorder %v5965, %v6124
      %vm6151 = vcmp.le.f32.partialorder %v5965, %v6128
      %vm6152 = vcmp.le.f32.partialorder %v5965, %v6132
      %vm6153 = vcmp.le.f32.partialorder %v5970, %v6116
      %vm6154 = vcmp.le.f32.partialorder %v5970, %v6120
      %vm6155 = vcmp.le.f32.partialorder %v5970, %v6124
      %vm6156 = vcmp.le.f32.partialorder %v5970, %v6128
      %vm6157 = vcmp.le.f32.partialorder %v5970, %v6132
      %vm6158 = vcmp.le.f32.partialorder %v5975, %v6116
      %vm6159 = vcmp.le.f32.partialorder %v5975, %v6120
      %vm6160 = vcmp.le.f32.partialorder %v5975, %v6124
      %vm6161 = vcmp.le.f32.partialorder %v5975, %v6128
      %vm6162 = vcmp.le.f32.partialorder %v5975, %v6132
      %vm6163 = vcmp.le.f32.partialorder %v5980, %v6116
      %vm6164 = vcmp.le.f32.partialorder %v5980, %v6120
      %vm6165 = vcmp.le.f32.partialorder %v5980, %v6124
      %vm6166 = vcmp.le.f32.partialorder %v5980, %v6128
      %vm6167 = vcmp.le.f32.partialorder %v5980, %v6132
      %vm6168 = vcmp.le.f32.partialorder %v5985, %v6116
      %vm6169 = vcmp.le.f32.partialorder %v5985, %v6120
      %vm6170 = vcmp.le.f32.partialorder %v5985, %v6124
      %vm6171 = vcmp.le.f32.partialorder %v5985, %v6128
      %vm6172 = vcmp.le.f32.partialorder %v5985, %v6132
      %vm6173 = vcmp.le.f32.partialorder %v5990, %v6116
      %vm6174 = vcmp.le.f32.partialorder %v5990, %v6120
      %vm6175 = vcmp.le.f32.partialorder %v5990, %v6124
      %vm6176 = vcmp.le.f32.partialorder %v5990, %v6128
      %vm6177 = vcmp.le.f32.partialorder %v5990, %v6132
      %vm6178 = vcmp.le.f32.partialorder %v5995, %v6116
      %vm6179 = vcmp.le.f32.partialorder %v5995, %v6120
      %vm6180 = vcmp.le.f32.partialorder %v5995, %v6124
      %vm6181 = vcmp.le.f32.partialorder %v5995, %v6128
      %vm6182 = vcmp.le.f32.partialorder %v5995, %v6132
      %vm6183 = vcmp.le.f32.partialorder %v6000, %v6116
      %vm6184 = vcmp.le.f32.partialorder %v6000, %v6120
      %vm6185 = vcmp.le.f32.partialorder %v6000, %v6124
      %vm6186 = vcmp.le.f32.partialorder %v6000, %v6128
      %vm6187 = vcmp.le.f32.partialorder %v6000, %v6132
      %vm6188 = vcmp.le.f32.partialorder %v6005, %v6116
      %vm6189 = vcmp.le.f32.partialorder %v6005, %v6120
      %vm6190 = vcmp.le.f32.partialorder %v6005, %v6124
      %vm6191 = vcmp.le.f32.partialorder %v6005, %v6128
      %vm6192 = vcmp.le.f32.partialorder %v6005, %v6132
      %vm6193 = vcmp.le.f32.partialorder %v6010, %v6116
      %vm6194 = vcmp.le.f32.partialorder %v6010, %v6120
      %vm6195 = vcmp.le.f32.partialorder %v6010, %v6124
      %vm6196 = vcmp.le.f32.partialorder %v6010, %v6128
      %vm6197 = vcmp.le.f32.partialorder %v6010, %v6132
      %vm6198 = vcmp.le.f32.partialorder %v6015, %v6116
      %vm6199 = vcmp.le.f32.partialorder %v6015, %v6120
      %vm6200 = vcmp.le.f32.partialorder %v6015, %v6124
      %vm6201 = vcmp.le.f32.partialorder %v6015, %v6128
      %vm6202 = vcmp.le.f32.partialorder %v6015, %v6132
      %vm6203 = vcmp.le.f32.partialorder %v6020, %v6116
      %vm6204 = vcmp.le.f32.partialorder %v6020, %v6120
      %vm6205 = vcmp.le.f32.partialorder %v6020, %v6124
      %vm6206 = vcmp.le.f32.partialorder %v6020, %v6128
      %vm6207 = vcmp.le.f32.partialorder %v6020, %v6132
      %vm6208 = vcmp.le.f32.partialorder %v6025, %v6116
      %vm6209 = vcmp.le.f32.partialorder %v6025, %v6120
      %vm6210 = vcmp.le.f32.partialorder %v6025, %v6124
      %vm6211 = vcmp.le.f32.partialorder %v6025, %v6128
      %vm6212 = vcmp.le.f32.partialorder %v6025, %v6132
      %vm6213 = vcmp.le.f32.partialorder %v6030, %v6116
      %vm6214 = vcmp.le.f32.partialorder %v6030, %v6120
      %vm6215 = vcmp.le.f32.partialorder %v6030, %v6124
      %vm6216 = vcmp.le.f32.partialorder %v6030, %v6128
      %vm6217 = vcmp.le.f32.partialorder %v6030, %v6132
      %vm6218 = vcmp.le.f32.partialorder %v6035, %v6116
      %vm6219 = vcmp.le.f32.partialorder %v6035, %v6120
      %vm6220 = vcmp.le.f32.partialorder %v6035, %v6124
      %vm6221 = vcmp.le.f32.partialorder %v6035, %v6128
      %vm6222 = vcmp.le.f32.partialorder %v6035, %v6132
      %vm6223 = vcmp.le.f32.partialorder %v6040, %v6116
      %vm6224 = vcmp.le.f32.partialorder %v6040, %v6120
      %vm6225 = vcmp.le.f32.partialorder %v6040, %v6124
      %vm6226 = vcmp.le.f32.partialorder %v6040, %v6128
      %vm6227 = vcmp.le.f32.partialorder %v6040, %v6132
      %vm6228 = vcmp.le.f32.partialorder %v6045, %v6116
      %vm6229 = vcmp.le.f32.partialorder %v6045, %v6120
      %vm6230 = vcmp.le.f32.partialorder %v6045, %v6124
      %vm6231 = vcmp.le.f32.partialorder %v6045, %v6128
      %vm6232 = vcmp.le.f32.partialorder %v6045, %v6132
      %vm6233 = vcmp.le.f32.partialorder %v6050, %v6116
      %vm6234 = vcmp.le.f32.partialorder %v6050, %v6120
      %vm6235 = vcmp.le.f32.partialorder %v6050, %v6124
      %vm6236 = vcmp.le.f32.partialorder %v6050, %v6128
      %vm6237 = vcmp.le.f32.partialorder %v6050, %v6132
      %vm6238 = vcmp.le.f32.partialorder %v6055, %v6116
      %vm6239 = vcmp.le.f32.partialorder %v6055, %v6120
      %vm6240 = vcmp.le.f32.partialorder %v6055, %v6124
      %vm6241 = vcmp.le.f32.partialorder %v6055, %v6128
      %vm6242 = vcmp.le.f32.partialorder %v6055, %v6132
      %vm6243 = vcmp.le.f32.partialorder %v6060, %v6116
      %vm6244 = vcmp.le.f32.partialorder %v6060, %v6120
      %vm6245 = vcmp.le.f32.partialorder %v6060, %v6124
      %vm6246 = vcmp.le.f32.partialorder %v6060, %v6128
      %vm6247 = vcmp.le.f32.partialorder %v6060, %v6132
      %vm6248 = vcmp.le.f32.partialorder %v6065, %v6116
      %vm6249 = vcmp.le.f32.partialorder %v6065, %v6120
      %vm6250 = vcmp.le.f32.partialorder %v6065, %v6124
      %vm6251 = vcmp.le.f32.partialorder %v6065, %v6128
      %vm6252 = vcmp.le.f32.partialorder %v6065, %v6132
      %vm6253 = vcmp.le.f32.partialorder %v6070, %v6116
      %vm6254 = vcmp.le.f32.partialorder %v6070, %v6120
      %vm6255 = vcmp.le.f32.partialorder %v6070, %v6124
      %vm6256 = vcmp.le.f32.partialorder %v6070, %v6128
      %vm6257 = vcmp.le.f32.partialorder %v6070, %v6132
      %vm6258 = vcmp.le.f32.partialorder %v6075, %v6116
      %vm6259 = vcmp.le.f32.partialorder %v6075, %v6120
      %vm6260 = vcmp.le.f32.partialorder %v6075, %v6124
      %vm6261 = vcmp.le.f32.partialorder %v6075, %v6128
      %vm6262 = vcmp.le.f32.partialorder %v6075, %v6132
      %vm6263 = vcmp.le.f32.partialorder %v6080, %v6116
      %vm6264 = vcmp.le.f32.partialorder %v6080, %v6120
      %vm6265 = vcmp.le.f32.partialorder %v6080, %v6124
      %vm6266 = vcmp.le.f32.partialorder %v6080, %v6128
      %vm6267 = vcmp.le.f32.partialorder %v6080, %v6132
      %vm6268 = vcmp.le.f32.partialorder %v6085, %v6116
      %vm6269 = vcmp.le.f32.partialorder %v6085, %v6120
      %vm6270 = vcmp.le.f32.partialorder %v6085, %v6124
      %vm6271 = vcmp.le.f32.partialorder %v6085, %v6128
      %vm6272 = vcmp.le.f32.partialorder %v6085, %v6132
      %vm6273 = vcmp.le.f32.partialorder %v6090, %v6116
      %vm6274 = vcmp.le.f32.partialorder %v6090, %v6120
      %vm6275 = vcmp.le.f32.partialorder %v6090, %v6124
      %vm6276 = vcmp.le.f32.partialorder %v6090, %v6128
      %vm6277 = vcmp.le.f32.partialorder %v6090, %v6132
      %vm6278 = vcmp.le.f32.partialorder %v6095, %v6116
      %vm6279 = vcmp.le.f32.partialorder %v6095, %v6120
      %vm6280 = vcmp.le.f32.partialorder %v6095, %v6124
      %vm6281 = vcmp.le.f32.partialorder %v6095, %v6128
      %vm6282 = vcmp.le.f32.partialorder %v6095, %v6132
      %vm6283 = vcmp.le.f32.partialorder %v6100, %v6116
      %vm6284 = vcmp.le.f32.partialorder %v6100, %v6120
      %vm6285 = vcmp.le.f32.partialorder %v6100, %v6124
      %vm6286 = vcmp.le.f32.partialorder %v6100, %v6128
      %vm6287 = vcmp.le.f32.partialorder %v6100, %v6132
      %vm6288 = vcmp.le.f32.partialorder %v6105, %v6116
      %vm6289 = vcmp.le.f32.partialorder %v6105, %v6120
      %vm6290 = vcmp.le.f32.partialorder %v6105, %v6124
      %vm6291 = vcmp.le.f32.partialorder %v6105, %v6128
      %vm6292 = vcmp.le.f32.partialorder %v6105, %v6132
      %vm6293 = vcmp.le.f32.partialorder %v6110, %v6116
      %vm6294 = vcmp.le.f32.partialorder %v6110, %v6120
      %vm6295 = vcmp.le.f32.partialorder %v6110, %v6124
      %vm6296 = vcmp.le.f32.partialorder %v6110, %v6128
      %vm6297 = vcmp.le.f32.partialorder %v6110, %v6132
      %v6298 = vsel %vm6138, 1, 0
      %v6299 = vsel %vm6139, 1, 0
      %v6300 = vsel %vm6140, 1, 0
      %v6301 = vsel %vm6141, 1, 0
      %v6302 = vsel %vm6142, 1, 0
      %v6303 = vsel %vm6143, 1, 0
      %v6304 = vsel %vm6144, 1, 0
      %v6305 = vsel %vm6145, 1, 0
      %v6306 = vsel %vm6146, 1, 0
      %v6307 = vsel %vm6147, 1, 0
      %v6308 = vsel %vm6148, 1, 0
      %v6309 = vsel %vm6149, 1, 0
      %v6310 = vsel %vm6150, 1, 0
      %v6311 = vsel %vm6151, 1, 0
      %v6312 = vsel %vm6152, 1, 0
      %v6313 = vsel %vm6153, 1, 0
      %v6314 = vsel %vm6154, 1, 0
      %v6315 = vsel %vm6155, 1, 0
      %v6316 = vsel %vm6156, 1, 0
      %v6317 = vsel %vm6157, 1, 0
      %v6318 = vsel %vm6158, 1, 0
      %v6319 = vsel %vm6159, 1, 0
      %v6320 = vsel %vm6160, 1, 0
      %v6321 = vsel %vm6161, 1, 0
      %v6322 = vsel %vm6162, 1, 0
      %v6323 = vsel %vm6163, 1, 0
      %v6324 = vsel %vm6164, 1, 0
      %v6325 = vsel %vm6165, 1, 0
      %v6326 = vsel %vm6166, 1, 0
      %v6327 = vsel %vm6167, 1, 0
      %v6328 = vsel %vm6168, 1, 0
      %v6329 = vsel %vm6169, 1, 0
      %v6330 = vsel %vm6170, 1, 0
      %v6331 = vsel %vm6171, 1, 0
      %v6332 = vsel %vm6172, 1, 0
      %v6333 = vsel %vm6173, 1, 0
      %v6334 = vsel %vm6174, 1, 0
      %v6335 = vsel %vm6175, 1, 0
      %v6336 = vsel %vm6176, 1, 0
      %v6337 = vsel %vm6177, 1, 0
      %v6338 = vsel %vm6178, 1, 0
      %v6339 = vsel %vm6179, 1, 0
      %v6340 = vsel %vm6180, 1, 0
      %v6341 = vsel %vm6181, 1, 0
      %v6342 = vsel %vm6182, 1, 0
      %v6343 = vsel %vm6183, 1, 0
      %v6344 = vsel %vm6184, 1, 0
      %v6345 = vsel %vm6185, 1, 0
      %v6346 = vsel %vm6186, 1, 0
      %v6347 = vsel %vm6187, 1, 0
      %v6348 = vsel %vm6188, 1, 0
      %v6349 = vsel %vm6189, 1, 0
      %v6350 = vsel %vm6190, 1, 0
      %v6351 = vsel %vm6191, 1, 0
      %v6352 = vsel %vm6192, 1, 0
      %v6353 = vsel %vm6193, 1, 0
      %v6354 = vsel %vm6194, 1, 0
      %v6355 = vsel %vm6195, 1, 0
      %v6356 = vsel %vm6196, 1, 0
      %v6357 = vsel %vm6197, 1, 0
      %v6358 = vsel %vm6198, 1, 0
      %v6359 = vsel %vm6199, 1, 0
      %v6360 = vsel %vm6200, 1, 0
      %v6361 = vsel %vm6201, 1, 0
      %v6362 = vsel %vm6202, 1, 0
      %v6363 = vsel %vm6203, 1, 0
      %v6364 = vsel %vm6204, 1, 0
      %v6365 = vsel %vm6205, 1, 0
      %v6366 = vsel %vm6206, 1, 0
      %v6367 = vsel %vm6207, 1, 0
      %v6368 = vsel %vm6208, 1, 0
      %v6369 = vsel %vm6209, 1, 0
      %v6370 = vsel %vm6210, 1, 0
      %v6371 = vsel %vm6211, 1, 0
      %v6372 = vsel %vm6212, 1, 0
      %v6373 = vsel %vm6213, 1, 0
      %v6374 = vsel %vm6214, 1, 0
      %v6375 = vsel %vm6215, 1, 0
      %v6376 = vsel %vm6216, 1, 0
      %v6377 = vsel %vm6217, 1, 0
      %v6378 = vsel %vm6218, 1, 0
      %v6379 = vsel %vm6219, 1, 0
      %v6380 = vsel %vm6220, 1, 0
      %v6381 = vsel %vm6221, 1, 0
      %v6382 = vsel %vm6222, 1, 0
      %v6383 = vsel %vm6223, 1, 0
      %v6384 = vsel %vm6224, 1, 0
      %v6385 = vsel %vm6225, 1, 0
      %v6386 = vsel %vm6226, 1, 0
      %v6387 = vsel %vm6227, 1, 0
      %v6388 = vsel %vm6228, 1, 0
      %v6389 = vsel %vm6229, 1, 0
      %v6390 = vsel %vm6230, 1, 0
      %v6391 = vsel %vm6231, 1, 0
      %v6392 = vsel %vm6232, 1, 0
      %v6393 = vsel %vm6233, 1, 0
      %v6394 = vsel %vm6234, 1, 0
      %v6395 = vsel %vm6235, 1, 0
      %v6396 = vsel %vm6236, 1, 0
      %v6397 = vsel %vm6237, 1, 0
      %v6398 = vsel %vm6238, 1, 0
      %v6399 = vsel %vm6239, 1, 0
      %v6400 = vsel %vm6240, 1, 0
      %v6401 = vsel %vm6241, 1, 0
      %v6402 = vsel %vm6242, 1, 0
      %v6403 = vsel %vm6243, 1, 0
      %v6404 = vsel %vm6244, 1, 0
      %v6405 = vsel %vm6245, 1, 0
      %v6406 = vsel %vm6246, 1, 0
      %v6407 = vsel %vm6247, 1, 0
      %v6408 = vsel %vm6248, 1, 0
      %v6409 = vsel %vm6249, 1, 0
      %v6410 = vsel %vm6250, 1, 0
      %v6411 = vsel %vm6251, 1, 0
      %v6412 = vsel %vm6252, 1, 0
      %v6413 = vsel %vm6253, 1, 0
      %v6414 = vsel %vm6254, 1, 0
      %v6415 = vsel %vm6255, 1, 0
      %v6416 = vsel %vm6256, 1, 0
      %v6417 = vsel %vm6257, 1, 0
      %v6418 = vsel %vm6258, 1, 0
      %v6419 = vsel %vm6259, 1, 0
      %v6420 = vsel %vm6260, 1, 0
      %v6421 = vsel %vm6261, 1, 0
      %v6422 = vsel %vm6262, 1, 0
      %v6423 = vsel %vm6263, 1, 0
      %v6424 = vsel %vm6264, 1, 0
      %v6425 = vsel %vm6265, 1, 0
      %v6426 = vsel %vm6266, 1, 0
      %v6427 = vsel %vm6267, 1, 0
      %v6428 = vsel %vm6268, 1, 0
      %v6429 = vsel %vm6269, 1, 0
      %v6430 = vsel %vm6270, 1, 0
      %v6431 = vsel %vm6271, 1, 0
      %v6432 = vsel %vm6272, 1, 0
      %v6433 = vsel %vm6273, 1, 0
      %v6434 = vsel %vm6274, 1, 0
      %v6435 = vsel %vm6275, 1, 0
      %v6436 = vsel %vm6276, 1, 0
      %v6437 = vsel %vm6277, 1, 0
      %v6438 = vsel %vm6278, 1, 0
      %v6439 = vsel %vm6279, 1, 0
      %v6440 = vsel %vm6280, 1, 0
      %v6441 = vsel %vm6281, 1, 0
      %v6442 = vsel %vm6282, 1, 0
      %v6443 = vsel %vm6283, 1, 0
      %v6444 = vsel %vm6284, 1, 0
      %v6445 = vsel %vm6285, 1, 0
      %v6446 = vsel %vm6286, 1, 0
      %v6447 = vsel %vm6287, 1, 0
      %v6448 = vsel %vm6288, 1, 0
      %v6449 = vsel %vm6289, 1, 0
      %v6450 = vsel %vm6290, 1, 0
      %v6451 = vsel %vm6291, 1, 0
      %v6452 = vsel %vm6292, 1, 0
      %v6453 = vsel %vm6293, 1, 0
      %v6454 = vsel %vm6294, 1, 0
      %v6455 = vsel %vm6295, 1, 0
      %v6456 = vsel %vm6296, 1, 0
      %v6457 = vsel %vm6297, 1, 0
      %v6458 = vcvt.s32.f32 %v6298
      %v6459 = vcvt.s32.f32 %v6299
      %v6460 = vcvt.s32.f32 %v6300
      %v6461 = vcvt.s32.f32 %v6301
      %v6462 = vcvt.s32.f32 %v6302
      %v6463 = vcvt.s32.f32 %v6303
      %v6464 = vcvt.s32.f32 %v6304
      %v6465 = vcvt.s32.f32 %v6305
      %v6466 = vcvt.s32.f32 %v6306
      %v6467 = vcvt.s32.f32 %v6307
      %v6468 = vcvt.s32.f32 %v6308
      %v6469 = vcvt.s32.f32 %v6309
      %v6470 = vcvt.s32.f32 %v6310
      %v6471 = vcvt.s32.f32 %v6311
      %v6472 = vcvt.s32.f32 %v6312
      %v6473 = vcvt.s32.f32 %v6313
      %v6474 = vcvt.s32.f32 %v6314
      %v6475 = vcvt.s32.f32 %v6315
      %v6476 = vcvt.s32.f32 %v6316
      %v6477 = vcvt.s32.f32 %v6317
      %v6478 = vcvt.s32.f32 %v6318
      %v6479 = vcvt.s32.f32 %v6319
      %v6480 = vcvt.s32.f32 %v6320
      %v6481 = vcvt.s32.f32 %v6321
      %v6482 = vcvt.s32.f32 %v6322
      %v6483 = vcvt.s32.f32 %v6323
      %v6484 = vcvt.s32.f32 %v6324
      %v6485 = vcvt.s32.f32 %v6325
      %v6486 = vcvt.s32.f32 %v6326
      %v6487 = vcvt.s32.f32 %v6327
      %v6488 = vcvt.s32.f32 %v6328
      %v6489 = vcvt.s32.f32 %v6329
      %v6490 = vcvt.s32.f32 %v6330
      %v6491 = vcvt.s32.f32 %v6331
      %v6492 = vcvt.s32.f32 %v6332
      %v6493 = vcvt.s32.f32 %v6333
      %v6494 = vcvt.s32.f32 %v6334
      %v6495 = vcvt.s32.f32 %v6335
      %v6496 = vcvt.s32.f32 %v6336
      %v6497 = vcvt.s32.f32 %v6337
      %v6498 = vcvt.s32.f32 %v6338
      %v6499 = vcvt.s32.f32 %v6339
      %v6500 = vcvt.s32.f32 %v6340
      %v6501 = vcvt.s32.f32 %v6341
      %v6502 = vcvt.s32.f32 %v6342
      %v6503 = vcvt.s32.f32 %v6343
      %v6504 = vcvt.s32.f32 %v6344
      %v6505 = vcvt.s32.f32 %v6345
      %v6506 = vcvt.s32.f32 %v6346
      %v6507 = vcvt.s32.f32 %v6347
      %v6508 = vcvt.s32.f32 %v6348
      %v6509 = vcvt.s32.f32 %v6349
      %v6510 = vcvt.s32.f32 %v6350
      %v6511 = vcvt.s32.f32 %v6351
      %v6512 = vcvt.s32.f32 %v6352
      %v6513 = vcvt.s32.f32 %v6353
      %v6514 = vcvt.s32.f32 %v6354
      %v6515 = vcvt.s32.f32 %v6355
      %v6516 = vcvt.s32.f32 %v6356
      %v6517 = vcvt.s32.f32 %v6357
      %v6518 = vcvt.s32.f32 %v6358
      %v6519 = vcvt.s32.f32 %v6359
      %v6520 = vcvt.s32.f32 %v6360
      %v6521 = vcvt.s32.f32 %v6361
      %v6522 = vcvt.s32.f32 %v6362
      %v6523 = vcvt.s32.f32 %v6363
      %v6524 = vcvt.s32.f32 %v6364
      %v6525 = vcvt.s32.f32 %v6365
      %v6526 = vcvt.s32.f32 %v6366
      %v6527 = vcvt.s32.f32 %v6367
      %v6528 = vcvt.s32.f32 %v6368
      %v6529 = vcvt.s32.f32 %v6369
      %v6530 = vcvt.s32.f32 %v6370
      %v6531 = vcvt.s32.f32 %v6371
      %v6532 = vcvt.s32.f32 %v6372
      %v6533 = vcvt.s32.f32 %v6373
      %v6534 = vcvt.s32.f32 %v6374
      %v6535 = vcvt.s32.f32 %v6375
      %v6536 = vcvt.s32.f32 %v6376
      %v6537 = vcvt.s32.f32 %v6377
      %v6538 = vcvt.s32.f32 %v6378
      %v6539 = vcvt.s32.f32 %v6379
      %v6540 = vcvt.s32.f32 %v6380
      %v6541 = vcvt.s32.f32 %v6381
      %v6542 = vcvt.s32.f32 %v6382
      %v6543 = vcvt.s32.f32 %v6383
      %v6544 = vcvt.s32.f32 %v6384
      %v6545 = vcvt.s32.f32 %v6385
      %v6546 = vcvt.s32.f32 %v6386
      %v6547 = vcvt.s32.f32 %v6387
      %v6548 = vcvt.s32.f32 %v6388
      %v6549 = vcvt.s32.f32 %v6389
      %v6550 = vcvt.s32.f32 %v6390
      %v6551 = vcvt.s32.f32 %v6391
      %v6552 = vcvt.s32.f32 %v6392
      %v6553 = vcvt.s32.f32 %v6393
      %v6554 = vcvt.s32.f32 %v6394
      %v6555 = vcvt.s32.f32 %v6395
      %v6556 = vcvt.s32.f32 %v6396
      %v6557 = vcvt.s32.f32 %v6397
      %v6558 = vcvt.s32.f32 %v6398
      %v6559 = vcvt.s32.f32 %v6399
      %v6560 = vcvt.s32.f32 %v6400
      %v6561 = vcvt.s32.f32 %v6401
      %v6562 = vcvt.s32.f32 %v6402
      %v6563 = vcvt.s32.f32 %v6403
      %v6564 = vcvt.s32.f32 %v6404
      %v6565 = vcvt.s32.f32 %v6405
      %v6566 = vcvt.s32.f32 %v6406
      %v6567 = vcvt.s32.f32 %v6407
      %v6568 = vcvt.s32.f32 %v6408
      %v6569 = vcvt.s32.f32 %v6409
      %v6570 = vcvt.s32.f32 %v6410
      %v6571 = vcvt.s32.f32 %v6411
      %v6572 = vcvt.s32.f32 %v6412
      %v6573 = vcvt.s32.f32 %v6413
      %v6574 = vcvt.s32.f32 %v6414
      %v6575 = vcvt.s32.f32 %v6415
      %v6576 = vcvt.s32.f32 %v6416
      %v6577 = vcvt.s32.f32 %v6417
      %v6578 = vcvt.s32.f32 %v6418
      %v6579 = vcvt.s32.f32 %v6419
      %v6580 = vcvt.s32.f32 %v6420
      %v6581 = vcvt.s32.f32 %v6421
      %v6582 = vcvt.s32.f32 %v6422
      %v6583 = vcvt.s32.f32 %v6423
      %v6584 = vcvt.s32.f32 %v6424
      %v6585 = vcvt.s32.f32 %v6425
      %v6586 = vcvt.s32.f32 %v6426
      %v6587 = vcvt.s32.f32 %v6427
      %v6588 = vcvt.s32.f32 %v6428
      %v6589 = vcvt.s32.f32 %v6429
      %v6590 = vcvt.s32.f32 %v6430
      %v6591 = vcvt.s32.f32 %v6431
      %v6592 = vcvt.s32.f32 %v6432
      %v6593 = vcvt.s32.f32 %v6433
      %v6594 = vcvt.s32.f32 %v6434
      %v6595 = vcvt.s32.f32 %v6435
      %v6596 = vcvt.s32.f32 %v6436
      %v6597 = vcvt.s32.f32 %v6437
      %v6598 = vcvt.s32.f32 %v6438
      %v6599 = vcvt.s32.f32 %v6439
      %v6600 = vcvt.s32.f32 %v6440
      %v6601 = vcvt.s32.f32 %v6441
      %v6602 = vcvt.s32.f32 %v6442
      %v6603 = vcvt.s32.f32 %v6443
      %v6604 = vcvt.s32.f32 %v6444
      %v6605 = vcvt.s32.f32 %v6445
      %v6606 = vcvt.s32.f32 %v6446
      %v6607 = vcvt.s32.f32 %v6447
      %v6608 = vcvt.s32.f32 %v6448
      %v6609 = vcvt.s32.f32 %v6449
      %v6610 = vcvt.s32.f32 %v6450
      %v6611 = vcvt.s32.f32 %v6451
      %v6612 = vcvt.s32.f32 %v6452
      %v6613 = vcvt.s32.f32 %v6453
      %v6614 = vcvt.s32.f32 %v6454
      %v6615 = vcvt.s32.f32 %v6455
      %v6616 = vcvt.s32.f32 %v6456
      %v6617 = vcvt.s32.f32 %v6457
      %vm6618 = vcmp.lt.s32.totalorder %v3950, 196
      %vm6619 = vcmp.lt.s32.totalorder %v3951, 196
      %v6620 = vsel %vm6618, 1, 0
      %v6621 = vsel %vm6619, 1, 0
      %v6622 = vcvt.s32.f32 %v6620
      %v6623 = vcvt.s32.f32 %v6621
      %6624 = vmatprep.subr.mxu0 %v6534
      %6625 = vmatpush1.msra.mxu0 %v6533
      %6626 = vmatprep.subr.mxu0 %v6529
      %6627 = vmatpush1.msra.mxu0 %v6528
      %6628 = vmatprep.subr.mxu0 %v6524
      %6629 = vmatpush1.msra.mxu0 %v6523
      %6630 = vmatprep.subr.mxu0 %v6519
      %6631 = vmatpush1.msra.mxu0 %v6518
      %6632 = vmatprep.subr.mxu0 %v6514
      %6633 = vmatpush1.msra.mxu0 %v6513
      %6634 = vmatprep.subr.mxu0 %v6509
      %6635 = vmatpush1.msra.mxu0 %v6508
      %6636 = vmatprep.subr.mxu0 %v6504
      %6637 = vmatpush1.msra.mxu0 %v6503
      %6638 = vmatprep.subr.mxu0 %v6499
      %6639 = vmatpush1.msra.mxu0 %v6498
      %6640 = vmatprep.subr.mxu0 %v6494
      %6641 = vmatpush1.msra.mxu0 %v6493
      %6642 = vmatprep.subr.mxu0 %v6489
      %6643 = vmatpush1.msra.mxu0 %v6488
      %6644 = vmatprep.subr.mxu0 %v6484
      %6645 = vmatpush1.msra.mxu0 %v6483
      %6646 = vmatprep.subr.mxu0 %v6479
      %6647 = vmatpush1.msra.mxu0 %v6478
      %6648 = vmatprep.subr.mxu0 %v6474
      %6649 = vmatpush1.msra.mxu0 %v6473
      %6650 = vmatprep.subr.mxu0 %v6469
      %6651 = vmatpush1.msra.mxu0 %v6468
      %6652 = vmatprep.subr.mxu0 %v6464
      %6653 = vmatpush1.msra.mxu0 %v6463
      %6654 = vmatprep.subr.mxu0 %v6459
      %6655 = vmatpush1.msra.mxu0 %v6458
      %6656 = vmatprep.subr.mxu0 %v6614
      %6657 = vmatpush2.msra.mxu0 %v6613
      %6658 = vmatprep.subr.mxu0 %v6609
      %6659 = vmatpush2.msra.mxu0 %v6608
      %6660 = vmatprep.subr.mxu0 %v6604
      %6661 = vmatpush2.msra.mxu0 %v6603
      %6662 = vmatprep.subr.mxu0 %v6599
      %6663 = vmatpush2.msra.mxu0 %v6598
      %6664 = vmatprep.subr.mxu0 %v6594
      %6665 = vmatpush2.msra.mxu0 %v6593
      %6666 = vmatprep.subr.mxu0 %v6589
      %6667 = vmatpush2.msra.mxu0 %v6588
      %6668 = vmatprep.subr.mxu0 %v6584
      %6669 = vmatpush2.msra.mxu0 %v6583
      %6670 = vmatprep.subr.mxu0 %v6579
      %6671 = vmatpush2.msra.mxu0 %v6578
      %6672 = vmatprep.subr.mxu0 %v6574
      %6673 = vmatpush2.msra.mxu0 %v6573
      %6674 = vmatprep.subr.mxu0 %v6569
      %6675 = vmatpush2.msra.mxu0 %v6568
      %6676 = vmatprep.subr.mxu0 %v6564
      %6677 = vmatpush2.msra.mxu0 %v6563
      %6678 = vmatprep.subr.mxu0 %v6559
      %6679 = vmatpush2.msra.mxu0 %v6558
      %6680 = vmatprep.subr.mxu0 %v6554
      %6681 = vmatpush2.msra.mxu0 %v6553
      %6682 = vmatprep.subr.mxu0 %v6549
      %6683 = vmatpush2.msra.mxu0 %v6548
      %6684 = vmatprep.subr.mxu0 %v6544
      %6685 = vmatpush2.msra.mxu0 %v6543
      %6686 = vmatprep.subr.mxu0 %v6539
      %6687 = vmatpush2.msra.mxu0 %v6538
      %6688 = vmatprep.mubr.f32.mxu0 %v6623
      %6689 = vmatmul.mubr.f32.gmra.mxu0 %v6622
      %v6690 = vpop.f32.mrf.mxu0
      %v6691 = vadd.f32 0.0, %v6690
      %v6692 = vpop.f32.mrf.mxu0
      %v6693 = vadd.f32 0.0, %v6692
      %6694 = vdwg.mxu0
      %6695 = vmatprep.subr.mxu0 %v6536
      %6696 = vmatpush1.msra.mxu0 %v6535
      %6697 = vmatprep.subr.mxu0 %v6531
      %6698 = vmatpush1.msra.mxu0 %v6530
      %6699 = vmatprep.subr.mxu0 %v6526
      %6700 = vmatpush1.msra.mxu0 %v6525
      %6701 = vmatprep.subr.mxu0 %v6521
      %6702 = vmatpush1.msra.mxu0 %v6520
      %6703 = vmatprep.subr.mxu0 %v6516
      %6704 = vmatpush1.msra.mxu0 %v6515
      %6705 = vmatprep.subr.mxu0 %v6511
      %6706 = vmatpush1.msra.mxu0 %v6510
      %6707 = vmatprep.subr.mxu0 %v6506
      %6708 = vmatpush1.msra.mxu0 %v6505
      %6709 = vmatprep.subr.mxu0 %v6501
      %6710 = vmatpush1.msra.mxu0 %v6500
      %6711 = vmatprep.subr.mxu0 %v6496
      %6712 = vmatpush1.msra.mxu0 %v6495
      %6713 = vmatprep.subr.mxu0 %v6491
      %6714 = vmatpush1.msra.mxu0 %v6490
      %6715 = vmatprep.subr.mxu0 %v6486
      %6716 = vmatpush1.msra.mxu0 %v6485
      %6717 = vmatprep.subr.mxu0 %v6481
      %6718 = vmatpush1.msra.mxu0 %v6480
      %6719 = vmatprep.subr.mxu0 %v6476
      %6720 = vmatpush1.msra.mxu0 %v6475
      %6721 = vmatprep.subr.mxu0 %v6471
      %6722 = vmatpush1.msra.mxu0 %v6470
      %6723 = vmatprep.subr.mxu0 %v6466
      %6724 = vmatpush1.msra.mxu0 %v6465
      %6725 = vmatprep.subr.mxu0 %v6461
      %6726 = vmatpush1.msra.mxu0 %v6460
      %6727 = vmatprep.subr.mxu0 %v6616
      %6728 = vmatpush2.msra.mxu0 %v6615
      %6729 = vmatprep.subr.mxu0 %v6611
      %6730 = vmatpush2.msra.mxu0 %v6610
      %6731 = vmatprep.subr.mxu0 %v6606
      %6732 = vmatpush2.msra.mxu0 %v6605
      %6733 = vmatprep.subr.mxu0 %v6601
      %6734 = vmatpush2.msra.mxu0 %v6600
      %6735 = vmatprep.subr.mxu0 %v6596
      %6736 = vmatpush2.msra.mxu0 %v6595
      %6737 = vmatprep.subr.mxu0 %v6591
      %6738 = vmatpush2.msra.mxu0 %v6590
      %6739 = vmatprep.subr.mxu0 %v6586
      %6740 = vmatpush2.msra.mxu0 %v6585
      %6741 = vmatprep.subr.mxu0 %v6581
      %6742 = vmatpush2.msra.mxu0 %v6580
      %6743 = vmatprep.subr.mxu0 %v6576
      %6744 = vmatpush2.msra.mxu0 %v6575
      %6745 = vmatprep.subr.mxu0 %v6571
      %6746 = vmatpush2.msra.mxu0 %v6570
      %6747 = vmatprep.subr.mxu0 %v6566
      %6748 = vmatpush2.msra.mxu0 %v6565
      %6749 = vmatprep.subr.mxu0 %v6561
      %6750 = vmatpush2.msra.mxu0 %v6560
      %6751 = vmatprep.subr.mxu0 %v6556
      %6752 = vmatpush2.msra.mxu0 %v6555
      %6753 = vmatprep.subr.mxu0 %v6551
      %6754 = vmatpush2.msra.mxu0 %v6550
      %6755 = vmatprep.subr.mxu0 %v6546
      %6756 = vmatpush2.msra.mxu0 %v6545
      %6757 = vmatprep.subr.mxu0 %v6541
      %6758 = vmatpush2.msra.mxu0 %v6540
      %6759 = vmatprep.mubr.f32.mxu0 %v6623
      %6760 = vmatmul.mubr.f32.gmra.mxu0 %v6622
      %v6761 = vpop.f32.mrf.mxu0
      %v6762 = vadd.f32 0.0, %v6761
      %v6763 = vpop.f32.mrf.mxu0
      %v6764 = vadd.f32 0.0, %v6763
      %6765 = vdwg.mxu0
      %6766 = vmatprep.subr.mxu0 0.0
      %6767 = vmatpush1.msra.mxu0 %v6537
      %6768 = vmatprep.subr.mxu0 0.0
      %6769 = vmatpush1.msra.mxu0 %v6532
      %6770 = vmatprep.subr.mxu0 0.0
      %6771 = vmatpush1.msra.mxu0 %v6527
      %6772 = vmatprep.subr.mxu0 0.0
      %6773 = vmatpush1.msra.mxu0 %v6522
      %6774 = vmatprep.subr.mxu0 0.0
      %6775 = vmatpush1.msra.mxu0 %v6517
      %6776 = vmatprep.subr.mxu0 0.0
      %6777 = vmatpush1.msra.mxu0 %v6512
      %6778 = vmatprep.subr.mxu0 0.0
      %6779 = vmatpush1.msra.mxu0 %v6507
      %6780 = vmatprep.subr.mxu0 0.0
      %6781 = vmatpush1.msra.mxu0 %v6502
      %6782 = vmatprep.subr.mxu0 0.0
      %6783 = vmatpush1.msra.mxu0 %v6497
      %6784 = vmatprep.subr.mxu0 0.0
      %6785 = vmatpush1.msra.mxu0 %v6492
      %6786 = vmatprep.subr.mxu0 0.0
      %6787 = vmatpush1.msra.mxu0 %v6487
      %6788 = vmatprep.subr.mxu0 0.0
      %6789 = vmatpush1.msra.mxu0 %v6482
      %6790 = vmatprep.subr.mxu0 0.0
      %6791 = vmatpush1.msra.mxu0 %v6477
      %6792 = vmatprep.subr.mxu0 0.0
      %6793 = vmatpush1.msra.mxu0 %v6472
      %6794 = vmatprep.subr.mxu0 0.0
      %6795 = vmatpush1.msra.mxu0 %v6467
      %6796 = vmatprep.subr.mxu0 0.0
      %6797 = vmatpush1.msra.mxu0 %v6462
      %6798 = vmatprep.subr.mxu0 0.0
      %6799 = vmatpush2.msra.mxu0 %v6617
      %6800 = vmatprep.subr.mxu0 0.0
      %6801 = vmatpush2.msra.mxu0 %v6612
      %6802 = vmatprep.subr.mxu0 0.0
      %6803 = vmatpush2.msra.mxu0 %v6607
      %6804 = vmatprep.subr.mxu0 0.0
      %6805 = vmatpush2.msra.mxu0 %v6602
      %6806 = vmatprep.subr.mxu0 0.0
      %6807 = vmatpush2.msra.mxu0 %v6597
      %6808 = vmatprep.subr.mxu0 0.0
      %6809 = vmatpush2.msra.mxu0 %v6592
      %6810 = vmatprep.subr.mxu0 0.0
      %6811 = vmatpush2.msra.mxu0 %v6587
      %6812 = vmatprep.subr.mxu0 0.0
      %6813 = vmatpush2.msra.mxu0 %v6582
      %6814 = vmatprep.subr.mxu0 0.0
      %6815 = vmatpush2.msra.mxu0 %v6577
      %6816 = vmatprep.subr.mxu0 0.0
      %6817 = vmatpush2.msra.mxu0 %v6572
      %6818 = vmatprep.subr.mxu0 0.0
      %6819 = vmatpush2.msra.mxu0 %v6567
      %6820 = vmatprep.subr.mxu0 0.0
      %6821 = vmatpush2.msra.mxu0 %v6562
      %6822 = vmatprep.subr.mxu0 0.0
      %6823 = vmatpush2.msra.mxu0 %v6557
      %6824 = vmatprep.subr.mxu0 0.0
      %6825 = vmatpush2.msra.mxu0 %v6552
      %6826 = vmatprep.subr.mxu0 0.0
      %6827 = vmatpush2.msra.mxu0 %v6547
      %6828 = vmatprep.subr.mxu0 0.0
      %6829 = vmatpush2.msra.mxu0 %v6542
      %6830 = vmatprep.mubr.f32.mxu0 %v6623
      %6831 = vmatmul.mubr.f32.gmra.mxu0 %v6622
      %v6832 = vpop.f32.mrf.mxu0
      %v6833 = vadd.f32 0.0, %v6832
      %v6834 = vpop.f32.mrf.mxu0
      %6835 = vdwg.mxu0
      %v6836 = vmul.f32 %v6691, %v4836
      %v6837 = vmul.f32 %v6693, %v4837
      %v6838 = vmul.f32 %v6762, %v4838
      %v6839 = vmul.f32 %v6764, %v4839
      %v6840 = vmul.f32 %v6833, %v4840
      %6841 = vmatprep.subr.mxu0 0.0
      %6842 = vmatpush1.msra.mxu0 %v1408
      %6843 = vmatprep.subr.mxu0 0.0
      %6844 = vmatpush1.msra.mxu0 %v1407
      %6845 = vmatprep.subr.mxu0 0.0
      %6846 = vmatpush1.msra.mxu0 %v1406
      %6847 = vmatprep.subr.mxu0 0.0
      %6848 = vmatpush1.msra.mxu0 %v1405
      %6849 = vmatprep.subr.mxu0 0.0
      %6850 = vmatpush1.msra.mxu0 %v1404
      %6851 = vmatprep.subr.mxu0 0.0
      %6852 = vmatpush1.msra.mxu0 %v1403
      %6853 = vmatprep.subr.mxu0 0.0
      %6854 = vmatpush1.msra.mxu0 %v1402
      %6855 = vmatprep.subr.mxu0 0.0
      %6856 = vmatpush1.msra.mxu0 %v1401
      %6857 = vmatprep.subr.mxu0 0.0
      %6858 = vmatpush1.msra.mxu0 %v1400
      %6859 = vmatprep.subr.mxu0 0.0
      %6860 = vmatpush1.msra.mxu0 %v1399
      %6861 = vmatprep.subr.mxu0 0.0
      %6862 = vmatpush1.msra.mxu0 %v1398
      %6863 = vmatprep.subr.mxu0 0.0
      %6864 = vmatpush1.msra.mxu0 %v1397
      %6865 = vmatprep.subr.mxu0 0.0
      %6866 = vmatpush1.msra.mxu0 %v1396
      %6867 = vmatprep.subr.mxu0 0.0
      %6868 = vmatpush1.msra.mxu0 %v1395
      %6869 = vmatprep.subr.mxu0 0.0
      %6870 = vmatpush1.msra.mxu0 %v1394
      %6871 = vmatprep.subr.mxu0 0.0
      %6872 = vmatpush1.msra.mxu0 %v1393
      %6873 = vmatprep.subr.mxu0 0.0
      %6874 = vmatpush2.msra.mxu0 %v1424
      %6875 = vmatprep.subr.mxu0 0.0
      %6876 = vmatpush2.msra.mxu0 %v1423
      %6877 = vmatprep.subr.mxu0 0.0
      %6878 = vmatpush2.msra.mxu0 %v1422
      %6879 = vmatprep.subr.mxu0 0.0
      %6880 = vmatpush2.msra.mxu0 %v1421
      %6881 = vmatprep.subr.mxu0 0.0
      %6882 = vmatpush2.msra.mxu0 %v1420
      %6883 = vmatprep.subr.mxu0 0.0
      %6884 = vmatpush2.msra.mxu0 %v1419
      %6885 = vmatprep.subr.mxu0 0.0
      %6886 = vmatpush2.msra.mxu0 %v1418
      %6887 = vmatprep.subr.mxu0 0.0
      %6888 = vmatpush2.msra.mxu0 %v1417
      %6889 = vmatprep.subr.mxu0 0.0
      %6890 = vmatpush2.msra.mxu0 %v1416
      %6891 = vmatprep.subr.mxu0 0.0
      %6892 = vmatpush2.msra.mxu0 %v1415
      %6893 = vmatprep.subr.mxu0 0.0
      %6894 = vmatpush2.msra.mxu0 %v1414
      %6895 = vmatprep.subr.mxu0 0.0
      %6896 = vmatpush2.msra.mxu0 %v1413
      %6897 = vmatprep.subr.mxu0 0.0
      %6898 = vmatpush2.msra.mxu0 %v1412
      %6899 = vmatprep.subr.mxu0 0.0
      %6900 = vmatpush2.msra.mxu0 %v1411
      %6901 = vmatprep.subr.mxu0 0.0
      %6902 = vmatpush2.msra.mxu0 %v1410
      %6903 = vmatprep.subr.mxu0 0.0
      %6904 = vmatpush2.msra.mxu0 %v1409
      %6905 = vmatprep.mubr.f32.mxu0 %v6837
      %6906 = vmatmul.mubr.f32.gmra.mxu0 %v6836
      %v6907 = vpop.f32.mrf.mxu0
      %v6908 = vadd.f32 0.0, %v6907
      %v6909 = vpop.f32.mrf.mxu0
      %6910 = vdwg.mxu0
      %6911 = vmatprep.subr.mxu0 0.0
      %6912 = vmatpush1.msra.mxu0 %v1440
      %6913 = vmatprep.subr.mxu0 0.0
      %6914 = vmatpush1.msra.mxu0 %v1439
      %6915 = vmatprep.subr.mxu0 0.0
      %6916 = vmatpush1.msra.mxu0 %v1438
      %6917 = vmatprep.subr.mxu0 0.0
      %6918 = vmatpush1.msra.mxu0 %v1437
      %6919 = vmatprep.subr.mxu0 0.0
      %6920 = vmatpush1.msra.mxu0 %v1436
      %6921 = vmatprep.subr.mxu0 0.0
      %6922 = vmatpush1.msra.mxu0 %v1435
      %6923 = vmatprep.subr.mxu0 0.0
      %6924 = vmatpush1.msra.mxu0 %v1434
      %6925 = vmatprep.subr.mxu0 0.0
      %6926 = vmatpush1.msra.mxu0 %v1433
      %6927 = vmatprep.subr.mxu0 0.0
      %6928 = vmatpush1.msra.mxu0 %v1432
      %6929 = vmatprep.subr.mxu0 0.0
      %6930 = vmatpush1.msra.mxu0 %v1431
      %6931 = vmatprep.subr.mxu0 0.0
      %6932 = vmatpush1.msra.mxu0 %v1430
      %6933 = vmatprep.subr.mxu0 0.0
      %6934 = vmatpush1.msra.mxu0 %v1429
      %6935 = vmatprep.subr.mxu0 0.0
      %6936 = vmatpush1.msra.mxu0 %v1428
      %6937 = vmatprep.subr.mxu0 0.0
      %6938 = vmatpush1.msra.mxu0 %v1427
      %6939 = vmatprep.subr.mxu0 0.0
      %6940 = vmatpush1.msra.mxu0 %v1426
      %6941 = vmatprep.subr.mxu0 0.0
      %6942 = vmatpush1.msra.mxu0 %v1425
      %6943 = vmatprep.subr.mxu0 0.0
      %6944 = vmatpush2.msra.mxu0 %v1456
      %6945 = vmatprep.subr.mxu0 0.0
      %6946 = vmatpush2.msra.mxu0 %v1455
      %6947 = vmatprep.subr.mxu0 0.0
      %6948 = vmatpush2.msra.mxu0 %v1454
      %6949 = vmatprep.subr.mxu0 0.0
      %6950 = vmatpush2.msra.mxu0 %v1453
      %6951 = vmatprep.subr.mxu0 0.0
      %6952 = vmatpush2.msra.mxu0 %v1452
      %6953 = vmatprep.subr.mxu0 0.0
      %6954 = vmatpush2.msra.mxu0 %v1451
      %6955 = vmatprep.subr.mxu0 0.0
      %6956 = vmatpush2.msra.mxu0 %v1450
      %6957 = vmatprep.subr.mxu0 0.0
      %6958 = vmatpush2.msra.mxu0 %v1449
      %6959 = vmatprep.subr.mxu0 0.0
      %6960 = vmatpush2.msra.mxu0 %v1448
      %6961 = vmatprep.subr.mxu0 0.0
      %6962 = vmatpush2.msra.mxu0 %v1447
      %6963 = vmatprep.subr.mxu0 0.0
      %6964 = vmatpush2.msra.mxu0 %v1446
      %6965 = vmatprep.subr.mxu0 0.0
      %6966 = vmatpush2.msra.mxu0 %v1445
      %6967 = vmatprep.subr.mxu0 0.0
      %6968 = vmatpush2.msra.mxu0 %v1444
      %6969 = vmatprep.subr.mxu0 0.0
      %6970 = vmatpush2.msra.mxu0 %v1443
      %6971 = vmatprep.subr.mxu0 0.0
      %6972 = vmatpush2.msra.mxu0 %v1442
      %6973 = vmatprep.subr.mxu0 0.0
      %6974 = vmatpush2.msra.mxu0 %v1441
      %6975 = vmatprep.mubr.f32.mxu0 %v6839
      %6976 = vmatmul.mubr.f32.gmra.mxu0 %v6838
      %v6977 = vpop.f32.mrf.mxu0
      %v6978 = vadd.f32 %v6908, %v6977
      %v6979 = vpop.f32.mrf.mxu0
      %6980 = vdwg.mxu0
      %6981 = vmatprep.subr.mxu0 0.0
      %6982 = vmatpush1.msra.mxu0 %v1472
      %6983 = vmatprep.subr.mxu0 0.0
      %6984 = vmatpush1.msra.mxu0 %v1471
      %6985 = vmatprep.subr.mxu0 0.0
      %6986 = vmatpush1.msra.mxu0 %v1470
      %6987 = vmatprep.subr.mxu0 0.0
      %6988 = vmatpush1.msra.mxu0 %v1469
      %6989 = vmatprep.subr.mxu0 0.0
      %6990 = vmatpush1.msra.mxu0 %v1468
      %6991 = vmatprep.subr.mxu0 0.0
      %6992 = vmatpush1.msra.mxu0 %v1467
      %6993 = vmatprep.subr.mxu0 0.0
      %6994 = vmatpush1.msra.mxu0 %v1466
      %6995 = vmatprep.subr.mxu0 0.0
      %6996 = vmatpush1.msra.mxu0 %v1465
      %6997 = vmatprep.subr.mxu0 0.0
      %6998 = vmatpush1.msra.mxu0 %v1464
      %6999 = vmatprep.subr.mxu0 0.0
      %7000 = vmatpush1.msra.mxu0 %v1463
      %7001 = vmatprep.subr.mxu0 0.0
      %7002 = vmatpush1.msra.mxu0 %v1462
      %7003 = vmatprep.subr.mxu0 0.0
      %7004 = vmatpush1.msra.mxu0 %v1461
      %7005 = vmatprep.subr.mxu0 0.0
      %7006 = vmatpush1.msra.mxu0 %v1460
      %7007 = vmatprep.subr.mxu0 0.0
      %7008 = vmatpush1.msra.mxu0 %v1459
      %7009 = vmatprep.subr.mxu0 0.0
      %7010 = vmatpush1.msra.mxu0 %v1458
      %7011 = vmatprep.subr.mxu0 0.0
      %7012 = vmatpush1.msra.mxu0 %v1457
      %7013 = vmatprep.subr.mxu0 0.0
      %7014 = vmatpush2.msra.mxu0 0.0
      %7015 = vmatprep.subr.mxu0 0.0
      %7016 = vmatpush2.msra.mxu0 0.0
      %7017 = vmatprep.subr.mxu0 0.0
      %7018 = vmatpush2.msra.mxu0 0.0
      %7019 = vmatprep.subr.mxu0 0.0
      %7020 = vmatpush2.msra.mxu0 0.0
      %7021 = vmatprep.subr.mxu0 0.0
      %7022 = vmatpush2.msra.mxu0 0.0
      %7023 = vmatprep.subr.mxu0 0.0
      %7024 = vmatpush2.msra.mxu0 0.0
      %7025 = vmatprep.subr.mxu0 0.0
      %7026 = vmatpush2.msra.mxu0 0.0
      %7027 = vmatprep.subr.mxu0 0.0
      %7028 = vmatpush2.msra.mxu0 0.0
      %7029 = vmatprep.subr.mxu0 0.0
      %7030 = vmatpush2.msra.mxu0 0.0
      %7031 = vmatprep.subr.mxu0 0.0
      %7032 = vmatpush2.msra.mxu0 0.0
      %7033 = vmatprep.subr.mxu0 0.0
      %7034 = vmatpush2.msra.mxu0 0.0
      %7035 = vmatprep.subr.mxu0 0.0
      %7036 = vmatpush2.msra.mxu0 0.0
      %7037 = vmatprep.subr.mxu0 0.0
      %7038 = vmatpush2.msra.mxu0 0.0
      %7039 = vmatprep.subr.mxu0 0.0
      %7040 = vmatpush2.msra.mxu0 0.0
      %7041 = vmatprep.subr.mxu0 0.0
      %7042 = vmatpush2.msra.mxu0 0.0
      %7043 = vmatprep.subr.mxu0 0.0
      %7044 = vmatpush2.msra.mxu0 0.0
      %7045 = vmatprep.mubr.f32.mxu0 0.0
      %7046 = vmatmul.mubr.f32.gmra.mxu0 %v6840
      %v7047 = vpop.f32.mrf.mxu0
      %v7048 = vadd.f32 %v6978, %v7047
      %v7049 = vpop.f32.mrf.mxu0
      %7050 = vdwg.mxu0
      %v7051 = vlaneseq
      %v7052 = vshrl.u32 %v7051, 7
      %v7053 = vsub.s32 0, %v7052
      %v7054 = vrot.slane %v7048, %v7053
      %7055 = vmatprep.subr.mxu0 0.0
      %7056 = vmatpush1.msra.mxu0 %v1488
      %7057 = vmatprep.subr.mxu0 0.0
      %7058 = vmatpush1.msra.mxu0 %v1487
      %7059 = vmatprep.subr.mxu0 0.0
      %7060 = vmatpush1.msra.mxu0 %v1486
      %7061 = vmatprep.subr.mxu0 0.0
      %7062 = vmatpush1.msra.mxu0 %v1485
      %7063 = vmatprep.subr.mxu0 0.0
      %7064 = vmatpush1.msra.mxu0 %v1484
      %7065 = vmatprep.subr.mxu0 0.0
      %7066 = vmatpush1.msra.mxu0 %v1483
      %7067 = vmatprep.subr.mxu0 0.0
      %7068 = vmatpush1.msra.mxu0 %v1482
      %7069 = vmatprep.subr.mxu0 0.0
      %7070 = vmatpush1.msra.mxu0 %v1481
      %7071 = vmatprep.subr.mxu0 0.0
      %7072 = vmatpush1.msra.mxu0 %v1480
      %7073 = vmatprep.subr.mxu0 0.0
      %7074 = vmatpush1.msra.mxu0 %v1479
      %7075 = vmatprep.subr.mxu0 0.0
      %7076 = vmatpush1.msra.mxu0 %v1478
      %7077 = vmatprep.subr.mxu0 0.0
      %7078 = vmatpush1.msra.mxu0 %v1477
      %7079 = vmatprep.subr.mxu0 0.0
      %7080 = vmatpush1.msra.mxu0 %v1476
      %7081 = vmatprep.subr.mxu0 0.0
      %7082 = vmatpush1.msra.mxu0 %v1475
      %7083 = vmatprep.subr.mxu0 0.0
      %7084 = vmatpush1.msra.mxu0 %v1474
      %7085 = vmatprep.subr.mxu0 0.0
      %7086 = vmatpush1.msra.mxu0 %v1473
      %7087 = vmatprep.subr.mxu0 0.0
      %7088 = vmatpush2.msra.mxu0 0.0
      %7089 = vmatprep.subr.mxu0 0.0
      %7090 = vmatpush2.msra.mxu0 0.0
      %7091 = vmatprep.subr.mxu0 0.0
      %7092 = vmatpush2.msra.mxu0 0.0
      %7093 = vmatprep.subr.mxu0 0.0
      %7094 = vmatpush2.msra.mxu0 0.0
      %7095 = vmatprep.subr.mxu0 0.0
      %7096 = vmatpush2.msra.mxu0 0.0
      %7097 = vmatprep.subr.mxu0 0.0
      %7098 = vmatpush2.msra.mxu0 0.0
      %7099 = vmatprep.subr.mxu0 0.0
      %7100 = vmatpush2.msra.mxu0 0.0
      %7101 = vmatprep.subr.mxu0 0.0
      %7102 = vmatpush2.msra.mxu0 0.0
      %7103 = vmatprep.subr.mxu0 0.0
      %7104 = vmatpush2.msra.mxu0 0.0
      %7105 = vmatprep.subr.mxu0 0.0
      %7106 = vmatpush2.msra.mxu0 0.0
      %7107 = vmatprep.subr.mxu0 0.0
      %7108 = vmatpush2.msra.mxu0 0.0
      %7109 = vmatprep.subr.mxu0 0.0
      %7110 = vmatpush2.msra.mxu0 0.0
      %7111 = vmatprep.subr.mxu0 0.0
      %7112 = vmatpush2.msra.mxu0 0.0
      %7113 = vmatprep.subr.mxu0 0.0
      %7114 = vmatpush2.msra.mxu0 0.0
      %7115 = vmatprep.subr.mxu0 0.0
      %7116 = vmatpush2.msra.mxu0 0.0
      %7117 = vmatprep.subr.mxu0 0.0
      %7118 = vmatpush2.msra.mxu0 0.0
      %7119 = vmatprep.mubr.f32.mxu0 0.0
      %7120 = vmatmul.mubr.f32.gmra.mxu0 %v5951
      %v7121 = vpop.f32.mrf.mxu0
      %v7122 = vadd.f32 %v7054, %v7121
      %v7123 = vpop.f32.mrf.mxu0
      %7124 = vdwg.mxu0
      %v7125 = vadd.f32 %v7122, %v5139
      %v7126 = vmax.f32 %v7125, 0.0
      %7127 = vmatprep.subr.mxu0 0.0
      %7128 = vmatpush1.msra.mxu0 %v1505
      %7129 = vmatprep.subr.mxu0 0.0
      %7130 = vmatpush1.msra.mxu0 %v1504
      %7131 = vmatprep.subr.mxu0 0.0
      %7132 = vmatpush1.msra.mxu0 %v1503
      %7133 = vmatprep.subr.mxu0 0.0
      %7134 = vmatpush1.msra.mxu0 %v1502
      %7135 = vmatprep.subr.mxu0 0.0
      %7136 = vmatpush1.msra.mxu0 %v1501
      %7137 = vmatprep.subr.mxu0 0.0
      %7138 = vmatpush1.msra.mxu0 %v1500
      %7139 = vmatprep.subr.mxu0 0.0
      %7140 = vmatpush1.msra.mxu0 %v1499
      %7141 = vmatprep.subr.mxu0 0.0
      %7142 = vmatpush1.msra.mxu0 %v1498
      %7143 = vmatprep.subr.mxu0 0.0
      %7144 = vmatpush1.msra.mxu0 %v1497
      %7145 = vmatprep.subr.mxu0 0.0
      %7146 = vmatpush1.msra.mxu0 %v1496
      %7147 = vmatprep.subr.mxu0 0.0
      %7148 = vmatpush1.msra.mxu0 %v1495
      %7149 = vmatprep.subr.mxu0 0.0
      %7150 = vmatpush1.msra.mxu0 %v1494
      %7151 = vmatprep.subr.mxu0 0.0
      %7152 = vmatpush1.msra.mxu0 %v1493
      %7153 = vmatprep.subr.mxu0 0.0
      %7154 = vmatpush1.msra.mxu0 %v1492
      %7155 = vmatprep.subr.mxu0 0.0
      %7156 = vmatpush1.msra.mxu0 %v1491
      %7157 = vmatprep.subr.mxu0 0.0
      %7158 = vmatpush1.msra.mxu0 %v1490
      %7159 = vmatprep.subr.mxu0 0.0
      %7160 = vmatpush2.msra.mxu0 0.0
      %7161 = vmatprep.subr.mxu0 0.0
      %7162 = vmatpush2.msra.mxu0 0.0
      %7163 = vmatprep.subr.mxu0 0.0
      %7164 = vmatpush2.msra.mxu0 0.0
      %7165 = vmatprep.subr.mxu0 0.0
      %7166 = vmatpush2.msra.mxu0 0.0
      %7167 = vmatprep.subr.mxu0 0.0
      %7168 = vmatpush2.msra.mxu0 0.0
      %7169 = vmatprep.subr.mxu0 0.0
      %7170 = vmatpush2.msra.mxu0 0.0
      %7171 = vmatprep.subr.mxu0 0.0
      %7172 = vmatpush2.msra.mxu0 0.0
      %7173 = vmatprep.subr.mxu0 0.0
      %7174 = vmatpush2.msra.mxu0 0.0
      %7175 = vmatprep.subr.mxu0 0.0
      %7176 = vmatpush2.msra.mxu0 0.0
      %7177 = vmatprep.subr.mxu0 0.0
      %7178 = vmatpush2.msra.mxu0 0.0
      %7179 = vmatprep.subr.mxu0 0.0
      %7180 = vmatpush2.msra.mxu0 0.0
      %7181 = vmatprep.subr.mxu0 0.0
      %7182 = vmatpush2.msra.mxu0 0.0
      %7183 = vmatprep.subr.mxu0 0.0
      %7184 = vmatpush2.msra.mxu0 0.0
      %7185 = vmatprep.subr.mxu0 0.0
      %7186 = vmatpush2.msra.mxu0 0.0
      %7187 = vmatprep.subr.mxu0 0.0
      %7188 = vmatpush2.msra.mxu0 0.0
      %7189 = vmatprep.subr.mxu0 0.0
      %7190 = vmatpush2.msra.mxu0 0.0
      %7191 = vmatprep.mubr.f32.mxu0 0.0
      %7192 = vmatmul.mubr.f32.gmra.mxu0 %v7126
      %v7193 = vpop.f32.mrf.mxu0
      %v7194 = vadd.f32 %v5149, %v7193
      %v7195 = vpop.f32.mrf.mxu0
      %7196 = vdwg.mxu0
      %7198 = vrot.lane.b32.xlu0 %v7194, 127
      %v7199 = vpop.permute.xlu0 %7198
      %v7202 = vsel %vm5877, %v5797, 0
      %v7205 = vsel %vm5877, %v5798, 0
      %v7208 = vsel %vm5877, %v5799, 0
      %7210 = vmatprep.subr.mxu0 0.0
      %7211 = vmatpush1.msra.mxu0 0.0
      %7212 = vmatprep.subr.mxu0 0.0
      %7213 = vmatpush1.msra.mxu0 0.0
      %7214 = vmatprep.subr.mxu0 0.0
      %7215 = vmatpush1.msra.mxu0 0.0
      %7216 = vmatprep.subr.mxu0 0.0
      %7217 = vmatpush1.msra.mxu0 0.0
      %7218 = vmatprep.subr.mxu0 0.0
      %7219 = vmatpush1.msra.mxu0 0.0
      %7220 = vmatprep.subr.mxu0 0.0
      %7221 = vmatpush1.msra.mxu0 0.0
      %7222 = vmatprep.subr.mxu0 0.0
      %7223 = vmatpush1.msra.mxu0 0.0
      %7224 = vmatprep.subr.mxu0 0.0
      %7225 = vmatpush1.msra.mxu0 0.0
      %7226 = vmatprep.subr.mxu0 0.0
      %7227 = vmatpush1.msra.mxu0 0.0
      %7228 = vmatprep.subr.mxu0 0.0
      %7229 = vmatpush1.msra.mxu0 0.0
      %7230 = vmatprep.subr.mxu0 0.0
      %7231 = vmatpush1.msra.mxu0 0.0
      %7232 = vmatprep.subr.mxu0 0.0
      %7233 = vmatpush1.msra.mxu0 0.0
      %7234 = vmatprep.subr.mxu0 0.0
      %7235 = vmatpush1.msra.mxu0 0.0
      %7236 = vmatprep.subr.mxu0 0.0
      %7237 = vmatpush1.msra.mxu0 0.0
      %7238 = vmatprep.subr.mxu0 0.0
      %7239 = vmatpush1.msra.mxu0 0.0
      %7240 = vmatprep.subr.mxu0 0.0
      %7241 = vmatpush1.msra.mxu0 %v7199
      %7242 = vmatprep.subr.mxu0 0.0
      %7243 = vmatpush2.msra.mxu0 0.0
      %7244 = vmatprep.subr.mxu0 0.0
      %7245 = vmatpush2.msra.mxu0 0.0
      %7246 = vmatprep.subr.mxu0 0.0
      %7247 = vmatpush2.msra.mxu0 0.0
      %7248 = vmatprep.subr.mxu0 0.0
      %7249 = vmatpush2.msra.mxu0 0.0
      %7250 = vmatprep.subr.mxu0 0.0
      %7251 = vmatpush2.msra.mxu0 0.0
      %7252 = vmatprep.subr.mxu0 0.0
      %7253 = vmatpush2.msra.mxu0 0.0
      %7254 = vmatprep.subr.mxu0 0.0
      %7255 = vmatpush2.msra.mxu0 0.0
      %7256 = vmatprep.subr.mxu0 0.0
      %7257 = vmatpush2.msra.mxu0 0.0
      %7258 = vmatprep.subr.mxu0 0.0
      %7259 = vmatpush2.msra.mxu0 0.0
      %7260 = vmatprep.subr.mxu0 0.0
      %7261 = vmatpush2.msra.mxu0 0.0
      %7262 = vmatprep.subr.mxu0 0.0
      %7263 = vmatpush2.msra.mxu0 0.0
      %7264 = vmatprep.subr.mxu0 0.0
      %7265 = vmatpush2.msra.mxu0 0.0
      %7266 = vmatprep.subr.mxu0 0.0
      %7267 = vmatpush2.msra.mxu0 0.0
      %7268 = vmatprep.subr.mxu0 0.0
      %7269 = vmatpush2.msra.mxu0 0.0
      %7270 = vmatprep.subr.mxu0 0.0
      %7271 = vmatpush2.msra.mxu0 0.0
      %7272 = vmatprep.subr.mxu0 0.0
      %7273 = vmatpush2.msra.mxu0 0.0
      %7274 = vmatprep.mubr.f32.mxu0 0.0
      %7275 = vmatmul.mubr.f32.gmra.mxu0 %v7202
      %v7276 = vpop.f32.mrf.mxu0
      %v7277 = vadd.f32 0.0, %v7276
      %v7278 = vpop.f32.mrf.mxu0
      %7279 = vmatprep.mubr.f32.mxu0 0.0
      %7280 = vmatmul.mubr.f32.gmra.mxu0 %v7205
      %v7281 = vpop.f32.mrf.mxu0
      %v7282 = vadd.f32 0.0, %v7281
      %v7283 = vpop.f32.mrf.mxu0
      %7284 = vmatprep.mubr.f32.mxu0 0.0
      %7285 = vmatmul.mubr.f32.gmra.mxu0 %v7208
      %v7286 = vpop.f32.mrf.mxu0
      %v7287 = vadd.f32 0.0, %v7286
      %v7288 = vpop.f32.mrf.mxu0
      %7289 = vdwg.mxu0
      %v7291 = vsel %vm5877, %v5794, 0
      %v7294 = vsel %vm5877, %v5795, 0
      %v7297 = vsel %vm5877, %v5796, 0
      %7299 = vmatprep.subr.mxu0 0.0
      %7300 = vmatpush1.msra.mxu0 0.0
      %7301 = vmatprep.subr.mxu0 0.0
      %7302 = vmatpush1.msra.mxu0 0.0
      %7303 = vmatprep.subr.mxu0 0.0
      %7304 = vmatpush1.msra.mxu0 0.0
      %7305 = vmatprep.subr.mxu0 0.0
      %7306 = vmatpush1.msra.mxu0 0.0
      %7307 = vmatprep.subr.mxu0 0.0
      %7308 = vmatpush1.msra.mxu0 0.0
      %7309 = vmatprep.subr.mxu0 0.0
      %7310 = vmatpush1.msra.mxu0 0.0
      %7311 = vmatprep.subr.mxu0 0.0
      %7312 = vmatpush1.msra.mxu0 0.0
      %7313 = vmatprep.subr.mxu0 0.0
      %7314 = vmatpush1.msra.mxu0 0.0
      %7315 = vmatprep.subr.mxu0 0.0
      %7316 = vmatpush1.msra.mxu0 0.0
      %7317 = vmatprep.subr.mxu0 0.0
      %7318 = vmatpush1.msra.mxu0 0.0
      %7319 = vmatprep.subr.mxu0 0.0
      %7320 = vmatpush1.msra.mxu0 0.0
      %7321 = vmatprep.subr.mxu0 0.0
      %7322 = vmatpush1.msra.mxu0 0.0
      %7323 = vmatprep.subr.mxu0 0.0
      %7324 = vmatpush1.msra.mxu0 0.0
      %7325 = vmatprep.subr.mxu0 0.0
      %7326 = vmatpush1.msra.mxu0 0.0
      %7327 = vmatprep.subr.mxu0 0.0
      %7328 = vmatpush1.msra.mxu0 0.0
      %7329 = vmatprep.subr.mxu0 0.0
      %7330 = vmatpush1.msra.mxu0 %v7194
      %7331 = vmatprep.subr.mxu0 0.0
      %7332 = vmatpush2.msra.mxu0 0.0
      %7333 = vmatprep.subr.mxu0 0.0
      %7334 = vmatpush2.msra.mxu0 0.0
      %7335 = vmatprep.subr.mxu0 0.0
      %7336 = vmatpush2.msra.mxu0 0.0
      %7337 = vmatprep.subr.mxu0 0.0
      %7338 = vmatpush2.msra.mxu0 0.0
      %7339 = vmatprep.subr.mxu0 0.0
      %7340 = vmatpush2.msra.mxu0 0.0
      %7341 = vmatprep.subr.mxu0 0.0
      %7342 = vmatpush2.msra.mxu0 0.0
      %7343 = vmatprep.subr.mxu0 0.0
      %7344 = vmatpush2.msra.mxu0 0.0
      %7345 = vmatprep.subr.mxu0 0.0
      %7346 = vmatpush2.msra.mxu0 0.0
      %7347 = vmatprep.subr.mxu0 0.0
      %7348 = vmatpush2.msra.mxu0 0.0
      %7349 = vmatprep.subr.mxu0 0.0
      %7350 = vmatpush2.msra.mxu0 0.0
      %7351 = vmatprep.subr.mxu0 0.0
      %7352 = vmatpush2.msra.mxu0 0.0
      %7353 = vmatprep.subr.mxu0 0.0
      %7354 = vmatpush2.msra.mxu0 0.0
      %7355 = vmatprep.subr.mxu0 0.0
      %7356 = vmatpush2.msra.mxu0 0.0
      %7357 = vmatprep.subr.mxu0 0.0
      %7358 = vmatpush2.msra.mxu0 0.0
      %7359 = vmatprep.subr.mxu0 0.0
      %7360 = vmatpush2.msra.mxu0 0.0
      %7361 = vmatprep.subr.mxu0 0.0
      %7362 = vmatpush2.msra.mxu0 0.0
      %7363 = vmatprep.mubr.f32.mxu0 0.0
      %7364 = vmatmul.mubr.f32.gmra.mxu0 %v7291
      %v7365 = vpop.f32.mrf.mxu0
      %v7366 = vadd.f32 %v7277, %v7365
      %v7367 = vpop.f32.mrf.mxu0
      %7368 = vmatprep.mubr.f32.mxu0 0.0
      %7369 = vmatmul.mubr.f32.gmra.mxu0 %v7294
      %v7370 = vpop.f32.mrf.mxu0
      %v7371 = vadd.f32 %v7282, %v7370
      %v7372 = vpop.f32.mrf.mxu0
      %7373 = vmatprep.mubr.f32.mxu0 0.0
      %7374 = vmatmul.mubr.f32.gmra.mxu0 %v7297
      %v7375 = vpop.f32.mrf.mxu0
      %v7376 = vadd.f32 %v7287, %v7375
      %v7377 = vpop.f32.mrf.mxu0
      %7378 = vdwg.mxu0
      %vm7379 = vcmp.gt.f32.partialorder %v5797, 0.0
      %vm7380 = vcmp.gt.f32.partialorder %v5798, 0.0
      %vm7381 = vcmp.gt.f32.partialorder %v5799, 0.0
      %7383 = vset.pattern.permute.xlu0 0
      %7384 = vperm.xlu0 %7383, %v7366
      %v7385 = vpop.permute.xlu0 %7384
      %7388 = vset.pattern.permute.xlu0 0
      %7389 = vperm.xlu0 %7388, %v7371
      %v7390 = vpop.permute.xlu0 %7389
      %7393 = vset.pattern.permute.xlu0 0
      %7394 = vperm.xlu0 %7393, %v7376
      %v7395 = vpop.permute.xlu0 %7394
      %v7397 = vsel %vm7379, %v7385, -1e+30
      %v7398 = vsel %vm7380, %v7390, -1e+30
      %v7399 = vsel %vm7381, %v7395, -1e+30
      %v7400 = vsel %vm5877, %v7397, -inf
      %v7401 = vsel %vm5877, %v7398, -inf
      %vm7402 = vcmask 62464
      %v7403 = vsel %vm7402, %v7399, -inf
      %v7404 = vmax.f32 %v7400, %v7401
      %v7405 = vmax.f32 %v7404, %v7403
      %v7406 = vrot.slane %v7405, 4
      %v7407 = vmax.f32 %v7405, %v7406
      %v7408 = vrot.slane %v7407, 2
      %v7409 = vmax.f32 %v7407, %v7408
      %v7410 = vrot.slane %v7409, 1
      %v7411 = vmax.f32 %v7409, %v7410
      %v7412 = vmul.f32 %v5797, %v7411
      %v7413 = vmul.f32 %v5798, %v7411
      %v7414 = vmul.f32 %v5799, %v7411
      %v7415 = vsel %vm5877, %v7412, 0.0
      %7416 = vadd.xlane.f32.xlu0 %v7415
      %v7417 = vpop.xlane.xlu0 %7416
      %v7418 = vsel %vm5877, %v7413, 0.0
      %7419 = vadd.xlane.f32.xlu0 %v7418
      %v7420 = vpop.xlane.xlu0 %7419
      %v7421 = vsel %vm7402, %v7414, 0.0
      %7422 = vadd.xlane.f32.xlu0 %v7421
      %v7423 = vpop.xlane.xlu0 %7422
      %v7424 = vsub.f32 %v7366, %v7417
      %v7425 = vsub.f32 %v7371, %v7420
      %v7426 = vsub.f32 %v7376, %v7423
      %v7427 = vmul.f32 %v7424, 1.442695
      %v7428 = vpow.pop %v7427
      %v7429 = vmul.f32 %v7425, 1.442695
      %v7430 = vpow.pop %v7429
      %v7431 = vmul.f32 %v7426, 1.442695
      %v7432 = vpow.pop %v7431
      %7434 = vset.pattern.permute.xlu0 0
      %7435 = vperm.xlu0 %7434, %v7428
      %v7436 = vpop.permute.xlu0 %7435
      %7439 = vset.pattern.permute.xlu0 0
      %7440 = vperm.xlu0 %7439, %v7430
      %v7441 = vpop.permute.xlu0 %7440
      %7444 = vset.pattern.permute.xlu0 0
      %7445 = vperm.xlu0 %7444, %v7432
      %v7446 = vpop.permute.xlu0 %7445
      %v7448 = vmul.f32 %v5797, %v7436
      %v7449 = vmul.f32 %v5798, %v7441
      %v7450 = vmul.f32 %v5799, %v7446
      %v7451 = vsel %vm5877, %v7448, 0.0
      %v7452 = vsel %vm5877, %v7449, 0.0
      %v7453 = vadd.f32 %v7451, %v7452
      %v7454 = vsel %vm7402, %v7450, 0.0
      %v7455 = vadd.f32 %v7453, %v7454
      %v7456 = vrot.slane %v7455, 4
      %v7457 = vadd.f32 %v7455, %v7456
      %v7458 = vrot.slane %v7457, 2
      %v7459 = vadd.f32 %v7457, %v7458
      %v7460 = vrot.slane %v7459, 1
      %v7461 = vadd.f32 %v7459, %v7460
      %v7462 = vmul.f32 %v5797, %v7461
      %v7463 = vmul.f32 %v5798, %v7461
      %v7464 = vmul.f32 %v5799, %v7461
      %v7465 = vsel %vm5877, %v7462, 0.0
      %7466 = vadd.xlane.f32.xlu0 %v7465
      %v7467 = vpop.xlane.xlu0 %7466
      %v7468 = vsel %vm5877, %v7463, 0.0
      %7469 = vadd.xlane.f32.xlu0 %v7468
      %v7470 = vpop.xlane.xlu0 %7469
      %v7471 = vsel %vm7402, %v7464, 0.0
      %7472 = vadd.xlane.f32.xlu0 %v7471
      %v7473 = vpop.xlane.xlu0 %7472
      %v7474 = vmax.f32 %v7467, 1e-12
      %v7475 = vmax.f32 %v7470, 1e-12
      %v7476 = vmax.f32 %v7473, 1e-12
      %v7477 = vrcp.pop %v7474
      %v7478 = vrcp.pop %v7475
      %v7479 = vrcp.pop %v7476
      %v7480 = vmul.f32 %v7428, %v7477
      %v7481 = vmul.f32 %v7430, %v7478
      %v7482 = vmul.f32 %v7432, %v7479
      %v7483 = vadd.f32 %v7480, 0.5
      %v7484 = vadd.f32 %v7481, 0.5
      %v7485 = vadd.f32 %v7482, 0.5
      %vm7486 = vcmask 175104
      %v7487 = vsel %vm7486, %v5800, 0.0
      %7488 = vadd.xlane.f32.xlu0 %v7487
      %v7489 = vpop.xlane.xlu0 %7488
      %vm7490 = vcmask 179200
      %v7492 = vsel %vm7490, %v5800, 0
      %v7495 = vsel %vm5574, %v7485, 0
      %7497 = vmatprep.subr.mxu0 0.0
      %7498 = vmatpush1.msra.mxu0 0.0
      %7499 = vmatprep.subr.mxu0 0.0
      %7500 = vmatpush1.msra.mxu0 0.0
      %7501 = vmatprep.subr.mxu0 0.0
      %7502 = vmatpush1.msra.mxu0 0.0
      %7503 = vmatprep.subr.mxu0 0.0
      %7504 = vmatpush1.msra.mxu0 0.0
      %7505 = vmatprep.subr.mxu0 0.0
      %7506 = vmatpush1.msra.mxu0 0.0
      %7507 = vmatprep.subr.mxu0 0.0
      %7508 = vmatpush1.msra.mxu0 0.0
      %7509 = vmatprep.subr.mxu0 0.0
      %7510 = vmatpush1.msra.mxu0 0.0
      %7511 = vmatprep.subr.mxu0 0.0
      %7512 = vmatpush1.msra.mxu0 0.0
      %7513 = vmatprep.subr.mxu0 0.0
      %7514 = vmatpush1.msra.mxu0 0.0
      %7515 = vmatprep.subr.mxu0 0.0
      %7516 = vmatpush1.msra.mxu0 0.0
      %7517 = vmatprep.subr.mxu0 0.0
      %7518 = vmatpush1.msra.mxu0 0.0
      %7519 = vmatprep.subr.mxu0 0.0
      %7520 = vmatpush1.msra.mxu0 0.0
      %7521 = vmatprep.subr.mxu0 0.0
      %7522 = vmatpush1.msra.mxu0 0.0
      %7523 = vmatprep.subr.mxu0 0.0
      %7524 = vmatpush1.msra.mxu0 %v7495
      %7525 = vmatprep.subr.mxu0 0.0
      %7526 = vmatpush1.msra.mxu0 %v7484
      %7527 = vmatprep.subr.mxu0 0.0
      %7528 = vmatpush1.msra.mxu0 %v7483
      %7529 = vmatprep.subr.mxu0 0.0
      %7530 = vmatpush2.msra.mxu0 0.0
      %7531 = vmatprep.subr.mxu0 0.0
      %7532 = vmatpush2.msra.mxu0 0.0
      %7533 = vmatprep.subr.mxu0 0.0
      %7534 = vmatpush2.msra.mxu0 0.0
      %7535 = vmatprep.subr.mxu0 0.0
      %7536 = vmatpush2.msra.mxu0 0.0
      %7537 = vmatprep.subr.mxu0 0.0
      %7538 = vmatpush2.msra.mxu0 0.0
      %7539 = vmatprep.subr.mxu0 0.0
      %7540 = vmatpush2.msra.mxu0 0.0
      %7541 = vmatprep.subr.mxu0 0.0
      %7542 = vmatpush2.msra.mxu0 0.0
      %7543 = vmatprep.subr.mxu0 0.0
      %7544 = vmatpush2.msra.mxu0 0.0
      %7545 = vmatprep.subr.mxu0 0.0
      %7546 = vmatpush2.msra.mxu0 0.0
      %7547 = vmatprep.subr.mxu0 0.0
      %7548 = vmatpush2.msra.mxu0 0.0
      %7549 = vmatprep.subr.mxu0 0.0
      %7550 = vmatpush2.msra.mxu0 0.0
      %7551 = vmatprep.subr.mxu0 0.0
      %7552 = vmatpush2.msra.mxu0 0.0
      %7553 = vmatprep.subr.mxu0 0.0
      %7554 = vmatpush2.msra.mxu0 0.0
      %7555 = vmatprep.subr.mxu0 0.0
      %7556 = vmatpush2.msra.mxu0 0.0
      %7557 = vmatprep.subr.mxu0 0.0
      %7558 = vmatpush2.msra.mxu0 0.0
      %7559 = vmatprep.subr.mxu0 0.0
      %7560 = vmatpush2.msra.mxu0 0.0
      %7561 = vmatprep.mubr.f32.mxu0 0.0
      %7562 = vmatmul.mubr.f32.gmra.mxu0 %v7492
      %v7563 = vpop.f32.mrf.mxu0
      %v7564 = vadd.f32 0.0, %v7563
      %v7565 = vpop.f32.mrf.mxu0
      %7566 = vdwg.mxu0
      %vm7567 = vcmp.gt.f32.partialorder %v7489, 0.0
      %v7568 = vmax.f32 %v7489, 1.0
      %v7569 = vrcp.pop %v7568
      %v7570 = vmul.f32 %v7564, %v7569
      %v7571 = vsel %vm7567, %v7570, 0.5
      %v7572 = vsel %vm5877, %v5663, 0
      %7574 = vmatprep.subr.mxu0 0.0
      %7575 = vmatpush1.msra.mxu0 0.0
      %7576 = vmatprep.subr.mxu0 0.0
      %7577 = vmatpush1.msra.mxu0 0.0
      %7578 = vmatprep.subr.mxu0 0.0
      %7579 = vmatpush1.msra.mxu0 0.0
      %7580 = vmatprep.subr.mxu0 0.0
      %7581 = vmatpush1.msra.mxu0 0.0
      %7582 = vmatprep.subr.mxu0 0.0
      %7583 = vmatpush1.msra.mxu0 0.0
      %7584 = vmatprep.subr.mxu0 0.0
      %7585 = vmatpush1.msra.mxu0 0.0
      %7586 = vmatprep.subr.mxu0 0.0
      %7587 = vmatpush1.msra.mxu0 0.0
      %7588 = vmatprep.subr.mxu0 0.0
      %7589 = vmatpush1.msra.mxu0 0.0
      %7590 = vmatprep.subr.mxu0 0.0
      %7591 = vmatpush1.msra.mxu0 0.0
      %7592 = vmatprep.subr.mxu0 0.0
      %7593 = vmatpush1.msra.mxu0 0.0
      %7594 = vmatprep.subr.mxu0 0.0
      %7595 = vmatpush1.msra.mxu0 0.0
      %7596 = vmatprep.subr.mxu0 0.0
      %7597 = vmatpush1.msra.mxu0 0.0
      %7598 = vmatprep.subr.mxu0 0.0
      %7599 = vmatpush1.msra.mxu0 0.0
      %7600 = vmatprep.subr.mxu0 0.0
      %7601 = vmatpush1.msra.mxu0 0.0
      %7602 = vmatprep.subr.mxu0 0.0
      %7603 = vmatpush1.msra.mxu0 0.0
      %7604 = vmatprep.subr.mxu0 0.0
      %7605 = vmatpush1.msra.mxu0 %v7126
      %7606 = vmatprep.subr.mxu0 0.0
      %7607 = vmatpush2.msra.mxu0 0.0
      %7608 = vmatprep.subr.mxu0 0.0
      %7609 = vmatpush2.msra.mxu0 0.0
      %7610 = vmatprep.subr.mxu0 0.0
      %7611 = vmatpush2.msra.mxu0 0.0
      %7612 = vmatprep.subr.mxu0 0.0
      %7613 = vmatpush2.msra.mxu0 0.0
      %7614 = vmatprep.subr.mxu0 0.0
      %7615 = vmatpush2.msra.mxu0 0.0
      %7616 = vmatprep.subr.mxu0 0.0
      %7617 = vmatpush2.msra.mxu0 0.0
      %7618 = vmatprep.subr.mxu0 0.0
      %7619 = vmatpush2.msra.mxu0 0.0
      %7620 = vmatprep.subr.mxu0 0.0
      %7621 = vmatpush2.msra.mxu0 0.0
      %7622 = vmatprep.subr.mxu0 0.0
      %7623 = vmatpush2.msra.mxu0 0.0
      %7624 = vmatprep.subr.mxu0 0.0
      %7625 = vmatpush2.msra.mxu0 0.0
      %7626 = vmatprep.subr.mxu0 0.0
      %7627 = vmatpush2.msra.mxu0 0.0
      %7628 = vmatprep.subr.mxu0 0.0
      %7629 = vmatpush2.msra.mxu0 0.0
      %7630 = vmatprep.subr.mxu0 0.0
      %7631 = vmatpush2.msra.mxu0 0.0
      %7632 = vmatprep.subr.mxu0 0.0
      %7633 = vmatpush2.msra.mxu0 0.0
      %7634 = vmatprep.subr.mxu0 0.0
      %7635 = vmatpush2.msra.mxu0 0.0
      %7636 = vmatprep.subr.mxu0 0.0
      %7637 = vmatpush2.msra.mxu0 0.0
      %7638 = vmatprep.mubr.f32.mxu0 0.0
      %7639 = vmatmul.mubr.f32.gmra.mxu0 %v7572
      %v7640 = vpop.f32.mrf.mxu0
      %v7641 = vadd.f32 0.0, %v7640
      %v7642 = vpop.f32.mrf.mxu0
      %7643 = vdwg.mxu0
      %7645 = vset.pattern.permute.xlu0 0
      %7646 = vperm.xlu0 %7645, %v7571
      %v7647 = vpop.permute.xlu0 %7646
      %v7649 = vmul.f32 %v7641, %v7647
      %v7650 = vld [vmem:[%s1246] sm:$0xf]
      %v7651 = vld [vmem:[%s1201] sm:$0xff]
      %v7652 = vld [vmem:[%s1201 + $0x8] sm:$0xff]
      %v7653 = vld [vmem:[%s1201 + $0x10] sm:$0xff]
      %v7654 = vld [vmem:[%s1201 + $0x18] sm:$0xff]
      %v7655 = vld [vmem:[%s1201 + $0x20] sm:$0xff]
      %v7656 = vld [vmem:[%s1201 + $0x28] sm:$0xff]
      %v7657 = vld [vmem:[%s1201 + $0x30] sm:$0xff]
      %v7658 = vld [vmem:[%s1201 + $0x38] sm:$0xff]
      %v7659 = vld [vmem:[%s1201 + $0x40] sm:$0xff]
      %v7660 = vld [vmem:[%s1201 + $0x48] sm:$0xff]
      %v7661 = vld [vmem:[%s1201 + $0x50] sm:$0xff]
      %v7662 = vld [vmem:[%s1201 + $0x58] sm:$0xff]
      %v7663 = vld [vmem:[%s1201 + $0x60] sm:$0xff]
      %v7664 = vld [vmem:[%s1201 + $0x68] sm:$0xff]
      %v7665 = vld [vmem:[%s1201 + $0x70] sm:$0xff]
      %v7666 = vld [vmem:[%s1201 + $0x78] sm:$0xff]
      %v7667 = vld [vmem:[%s1205] sm:$0x1f]
      %v7668 = vld [vmem:[%s1251] sm:$0xff]
      %v7669 = vld [vmem:[%s1251 + $0x8] sm:$0x3]
      %v7670 = vld [vmem:[%s1256] sm:$0xff]
      %v7671 = vld [vmem:[%s1256 + $0x8] sm:$0x3]
      %v7672 = vld [vmem:[%s1260] sm:$0x3]
      %7673 = vmatprep.subr.mxu0 0.0
      %7674 = vmatpush1.msra.mxu0 %v5792
      %7675 = vmatprep.subr.mxu0 0.0
      %7676 = vmatpush1.msra.mxu0 %v5791
      %7677 = vmatprep.subr.mxu0 0.0
      %7678 = vmatpush1.msra.mxu0 %v5790
      %7679 = vmatprep.subr.mxu0 0.0
      %7680 = vmatpush1.msra.mxu0 %v5789
      %7681 = vmatprep.subr.mxu0 0.0
      %7682 = vmatpush1.msra.mxu0 %v5788
      %7683 = vmatprep.subr.mxu0 0.0
      %7684 = vmatpush1.msra.mxu0 %v5787
      %7685 = vmatprep.subr.mxu0 0.0
      %7686 = vmatpush1.msra.mxu0 %v5786
      %7687 = vmatprep.subr.mxu0 0.0
      %7688 = vmatpush1.msra.mxu0 %v5785
      %7689 = vmatprep.subr.mxu0 0.0
      %7690 = vmatpush1.msra.mxu0 %v5784
      %7691 = vmatprep.subr.mxu0 0.0
      %7692 = vmatpush1.msra.mxu0 %v5783
      %7693 = vmatprep.subr.mxu0 0.0
      %7694 = vmatpush1.msra.mxu0 %v5782
      %7695 = vmatprep.subr.mxu0 0.0
      %7696 = vmatpush1.msra.mxu0 %v5781
      %7697 = vmatprep.subr.mxu0 0.0
      %7698 = vmatpush1.msra.mxu0 %v5780
      %7699 = vmatprep.subr.mxu0 0.0
      %7700 = vmatpush1.msra.mxu0 %v5779
      %7701 = vmatprep.subr.mxu0 0.0
      %7702 = vmatpush1.msra.mxu0 %v5778
      %7703 = vmatprep.subr.mxu0 0.0
      %7704 = vmatpush1.msra.mxu0 %v5777
      %7705 = vmatprep.subr.mxu0 0.0
      %7706 = vmatpush2.msra.mxu0 0.0
      %7707 = vmatprep.subr.mxu0 0.0
      %7708 = vmatpush2.msra.mxu0 0.0
      %7709 = vmatprep.subr.mxu0 0.0
      %7710 = vmatpush2.msra.mxu0 0.0
      %7711 = vmatprep.subr.mxu0 0.0
      %7712 = vmatpush2.msra.mxu0 0.0
      %7713 = vmatprep.subr.mxu0 0.0
      %7714 = vmatpush2.msra.mxu0 0.0
      %7715 = vmatprep.subr.mxu0 0.0
      %7716 = vmatpush2.msra.mxu0 0.0
      %7717 = vmatprep.subr.mxu0 0.0
      %7718 = vmatpush2.msra.mxu0 0.0
      %7719 = vmatprep.subr.mxu0 0.0
      %7720 = vmatpush2.msra.mxu0 0.0
      %7721 = vmatprep.subr.mxu0 0.0
      %7722 = vmatpush2.msra.mxu0 0.0
      %7723 = vmatprep.subr.mxu0 0.0
      %7724 = vmatpush2.msra.mxu0 0.0
      %7725 = vmatprep.subr.mxu0 0.0
      %7726 = vmatpush2.msra.mxu0 0.0
      %7727 = vmatprep.subr.mxu0 0.0
      %7728 = vmatpush2.msra.mxu0 0.0
      %7729 = vmatprep.subr.mxu0 0.0
      %7730 = vmatpush2.msra.mxu0 0.0
      %7731 = vmatprep.subr.mxu0 0.0
      %7732 = vmatpush2.msra.mxu0 0.0
      %7733 = vmatprep.subr.mxu0 0.0
      %7734 = vmatpush2.msra.mxu0 0.0
      %7735 = vmatprep.subr.mxu0 0.0
      %7736 = vmatpush2.msra.mxu0 0.0
      %7737 = vmatprep.mubr.f32.mxu0 0.0
      %7738 = vmatmul.mubr.f32.gmra.mxu0 %v7649
      %v7739 = vpop.f32.mrf.mxu0
      %v7740 = vadd.f32 0.0, %v7739
      %v7741 = vpop.f32.mrf.mxu0
      %7742 = vdwg.mxu0
      %v7744 = vsel %vm1507, %v7650, 0
      %v7747 = vsel %vm1514, %v7740, 0
      %7749 = vmatprep.subr.mxu0 0.0
      %7750 = vmatpush1.msra.mxu0 0.0
      %7751 = vmatprep.subr.mxu0 0.0
      %7752 = vmatpush1.msra.mxu0 0.0
      %7753 = vmatprep.subr.mxu0 0.0
      %7754 = vmatpush1.msra.mxu0 0.0
      %7755 = vmatprep.subr.mxu0 0.0
      %7756 = vmatpush1.msra.mxu0 0.0
      %7757 = vmatprep.subr.mxu0 0.0
      %7758 = vmatpush1.msra.mxu0 0.0
      %7759 = vmatprep.subr.mxu0 0.0
      %7760 = vmatpush1.msra.mxu0 0.0
      %7761 = vmatprep.subr.mxu0 0.0
      %7762 = vmatpush1.msra.mxu0 0.0
      %7763 = vmatprep.subr.mxu0 0.0
      %7764 = vmatpush1.msra.mxu0 0.0
      %7765 = vmatprep.subr.mxu0 0.0
      %7766 = vmatpush1.msra.mxu0 0.0
      %7767 = vmatprep.subr.mxu0 0.0
      %7768 = vmatpush1.msra.mxu0 0.0
      %7769 = vmatprep.subr.mxu0 0.0
      %7770 = vmatpush1.msra.mxu0 0.0
      %7771 = vmatprep.subr.mxu0 0.0
      %7772 = vmatpush1.msra.mxu0 0.0
      %7773 = vmatprep.subr.mxu0 0.0
      %7774 = vmatpush1.msra.mxu0 0.0
      %7775 = vmatprep.subr.mxu0 0.0
      %7776 = vmatpush1.msra.mxu0 0.0
      %7777 = vmatprep.subr.mxu0 0.0
      %7778 = vmatpush1.msra.mxu0 0.0
      %7779 = vmatprep.subr.mxu0 0.0
      %7780 = vmatpush1.msra.mxu0 %v7747
      %7781 = vmatprep.subr.mxu0 0.0
      %7782 = vmatpush2.msra.mxu0 0.0
      %7783 = vmatprep.subr.mxu0 0.0
      %7784 = vmatpush2.msra.mxu0 0.0
      %7785 = vmatprep.subr.mxu0 0.0
      %7786 = vmatpush2.msra.mxu0 0.0
      %7787 = vmatprep.subr.mxu0 0.0
      %7788 = vmatpush2.msra.mxu0 0.0
      %7789 = vmatprep.subr.mxu0 0.0
      %7790 = vmatpush2.msra.mxu0 0.0
      %7791 = vmatprep.subr.mxu0 0.0
      %7792 = vmatpush2.msra.mxu0 0.0
      %7793 = vmatprep.subr.mxu0 0.0
      %7794 = vmatpush2.msra.mxu0 0.0
      %7795 = vmatprep.subr.mxu0 0.0
      %7796 = vmatpush2.msra.mxu0 0.0
      %7797 = vmatprep.subr.mxu0 0.0
      %7798 = vmatpush2.msra.mxu0 0.0
      %7799 = vmatprep.subr.mxu0 0.0
      %7800 = vmatpush2.msra.mxu0 0.0
      %7801 = vmatprep.subr.mxu0 0.0
      %7802 = vmatpush2.msra.mxu0 0.0
      %7803 = vmatprep.subr.mxu0 0.0
      %7804 = vmatpush2.msra.mxu0 0.0
      %7805 = vmatprep.subr.mxu0 0.0
      %7806 = vmatpush2.msra.mxu0 0.0
      %7807 = vmatprep.subr.mxu0 0.0
      %7808 = vmatpush2.msra.mxu0 0.0
      %7809 = vmatprep.subr.mxu0 0.0
      %7810 = vmatpush2.msra.mxu0 0.0
      %7811 = vmatprep.subr.mxu0 0.0
      %7812 = vmatpush2.msra.mxu0 0.0
      %7813 = vmatprep.mubr.f32.mxu0 0.0
      %7814 = vmatmul.mubr.f32.gmra.mxu0 %v7744
      %v7815 = vpop.f32.mrf.mxu0
      %v7816 = vadd.f32 %v5875, %v7815
      %v7817 = vpop.f32.mrf.mxu0
      %7818 = vdwg.mxu0
      %v7819 = vmax.f32 %v7816, 0.0
      %7821 = vset.pattern.permute.xlu0 0
      %7822 = vperm.xlu0 %7821, %v7651
      %v7823 = vpop.permute.xlu0 %7822
      %7826 = vset.pattern.permute.xlu0 0
      %7827 = vperm.xlu0 %7826, %v7652
      %v7828 = vpop.permute.xlu0 %7827
      %7831 = vset.pattern.permute.xlu0 0
      %7832 = vperm.xlu0 %7831, %v7653
      %v7833 = vpop.permute.xlu0 %7832
      %7836 = vset.pattern.permute.xlu0 0
      %7837 = vperm.xlu0 %7836, %v7654
      %v7838 = vpop.permute.xlu0 %7837
      %7841 = vset.pattern.permute.xlu0 0
      %7842 = vperm.xlu0 %7841, %v7655
      %v7843 = vpop.permute.xlu0 %7842
      %7846 = vset.pattern.permute.xlu0 0
      %7847 = vperm.xlu0 %7846, %v7656
      %v7848 = vpop.permute.xlu0 %7847
      %7851 = vset.pattern.permute.xlu0 0
      %7852 = vperm.xlu0 %7851, %v7657
      %v7853 = vpop.permute.xlu0 %7852
      %7856 = vset.pattern.permute.xlu0 0
      %7857 = vperm.xlu0 %7856, %v7658
      %v7858 = vpop.permute.xlu0 %7857
      %7861 = vset.pattern.permute.xlu0 0
      %7862 = vperm.xlu0 %7861, %v7659
      %v7863 = vpop.permute.xlu0 %7862
      %7866 = vset.pattern.permute.xlu0 0
      %7867 = vperm.xlu0 %7866, %v7660
      %v7868 = vpop.permute.xlu0 %7867
      %7871 = vset.pattern.permute.xlu0 0
      %7872 = vperm.xlu0 %7871, %v7661
      %v7873 = vpop.permute.xlu0 %7872
      %7876 = vset.pattern.permute.xlu0 0
      %7877 = vperm.xlu0 %7876, %v7662
      %v7878 = vpop.permute.xlu0 %7877
      %7881 = vset.pattern.permute.xlu0 0
      %7882 = vperm.xlu0 %7881, %v7663
      %v7883 = vpop.permute.xlu0 %7882
      %7886 = vset.pattern.permute.xlu0 0
      %7887 = vperm.xlu0 %7886, %v7664
      %v7888 = vpop.permute.xlu0 %7887
      %7891 = vset.pattern.permute.xlu0 0
      %7892 = vperm.xlu0 %7891, %v7665
      %v7893 = vpop.permute.xlu0 %7892
      %7896 = vset.pattern.permute.xlu0 0
      %7897 = vperm.xlu0 %7896, %v7666
      %v7898 = vpop.permute.xlu0 %7897
      %v7901 = vlaneseq
      %v7902 = vshrl.u32 %v7901, 7
      %v7903 = vsub.s32 0, %v7902
      %v7904 = vrot.slane %v7667, %v7903
      %v7905 = vlaneseq
      %v7906 = vshrl.u32 %v7905, 7
      %v7907 = vsub.s32 1, %v7906
      %v7908 = vrot.slane %v7667, %v7907
      %v7909 = vlaneseq
      %v7910 = vshrl.u32 %v7909, 7
      %v7911 = vsub.s32 2, %v7910
      %v7912 = vrot.slane %v7667, %v7911
      %v7913 = vlaneseq
      %v7914 = vshrl.u32 %v7913, 7
      %v7915 = vsub.s32 3, %v7914
      %v7916 = vrot.slane %v7667, %v7915
      %v7917 = vlaneseq
      %v7918 = vshrl.u32 %v7917, 7
      %v7919 = vsub.s32 4, %v7918
      %v7920 = vrot.slane %v7667, %v7919
      %vm7926 = vcmp.le.f32.partialorder %v7823, %v7904
      %vm7927 = vcmp.le.f32.partialorder %v7823, %v7908
      %vm7928 = vcmp.le.f32.partialorder %v7823, %v7912
      %vm7929 = vcmp.le.f32.partialorder %v7823, %v7916
      %vm7930 = vcmp.le.f32.partialorder %v7823, %v7920
      %vm7931 = vcmp.le.f32.partialorder %v7828, %v7904
      %vm7932 = vcmp.le.f32.partialorder %v7828, %v7908
      %vm7933 = vcmp.le.f32.partialorder %v7828, %v7912
      %vm7934 = vcmp.le.f32.partialorder %v7828, %v7916
      %vm7935 = vcmp.le.f32.partialorder %v7828, %v7920
      %vm7936 = vcmp.le.f32.partialorder %v7833, %v7904
      %vm7937 = vcmp.le.f32.partialorder %v7833, %v7908
      %vm7938 = vcmp.le.f32.partialorder %v7833, %v7912
      %vm7939 = vcmp.le.f32.partialorder %v7833, %v7916
      %vm7940 = vcmp.le.f32.partialorder %v7833, %v7920
      %vm7941 = vcmp.le.f32.partialorder %v7838, %v7904
      %vm7942 = vcmp.le.f32.partialorder %v7838, %v7908
      %vm7943 = vcmp.le.f32.partialorder %v7838, %v7912
      %vm7944 = vcmp.le.f32.partialorder %v7838, %v7916
      %vm7945 = vcmp.le.f32.partialorder %v7838, %v7920
      %vm7946 = vcmp.le.f32.partialorder %v7843, %v7904
      %vm7947 = vcmp.le.f32.partialorder %v7843, %v7908
      %vm7948 = vcmp.le.f32.partialorder %v7843, %v7912
      %vm7949 = vcmp.le.f32.partialorder %v7843, %v7916
      %vm7950 = vcmp.le.f32.partialorder %v7843, %v7920
      %vm7951 = vcmp.le.f32.partialorder %v7848, %v7904
      %vm7952 = vcmp.le.f32.partialorder %v7848, %v7908
      %vm7953 = vcmp.le.f32.partialorder %v7848, %v7912
      %vm7954 = vcmp.le.f32.partialorder %v7848, %v7916
      %vm7955 = vcmp.le.f32.partialorder %v7848, %v7920
      %vm7956 = vcmp.le.f32.partialorder %v7853, %v7904
      %vm7957 = vcmp.le.f32.partialorder %v7853, %v7908
      %vm7958 = vcmp.le.f32.partialorder %v7853, %v7912
      %vm7959 = vcmp.le.f32.partialorder %v7853, %v7916
      %vm7960 = vcmp.le.f32.partialorder %v7853, %v7920
      %vm7961 = vcmp.le.f32.partialorder %v7858, %v7904
      %vm7962 = vcmp.le.f32.partialorder %v7858, %v7908
      %vm7963 = vcmp.le.f32.partialorder %v7858, %v7912
      %vm7964 = vcmp.le.f32.partialorder %v7858, %v7916
      %vm7965 = vcmp.le.f32.partialorder %v7858, %v7920
      %vm7966 = vcmp.le.f32.partialorder %v7863, %v7904
      %vm7967 = vcmp.le.f32.partialorder %v7863, %v7908
      %vm7968 = vcmp.le.f32.partialorder %v7863, %v7912
      %vm7969 = vcmp.le.f32.partialorder %v7863, %v7916
      %vm7970 = vcmp.le.f32.partialorder %v7863, %v7920
      %vm7971 = vcmp.le.f32.partialorder %v7868, %v7904
      %vm7972 = vcmp.le.f32.partialorder %v7868, %v7908
      %vm7973 = vcmp.le.f32.partialorder %v7868, %v7912
      %vm7974 = vcmp.le.f32.partialorder %v7868, %v7916
      %vm7975 = vcmp.le.f32.partialorder %v7868, %v7920
      %vm7976 = vcmp.le.f32.partialorder %v7873, %v7904
      %vm7977 = vcmp.le.f32.partialorder %v7873, %v7908
      %vm7978 = vcmp.le.f32.partialorder %v7873, %v7912
      %vm7979 = vcmp.le.f32.partialorder %v7873, %v7916
      %vm7980 = vcmp.le.f32.partialorder %v7873, %v7920
      %vm7981 = vcmp.le.f32.partialorder %v7878, %v7904
      %vm7982 = vcmp.le.f32.partialorder %v7878, %v7908
      %vm7983 = vcmp.le.f32.partialorder %v7878, %v7912
      %vm7984 = vcmp.le.f32.partialorder %v7878, %v7916
      %vm7985 = vcmp.le.f32.partialorder %v7878, %v7920
      %vm7986 = vcmp.le.f32.partialorder %v7883, %v7904
      %vm7987 = vcmp.le.f32.partialorder %v7883, %v7908
      %vm7988 = vcmp.le.f32.partialorder %v7883, %v7912
      %vm7989 = vcmp.le.f32.partialorder %v7883, %v7916
      %vm7990 = vcmp.le.f32.partialorder %v7883, %v7920
      %vm7991 = vcmp.le.f32.partialorder %v7888, %v7904
      %vm7992 = vcmp.le.f32.partialorder %v7888, %v7908
      %vm7993 = vcmp.le.f32.partialorder %v7888, %v7912
      %vm7994 = vcmp.le.f32.partialorder %v7888, %v7916
      %vm7995 = vcmp.le.f32.partialorder %v7888, %v7920
      %vm7996 = vcmp.le.f32.partialorder %v7893, %v7904
      %vm7997 = vcmp.le.f32.partialorder %v7893, %v7908
      %vm7998 = vcmp.le.f32.partialorder %v7893, %v7912
      %vm7999 = vcmp.le.f32.partialorder %v7893, %v7916
      %vm8000 = vcmp.le.f32.partialorder %v7893, %v7920
      %vm8001 = vcmp.le.f32.partialorder %v7898, %v7904
      %vm8002 = vcmp.le.f32.partialorder %v7898, %v7908
      %vm8003 = vcmp.le.f32.partialorder %v7898, %v7912
      %vm8004 = vcmp.le.f32.partialorder %v7898, %v7916
      %vm8005 = vcmp.le.f32.partialorder %v7898, %v7920
      %v8006 = vsel %vm7926, 1, 0
      %v8007 = vsel %vm7927, 1, 0
      %v8008 = vsel %vm7928, 1, 0
      %v8009 = vsel %vm7929, 1, 0
      %v8010 = vsel %vm7930, 1, 0
      %v8011 = vsel %vm7931, 1, 0
      %v8012 = vsel %vm7932, 1, 0
      %v8013 = vsel %vm7933, 1, 0
      %v8014 = vsel %vm7934, 1, 0
      %v8015 = vsel %vm7935, 1, 0
      %v8016 = vsel %vm7936, 1, 0
      %v8017 = vsel %vm7937, 1, 0
      %v8018 = vsel %vm7938, 1, 0
      %v8019 = vsel %vm7939, 1, 0
      %v8020 = vsel %vm7940, 1, 0
      %v8021 = vsel %vm7941, 1, 0
      %v8022 = vsel %vm7942, 1, 0
      %v8023 = vsel %vm7943, 1, 0
      %v8024 = vsel %vm7944, 1, 0
      %v8025 = vsel %vm7945, 1, 0
      %v8026 = vsel %vm7946, 1, 0
      %v8027 = vsel %vm7947, 1, 0
      %v8028 = vsel %vm7948, 1, 0
      %v8029 = vsel %vm7949, 1, 0
      %v8030 = vsel %vm7950, 1, 0
      %v8031 = vsel %vm7951, 1, 0
      %v8032 = vsel %vm7952, 1, 0
      %v8033 = vsel %vm7953, 1, 0
      %v8034 = vsel %vm7954, 1, 0
      %v8035 = vsel %vm7955, 1, 0
      %v8036 = vsel %vm7956, 1, 0
      %v8037 = vsel %vm7957, 1, 0
      %v8038 = vsel %vm7958, 1, 0
      %v8039 = vsel %vm7959, 1, 0
      %v8040 = vsel %vm7960, 1, 0
      %v8041 = vsel %vm7961, 1, 0
      %v8042 = vsel %vm7962, 1, 0
      %v8043 = vsel %vm7963, 1, 0
      %v8044 = vsel %vm7964, 1, 0
      %v8045 = vsel %vm7965, 1, 0
      %v8046 = vsel %vm7966, 1, 0
      %v8047 = vsel %vm7967, 1, 0
      %v8048 = vsel %vm7968, 1, 0
      %v8049 = vsel %vm7969, 1, 0
      %v8050 = vsel %vm7970, 1, 0
      %v8051 = vsel %vm7971, 1, 0
      %v8052 = vsel %vm7972, 1, 0
      %v8053 = vsel %vm7973, 1, 0
      %v8054 = vsel %vm7974, 1, 0
      %v8055 = vsel %vm7975, 1, 0
      %v8056 = vsel %vm7976, 1, 0
      %v8057 = vsel %vm7977, 1, 0
      %v8058 = vsel %vm7978, 1, 0
      %v8059 = vsel %vm7979, 1, 0
      %v8060 = vsel %vm7980, 1, 0
      %v8061 = vsel %vm7981, 1, 0
      %v8062 = vsel %vm7982, 1, 0
      %v8063 = vsel %vm7983, 1, 0
      %v8064 = vsel %vm7984, 1, 0
      %v8065 = vsel %vm7985, 1, 0
      %v8066 = vsel %vm7986, 1, 0
      %v8067 = vsel %vm7987, 1, 0
      %v8068 = vsel %vm7988, 1, 0
      %v8069 = vsel %vm7989, 1, 0
      %v8070 = vsel %vm7990, 1, 0
      %v8071 = vsel %vm7991, 1, 0
      %v8072 = vsel %vm7992, 1, 0
      %v8073 = vsel %vm7993, 1, 0
      %v8074 = vsel %vm7994, 1, 0
      %v8075 = vsel %vm7995, 1, 0
      %v8076 = vsel %vm7996, 1, 0
      %v8077 = vsel %vm7997, 1, 0
      %v8078 = vsel %vm7998, 1, 0
      %v8079 = vsel %vm7999, 1, 0
      %v8080 = vsel %vm8000, 1, 0
      %v8081 = vsel %vm8001, 1, 0
      %v8082 = vsel %vm8002, 1, 0
      %v8083 = vsel %vm8003, 1, 0
      %v8084 = vsel %vm8004, 1, 0
      %v8085 = vsel %vm8005, 1, 0
      %v8086 = vcvt.s32.f32 %v8006
      %v8087 = vcvt.s32.f32 %v8007
      %v8088 = vcvt.s32.f32 %v8008
      %v8089 = vcvt.s32.f32 %v8009
      %v8090 = vcvt.s32.f32 %v8010
      %v8091 = vcvt.s32.f32 %v8011
      %v8092 = vcvt.s32.f32 %v8012
      %v8093 = vcvt.s32.f32 %v8013
      %v8094 = vcvt.s32.f32 %v8014
      %v8095 = vcvt.s32.f32 %v8015
      %v8096 = vcvt.s32.f32 %v8016
      %v8097 = vcvt.s32.f32 %v8017
      %v8098 = vcvt.s32.f32 %v8018
      %v8099 = vcvt.s32.f32 %v8019
      %v8100 = vcvt.s32.f32 %v8020
      %v8101 = vcvt.s32.f32 %v8021
      %v8102 = vcvt.s32.f32 %v8022
      %v8103 = vcvt.s32.f32 %v8023
      %v8104 = vcvt.s32.f32 %v8024
      %v8105 = vcvt.s32.f32 %v8025
      %v8106 = vcvt.s32.f32 %v8026
      %v8107 = vcvt.s32.f32 %v8027
      %v8108 = vcvt.s32.f32 %v8028
      %v8109 = vcvt.s32.f32 %v8029
      %v8110 = vcvt.s32.f32 %v8030
      %v8111 = vcvt.s32.f32 %v8031
      %v8112 = vcvt.s32.f32 %v8032
      %v8113 = vcvt.s32.f32 %v8033
      %v8114 = vcvt.s32.f32 %v8034
      %v8115 = vcvt.s32.f32 %v8035
      %v8116 = vcvt.s32.f32 %v8036
      %v8117 = vcvt.s32.f32 %v8037
      %v8118 = vcvt.s32.f32 %v8038
      %v8119 = vcvt.s32.f32 %v8039
      %v8120 = vcvt.s32.f32 %v8040
      %v8121 = vcvt.s32.f32 %v8041
      %v8122 = vcvt.s32.f32 %v8042
      %v8123 = vcvt.s32.f32 %v8043
      %v8124 = vcvt.s32.f32 %v8044
      %v8125 = vcvt.s32.f32 %v8045
      %v8126 = vcvt.s32.f32 %v8046
      %v8127 = vcvt.s32.f32 %v8047
      %v8128 = vcvt.s32.f32 %v8048
      %v8129 = vcvt.s32.f32 %v8049
      %v8130 = vcvt.s32.f32 %v8050
      %v8131 = vcvt.s32.f32 %v8051
      %v8132 = vcvt.s32.f32 %v8052
      %v8133 = vcvt.s32.f32 %v8053
      %v8134 = vcvt.s32.f32 %v8054
      %v8135 = vcvt.s32.f32 %v8055
      %v8136 = vcvt.s32.f32 %v8056
      %v8137 = vcvt.s32.f32 %v8057
      %v8138 = vcvt.s32.f32 %v8058
      %v8139 = vcvt.s32.f32 %v8059
      %v8140 = vcvt.s32.f32 %v8060
      %v8141 = vcvt.s32.f32 %v8061
      %v8142 = vcvt.s32.f32 %v8062
      %v8143 = vcvt.s32.f32 %v8063
      %v8144 = vcvt.s32.f32 %v8064
      %v8145 = vcvt.s32.f32 %v8065
      %v8146 = vcvt.s32.f32 %v8066
      %v8147 = vcvt.s32.f32 %v8067
      %v8148 = vcvt.s32.f32 %v8068
      %v8149 = vcvt.s32.f32 %v8069
      %v8150 = vcvt.s32.f32 %v8070
      %v8151 = vcvt.s32.f32 %v8071
      %v8152 = vcvt.s32.f32 %v8072
      %v8153 = vcvt.s32.f32 %v8073
      %v8154 = vcvt.s32.f32 %v8074
      %v8155 = vcvt.s32.f32 %v8075
      %v8156 = vcvt.s32.f32 %v8076
      %v8157 = vcvt.s32.f32 %v8077
      %v8158 = vcvt.s32.f32 %v8078
      %v8159 = vcvt.s32.f32 %v8079
      %v8160 = vcvt.s32.f32 %v8080
      %v8161 = vcvt.s32.f32 %v8081
      %v8162 = vcvt.s32.f32 %v8082
      %v8163 = vcvt.s32.f32 %v8083
      %v8164 = vcvt.s32.f32 %v8084
      %v8165 = vcvt.s32.f32 %v8085
      %vm8166 = vcmp.lt.s32.totalorder %v3950, 49
      %v8167 = vsel %vm8166, 1, 0
      %v8168 = vcvt.s32.f32 %v8167
      %8169 = vmatprep.subr.mxu0 %v8162
      %8170 = vmatpush1.msra.mxu0 %v8161
      %8171 = vmatprep.subr.mxu0 %v8157
      %8172 = vmatpush1.msra.mxu0 %v8156
      %8173 = vmatprep.subr.mxu0 %v8152
      %8174 = vmatpush1.msra.mxu0 %v8151
      %8175 = vmatprep.subr.mxu0 %v8147
      %8176 = vmatpush1.msra.mxu0 %v8146
      %8177 = vmatprep.subr.mxu0 %v8142
      %8178 = vmatpush1.msra.mxu0 %v8141
      %8179 = vmatprep.subr.mxu0 %v8137
      %8180 = vmatpush1.msra.mxu0 %v8136
      %8181 = vmatprep.subr.mxu0 %v8132
      %8182 = vmatpush1.msra.mxu0 %v8131
      %8183 = vmatprep.subr.mxu0 %v8127
      %8184 = vmatpush1.msra.mxu0 %v8126
      %8185 = vmatprep.subr.mxu0 %v8122
      %8186 = vmatpush1.msra.mxu0 %v8121
      %8187 = vmatprep.subr.mxu0 %v8117
      %8188 = vmatpush1.msra.mxu0 %v8116
      %8189 = vmatprep.subr.mxu0 %v8112
      %8190 = vmatpush1.msra.mxu0 %v8111
      %8191 = vmatprep.subr.mxu0 %v8107
      %8192 = vmatpush1.msra.mxu0 %v8106
      %8193 = vmatprep.subr.mxu0 %v8102
      %8194 = vmatpush1.msra.mxu0 %v8101
      %8195 = vmatprep.subr.mxu0 %v8097
      %8196 = vmatpush1.msra.mxu0 %v8096
      %8197 = vmatprep.subr.mxu0 %v8092
      %8198 = vmatpush1.msra.mxu0 %v8091
      %8199 = vmatprep.subr.mxu0 %v8087
      %8200 = vmatpush1.msra.mxu0 %v8086
      %8201 = vmatprep.subr.mxu0 0.0
      %8202 = vmatpush2.msra.mxu0 0.0
      %8203 = vmatprep.subr.mxu0 0.0
      %8204 = vmatpush2.msra.mxu0 0.0
      %8205 = vmatprep.subr.mxu0 0.0
      %8206 = vmatpush2.msra.mxu0 0.0
      %8207 = vmatprep.subr.mxu0 0.0
      %8208 = vmatpush2.msra.mxu0 0.0
      %8209 = vmatprep.subr.mxu0 0.0
      %8210 = vmatpush2.msra.mxu0 0.0
      %8211 = vmatprep.subr.mxu0 0.0
      %8212 = vmatpush2.msra.mxu0 0.0
      %8213 = vmatprep.subr.mxu0 0.0
      %8214 = vmatpush2.msra.mxu0 0.0
      %8215 = vmatprep.subr.mxu0 0.0
      %8216 = vmatpush2.msra.mxu0 0.0
      %8217 = vmatprep.subr.mxu0 0.0
      %8218 = vmatpush2.msra.mxu0 0.0
      %8219 = vmatprep.subr.mxu0 0.0
      %8220 = vmatpush2.msra.mxu0 0.0
      %8221 = vmatprep.subr.mxu0 0.0
      %8222 = vmatpush2.msra.mxu0 0.0
      %8223 = vmatprep.subr.mxu0 0.0
      %8224 = vmatpush2.msra.mxu0 0.0
      %8225 = vmatprep.subr.mxu0 0.0
      %8226 = vmatpush2.msra.mxu0 0.0
      %8227 = vmatprep.subr.mxu0 0.0
      %8228 = vmatpush2.msra.mxu0 0.0
      %8229 = vmatprep.subr.mxu0 0.0
      %8230 = vmatpush2.msra.mxu0 0.0
      %8231 = vmatprep.subr.mxu0 0.0
      %8232 = vmatpush2.msra.mxu0 0.0
      %8233 = vmatprep.mubr.f32.mxu0 0.0
      %8234 = vmatmul.mubr.f32.gmra.mxu0 %v8168
      %v8235 = vpop.f32.mrf.mxu0
      %v8236 = vadd.f32 0.0, %v8235
      %v8237 = vpop.f32.mrf.mxu0
      %v8238 = vadd.f32 0.0, %v8237
      %8239 = vdwg.mxu0
      %8240 = vmatprep.subr.mxu0 %v8164
      %8241 = vmatpush1.msra.mxu0 %v8163
      %8242 = vmatprep.subr.mxu0 %v8159
      %8243 = vmatpush1.msra.mxu0 %v8158
      %8244 = vmatprep.subr.mxu0 %v8154
      %8245 = vmatpush1.msra.mxu0 %v8153
      %8246 = vmatprep.subr.mxu0 %v8149
      %8247 = vmatpush1.msra.mxu0 %v8148
      %8248 = vmatprep.subr.mxu0 %v8144
      %8249 = vmatpush1.msra.mxu0 %v8143
      %8250 = vmatprep.subr.mxu0 %v8139
      %8251 = vmatpush1.msra.mxu0 %v8138
      %8252 = vmatprep.subr.mxu0 %v8134
      %8253 = vmatpush1.msra.mxu0 %v8133
      %8254 = vmatprep.subr.mxu0 %v8129
      %8255 = vmatpush1.msra.mxu0 %v8128
      %8256 = vmatprep.subr.mxu0 %v8124
      %8257 = vmatpush1.msra.mxu0 %v8123
      %8258 = vmatprep.subr.mxu0 %v8119
      %8259 = vmatpush1.msra.mxu0 %v8118
      %8260 = vmatprep.subr.mxu0 %v8114
      %8261 = vmatpush1.msra.mxu0 %v8113
      %8262 = vmatprep.subr.mxu0 %v8109
      %8263 = vmatpush1.msra.mxu0 %v8108
      %8264 = vmatprep.subr.mxu0 %v8104
      %8265 = vmatpush1.msra.mxu0 %v8103
      %8266 = vmatprep.subr.mxu0 %v8099
      %8267 = vmatpush1.msra.mxu0 %v8098
      %8268 = vmatprep.subr.mxu0 %v8094
      %8269 = vmatpush1.msra.mxu0 %v8093
      %8270 = vmatprep.subr.mxu0 %v8089
      %8271 = vmatpush1.msra.mxu0 %v8088
      %8272 = vmatprep.subr.mxu0 0.0
      %8273 = vmatpush2.msra.mxu0 0.0
      %8274 = vmatprep.subr.mxu0 0.0
      %8275 = vmatpush2.msra.mxu0 0.0
      %8276 = vmatprep.subr.mxu0 0.0
      %8277 = vmatpush2.msra.mxu0 0.0
      %8278 = vmatprep.subr.mxu0 0.0
      %8279 = vmatpush2.msra.mxu0 0.0
      %8280 = vmatprep.subr.mxu0 0.0
      %8281 = vmatpush2.msra.mxu0 0.0
      %8282 = vmatprep.subr.mxu0 0.0
      %8283 = vmatpush2.msra.mxu0 0.0
      %8284 = vmatprep.subr.mxu0 0.0
      %8285 = vmatpush2.msra.mxu0 0.0
      %8286 = vmatprep.subr.mxu0 0.0
      %8287 = vmatpush2.msra.mxu0 0.0
      %8288 = vmatprep.subr.mxu0 0.0
      %8289 = vmatpush2.msra.mxu0 0.0
      %8290 = vmatprep.subr.mxu0 0.0
      %8291 = vmatpush2.msra.mxu0 0.0
      %8292 = vmatprep.subr.mxu0 0.0
      %8293 = vmatpush2.msra.mxu0 0.0
      %8294 = vmatprep.subr.mxu0 0.0
      %8295 = vmatpush2.msra.mxu0 0.0
      %8296 = vmatprep.subr.mxu0 0.0
      %8297 = vmatpush2.msra.mxu0 0.0
      %8298 = vmatprep.subr.mxu0 0.0
      %8299 = vmatpush2.msra.mxu0 0.0
      %8300 = vmatprep.subr.mxu0 0.0
      %8301 = vmatpush2.msra.mxu0 0.0
      %8302 = vmatprep.subr.mxu0 0.0
      %8303 = vmatpush2.msra.mxu0 0.0
      %8304 = vmatprep.mubr.f32.mxu0 0.0
      %8305 = vmatmul.mubr.f32.gmra.mxu0 %v8168
      %v8306 = vpop.f32.mrf.mxu0
      %v8307 = vadd.f32 0.0, %v8306
      %v8308 = vpop.f32.mrf.mxu0
      %v8309 = vadd.f32 0.0, %v8308
      %8310 = vdwg.mxu0
      %8311 = vmatprep.subr.mxu0 0.0
      %8312 = vmatpush1.msra.mxu0 %v8165
      %8313 = vmatprep.subr.mxu0 0.0
      %8314 = vmatpush1.msra.mxu0 %v8160
      %8315 = vmatprep.subr.mxu0 0.0
      %8316 = vmatpush1.msra.mxu0 %v8155
      %8317 = vmatprep.subr.mxu0 0.0
      %8318 = vmatpush1.msra.mxu0 %v8150
      %8319 = vmatprep.subr.mxu0 0.0
      %8320 = vmatpush1.msra.mxu0 %v8145
      %8321 = vmatprep.subr.mxu0 0.0
      %8322 = vmatpush1.msra.mxu0 %v8140
      %8323 = vmatprep.subr.mxu0 0.0
      %8324 = vmatpush1.msra.mxu0 %v8135
      %8325 = vmatprep.subr.mxu0 0.0
      %8326 = vmatpush1.msra.mxu0 %v8130
      %8327 = vmatprep.subr.mxu0 0.0
      %8328 = vmatpush1.msra.mxu0 %v8125
      %8329 = vmatprep.subr.mxu0 0.0
      %8330 = vmatpush1.msra.mxu0 %v8120
      %8331 = vmatprep.subr.mxu0 0.0
      %8332 = vmatpush1.msra.mxu0 %v8115
      %8333 = vmatprep.subr.mxu0 0.0
      %8334 = vmatpush1.msra.mxu0 %v8110
      %8335 = vmatprep.subr.mxu0 0.0
      %8336 = vmatpush1.msra.mxu0 %v8105
      %8337 = vmatprep.subr.mxu0 0.0
      %8338 = vmatpush1.msra.mxu0 %v8100
      %8339 = vmatprep.subr.mxu0 0.0
      %8340 = vmatpush1.msra.mxu0 %v8095
      %8341 = vmatprep.subr.mxu0 0.0
      %8342 = vmatpush1.msra.mxu0 %v8090
      %8343 = vmatprep.subr.mxu0 0.0
      %8344 = vmatpush2.msra.mxu0 0.0
      %8345 = vmatprep.subr.mxu0 0.0
      %8346 = vmatpush2.msra.mxu0 0.0
      %8347 = vmatprep.subr.mxu0 0.0
      %8348 = vmatpush2.msra.mxu0 0.0
      %8349 = vmatprep.subr.mxu0 0.0
      %8350 = vmatpush2.msra.mxu0 0.0
      %8351 = vmatprep.subr.mxu0 0.0
      %8352 = vmatpush2.msra.mxu0 0.0
      %8353 = vmatprep.subr.mxu0 0.0
      %8354 = vmatpush2.msra.mxu0 0.0
      %8355 = vmatprep.subr.mxu0 0.0
      %8356 = vmatpush2.msra.mxu0 0.0
      %8357 = vmatprep.subr.mxu0 0.0
      %8358 = vmatpush2.msra.mxu0 0.0
      %8359 = vmatprep.subr.mxu0 0.0
      %8360 = vmatpush2.msra.mxu0 0.0
      %8361 = vmatprep.subr.mxu0 0.0
      %8362 = vmatpush2.msra.mxu0 0.0
      %8363 = vmatprep.subr.mxu0 0.0
      %8364 = vmatpush2.msra.mxu0 0.0
      %8365 = vmatprep.subr.mxu0 0.0
      %8366 = vmatpush2.msra.mxu0 0.0
      %8367 = vmatprep.subr.mxu0 0.0
      %8368 = vmatpush2.msra.mxu0 0.0
      %8369 = vmatprep.subr.mxu0 0.0
      %8370 = vmatpush2.msra.mxu0 0.0
      %8371 = vmatprep.subr.mxu0 0.0
      %8372 = vmatpush2.msra.mxu0 0.0
      %8373 = vmatprep.subr.mxu0 0.0
      %8374 = vmatpush2.msra.mxu0 0.0
      %8375 = vmatprep.mubr.f32.mxu0 0.0
      %8376 = vmatmul.mubr.f32.gmra.mxu0 %v8168
      %v8377 = vpop.f32.mrf.mxu0
      %v8378 = vadd.f32 0.0, %v8377
      %v8379 = vpop.f32.mrf.mxu0
      %8380 = vdwg.mxu0
      %v8381 = vmul.f32 %v8236, %v4836
      %v8382 = vmul.f32 %v8238, %v4837
      %v8383 = vmul.f32 %v8307, %v4838
      %v8384 = vmul.f32 %v8309, %v4839
      %v8385 = vmul.f32 %v8378, %v4840
      %8386 = vmatprep.subr.mxu0 0.0
      %8387 = vmatpush1.msra.mxu0 %v1408
      %8388 = vmatprep.subr.mxu0 0.0
      %8389 = vmatpush1.msra.mxu0 %v1407
      %8390 = vmatprep.subr.mxu0 0.0
      %8391 = vmatpush1.msra.mxu0 %v1406
      %8392 = vmatprep.subr.mxu0 0.0
      %8393 = vmatpush1.msra.mxu0 %v1405
      %8394 = vmatprep.subr.mxu0 0.0
      %8395 = vmatpush1.msra.mxu0 %v1404
      %8396 = vmatprep.subr.mxu0 0.0
      %8397 = vmatpush1.msra.mxu0 %v1403
      %8398 = vmatprep.subr.mxu0 0.0
      %8399 = vmatpush1.msra.mxu0 %v1402
      %8400 = vmatprep.subr.mxu0 0.0
      %8401 = vmatpush1.msra.mxu0 %v1401
      %8402 = vmatprep.subr.mxu0 0.0
      %8403 = vmatpush1.msra.mxu0 %v1400
      %8404 = vmatprep.subr.mxu0 0.0
      %8405 = vmatpush1.msra.mxu0 %v1399
      %8406 = vmatprep.subr.mxu0 0.0
      %8407 = vmatpush1.msra.mxu0 %v1398
      %8408 = vmatprep.subr.mxu0 0.0
      %8409 = vmatpush1.msra.mxu0 %v1397
      %8410 = vmatprep.subr.mxu0 0.0
      %8411 = vmatpush1.msra.mxu0 %v1396
      %8412 = vmatprep.subr.mxu0 0.0
      %8413 = vmatpush1.msra.mxu0 %v1395
      %8414 = vmatprep.subr.mxu0 0.0
      %8415 = vmatpush1.msra.mxu0 %v1394
      %8416 = vmatprep.subr.mxu0 0.0
      %8417 = vmatpush1.msra.mxu0 %v1393
      %8418 = vmatprep.subr.mxu0 0.0
      %8419 = vmatpush2.msra.mxu0 %v1424
      %8420 = vmatprep.subr.mxu0 0.0
      %8421 = vmatpush2.msra.mxu0 %v1423
      %8422 = vmatprep.subr.mxu0 0.0
      %8423 = vmatpush2.msra.mxu0 %v1422
      %8424 = vmatprep.subr.mxu0 0.0
      %8425 = vmatpush2.msra.mxu0 %v1421
      %8426 = vmatprep.subr.mxu0 0.0
      %8427 = vmatpush2.msra.mxu0 %v1420
      %8428 = vmatprep.subr.mxu0 0.0
      %8429 = vmatpush2.msra.mxu0 %v1419
      %8430 = vmatprep.subr.mxu0 0.0
      %8431 = vmatpush2.msra.mxu0 %v1418
      %8432 = vmatprep.subr.mxu0 0.0
      %8433 = vmatpush2.msra.mxu0 %v1417
      %8434 = vmatprep.subr.mxu0 0.0
      %8435 = vmatpush2.msra.mxu0 %v1416
      %8436 = vmatprep.subr.mxu0 0.0
      %8437 = vmatpush2.msra.mxu0 %v1415
      %8438 = vmatprep.subr.mxu0 0.0
      %8439 = vmatpush2.msra.mxu0 %v1414
      %8440 = vmatprep.subr.mxu0 0.0
      %8441 = vmatpush2.msra.mxu0 %v1413
      %8442 = vmatprep.subr.mxu0 0.0
      %8443 = vmatpush2.msra.mxu0 %v1412
      %8444 = vmatprep.subr.mxu0 0.0
      %8445 = vmatpush2.msra.mxu0 %v1411
      %8446 = vmatprep.subr.mxu0 0.0
      %8447 = vmatpush2.msra.mxu0 %v1410
      %8448 = vmatprep.subr.mxu0 0.0
      %8449 = vmatpush2.msra.mxu0 %v1409
      %8450 = vmatprep.mubr.f32.mxu0 %v8382
      %8451 = vmatmul.mubr.f32.gmra.mxu0 %v8381
      %v8452 = vpop.f32.mrf.mxu0
      %v8453 = vadd.f32 0.0, %v8452
      %v8454 = vpop.f32.mrf.mxu0
      %8455 = vdwg.mxu0
      %8456 = vmatprep.subr.mxu0 0.0
      %8457 = vmatpush1.msra.mxu0 %v1440
      %8458 = vmatprep.subr.mxu0 0.0
      %8459 = vmatpush1.msra.mxu0 %v1439
      %8460 = vmatprep.subr.mxu0 0.0
      %8461 = vmatpush1.msra.mxu0 %v1438
      %8462 = vmatprep.subr.mxu0 0.0
      %8463 = vmatpush1.msra.mxu0 %v1437
      %8464 = vmatprep.subr.mxu0 0.0
      %8465 = vmatpush1.msra.mxu0 %v1436
      %8466 = vmatprep.subr.mxu0 0.0
      %8467 = vmatpush1.msra.mxu0 %v1435
      %8468 = vmatprep.subr.mxu0 0.0
      %8469 = vmatpush1.msra.mxu0 %v1434
      %8470 = vmatprep.subr.mxu0 0.0
      %8471 = vmatpush1.msra.mxu0 %v1433
      %8472 = vmatprep.subr.mxu0 0.0
      %8473 = vmatpush1.msra.mxu0 %v1432
      %8474 = vmatprep.subr.mxu0 0.0
      %8475 = vmatpush1.msra.mxu0 %v1431
      %8476 = vmatprep.subr.mxu0 0.0
      %8477 = vmatpush1.msra.mxu0 %v1430
      %8478 = vmatprep.subr.mxu0 0.0
      %8479 = vmatpush1.msra.mxu0 %v1429
      %8480 = vmatprep.subr.mxu0 0.0
      %8481 = vmatpush1.msra.mxu0 %v1428
      %8482 = vmatprep.subr.mxu0 0.0
      %8483 = vmatpush1.msra.mxu0 %v1427
      %8484 = vmatprep.subr.mxu0 0.0
      %8485 = vmatpush1.msra.mxu0 %v1426
      %8486 = vmatprep.subr.mxu0 0.0
      %8487 = vmatpush1.msra.mxu0 %v1425
      %8488 = vmatprep.subr.mxu0 0.0
      %8489 = vmatpush2.msra.mxu0 %v1456
      %8490 = vmatprep.subr.mxu0 0.0
      %8491 = vmatpush2.msra.mxu0 %v1455
      %8492 = vmatprep.subr.mxu0 0.0
      %8493 = vmatpush2.msra.mxu0 %v1454
      %8494 = vmatprep.subr.mxu0 0.0
      %8495 = vmatpush2.msra.mxu0 %v1453
      %8496 = vmatprep.subr.mxu0 0.0
      %8497 = vmatpush2.msra.mxu0 %v1452
      %8498 = vmatprep.subr.mxu0 0.0
      %8499 = vmatpush2.msra.mxu0 %v1451
      %8500 = vmatprep.subr.mxu0 0.0
      %8501 = vmatpush2.msra.mxu0 %v1450
      %8502 = vmatprep.subr.mxu0 0.0
      %8503 = vmatpush2.msra.mxu0 %v1449
      %8504 = vmatprep.subr.mxu0 0.0
      %8505 = vmatpush2.msra.mxu0 %v1448
      %8506 = vmatprep.subr.mxu0 0.0
      %8507 = vmatpush2.msra.mxu0 %v1447
      %8508 = vmatprep.subr.mxu0 0.0
      %8509 = vmatpush2.msra.mxu0 %v1446
      %8510 = vmatprep.subr.mxu0 0.0
      %8511 = vmatpush2.msra.mxu0 %v1445
      %8512 = vmatprep.subr.mxu0 0.0
      %8513 = vmatpush2.msra.mxu0 %v1444
      %8514 = vmatprep.subr.mxu0 0.0
      %8515 = vmatpush2.msra.mxu0 %v1443
      %8516 = vmatprep.subr.mxu0 0.0
      %8517 = vmatpush2.msra.mxu0 %v1442
      %8518 = vmatprep.subr.mxu0 0.0
      %8519 = vmatpush2.msra.mxu0 %v1441
      %8520 = vmatprep.mubr.f32.mxu0 %v8384
      %8521 = vmatmul.mubr.f32.gmra.mxu0 %v8383
      %v8522 = vpop.f32.mrf.mxu0
      %v8523 = vadd.f32 %v8453, %v8522
      %v8524 = vpop.f32.mrf.mxu0
      %8525 = vdwg.mxu0
      %8526 = vmatprep.subr.mxu0 0.0
      %8527 = vmatpush1.msra.mxu0 %v1472
      %8528 = vmatprep.subr.mxu0 0.0
      %8529 = vmatpush1.msra.mxu0 %v1471
      %8530 = vmatprep.subr.mxu0 0.0
      %8531 = vmatpush1.msra.mxu0 %v1470
      %8532 = vmatprep.subr.mxu0 0.0
      %8533 = vmatpush1.msra.mxu0 %v1469
      %8534 = vmatprep.subr.mxu0 0.0
      %8535 = vmatpush1.msra.mxu0 %v1468
      %8536 = vmatprep.subr.mxu0 0.0
      %8537 = vmatpush1.msra.mxu0 %v1467
      %8538 = vmatprep.subr.mxu0 0.0
      %8539 = vmatpush1.msra.mxu0 %v1466
      %8540 = vmatprep.subr.mxu0 0.0
      %8541 = vmatpush1.msra.mxu0 %v1465
      %8542 = vmatprep.subr.mxu0 0.0
      %8543 = vmatpush1.msra.mxu0 %v1464
      %8544 = vmatprep.subr.mxu0 0.0
      %8545 = vmatpush1.msra.mxu0 %v1463
      %8546 = vmatprep.subr.mxu0 0.0
      %8547 = vmatpush1.msra.mxu0 %v1462
      %8548 = vmatprep.subr.mxu0 0.0
      %8549 = vmatpush1.msra.mxu0 %v1461
      %8550 = vmatprep.subr.mxu0 0.0
      %8551 = vmatpush1.msra.mxu0 %v1460
      %8552 = vmatprep.subr.mxu0 0.0
      %8553 = vmatpush1.msra.mxu0 %v1459
      %8554 = vmatprep.subr.mxu0 0.0
      %8555 = vmatpush1.msra.mxu0 %v1458
      %8556 = vmatprep.subr.mxu0 0.0
      %8557 = vmatpush1.msra.mxu0 %v1457
      %8558 = vmatprep.subr.mxu0 0.0
      %8559 = vmatpush2.msra.mxu0 0.0
      %8560 = vmatprep.subr.mxu0 0.0
      %8561 = vmatpush2.msra.mxu0 0.0
      %8562 = vmatprep.subr.mxu0 0.0
      %8563 = vmatpush2.msra.mxu0 0.0
      %8564 = vmatprep.subr.mxu0 0.0
      %8565 = vmatpush2.msra.mxu0 0.0
      %8566 = vmatprep.subr.mxu0 0.0
      %8567 = vmatpush2.msra.mxu0 0.0
      %8568 = vmatprep.subr.mxu0 0.0
      %8569 = vmatpush2.msra.mxu0 0.0
      %8570 = vmatprep.subr.mxu0 0.0
      %8571 = vmatpush2.msra.mxu0 0.0
      %8572 = vmatprep.subr.mxu0 0.0
      %8573 = vmatpush2.msra.mxu0 0.0
      %8574 = vmatprep.subr.mxu0 0.0
      %8575 = vmatpush2.msra.mxu0 0.0
      %8576 = vmatprep.subr.mxu0 0.0
      %8577 = vmatpush2.msra.mxu0 0.0
      %8578 = vmatprep.subr.mxu0 0.0
      %8579 = vmatpush2.msra.mxu0 0.0
      %8580 = vmatprep.subr.mxu0 0.0
      %8581 = vmatpush2.msra.mxu0 0.0
      %8582 = vmatprep.subr.mxu0 0.0
      %8583 = vmatpush2.msra.mxu0 0.0
      %8584 = vmatprep.subr.mxu0 0.0
      %8585 = vmatpush2.msra.mxu0 0.0
      %8586 = vmatprep.subr.mxu0 0.0
      %8587 = vmatpush2.msra.mxu0 0.0
      %8588 = vmatprep.subr.mxu0 0.0
      %8589 = vmatpush2.msra.mxu0 0.0
      %8590 = vmatprep.mubr.f32.mxu0 0.0
      %8591 = vmatmul.mubr.f32.gmra.mxu0 %v8385
      %v8592 = vpop.f32.mrf.mxu0
      %v8593 = vadd.f32 %v8523, %v8592
      %v8594 = vpop.f32.mrf.mxu0
      %8595 = vdwg.mxu0
      %v8596 = vlaneseq
      %v8597 = vshrl.u32 %v8596, 7
      %v8598 = vsub.s32 0, %v8597
      %v8599 = vrot.slane %v8593, %v8598
      %8600 = vmatprep.subr.mxu0 0.0
      %8601 = vmatpush1.msra.mxu0 %v1488
      %8602 = vmatprep.subr.mxu0 0.0
      %8603 = vmatpush1.msra.mxu0 %v1487
      %8604 = vmatprep.subr.mxu0 0.0
      %8605 = vmatpush1.msra.mxu0 %v1486
      %8606 = vmatprep.subr.mxu0 0.0
      %8607 = vmatpush1.msra.mxu0 %v1485
      %8608 = vmatprep.subr.mxu0 0.0
      %8609 = vmatpush1.msra.mxu0 %v1484
      %8610 = vmatprep.subr.mxu0 0.0
      %8611 = vmatpush1.msra.mxu0 %v1483
      %8612 = vmatprep.subr.mxu0 0.0
      %8613 = vmatpush1.msra.mxu0 %v1482
      %8614 = vmatprep.subr.mxu0 0.0
      %8615 = vmatpush1.msra.mxu0 %v1481
      %8616 = vmatprep.subr.mxu0 0.0
      %8617 = vmatpush1.msra.mxu0 %v1480
      %8618 = vmatprep.subr.mxu0 0.0
      %8619 = vmatpush1.msra.mxu0 %v1479
      %8620 = vmatprep.subr.mxu0 0.0
      %8621 = vmatpush1.msra.mxu0 %v1478
      %8622 = vmatprep.subr.mxu0 0.0
      %8623 = vmatpush1.msra.mxu0 %v1477
      %8624 = vmatprep.subr.mxu0 0.0
      %8625 = vmatpush1.msra.mxu0 %v1476
      %8626 = vmatprep.subr.mxu0 0.0
      %8627 = vmatpush1.msra.mxu0 %v1475
      %8628 = vmatprep.subr.mxu0 0.0
      %8629 = vmatpush1.msra.mxu0 %v1474
      %8630 = vmatprep.subr.mxu0 0.0
      %8631 = vmatpush1.msra.mxu0 %v1473
      %8632 = vmatprep.subr.mxu0 0.0
      %8633 = vmatpush2.msra.mxu0 0.0
      %8634 = vmatprep.subr.mxu0 0.0
      %8635 = vmatpush2.msra.mxu0 0.0
      %8636 = vmatprep.subr.mxu0 0.0
      %8637 = vmatpush2.msra.mxu0 0.0
      %8638 = vmatprep.subr.mxu0 0.0
      %8639 = vmatpush2.msra.mxu0 0.0
      %8640 = vmatprep.subr.mxu0 0.0
      %8641 = vmatpush2.msra.mxu0 0.0
      %8642 = vmatprep.subr.mxu0 0.0
      %8643 = vmatpush2.msra.mxu0 0.0
      %8644 = vmatprep.subr.mxu0 0.0
      %8645 = vmatpush2.msra.mxu0 0.0
      %8646 = vmatprep.subr.mxu0 0.0
      %8647 = vmatpush2.msra.mxu0 0.0
      %8648 = vmatprep.subr.mxu0 0.0
      %8649 = vmatpush2.msra.mxu0 0.0
      %8650 = vmatprep.subr.mxu0 0.0
      %8651 = vmatpush2.msra.mxu0 0.0
      %8652 = vmatprep.subr.mxu0 0.0
      %8653 = vmatpush2.msra.mxu0 0.0
      %8654 = vmatprep.subr.mxu0 0.0
      %8655 = vmatpush2.msra.mxu0 0.0
      %8656 = vmatprep.subr.mxu0 0.0
      %8657 = vmatpush2.msra.mxu0 0.0
      %8658 = vmatprep.subr.mxu0 0.0
      %8659 = vmatpush2.msra.mxu0 0.0
      %8660 = vmatprep.subr.mxu0 0.0
      %8661 = vmatpush2.msra.mxu0 0.0
      %8662 = vmatprep.subr.mxu0 0.0
      %8663 = vmatpush2.msra.mxu0 0.0
      %8664 = vmatprep.mubr.f32.mxu0 0.0
      %8665 = vmatmul.mubr.f32.gmra.mxu0 %v7819
      %v8666 = vpop.f32.mrf.mxu0
      %v8667 = vadd.f32 %v8599, %v8666
      %v8668 = vpop.f32.mrf.mxu0
      %8669 = vdwg.mxu0
      %v8670 = vadd.f32 %v8667, %v5139
      %v8671 = vmax.f32 %v8670, 0.0
      %8672 = vmatprep.subr.mxu0 0.0
      %8673 = vmatpush1.msra.mxu0 %v1505
      %8674 = vmatprep.subr.mxu0 0.0
      %8675 = vmatpush1.msra.mxu0 %v1504
      %8676 = vmatprep.subr.mxu0 0.0
      %8677 = vmatpush1.msra.mxu0 %v1503
      %8678 = vmatprep.subr.mxu0 0.0
      %8679 = vmatpush1.msra.mxu0 %v1502
      %8680 = vmatprep.subr.mxu0 0.0
      %8681 = vmatpush1.msra.mxu0 %v1501
      %8682 = vmatprep.subr.mxu0 0.0
      %8683 = vmatpush1.msra.mxu0 %v1500
      %8684 = vmatprep.subr.mxu0 0.0
      %8685 = vmatpush1.msra.mxu0 %v1499
      %8686 = vmatprep.subr.mxu0 0.0
      %8687 = vmatpush1.msra.mxu0 %v1498
      %8688 = vmatprep.subr.mxu0 0.0
      %8689 = vmatpush1.msra.mxu0 %v1497
      %8690 = vmatprep.subr.mxu0 0.0
      %8691 = vmatpush1.msra.mxu0 %v1496
      %8692 = vmatprep.subr.mxu0 0.0
      %8693 = vmatpush1.msra.mxu0 %v1495
      %8694 = vmatprep.subr.mxu0 0.0
      %8695 = vmatpush1.msra.mxu0 %v1494
      %8696 = vmatprep.subr.mxu0 0.0
      %8697 = vmatpush1.msra.mxu0 %v1493
      %8698 = vmatprep.subr.mxu0 0.0
      %8699 = vmatpush1.msra.mxu0 %v1492
      %8700 = vmatprep.subr.mxu0 0.0
      %8701 = vmatpush1.msra.mxu0 %v1491
      %8702 = vmatprep.subr.mxu0 0.0
      %8703 = vmatpush1.msra.mxu0 %v1490
      %8704 = vmatprep.subr.mxu0 0.0
      %8705 = vmatpush2.msra.mxu0 0.0
      %8706 = vmatprep.subr.mxu0 0.0
      %8707 = vmatpush2.msra.mxu0 0.0
      %8708 = vmatprep.subr.mxu0 0.0
      %8709 = vmatpush2.msra.mxu0 0.0
      %8710 = vmatprep.subr.mxu0 0.0
      %8711 = vmatpush2.msra.mxu0 0.0
      %8712 = vmatprep.subr.mxu0 0.0
      %8713 = vmatpush2.msra.mxu0 0.0
      %8714 = vmatprep.subr.mxu0 0.0
      %8715 = vmatpush2.msra.mxu0 0.0
      %8716 = vmatprep.subr.mxu0 0.0
      %8717 = vmatpush2.msra.mxu0 0.0
      %8718 = vmatprep.subr.mxu0 0.0
      %8719 = vmatpush2.msra.mxu0 0.0
      %8720 = vmatprep.subr.mxu0 0.0
      %8721 = vmatpush2.msra.mxu0 0.0
      %8722 = vmatprep.subr.mxu0 0.0
      %8723 = vmatpush2.msra.mxu0 0.0
      %8724 = vmatprep.subr.mxu0 0.0
      %8725 = vmatpush2.msra.mxu0 0.0
      %8726 = vmatprep.subr.mxu0 0.0
      %8727 = vmatpush2.msra.mxu0 0.0
      %8728 = vmatprep.subr.mxu0 0.0
      %8729 = vmatpush2.msra.mxu0 0.0
      %8730 = vmatprep.subr.mxu0 0.0
      %8731 = vmatpush2.msra.mxu0 0.0
      %8732 = vmatprep.subr.mxu0 0.0
      %8733 = vmatpush2.msra.mxu0 0.0
      %8734 = vmatprep.subr.mxu0 0.0
      %8735 = vmatpush2.msra.mxu0 0.0
      %8736 = vmatprep.mubr.f32.mxu0 0.0
      %8737 = vmatmul.mubr.f32.gmra.mxu0 %v8671
      %v8738 = vpop.f32.mrf.mxu0
      %v8739 = vadd.f32 %v5149, %v8738
      %v8740 = vpop.f32.mrf.mxu0
      %8741 = vdwg.mxu0
      %8743 = vrot.lane.b32.xlu0 %v8739, 127
      %v8744 = vpop.permute.xlu0 %8743
      %v8746 = vsel %vm1507, %v7670, 0
      %v8749 = vsel %vm1507, %v7671, 0
      %v8751 = vsel %vm1514, %v8744, 0
      %8753 = vmatprep.subr.mxu0 0.0
      %8754 = vmatpush1.msra.mxu0 0.0
      %8755 = vmatprep.subr.mxu0 0.0
      %8756 = vmatpush1.msra.mxu0 0.0
      %8757 = vmatprep.subr.mxu0 0.0
      %8758 = vmatpush1.msra.mxu0 0.0
      %8759 = vmatprep.subr.mxu0 0.0
      %8760 = vmatpush1.msra.mxu0 0.0
      %8761 = vmatprep.subr.mxu0 0.0
      %8762 = vmatpush1.msra.mxu0 0.0
      %8763 = vmatprep.subr.mxu0 0.0
      %8764 = vmatpush1.msra.mxu0 0.0
      %8765 = vmatprep.subr.mxu0 0.0
      %8766 = vmatpush1.msra.mxu0 0.0
      %8767 = vmatprep.subr.mxu0 0.0
      %8768 = vmatpush1.msra.mxu0 0.0
      %8769 = vmatprep.subr.mxu0 0.0
      %8770 = vmatpush1.msra.mxu0 0.0
      %8771 = vmatprep.subr.mxu0 0.0
      %8772 = vmatpush1.msra.mxu0 0.0
      %8773 = vmatprep.subr.mxu0 0.0
      %8774 = vmatpush1.msra.mxu0 0.0
      %8775 = vmatprep.subr.mxu0 0.0
      %8776 = vmatpush1.msra.mxu0 0.0
      %8777 = vmatprep.subr.mxu0 0.0
      %8778 = vmatpush1.msra.mxu0 0.0
      %8779 = vmatprep.subr.mxu0 0.0
      %8780 = vmatpush1.msra.mxu0 0.0
      %8781 = vmatprep.subr.mxu0 0.0
      %8782 = vmatpush1.msra.mxu0 0.0
      %8783 = vmatprep.subr.mxu0 0.0
      %8784 = vmatpush1.msra.mxu0 %v8751
      %8785 = vmatprep.subr.mxu0 0.0
      %8786 = vmatpush2.msra.mxu0 0.0
      %8787 = vmatprep.subr.mxu0 0.0
      %8788 = vmatpush2.msra.mxu0 0.0
      %8789 = vmatprep.subr.mxu0 0.0
      %8790 = vmatpush2.msra.mxu0 0.0
      %8791 = vmatprep.subr.mxu0 0.0
      %8792 = vmatpush2.msra.mxu0 0.0
      %8793 = vmatprep.subr.mxu0 0.0
      %8794 = vmatpush2.msra.mxu0 0.0
      %8795 = vmatprep.subr.mxu0 0.0
      %8796 = vmatpush2.msra.mxu0 0.0
      %8797 = vmatprep.subr.mxu0 0.0
      %8798 = vmatpush2.msra.mxu0 0.0
      %8799 = vmatprep.subr.mxu0 0.0
      %8800 = vmatpush2.msra.mxu0 0.0
      %8801 = vmatprep.subr.mxu0 0.0
      %8802 = vmatpush2.msra.mxu0 0.0
      %8803 = vmatprep.subr.mxu0 0.0
      %8804 = vmatpush2.msra.mxu0 0.0
      %8805 = vmatprep.subr.mxu0 0.0
      %8806 = vmatpush2.msra.mxu0 0.0
      %8807 = vmatprep.subr.mxu0 0.0
      %8808 = vmatpush2.msra.mxu0 0.0
      %8809 = vmatprep.subr.mxu0 0.0
      %8810 = vmatpush2.msra.mxu0 0.0
      %8811 = vmatprep.subr.mxu0 0.0
      %8812 = vmatpush2.msra.mxu0 0.0
      %8813 = vmatprep.subr.mxu0 0.0
      %8814 = vmatpush2.msra.mxu0 0.0
      %8815 = vmatprep.subr.mxu0 0.0
      %8816 = vmatpush2.msra.mxu0 0.0
      %8817 = vmatprep.mubr.f32.mxu0 0.0
      %8818 = vmatmul.mubr.f32.gmra.mxu0 %v8746
      %v8819 = vpop.f32.mrf.mxu0
      %v8820 = vadd.f32 0.0, %v8819
      %v8821 = vpop.f32.mrf.mxu0
      %8822 = vmatprep.mubr.f32.mxu0 0.0
      %8823 = vmatmul.mubr.f32.gmra.mxu0 %v8749
      %v8824 = vpop.f32.mrf.mxu0
      %v8825 = vadd.f32 0.0, %v8824
      %v8826 = vpop.f32.mrf.mxu0
      %8827 = vdwg.mxu0
      %v8829 = vsel %vm1507, %v7668, 0
      %v8832 = vsel %vm1507, %v7669, 0
      %v8834 = vsel %vm1514, %v8739, 0
      %8836 = vmatprep.subr.mxu0 0.0
      %8837 = vmatpush1.msra.mxu0 0.0
      %8838 = vmatprep.subr.mxu0 0.0
      %8839 = vmatpush1.msra.mxu0 0.0
      %8840 = vmatprep.subr.mxu0 0.0
      %8841 = vmatpush1.msra.mxu0 0.0
      %8842 = vmatprep.subr.mxu0 0.0
      %8843 = vmatpush1.msra.mxu0 0.0
      %8844 = vmatprep.subr.mxu0 0.0
      %8845 = vmatpush1.msra.mxu0 0.0
      %8846 = vmatprep.subr.mxu0 0.0
      %8847 = vmatpush1.msra.mxu0 0.0
      %8848 = vmatprep.subr.mxu0 0.0
      %8849 = vmatpush1.msra.mxu0 0.0
      %8850 = vmatprep.subr.mxu0 0.0
      %8851 = vmatpush1.msra.mxu0 0.0
      %8852 = vmatprep.subr.mxu0 0.0
      %8853 = vmatpush1.msra.mxu0 0.0
      %8854 = vmatprep.subr.mxu0 0.0
      %8855 = vmatpush1.msra.mxu0 0.0
      %8856 = vmatprep.subr.mxu0 0.0
      %8857 = vmatpush1.msra.mxu0 0.0
      %8858 = vmatprep.subr.mxu0 0.0
      %8859 = vmatpush1.msra.mxu0 0.0
      %8860 = vmatprep.subr.mxu0 0.0
      %8861 = vmatpush1.msra.mxu0 0.0
      %8862 = vmatprep.subr.mxu0 0.0
      %8863 = vmatpush1.msra.mxu0 0.0
      %8864 = vmatprep.subr.mxu0 0.0
      %8865 = vmatpush1.msra.mxu0 0.0
      %8866 = vmatprep.subr.mxu0 0.0
      %8867 = vmatpush1.msra.mxu0 %v8834
      %8868 = vmatprep.subr.mxu0 0.0
      %8869 = vmatpush2.msra.mxu0 0.0
      %8870 = vmatprep.subr.mxu0 0.0
      %8871 = vmatpush2.msra.mxu0 0.0
      %8872 = vmatprep.subr.mxu0 0.0
      %8873 = vmatpush2.msra.mxu0 0.0
      %8874 = vmatprep.subr.mxu0 0.0
      %8875 = vmatpush2.msra.mxu0 0.0
      %8876 = vmatprep.subr.mxu0 0.0
      %8877 = vmatpush2.msra.mxu0 0.0
      %8878 = vmatprep.subr.mxu0 0.0
      %8879 = vmatpush2.msra.mxu0 0.0
      %8880 = vmatprep.subr.mxu0 0.0
      %8881 = vmatpush2.msra.mxu0 0.0
      %8882 = vmatprep.subr.mxu0 0.0
      %8883 = vmatpush2.msra.mxu0 0.0
      %8884 = vmatprep.subr.mxu0 0.0
      %8885 = vmatpush2.msra.mxu0 0.0
      %8886 = vmatprep.subr.mxu0 0.0
      %8887 = vmatpush2.msra.mxu0 0.0
      %8888 = vmatprep.subr.mxu0 0.0
      %8889 = vmatpush2.msra.mxu0 0.0
      %8890 = vmatprep.subr.mxu0 0.0
      %8891 = vmatpush2.msra.mxu0 0.0
      %8892 = vmatprep.subr.mxu0 0.0
      %8893 = vmatpush2.msra.mxu0 0.0
      %8894 = vmatprep.subr.mxu0 0.0
      %8895 = vmatpush2.msra.mxu0 0.0
      %8896 = vmatprep.subr.mxu0 0.0
      %8897 = vmatpush2.msra.mxu0 0.0
      %8898 = vmatprep.subr.mxu0 0.0
      %8899 = vmatpush2.msra.mxu0 0.0
      %8900 = vmatprep.mubr.f32.mxu0 0.0
      %8901 = vmatmul.mubr.f32.gmra.mxu0 %v8829
      %v8902 = vpop.f32.mrf.mxu0
      %v8903 = vadd.f32 %v8820, %v8902
      %v8904 = vpop.f32.mrf.mxu0
      %8905 = vmatprep.mubr.f32.mxu0 0.0
      %8906 = vmatmul.mubr.f32.gmra.mxu0 %v8832
      %v8907 = vpop.f32.mrf.mxu0
      %v8908 = vadd.f32 %v8825, %v8907
      %v8909 = vpop.f32.mrf.mxu0
      %8910 = vdwg.mxu0
      %vm8911 = vcmp.gt.f32.partialorder %v7670, 0.0
      %vm8912 = vcmp.gt.f32.partialorder %v7671, 0.0
      %8914 = vset.pattern.permute.xlu0 0
      %8915 = vperm.xlu0 %8914, %v8903
      %v8916 = vpop.permute.xlu0 %8915
      %8919 = vset.pattern.permute.xlu0 0
      %8920 = vperm.xlu0 %8919, %v8908
      %v8921 = vpop.permute.xlu0 %8920
      %v8923 = vsel %vm8911, %v8916, -1e+30
      %v8924 = vsel %vm8912, %v8921, -1e+30
      %v8925 = vsel %vm1507, %v8923, -inf
      %vm8926 = vcmask 25600
      %v8927 = vsel %vm8926, %v8924, -inf
      %v8928 = vmax.f32 %v8925, %v8927
      %v8929 = vrot.slane %v8928, 4
      %v8930 = vmax.f32 %v8928, %v8929
      %v8931 = vrot.slane %v8930, 2
      %v8932 = vmax.f32 %v8930, %v8931
      %v8933 = vrot.slane %v8932, 1
      %v8934 = vmax.f32 %v8932, %v8933
      %v8935 = vmul.f32 %v7670, %v8934
      %v8936 = vmul.f32 %v7671, %v8934
      %v8937 = vsel %vm1507, %v8935, 0.0
      %8938 = vadd.xlane.f32.xlu0 %v8937
      %v8939 = vpop.xlane.xlu0 %8938
      %v8940 = vsel %vm8926, %v8936, 0.0
      %8941 = vadd.xlane.f32.xlu0 %v8940
      %v8942 = vpop.xlane.xlu0 %8941
      %v8943 = vsub.f32 %v8903, %v8939
      %v8944 = vsub.f32 %v8908, %v8942
      %v8945 = vmul.f32 %v8943, 1.442695
      %v8946 = vpow.pop %v8945
      %v8947 = vmul.f32 %v8944, 1.442695
      %v8948 = vpow.pop %v8947
      %8950 = vset.pattern.permute.xlu0 0
      %8951 = vperm.xlu0 %8950, %v8946
      %v8952 = vpop.permute.xlu0 %8951
      %8955 = vset.pattern.permute.xlu0 0
      %8956 = vperm.xlu0 %8955, %v8948
      %v8957 = vpop.permute.xlu0 %8956
      %v8959 = vmul.f32 %v7670, %v8952
      %v8960 = vmul.f32 %v7671, %v8957
      %v8961 = vsel %vm1507, %v8959, 0.0
      %v8962 = vsel %vm8926, %v8960, 0.0
      %v8963 = vadd.f32 %v8961, %v8962
      %v8964 = vrot.slane %v8963, 4
      %v8965 = vadd.f32 %v8963, %v8964
      %v8966 = vrot.slane %v8965, 2
      %v8967 = vadd.f32 %v8965, %v8966
      %v8968 = vrot.slane %v8967, 1
      %v8969 = vadd.f32 %v8967, %v8968
      %v8970 = vmul.f32 %v7670, %v8969
      %v8971 = vmul.f32 %v7671, %v8969
      %v8972 = vsel %vm1507, %v8970, 0.0
      %8973 = vadd.xlane.f32.xlu0 %v8972
      %v8974 = vpop.xlane.xlu0 %8973
      %v8975 = vsel %vm8926, %v8971, 0.0
      %8976 = vadd.xlane.f32.xlu0 %v8975
      %v8977 = vpop.xlane.xlu0 %8976
      %v8978 = vmax.f32 %v8974, 1e-12
      %v8979 = vmax.f32 %v8977, 1e-12
      %v8980 = vrcp.pop %v8978
      %v8981 = vrcp.pop %v8979
      %v8982 = vmul.f32 %v8946, %v8980
      %v8983 = vmul.f32 %v8948, %v8981
      %v8984 = vadd.f32 %v8982, 0.5
      %v8985 = vadd.f32 %v8983, 0.5
      %vm8986 = vcmask 74752
      %v8987 = vsel %vm8986, %v7672, 0.0
      %8988 = vadd.xlane.f32.xlu0 %v8987
      %v8989 = vpop.xlane.xlu0 %8988
      %vm8990 = vcmask 80896
      %v8992 = vsel %vm8990, %v7672, 0
      %vm8994 = vcmask 1041408
      %v8996 = vsel %vm8994, %v8985, 0
      %8998 = vmatprep.subr.mxu0 0.0
      %8999 = vmatpush1.msra.mxu0 0.0
      %9000 = vmatprep.subr.mxu0 0.0
      %9001 = vmatpush1.msra.mxu0 0.0
      %9002 = vmatprep.subr.mxu0 0.0
      %9003 = vmatpush1.msra.mxu0 0.0
      %9004 = vmatprep.subr.mxu0 0.0
      %9005 = vmatpush1.msra.mxu0 0.0
      %9006 = vmatprep.subr.mxu0 0.0
      %9007 = vmatpush1.msra.mxu0 0.0
      %9008 = vmatprep.subr.mxu0 0.0
      %9009 = vmatpush1.msra.mxu0 0.0
      %9010 = vmatprep.subr.mxu0 0.0
      %9011 = vmatpush1.msra.mxu0 0.0
      %9012 = vmatprep.subr.mxu0 0.0
      %9013 = vmatpush1.msra.mxu0 0.0
      %9014 = vmatprep.subr.mxu0 0.0
      %9015 = vmatpush1.msra.mxu0 0.0
      %9016 = vmatprep.subr.mxu0 0.0
      %9017 = vmatpush1.msra.mxu0 0.0
      %9018 = vmatprep.subr.mxu0 0.0
      %9019 = vmatpush1.msra.mxu0 0.0
      %9020 = vmatprep.subr.mxu0 0.0
      %9021 = vmatpush1.msra.mxu0 0.0
      %9022 = vmatprep.subr.mxu0 0.0
      %9023 = vmatpush1.msra.mxu0 0.0
      %9024 = vmatprep.subr.mxu0 0.0
      %9025 = vmatpush1.msra.mxu0 0.0
      %9026 = vmatprep.subr.mxu0 0.0
      %9027 = vmatpush1.msra.mxu0 %v8996
      %9028 = vmatprep.subr.mxu0 0.0
      %9029 = vmatpush1.msra.mxu0 %v8984
      %9030 = vmatprep.subr.mxu0 0.0
      %9031 = vmatpush2.msra.mxu0 0.0
      %9032 = vmatprep.subr.mxu0 0.0
      %9033 = vmatpush2.msra.mxu0 0.0
      %9034 = vmatprep.subr.mxu0 0.0
      %9035 = vmatpush2.msra.mxu0 0.0
      %9036 = vmatprep.subr.mxu0 0.0
      %9037 = vmatpush2.msra.mxu0 0.0
      %9038 = vmatprep.subr.mxu0 0.0
      %9039 = vmatpush2.msra.mxu0 0.0
      %9040 = vmatprep.subr.mxu0 0.0
      %9041 = vmatpush2.msra.mxu0 0.0
      %9042 = vmatprep.subr.mxu0 0.0
      %9043 = vmatpush2.msra.mxu0 0.0
      %9044 = vmatprep.subr.mxu0 0.0
      %9045 = vmatpush2.msra.mxu0 0.0
      %9046 = vmatprep.subr.mxu0 0.0
      %9047 = vmatpush2.msra.mxu0 0.0
      %9048 = vmatprep.subr.mxu0 0.0
      %9049 = vmatpush2.msra.mxu0 0.0
      %9050 = vmatprep.subr.mxu0 0.0
      %9051 = vmatpush2.msra.mxu0 0.0
      %9052 = vmatprep.subr.mxu0 0.0
      %9053 = vmatpush2.msra.mxu0 0.0
      %9054 = vmatprep.subr.mxu0 0.0
      %9055 = vmatpush2.msra.mxu0 0.0
      %9056 = vmatprep.subr.mxu0 0.0
      %9057 = vmatpush2.msra.mxu0 0.0
      %9058 = vmatprep.subr.mxu0 0.0
      %9059 = vmatpush2.msra.mxu0 0.0
      %9060 = vmatprep.subr.mxu0 0.0
      %9061 = vmatpush2.msra.mxu0 0.0
      %9062 = vmatprep.mubr.f32.mxu0 0.0
      %9063 = vmatmul.mubr.f32.gmra.mxu0 %v8992
      %v9064 = vpop.f32.mrf.mxu0
      %v9065 = vadd.f32 0.0, %v9064
      %v9066 = vpop.f32.mrf.mxu0
      %9067 = vdwg.mxu0
      %vm9068 = vcmp.gt.f32.partialorder %v8989, 0.0
      %v9069 = vmax.f32 %v8989, 1.0
      %v9070 = vrcp.pop %v9069
      %v9071 = vmul.f32 %v9065, %v9070
      %v9072 = vsel %vm9068, %v9071, 0.5
      %v9073 = vsel %vm1507, %v5663, 0
      %v9076 = vsel %vm1514, %v8671, 0
      %9078 = vmatprep.subr.mxu0 0.0
      %9079 = vmatpush1.msra.mxu0 0.0
      %9080 = vmatprep.subr.mxu0 0.0
      %9081 = vmatpush1.msra.mxu0 0.0
      %9082 = vmatprep.subr.mxu0 0.0
      %9083 = vmatpush1.msra.mxu0 0.0
      %9084 = vmatprep.subr.mxu0 0.0
      %9085 = vmatpush1.msra.mxu0 0.0
      %9086 = vmatprep.subr.mxu0 0.0
      %9087 = vmatpush1.msra.mxu0 0.0
      %9088 = vmatprep.subr.mxu0 0.0
      %9089 = vmatpush1.msra.mxu0 0.0
      %9090 = vmatprep.subr.mxu0 0.0
      %9091 = vmatpush1.msra.mxu0 0.0
      %9092 = vmatprep.subr.mxu0 0.0
      %9093 = vmatpush1.msra.mxu0 0.0
      %9094 = vmatprep.subr.mxu0 0.0
      %9095 = vmatpush1.msra.mxu0 0.0
      %9096 = vmatprep.subr.mxu0 0.0
      %9097 = vmatpush1.msra.mxu0 0.0
      %9098 = vmatprep.subr.mxu0 0.0
      %9099 = vmatpush1.msra.mxu0 0.0
      %9100 = vmatprep.subr.mxu0 0.0
      %9101 = vmatpush1.msra.mxu0 0.0
      %9102 = vmatprep.subr.mxu0 0.0
      %9103 = vmatpush1.msra.mxu0 0.0
      %9104 = vmatprep.subr.mxu0 0.0
      %9105 = vmatpush1.msra.mxu0 0.0
      %9106 = vmatprep.subr.mxu0 0.0
      %9107 = vmatpush1.msra.mxu0 0.0
      %9108 = vmatprep.subr.mxu0 0.0
      %9109 = vmatpush1.msra.mxu0 %v9076
      %9110 = vmatprep.subr.mxu0 0.0
      %9111 = vmatpush2.msra.mxu0 0.0
      %9112 = vmatprep.subr.mxu0 0.0
      %9113 = vmatpush2.msra.mxu0 0.0
      %9114 = vmatprep.subr.mxu0 0.0
      %9115 = vmatpush2.msra.mxu0 0.0
      %9116 = vmatprep.subr.mxu0 0.0
      %9117 = vmatpush2.msra.mxu0 0.0
      %9118 = vmatprep.subr.mxu0 0.0
      %9119 = vmatpush2.msra.mxu0 0.0
      %9120 = vmatprep.subr.mxu0 0.0
      %9121 = vmatpush2.msra.mxu0 0.0
      %9122 = vmatprep.subr.mxu0 0.0
      %9123 = vmatpush2.msra.mxu0 0.0
      %9124 = vmatprep.subr.mxu0 0.0
      %9125 = vmatpush2.msra.mxu0 0.0
      %9126 = vmatprep.subr.mxu0 0.0
      %9127 = vmatpush2.msra.mxu0 0.0
      %9128 = vmatprep.subr.mxu0 0.0
      %9129 = vmatpush2.msra.mxu0 0.0
      %9130 = vmatprep.subr.mxu0 0.0
      %9131 = vmatpush2.msra.mxu0 0.0
      %9132 = vmatprep.subr.mxu0 0.0
      %9133 = vmatpush2.msra.mxu0 0.0
      %9134 = vmatprep.subr.mxu0 0.0
      %9135 = vmatpush2.msra.mxu0 0.0
      %9136 = vmatprep.subr.mxu0 0.0
      %9137 = vmatpush2.msra.mxu0 0.0
      %9138 = vmatprep.subr.mxu0 0.0
      %9139 = vmatpush2.msra.mxu0 0.0
      %9140 = vmatprep.subr.mxu0 0.0
      %9141 = vmatpush2.msra.mxu0 0.0
      %9142 = vmatprep.mubr.f32.mxu0 0.0
      %9143 = vmatmul.mubr.f32.gmra.mxu0 %v9073
      %v9144 = vpop.f32.mrf.mxu0
      %v9145 = vadd.f32 0.0, %v9144
      %v9146 = vpop.f32.mrf.mxu0
      %9147 = vdwg.mxu0
      %9149 = vset.pattern.permute.xlu0 0
      %9150 = vperm.xlu0 %9149, %v9072
      %v9151 = vpop.permute.xlu0 %9150
      %v9153 = vmul.f32 %v9145, %v9151
      %v9154 = vsel %vm8994, %v9153, 0.0
      %v9155 = vrot.slane %v9154, 4
      %v9156 = vadd.f32 %v9154, %v9155
      %v9157 = vrot.slane %v9156, 2
      %v9158 = vadd.f32 %v9156, %v9157
      %v9159 = vrot.slane %v9158, 1
      %v9160 = vadd.f32 %v9158, %v9159
      %v9161 = vrcp.pop 2.0
      %v9162 = vmul.f32 %v9160, %v9161
      %v9163 = vld [vmem:[%s33] sm:$0xff]
      %v9164 = vld [vmem:[%s33 + $0x8] sm:$0xff]
      %v9165 = vld [vmem:[%s33 + $0x10] sm:$0xff]
      %v9166 = vld [vmem:[%s33 + $0x18] sm:$0xff]
      %v9167 = vld [vmem:[%s33 + $0x20] sm:$0xff]
      %v9168 = vld [vmem:[%s33 + $0x28] sm:$0xff]
      %v9169 = vld [vmem:[%s33 + $0x30] sm:$0xff]
      %v9170 = vld [vmem:[%s33 + $0x38] sm:$0xff]
      %v9171 = vld [vmem:[%s33 + $0x40] sm:$0xff]
      %v9172 = vld [vmem:[%s33 + $0x48] sm:$0xff]
      %v9173 = vld [vmem:[%s33 + $0x50] sm:$0xff]
      %v9174 = vld [vmem:[%s33 + $0x58] sm:$0xff]
      %v9175 = vld [vmem:[%s33 + $0x60] sm:$0xff]
      %v9176 = vld [vmem:[%s33 + $0x68] sm:$0xff]
      %v9177 = vld [vmem:[%s33 + $0x70] sm:$0xff]
      %v9178 = vld [vmem:[%s33 + $0x78] sm:$0xff]
      %v9179 = vld [vmem:[%s35] sm:$0x1]
      %9180 = vmatprep.subr.mxu0 0.0
      %9181 = vmatpush1.msra.mxu0 %v9178
      %9182 = vmatprep.subr.mxu0 0.0
      %9183 = vmatpush1.msra.mxu0 %v9177
      %9184 = vmatprep.subr.mxu0 0.0
      %9185 = vmatpush1.msra.mxu0 %v9176
      %9186 = vmatprep.subr.mxu0 0.0
      %9187 = vmatpush1.msra.mxu0 %v9175
      %9188 = vmatprep.subr.mxu0 0.0
      %9189 = vmatpush1.msra.mxu0 %v9174
      %9190 = vmatprep.subr.mxu0 0.0
      %9191 = vmatpush1.msra.mxu0 %v9173
      %9192 = vmatprep.subr.mxu0 0.0
      %9193 = vmatpush1.msra.mxu0 %v9172
      %9194 = vmatprep.subr.mxu0 0.0
      %9195 = vmatpush1.msra.mxu0 %v9171
      %9196 = vmatprep.subr.mxu0 0.0
      %9197 = vmatpush1.msra.mxu0 %v9170
      %9198 = vmatprep.subr.mxu0 0.0
      %9199 = vmatpush1.msra.mxu0 %v9169
      %9200 = vmatprep.subr.mxu0 0.0
      %9201 = vmatpush1.msra.mxu0 %v9168
      %9202 = vmatprep.subr.mxu0 0.0
      %9203 = vmatpush1.msra.mxu0 %v9167
      %9204 = vmatprep.subr.mxu0 0.0
      %9205 = vmatpush1.msra.mxu0 %v9166
      %9206 = vmatprep.subr.mxu0 0.0
      %9207 = vmatpush1.msra.mxu0 %v9165
      %9208 = vmatprep.subr.mxu0 0.0
      %9209 = vmatpush1.msra.mxu0 %v9164
      %9210 = vmatprep.subr.mxu0 0.0
      %9211 = vmatpush1.msra.mxu0 %v9163
      %9212 = vmatprep.subr.mxu0 0.0
      %9213 = vmatpush2.msra.mxu0 0.0
      %9214 = vmatprep.subr.mxu0 0.0
      %9215 = vmatpush2.msra.mxu0 0.0
      %9216 = vmatprep.subr.mxu0 0.0
      %9217 = vmatpush2.msra.mxu0 0.0
      %9218 = vmatprep.subr.mxu0 0.0
      %9219 = vmatpush2.msra.mxu0 0.0
      %9220 = vmatprep.subr.mxu0 0.0
      %9221 = vmatpush2.msra.mxu0 0.0
      %9222 = vmatprep.subr.mxu0 0.0
      %9223 = vmatpush2.msra.mxu0 0.0
      %9224 = vmatprep.subr.mxu0 0.0
      %9225 = vmatpush2.msra.mxu0 0.0
      %9226 = vmatprep.subr.mxu0 0.0
      %9227 = vmatpush2.msra.mxu0 0.0
      %9228 = vmatprep.subr.mxu0 0.0
      %9229 = vmatpush2.msra.mxu0 0.0
      %9230 = vmatprep.subr.mxu0 0.0
      %9231 = vmatpush2.msra.mxu0 0.0
      %9232 = vmatprep.subr.mxu0 0.0
      %9233 = vmatpush2.msra.mxu0 0.0
      %9234 = vmatprep.subr.mxu0 0.0
      %9235 = vmatpush2.msra.mxu0 0.0
      %9236 = vmatprep.subr.mxu0 0.0
      %9237 = vmatpush2.msra.mxu0 0.0
      %9238 = vmatprep.subr.mxu0 0.0
      %9239 = vmatpush2.msra.mxu0 0.0
      %9240 = vmatprep.subr.mxu0 0.0
      %9241 = vmatpush2.msra.mxu0 0.0
      %9242 = vmatprep.subr.mxu0 0.0
      %9243 = vmatpush2.msra.mxu0 0.0
      %9244 = vmatprep.mubr.f32.mxu0 0.0
      %9245 = vmatmul.mubr.f32.gmra.mxu0 %v9162
      %v9246 = vpop.f32.mrf.mxu0
      %v9247 = vadd.f32 %v9179, %v9246
      %v9248 = vpop.f32.mrf.mxu0
      %9249 = vdwg.mxu0
      %v9250 = vlaneseq
      %v9251 = vshrl.u32 %v9250, 7
      %v9252 = vsub.s32 0, %v9251
      %v9253 = vrot.slane %v9247, %v9252
      %9254 = vst [vmem:[%s1264] sm:$0xff] %v9253
      %p9255 = scmp.lt.s32.totalorder %s72, 1
      %s9256 = scalar_select %p9255, %s72, 1
      %s9257 = smul.addr %s9256, 8
      %s9258 = scalar_lea.vmem %s61, %s9257
      // Predicated region
      $region141: #{forward.1} parent=139 // pred_check
        %p9259 = pneg %p815
      $region142: #{forward.1} parent=139 // pred_check_branch
        %9261 = sbr.rel (%p9259) target = $region144
      $region143: #{forward.1} parent=139 // pred_region
        _
      $region144: #{forward.1} parent=139 // pred_fallthru
        _
    $region140: #{forward.1} parent=5 // pred_fallthru
      _
    %p9262 = scmp.le.s32.totalorder 2, %s67
    // Predicated region
    $region145: #{forward.1} parent=5 // pred_check
      %p9263 = pneg %p9262
    $region146: #{forward.1} parent=5 // pred_check_branch
      %9265 = sbr.rel (%p9263) target = $region148
    $region147: #{forward.1} parent=5 // pred_region
      %s9266 = ssub.s32 %s67, 2
      // Predicated region
      $region149: #{forward.1} parent=147 // pred_check
        %p9267 = pneg %p821
      $region150: #{forward.1} parent=147 // pred_check_branch
        %9269 = sbr.rel (%p9267) target = $region152
      $region151: #{forward.1} parent=147 // pred_region
        %p9270 = scmp.lt.s32.totalorder %s73, 1
        %s9271 = scalar_select %p9270, %s73, 1
        %s9272 = smul.addr %s9271, 8
        %s9273 = scalar_lea.vmem %s61, %s9272
      $region152: #{forward.1} parent=147 // pred_fallthru
        _
    $region148: #{forward.1} parent=5 // pred_fallthru
      _
  $region6: #{forward.1} parent=0 // loop_footer
    %s71 = sadd.s32 1, %s67
  $region7: #{forward.1} parent=0 // loop_footer_branch
    %66 = sbr.rel target = $region3
  $region8: #{forward.1} parent=0 // loop_exit
    _

</llo_original>
